<compile_context>
chip_gen: v6e
topology: v6e:2x2x1
jax: 0.10.0
libtpu: 0.0.40
codegen_flags: <defaults>
</compile_context>

<pallas_src>
import functools
import math

import jax
import jax.numpy as jnp
from jax import lax
from jax.experimental import pallas as pl
from jax.experimental.pallas import tpu as pltpu

_PREC = lax.Precision.HIGHEST  # accurate f32 MXU passes (decays get exponentiated)


def _wkv6_kernel(k_ref, v_ref, r_ref, td_ref, tf_ref, s0_ref,
                 y_ref, snew_ref, st_ref):
    # One grid step = one lane-packed group of P heads x one chunk of C timesteps.
    #   k/v/r/td_ref : [C, P*N]     (P heads packed along lanes)
    #   tf_ref       : [1, P*N]
    #   s0_ref       : [1, P, N, N] initial state, value-major  (S^T: s0[i, j])
    #   y_ref        : [C, P*N]
    #   snew_ref     : [1, P, N, N] final state (value-major), written at last chunk
    #   st_ref       : VMEM [P, N, N] f32 running state, persists across time chunks
    C = k_ref.shape[0]
    P, N = s0_ref.shape[1], s0_ref.shape[2]
    tc = pl.program_id(1)

    @pl.when(tc == 0)
    def _init():
        st_ref[...] = s0_ref[0].astype(jnp.float32)

    f32 = jnp.float32
    kp = k_ref[...].astype(f32)
    vp = v_ref[...].astype(f32)
    rp = r_ref[...].astype(f32)
    lg = jnp.log(td_ref[...].astype(f32))            # td in (0,1) -> log-decay < 0
    tfp = tf_ref[...].astype(f32)                     # [1, P*N]

    # Cumulative log-decay inside the chunk via triangular-mask matmuls (MXU).
    row = lax.broadcasted_iota(jnp.int32, (C, C), 0)
    col = lax.broadcasted_iota(jnp.int32, (C, C), 1)
    incl = (col <= row).astype(f32)                   # inclusive prefix-sum matrix
    strict = col < row                                # strictly-causal mask (u < t)

    cum_in = jnp.dot(incl, lg, precision=_PREC, preferred_element_type=f32)  # [C, P*N]
    cum_ex = cum_in - lg                              # exclusive prefix sum
    cum_end = cum_in[C - 1:C, :]                      # [1, P*N] total chunk log-decay

    # Hoisted, lane-packed (full 128-lane) per-chunk factors.
    rw = rp * jnp.exp(cum_ex)                         # r * decay(chunk start -> t)
    ki = kp * jnp.exp(-cum_in)                        # k / inclusive decay (intra-chunk)
    kd = kp * jnp.exp(cum_end - cum_in)               # k * decay(t -> chunk end), <= 1
    wend = jnp.exp(cum_end)                           # [1, P*N] per-j total decay
    rtfk = rp * tfp * kp                              # "bonus" (current-token) term

    for h in range(P):                                # static unroll over packed heads
        sl = slice(h * N, (h + 1) * N)
        rw_h, ki_h, kd_h, v_h = rw[:, sl], ki[:, sl], kd[:, sl], vp[:, sl]
        s_h = st_ref[h]                               # [N, N] value-major (i, j)

        # Diagonal (time_first bonus) term: y_diag[t, i] = (sum_j r*tf*k)[t] * v[t, i]
        coeff = jnp.sum(rtfk[:, sl], axis=-1, keepdims=True)                    # [C, 1]

        # Inter-chunk: y_inter[t, i] = sum_j rw[t, j] * S[j, i]   (S stored as S^T)
        y_inter = lax.dot_general(rw_h, s_h, (((1,), (1,)), ((), ())),
                                  precision=_PREC, preferred_element_type=f32)  # [C, N]

        # Intra-chunk: A[t, u] = sum_j rw[t, j] * ki[u, j], strictly causal.
        a = lax.dot_general(rw_h, ki_h, (((1,), (1,)), ((), ())),
                            precision=_PREC, preferred_element_type=f32)        # [C, C]
        a = jnp.where(strict, a, 0.0)
        y_intra = jnp.dot(a, v_h, precision=_PREC, preferred_element_type=f32)  # [C, N]

        y_ref[:, sl] = (coeff * v_h + y_inter + y_intra).astype(y_ref.dtype)

        # State update: S'[i, j] = wend[j] * S[i, j] + sum_u v[u, i] * kd[u, j]
        st_ref[h] = wend[:, sl] * s_h + lax.dot_general(
            v_h, kd_h, (((0,), (0,)), ((), ())),
            precision=_PREC, preferred_element_type=f32)

    @pl.when(tc == pl.num_programs(1) - 1)
    def _finalize():
        snew_ref[0] = st_ref[...].astype(snew_ref.dtype)


def _pick_time_chunk(T, max_chunk):
    # Largest chunk <= max_chunk that divides T and keeps sublane (8) alignment.
    for c in range(min(max_chunk, T), 0, -1):
        if T % c == 0 and (c % 8 == 0 or c == T):
            return c
    return T


@functools.partial(jax.jit, static_argnames=("chunk",))
def wkv6(k, v, r, state, tf, td, *, chunk=32):
    """k, v, r, td: [T,H,N]; state: [H,N,N]; tf: [H,N] -> (y [T,H,N], state' [H,N,N])."""
    T, H, N = k.shape
    # Pack P heads per lane block so the block's last dim is a multiple of 128.
    if N % 128 == 0:
        P = 1
    else:
        P = 128 // math.gcd(N, 128)
        if H % P != 0:
            P = H          # fallback: single full-width lane block (always legal)
    G = H // P
    CT = _pick_time_chunk(T, chunk)
    LB = P * N

    # Native [T, H, N] layout: merging (H, N) is a free reshape -> no transposes of the
    # big sequence tensors (saves 5 full HBM passes vs. the previous version).
    kf, vf, rf, tdf = (x.reshape(T, H * N) for x in (k, v, r, td))
    tff = tf.reshape(1, H * N)
    # State carried value-major (S^T) inside the kernel; [H,64,64] transpose is tiny.
    s0 = jnp.swapaxes(state, -1, -2).reshape(G, P, N, N)

    seq_spec = pl.BlockSpec((CT, LB), lambda g, t: (t, g))
    st_spec = pl.BlockSpec((1, P, N, N), lambda g, t: (g, 0, 0, 0))

    y, s_new = pl.pallas_call(
        _wkv6_kernel,
        out_shape=(jax.ShapeDtypeStruct((T, H * N), k.dtype),
                   jax.ShapeDtypeStruct((G, P, N, N), state.dtype)),
        grid_spec=pltpu.PrefetchScalarGridSpec(
            num_scalar_prefetch=0,
            grid=(G, T // CT),                    # heads parallel, time sequential (last)
            in_specs=[seq_spec, seq_spec, seq_spec, seq_spec,
                      pl.BlockSpec((1, LB), lambda g, t: (0, g)),
                      st_spec],
            out_specs=(seq_spec, st_spec),
            scratch_shapes=[pltpu.VMEM((P, N, N), jnp.float32)]),
        compiler_params=pltpu.CompilerParams(
            dimension_semantics=("parallel", "arbitrary")),
    )(kf, vf, rf, tdf, tff, s0)

    y = y.reshape(T, H, N)
    s_new = jnp.swapaxes(s_new.reshape(H, N, N), -1, -2)
    return y, s_new


def wkv6_ref(k, v, r, state, tf, td):
    """Pure-JAX sequential reference for the same recurrence."""
    def step(s, inp):
        kt, vt, rt, wt = inp                                   # each [H, N]
        a = kt[:, :, None] * vt[:, None, :]                    # [H, N, N]
        y = jnp.einsum('hj,hji->hi', rt, tf[:, :, None] * a + s)
        s = wt[:, :, None] * s + a
        return s, y
    s_new, ys = lax.scan(step, state, (k, v, r, td))
    return ys, s_new


if __name__ == "__main__":
    # Small shapes consistent with the module (head_size fixed at 64); 4 heads, 128 steps
    # -> grid (2 head-pairs, 4 time chunks of 32).
    T, H, N = 128, 4, 64
    key = jax.random.PRNGKey(0)
    kk, kv, kr, ks, ktf, ktd = jax.random.split(key, 6)

    k = jax.random.normal(kk, (T, H, N), jnp.float32)
    v = jax.random.normal(kv, (T, H, N), jnp.float32)
    r = jax.random.normal(kr, (T, H, N), jnp.float32)
    state = jax.random.normal(ks, (H, N, N), jnp.float32)
    # self.tf = torch.rand(n_head, head_size) -> uniform(0,1), deterministic here
    tf = jax.random.uniform(ktf, (H, N), jnp.float32)
    # time-decay already in multiplicative form (0, 1)
    td = jax.random.uniform(ktd, (T, H, N), jnp.float32)

    y, s_new = wkv6(k, v, r, state, tf, td)
    jax.block_until_ready((y, s_new))

    y_ref, s_ref = wkv6_ref(k, v, r, state, tf, td)
    assert jnp.allclose(y, y_ref, rtol=5e-3, atol=5e-3), "output mismatch"
    assert jnp.allclose(s_new, s_ref, rtol=5e-3, atol=5e-3), "state mismatch"

    print("KERNEL_OK")
</pallas_src>

<mosaic_0001>
module attributes {stable_mosaic.version = 11 : i64} {
  func.func @_wkv6_kernel(%arg0: i32, %arg1: i32, %arg2: memref<32x128xf32, #tpu.memory_space<vmem>>, %arg3: memref<32x128xf32, #tpu.memory_space<vmem>>, %arg4: memref<32x128xf32, #tpu.memory_space<vmem>>, %arg5: memref<32x128xf32, #tpu.memory_space<vmem>>, %arg6: memref<1x128xf32, #tpu.memory_space<vmem>>, %arg7: memref<1x2x64x64xf32, #tpu.memory_space<vmem>>, %arg8: memref<32x128xf32, #tpu.memory_space<vmem>>, %arg9: memref<1x2x64x64xf32, #tpu.memory_space<vmem>>, %arg10: memref<2x64x64xf32, #tpu.memory_space<vmem>>) attributes {dimension_semantics = [#tpu.dimension_semantics<parallel>, #tpu.dimension_semantics<arbitrary>], iteration_bounds = array<i64: 2, 4>, scalar_prefetch = 0 : i64, scratch_operands = 1 : i64, tpu.core_type = #tpu.core_type<tc>, window_params = [{transform_indices = @transform_0, window_bounds = array<i64: 32, 128>}, {transform_indices = @transform_1, window_bounds = array<i64: 32, 128>}, {transform_indices = @transform_2, window_bounds = array<i64: 32, 128>}, {transform_indices = @transform_3, window_bounds = array<i64: 32, 128>}, {transform_indices = @transform_4, window_bounds = array<i64: 1, 128>}, {transform_indices = @transform_5, window_bounds = array<i64: 1, 2, 64, 64>}, {transform_indices = @transform_6, window_bounds = array<i64: 32, 128>}, {transform_indices = @transform_7, window_bounds = array<i64: 1, 2, 64, 64>}]} {
    %c0_i32 = arith.constant 0 : i32
    %0 = arith.cmpi eq, %arg1, %c0_i32 : i32
    %1 = arith.extui %0 : i1 to i32
    %c0_i32_0 = arith.constant 0 : i32
    %2 = arith.cmpi ne, %1, %c0_i32_0 : i32
    scf.if %2 {
      %c0_38 = arith.constant 0 : index
      %c0_39 = arith.constant 0 : index
      %c0_40 = arith.constant 0 : index
      %c0_41 = arith.constant 0 : index
      %89 = vector.load %arg7[%c0_38, %c0_39, %c0_40, %c0_41] : memref<1x2x64x64xf32, #tpu.memory_space<vmem>>, vector<1x2x64x64xf32>
      %90 = vector.shape_cast %89 : vector<1x2x64x64xf32> to vector<2x64x64xf32>
      %c0_42 = arith.constant 0 : index
      %c0_43 = arith.constant 0 : index
      %c0_44 = arith.constant 0 : index
      %91 = vector.load %arg10[%c0_42, %c0_43, %c0_44] : memref<2x64x64xf32, #tpu.memory_space<vmem>>, vector<2x64x64xf32>
      tpu.vector_store %arg10[%c0_42, %c0_43, %c0_44], %90 {strides = array<i32>} : memref<2x64x64xf32, #tpu.memory_space<vmem>>, vector<2x64x64xf32>,
    } else {
    }
    %c0 = arith.constant 0 : index
    %c0_1 = arith.constant 0 : index
    %3 = vector.load %arg2[%c0, %c0_1] : memref<32x128xf32, #tpu.memory_space<vmem>>, vector<32x128xf32>
    %c0_2 = arith.constant 0 : index
    %c0_3 = arith.constant 0 : index
    %4 = vector.load %arg3[%c0_2, %c0_3] : memref<32x128xf32, #tpu.memory_space<vmem>>, vector<32x128xf32>
    %c0_4 = arith.constant 0 : index
    %c0_5 = arith.constant 0 : index
    %5 = vector.load %arg4[%c0_4, %c0_5] : memref<32x128xf32, #tpu.memory_space<vmem>>, vector<32x128xf32>
    %c0_6 = arith.constant 0 : index
    %c0_7 = arith.constant 0 : index
    %6 = vector.load %arg5[%c0_6, %c0_7] : memref<32x128xf32, #tpu.memory_space<vmem>>, vector<32x128xf32>
    %7 = math.log %6 : vector<32x128xf32>
    %c0_8 = arith.constant 0 : index
    %c0_9 = arith.constant 0 : index
    %8 = vector.load %arg6[%c0_8, %c0_9] : memref<1x128xf32, #tpu.memory_space<vmem>>, vector<1x128xf32>
    %9 = tpu.iota {dimensions = array<i32: 0>} : vector<32x32xi32>
    %10 = tpu.iota {dimensions = array<i32: 1>} : vector<32x32xi32>
    %11 = arith.cmpi sle, %10, %9 : vector<32x32xi32>
    %12 = arith.extui %11 : vector<32x32xi1> to vector<32x32xi32>
    %13 = arith.sitofp %12 : vector<32x32xi32> to vector<32x32xf32>
    %14 = arith.cmpi slt, %10, %9 : vector<32x32xi32>
    %cst = arith.constant dense<0.000000e+00> : vector<32x128xf32>
    %15 = tpu.matmul %13, %7, %cst {dimension_numbers = #tpu.dot_dimension_numbers<[1], [0], [0], [1], [0, 0, 1, 1], [], []>, precision = #tpu.contract_precision<fp32>} : vector<32x32xf32>, vector<32x128xf32>, vector<32x128xf32> -> vector<32x128xf32>
    %16 = arith.subf %15, %7 : vector<32x128xf32>
    %17 = vector.extract_strided_slice %15 {offsets = [31, 0], sizes = [1, 128], strides = [1, 1]} : vector<32x128xf32> to vector<1x128xf32>
    %18 = math.exp %16 : vector<32x128xf32>
    %19 = arith.mulf %5, %18 : vector<32x128xf32>
    %cst_10 = arith.constant 0.000000e+00 : f32
    %20 = vector.broadcast %cst_10 : f32 to vector<32x128xf32>
    %21 = arith.subf %20, %15 : vector<32x128xf32>
    %22 = math.exp %21 : vector<32x128xf32>
    %23 = arith.mulf %3, %22 : vector<32x128xf32>
    %24 = vector.broadcast %17 : vector<1x128xf32> to vector<32x128xf32>
    %25 = arith.subf %24, %15 : vector<32x128xf32>
    %26 = math.exp %25 : vector<32x128xf32>
    %27 = arith.mulf %3, %26 : vector<32x128xf32>
    %28 = math.exp %17 : vector<1x128xf32>
    %29 = vector.broadcast %8 : vector<1x128xf32> to vector<32x128xf32>
    %30 = arith.mulf %5, %29 : vector<32x128xf32>
    %31 = arith.mulf %30, %3 : vector<32x128xf32>
    %32 = vector.extract_strided_slice %19 {offsets = [0, 0], sizes = [32, 64], strides = [1, 1]} : vector<32x128xf32> to vector<32x64xf32>
    %33 = vector.extract_strided_slice %23 {offsets = [0, 0], sizes = [32, 64], strides = [1, 1]} : vector<32x128xf32> to vector<32x64xf32>
    %34 = vector.extract_strided_slice %27 {offsets = [0, 0], sizes = [32, 64], strides = [1, 1]} : vector<32x128xf32> to vector<32x64xf32>
    %35 = vector.extract_strided_slice %4 {offsets = [0, 0], sizes = [32, 64], strides = [1, 1]} : vector<32x128xf32> to vector<32x64xf32>
    %c0_11 = arith.constant 0 : index
    %c0_12 = arith.constant 0 : index
    %c0_13 = arith.constant 0 : index
    %36 = vector.load %arg10[%c0_11, %c0_12, %c0_13] : memref<2x64x64xf32, #tpu.memory_space<vmem>>, vector<1x64x64xf32>
    %37 = vector.shape_cast %36 : vector<1x64x64xf32> to vector<64x64xf32>
    %38 = vector.extract_strided_slice %31 {offsets = [0, 0], sizes = [32, 64], strides = [1, 1]} : vector<32x128xf32> to vector<32x64xf32>
    %cst_14 = arith.constant dense<0.000000e+00> : vector<32xf32>
    %39 = vector.multi_reduction <add>, %38, %cst_14 [1] : vector<32x64xf32> to vector<32xf32>
    %40 = vector.shape_cast %39 : vector<32xf32> to vector<32x1xf32>
    %cst_15 = arith.constant dense<0.000000e+00> : vector<32x64xf32>
    %41 = tpu.matmul %32, %37, %cst_15 {dimension_numbers = #tpu.dot_dimension_numbers<[1], [1], [0], [0], [0, 0, 1, 0], [], []>, precision = #tpu.contract_precision<fp32>} : vector<32x64xf32>, vector<64x64xf32>, vector<32x64xf32> -> vector<32x64xf32>
    %cst_16 = arith.constant dense<0.000000e+00> : vector<32x32xf32>
    %42 = tpu.matmul %32, %33, %cst_16 {dimension_numbers = #tpu.dot_dimension_numbers<[1], [1], [0], [0], [0, 0, 1, 0], [], []>, precision = #tpu.contract_precision<fp32>} : vector<32x64xf32>, vector<32x64xf32>, vector<32x32xf32> -> vector<32x32xf32>
    %cst_17 = arith.constant 0.000000e+00 : f32
    %43 = vector.broadcast %cst_17 : f32 to vector<32x32xf32>
    %44 = arith.select %14, %42, %43 : vector<32x32xi1>, vector<32x32xf32>
    %cst_18 = arith.constant dense<0.000000e+00> : vector<32x64xf32>
    %45 = tpu.matmul %44, %35, %cst_18 {dimension_numbers = #tpu.dot_dimension_numbers<[1], [0], [0], [1], [0, 0, 1, 1], [], []>, precision = #tpu.contract_precision<fp32>} : vector<32x32xf32>, vector<32x64xf32>, vector<32x64xf32> -> vector<32x64xf32>
    %46 = vector.broadcast %40 : vector<32x1xf32> to vector<32x64xf32>
    %47 = arith.mulf %46, %35 : vector<32x64xf32>
    %48 = arith.addf %47, %41 : vector<32x64xf32>
    %49 = arith.addf %48, %45 : vector<32x64xf32>
    %c0_19 = arith.constant 0 : index
    %c0_20 = arith.constant 0 : index
    %50 = vector.load %arg8[%c0_19, %c0_20] : memref<32x128xf32, #tpu.memory_space<vmem>>, vector<32x64xf32>
    tpu.vector_store %arg8[%c0_19, %c0_20], %49 {strides = array<i32>} : memref<32x128xf32, #tpu.memory_space<vmem>>, vector<32x64xf32>,
    %51 = vector.extract_strided_slice %28 {offsets = [0, 0], sizes = [1, 64], strides = [1, 1]} : vector<1x128xf32> to vector<1x64xf32>
    %52 = vector.broadcast %51 : vector<1x64xf32> to vector<64x64xf32>
    %53 = arith.mulf %52, %37 : vector<64x64xf32>
    %cst_21 = arith.constant dense<0.000000e+00> : vector<64x64xf32>
    %54 = tpu.matmul %35, %34, %cst_21 {dimension_numbers = #tpu.dot_dimension_numbers<[0], [0], [1], [1], [0, 1, 1, 1], [], []>, precision = #tpu.contract_precision<fp32>} : vector<32x64xf32>, vector<32x64xf32>, vector<64x64xf32> -> vector<64x64xf32>
    %55 = arith.addf %53, %54 : vector<64x64xf32>
    %c0_22 = arith.constant 0 : index
    %c0_23 = arith.constant 0 : index
    %c0_24 = arith.constant 0 : index
    %56 = vector.load %arg10[%c0_22, %c0_23, %c0_24] : memref<2x64x64xf32, #tpu.memory_space<vmem>>, vector<1x64x64xf32>
    %57 = vector.shape_cast %56 : vector<1x64x64xf32> to vector<64x64xf32>
    %58 = vector.shape_cast %55 : vector<64x64xf32> to vector<1x64x64xf32>
    tpu.vector_store %arg10[%c0_22, %c0_23, %c0_24], %58 {strides = array<i32>} : memref<2x64x64xf32, #tpu.memory_space<vmem>>, vector<1x64x64xf32>,
    %59 = vector.extract_strided_slice %19 {offsets = [0, 64], sizes = [32, 64], strides = [1, 1]} : vector<32x128xf32> to vector<32x64xf32>
    %60 = vector.extract_strided_slice %23 {offsets = [0, 64], sizes = [32, 64], strides = [1, 1]} : vector<32x128xf32> to vector<32x64xf32>
    %61 = vector.extract_strided_slice %27 {offsets = [0, 64], sizes = [32, 64], strides = [1, 1]} : vector<32x128xf32> to vector<32x64xf32>
    %62 = vector.extract_strided_slice %4 {offsets = [0, 64], sizes = [32, 64], strides = [1, 1]} : vector<32x128xf32> to vector<32x64xf32>
    %c1 = arith.constant 1 : index
    %c0_25 = arith.constant 0 : index
    %c0_26 = arith.constant 0 : index
    %63 = vector.load %arg10[%c1, %c0_25, %c0_26] : memref<2x64x64xf32, #tpu.memory_space<vmem>>, vector<1x64x64xf32>
    %64 = vector.shape_cast %63 : vector<1x64x64xf32> to vector<64x64xf32>
    %65 = vector.extract_strided_slice %31 {offsets = [0, 64], sizes = [32, 64], strides = [1, 1]} : vector<32x128xf32> to vector<32x64xf32>
    %cst_27 = arith.constant dense<0.000000e+00> : vector<32xf32>
    %66 = vector.multi_reduction <add>, %65, %cst_27 [1] : vector<32x64xf32> to vector<32xf32>
    %67 = vector.shape_cast %66 : vector<32xf32> to vector<32x1xf32>
    %cst_28 = arith.constant dense<0.000000e+00> : vector<32x64xf32>
    %68 = tpu.matmul %59, %64, %cst_28 {dimension_numbers = #tpu.dot_dimension_numbers<[1], [1], [0], [0], [0, 0, 1, 0], [], []>, precision = #tpu.contract_precision<fp32>} : vector<32x64xf32>, vector<64x64xf32>, vector<32x64xf32> -> vector<32x64xf32>
    %cst_29 = arith.constant dense<0.000000e+00> : vector<32x32xf32>
    %69 = tpu.matmul %59, %60, %cst_29 {dimension_numbers = #tpu.dot_dimension_numbers<[1], [1], [0], [0], [0, 0, 1, 0], [], []>, precision = #tpu.contract_precision<fp32>} : vector<32x64xf32>, vector<32x64xf32>, vector<32x32xf32> -> vector<32x32xf32>
    %cst_30 = arith.constant 0.000000e+00 : f32
    %70 = vector.broadcast %cst_30 : f32 to vector<32x32xf32>
    %71 = arith.select %14, %69, %70 : vector<32x32xi1>, vector<32x32xf32>
    %cst_31 = arith.constant dense<0.000000e+00> : vector<32x64xf32>
    %72 = tpu.matmul %71, %62, %cst_31 {dimension_numbers = #tpu.dot_dimension_numbers<[1], [0], [0], [1], [0, 0, 1, 1], [], []>, precision = #tpu.contract_precision<fp32>} : vector<32x32xf32>, vector<32x64xf32>, vector<32x64xf32> -> vector<32x64xf32>
    %73 = vector.broadcast %67 : vector<32x1xf32> to vector<32x64xf32>
    %74 = arith.mulf %73, %62 : vector<32x64xf32>
    %75 = arith.addf %74, %68 : vector<32x64xf32>
    %76 = arith.addf %75, %72 : vector<32x64xf32>
    %c0_32 = arith.constant 0 : index
    %c64 = arith.constant 64 : index
    %77 = vector.load %arg8[%c0_32, %c64] : memref<32x128xf32, #tpu.memory_space<vmem>>, vector<32x64xf32>
    tpu.vector_store %arg8[%c0_32, %c64], %76 {strides = array<i32>} : memref<32x128xf32, #tpu.memory_space<vmem>>, vector<32x64xf32>,
    %78 = vector.extract_strided_slice %28 {offsets = [0, 64], sizes = [1, 64], strides = [1, 1]} : vector<1x128xf32> to vector<1x64xf32>
    %79 = vector.broadcast %78 : vector<1x64xf32> to vector<64x64xf32>
    %80 = arith.mulf %79, %64 : vector<64x64xf32>
    %cst_33 = arith.constant dense<0.000000e+00> : vector<64x64xf32>
    %81 = tpu.matmul %62, %61, %cst_33 {dimension_numbers = #tpu.dot_dimension_numbers<[0], [0], [1], [1], [0, 1, 1, 1], [], []>, precision = #tpu.contract_precision<fp32>} : vector<32x64xf32>, vector<32x64xf32>, vector<64x64xf32> -> vector<64x64xf32>
    %82 = arith.addf %80, %81 : vector<64x64xf32>
    %c1_34 = arith.constant 1 : index
    %c0_35 = arith.constant 0 : index
    %c0_36 = arith.constant 0 : index
    %83 = vector.load %arg10[%c1_34, %c0_35, %c0_36] : memref<2x64x64xf32, #tpu.memory_space<vmem>>, vector<1x64x64xf32>
    %84 = vector.shape_cast %83 : vector<1x64x64xf32> to vector<64x64xf32>
    %85 = vector.shape_cast %82 : vector<64x64xf32> to vector<1x64x64xf32>
    tpu.vector_store %arg10[%c1_34, %c0_35, %c0_36], %85 {strides = array<i32>} : memref<2x64x64xf32, #tpu.memory_space<vmem>>, vector<1x64x64xf32>,
    %c3_i32 = arith.constant 3 : i32
    %86 = arith.cmpi eq, %arg1, %c3_i32 : i32
    %87 = arith.extui %86 : i1 to i32
    %c0_i32_37 = arith.constant 0 : i32
    %88 = arith.cmpi ne, %87, %c0_i32_37 : i32
    scf.if %88 {
      %c0_38 = arith.constant 0 : index
      %c0_39 = arith.constant 0 : index
      %c0_40 = arith.constant 0 : index
      %89 = vector.load %arg10[%c0_38, %c0_39, %c0_40] : memref<2x64x64xf32, #tpu.memory_space<vmem>>, vector<2x64x64xf32>
      %c0_41 = arith.constant 0 : index
      %c0_42 = arith.constant 0 : index
      %c0_43 = arith.constant 0 : index
      %c0_44 = arith.constant 0 : index
      %90 = vector.load %arg9[%c0_41, %c0_42, %c0_43, %c0_44] : memref<1x2x64x64xf32, #tpu.memory_space<vmem>>, vector<1x2x64x64xf32>
      %91 = vector.shape_cast %90 : vector<1x2x64x64xf32> to vector<2x64x64xf32>
      %92 = vector.shape_cast %89 : vector<2x64x64xf32> to vector<1x2x64x64xf32>
      tpu.vector_store %arg9[%c0_41, %c0_42, %c0_43, %c0_44], %92 {strides = array<i32>} : memref<1x2x64x64xf32, #tpu.memory_space<vmem>>, vector<1x2x64x64xf32>,
    } else {
    }
    return
  }
  func.func @transform_0(%arg0: i32, %arg1: i32) -> (i32, i32) {
    %c0_i32 = arith.constant 0 : i32
    return %arg1, %arg0 : i32, i32
  }
  func.func @transform_1(%arg0: i32, %arg1: i32) -> (i32, i32) {
    %c0_i32 = arith.constant 0 : i32
    return %arg1, %arg0 : i32, i32
  }
  func.func @transform_2(%arg0: i32, %arg1: i32) -> (i32, i32) {
    %c0_i32 = arith.constant 0 : i32
    return %arg1, %arg0 : i32, i32
  }
  func.func @transform_3(%arg0: i32, %arg1: i32) -> (i32, i32) {
    %c0_i32 = arith.constant 0 : i32
    return %arg1, %arg0 : i32, i32
  }
  func.func @transform_4(%arg0: i32, %arg1: i32) -> (i32, i32) {
    %c0_i32 = arith.constant 0 : i32
    %c0_i32_0 = arith.constant 0 : i32
    return %c0_i32, %arg0 : i32, i32
  }
  func.func @transform_5(%arg0: i32, %arg1: i32) -> (i32, i32, i32, i32) {
    %c0_i32 = arith.constant 0 : i32
    %c0_i32_0 = arith.constant 0 : i32
    %c0_i32_1 = arith.constant 0 : i32
    %c0_i32_2 = arith.constant 0 : i32
    return %arg0, %c0_i32, %c0_i32_0, %c0_i32_1 : i32, i32, i32, i32
  }
  func.func @transform_6(%arg0: i32, %arg1: i32) -> (i32, i32) {
    %c0_i32 = arith.constant 0 : i32
    return %arg1, %arg0 : i32, i32
  }
  func.func @transform_7(%arg0: i32, %arg1: i32) -> (i32, i32, i32, i32) {
    %c0_i32 = arith.constant 0 : i32
    %c0_i32_0 = arith.constant 0 : i32
    %c0_i32_1 = arith.constant 0 : i32
    %c0_i32_2 = arith.constant 0 : i32
    return %arg0, %c0_i32, %c0_i32_0, %c0_i32_1 : i32, i32, i32, i32
  }
}

</mosaic_0001>

<llo_original>
// kernel: wkv6.1
$region0: #{wkv6.1}
  #allocation0 [shape = 'u32[]', space=smem, size = 0x4, offset = 0x4, fixed_abs, tag = 'smem constant byte address 0x4 - core index']
  #allocation1 [shape = 'u32[144,128]{1,0:T(1,128)}', space=vmem, size = 0x12000, scoped, tag = 'internal scratch']
  #allocation2 [shape = 'f32[2,64,64]{2,1,0:T(8,128)}', space=vmem, size = 0x10000, scoped, tag = 'scratch operand']
  %s0 = inlined_call_operand.vmem [shape: f32[128,256], index: 0, kind: input, shape index: {}]
  %s1 = inlined_call_operand.vmem [shape: f32[128,256], index: 1, kind: input, shape index: {}]
  %s2 = inlined_call_operand.vmem [shape: f32[128,256], index: 2, kind: input, shape index: {}]
  %s3 = inlined_call_operand.vmem [shape: f32[128,256], index: 3, kind: input, shape index: {}]
  %s4 = inlined_call_operand.vmem [shape: f32[1,256], index: 4, kind: input, shape index: {}]
  %s5 = inlined_call_operand.vmem [shape: f32[2,2,64,64], index: 5, kind: input, shape index: {}]
  %s6 = inlined_call_operand.vmem [shape: f32[128,256], index: 6, kind: output, shape index: {0}]
  %s7 = inlined_call_operand.vmem [shape: f32[2,2,64,64], index: 7, kind: output, shape index: {1}]
  %8 = xla_tuple %s6, %s7
  %s9 = sld [smem:[#allocation0]]
  $region259: #{wkv6.1} parent=0
    _
  %s11 = ssub.s32 1, %s9
  %s12 = scalar_select 0, %s11, %s9
  $region1: #{wkv6.1} parent=0
    #allocation3 [shape = 'u8[32768]{0}', space=vmem, size = 0x8000, scoped, tag = 'input window, operand 0']
    #allocation4 [shape = 'u8[32768]{0}', space=vmem, size = 0x8000, scoped, tag = 'input window, operand 1']
    #allocation5 [shape = 'u8[32768]{0}', space=vmem, size = 0x8000, scoped, tag = 'input window, operand 2']
    #allocation6 [shape = 'u8[32768]{0}', space=vmem, size = 0x8000, scoped, tag = 'input window, operand 3']
    #allocation7 [shape = 'u8[32768]{0}', space=vmem, size = 0x8000, scoped, tag = 'output window, operand 0']
    loop: start=0, step=1, limit=10
    $region2: #{wkv6.1} parent=1 // loop_pre_header
      _
    $region3: #{wkv6.1} parent=1 // loop_header
      %s14 = sphi 0, %s18
      %p15 = scmp.ge.s32.totalorder %s14, 10
      %s21 = sphi 0, %s33
      %s22 = sphi 0, %s29
      %s23 = sphi 0, %s21
      %s24 = sphi 0, %s22
      %s25 = sphi 0, %s23
      %s26 = sphi 0, %s24
      %s38 = sphi 0, %s40
      %s41 = sphi 0, %s38
      %s42 = sphi 0, %s41
      %s58 = sphi 0, %s42
      %s66 = sphi 0, %s68
      %s69 = sphi 0, %s66
      %s70 = sphi 0, %s69
      %s86 = sphi 0, %s70
      %s94 = sphi 0, %s96
      %s97 = sphi 0, %s94
      %s98 = sphi 0, %s97
      %s114 = sphi 0, %s98
      %s122 = sphi 0, %s124
      %s125 = sphi 0, %s122
      %s126 = sphi 0, %s125
      %s142 = sphi 0, %s126
      %s148 = sphi 0, %s150
      %s151 = sphi 0, %s148
      %s152 = sphi 0, %s151
      %s168 = sphi 0, %s152
      %s174 = sphi 0, %s176
      %s177 = sphi 0, %s174
      %s178 = sphi 0, %s177
      %s194 = sphi 0, %s178
      %s202 = sphi 0, %s204
      %s205 = sphi 0, %s202
      %s206 = sphi 0, %s205
      %s222 = sphi 0, %s206
      %s228 = sphi 0, %s230
      %s231 = sphi 0, %s228
      %s232 = sphi 0, %s231
      %s248 = sphi 0, %s232
    $region4: #{wkv6.1} parent=1 // loop_header_branch
      %17 = sbr.rel (%p15) target = $region8
    $region5: #{wkv6.1} parent=1 // loop_body
      %s19 = ssub.s32 %s14, 1
      %s20 = ssub.s32 %s14, 2
      %s27 = sadd.s32 1, %s22
      %p28 = scmp.ge.s32.totalorder %s27, 4
      %s29 = scalar_select %p28, 0, %s27
      %s30 = sadd.s32 1, %s21
      %s31 = scalar_select %p28, %s30, %s21
      %p32 = scmp.ge.s32.totalorder %s31, 2
      %s33 = scalar_select %p32, 0, %s31
      %s34 = ssub.s32 %s22, %s29
      %s35 = ssub.s32 %s21, %s33
      %s36 = sor.u32 %s34, %s35
      %p37 = scmp.eq.s32.totalorder %s36, 0
      %s39 = sadd.s32 %s38, 1
      %s40 = scalar_select %p37, %s38, %s39
      %p43 = pneg %p37
      %p44 = scmp.eq.s32.totalorder %s14, 7
      %p45 = por %p43, %p44
      %p46 = scmp.ne.s32.totalorder %s38, %s41
      %p47 = scmp.eq.s32.totalorder %s14, 0
      %p48 = por %p46, %p47
      %p49 = scmp.ne.s32.totalorder %s38, %s41
      %p50 = scmp.eq.s32.totalorder %s19, 7
      %p51 = por %p49, %p50
      %p52 = scmp.ne.s32.totalorder %s41, %s42
      %p53 = scmp.eq.s32.totalorder %s19, 0
      %p54 = por %p52, %p53
      %p55 = scmp.ne.s32.totalorder %s41, %s42
      %p56 = scmp.eq.s32.totalorder %s20, 7
      %p57 = por %p55, %p56
      %p59 = scmp.ne.s32.totalorder %s42, %s58
      %p60 = scmp.eq.s32.totalorder %s20, 0
      %p61 = por %p59, %p60
      %s62 = ssub.s32 %s22, %s29
      %s63 = ssub.s32 %s21, %s33
      %s64 = sor.u32 %s62, %s63
      %p65 = scmp.eq.s32.totalorder %s64, 0
      %s67 = sadd.s32 %s66, 1
      %s68 = scalar_select %p65, %s66, %s67
      %p71 = pneg %p65
      %p72 = scmp.eq.s32.totalorder %s14, 7
      %p73 = por %p71, %p72
      %p74 = scmp.ne.s32.totalorder %s66, %s69
      %p75 = scmp.eq.s32.totalorder %s14, 0
      %p76 = por %p74, %p75
      %p77 = scmp.ne.s32.totalorder %s66, %s69
      %p78 = scmp.eq.s32.totalorder %s19, 7
      %p79 = por %p77, %p78
      %p80 = scmp.ne.s32.totalorder %s69, %s70
      %p81 = scmp.eq.s32.totalorder %s19, 0
      %p82 = por %p80, %p81
      %p83 = scmp.ne.s32.totalorder %s69, %s70
      %p84 = scmp.eq.s32.totalorder %s20, 7
      %p85 = por %p83, %p84
      %p87 = scmp.ne.s32.totalorder %s70, %s86
      %p88 = scmp.eq.s32.totalorder %s20, 0
      %p89 = por %p87, %p88
      %s90 = ssub.s32 %s22, %s29
      %s91 = ssub.s32 %s21, %s33
      %s92 = sor.u32 %s90, %s91
      %p93 = scmp.eq.s32.totalorder %s92, 0
      %s95 = sadd.s32 %s94, 1
      %s96 = scalar_select %p93, %s94, %s95
      %p99 = pneg %p93
      %p100 = scmp.eq.s32.totalorder %s14, 7
      %p101 = por %p99, %p100
      %p102 = scmp.ne.s32.totalorder %s94, %s97
      %p103 = scmp.eq.s32.totalorder %s14, 0
      %p104 = por %p102, %p103
      %p105 = scmp.ne.s32.totalorder %s94, %s97
      %p106 = scmp.eq.s32.totalorder %s19, 7
      %p107 = por %p105, %p106
      %p108 = scmp.ne.s32.totalorder %s97, %s98
      %p109 = scmp.eq.s32.totalorder %s19, 0
      %p110 = por %p108, %p109
      %p111 = scmp.ne.s32.totalorder %s97, %s98
      %p112 = scmp.eq.s32.totalorder %s20, 7
      %p113 = por %p111, %p112
      %p115 = scmp.ne.s32.totalorder %s98, %s114
      %p116 = scmp.eq.s32.totalorder %s20, 0
      %p117 = por %p115, %p116
      %s118 = ssub.s32 %s22, %s29
      %s119 = ssub.s32 %s21, %s33
      %s120 = sor.u32 %s118, %s119
      %p121 = scmp.eq.s32.totalorder %s120, 0
      %s123 = sadd.s32 %s122, 1
      %s124 = scalar_select %p121, %s122, %s123
      %p127 = pneg %p121
      %p128 = scmp.eq.s32.totalorder %s14, 7
      %p129 = por %p127, %p128
      %p130 = scmp.ne.s32.totalorder %s122, %s125
      %p131 = scmp.eq.s32.totalorder %s14, 0
      %p132 = por %p130, %p131
      %p133 = scmp.ne.s32.totalorder %s122, %s125
      %p134 = scmp.eq.s32.totalorder %s19, 7
      %p135 = por %p133, %p134
      %p136 = scmp.ne.s32.totalorder %s125, %s126
      %p137 = scmp.eq.s32.totalorder %s19, 0
      %p138 = por %p136, %p137
      %p139 = scmp.ne.s32.totalorder %s125, %s126
      %p140 = scmp.eq.s32.totalorder %s20, 7
      %p141 = por %p139, %p140
      %p143 = scmp.ne.s32.totalorder %s126, %s142
      %p144 = scmp.eq.s32.totalorder %s20, 0
      %p145 = por %p143, %p144
      %s146 = ssub.s32 %s21, %s33
      %p147 = scmp.eq.s32.totalorder %s146, 0
      %s149 = sadd.s32 %s148, 1
      %s150 = scalar_select %p147, %s148, %s149
      %p153 = pneg %p147
      %p154 = scmp.eq.s32.totalorder %s14, 7
      %p155 = por %p153, %p154
      %p156 = scmp.ne.s32.totalorder %s148, %s151
      %p157 = scmp.eq.s32.totalorder %s14, 0
      %p158 = por %p156, %p157
      %p159 = scmp.ne.s32.totalorder %s148, %s151
      %p160 = scmp.eq.s32.totalorder %s19, 7
      %p161 = por %p159, %p160
      %p162 = scmp.ne.s32.totalorder %s151, %s152
      %p163 = scmp.eq.s32.totalorder %s19, 0
      %p164 = por %p162, %p163
      %p165 = scmp.ne.s32.totalorder %s151, %s152
      %p166 = scmp.eq.s32.totalorder %s20, 7
      %p167 = por %p165, %p166
      %p169 = scmp.ne.s32.totalorder %s152, %s168
      %p170 = scmp.eq.s32.totalorder %s20, 0
      %p171 = por %p169, %p170
      %s172 = ssub.s32 %s21, %s33
      %p173 = scmp.eq.s32.totalorder %s172, 0
      %s175 = sadd.s32 %s174, 1
      %s176 = scalar_select %p173, %s174, %s175
      %p179 = pneg %p173
      %p180 = scmp.eq.s32.totalorder %s14, 7
      %p181 = por %p179, %p180
      %p182 = scmp.ne.s32.totalorder %s174, %s177
      %p183 = scmp.eq.s32.totalorder %s14, 0
      %p184 = por %p182, %p183
      %p185 = scmp.ne.s32.totalorder %s174, %s177
      %p186 = scmp.eq.s32.totalorder %s19, 7
      %p187 = por %p185, %p186
      %p188 = scmp.ne.s32.totalorder %s177, %s178
      %p189 = scmp.eq.s32.totalorder %s19, 0
      %p190 = por %p188, %p189
      %p191 = scmp.ne.s32.totalorder %s177, %s178
      %p192 = scmp.eq.s32.totalorder %s20, 7
      %p193 = por %p191, %p192
      %p195 = scmp.ne.s32.totalorder %s178, %s194
      %p196 = scmp.eq.s32.totalorder %s20, 0
      %p197 = por %p195, %p196
      %s198 = ssub.s32 %s22, %s29
      %s199 = ssub.s32 %s21, %s33
      %s200 = sor.u32 %s198, %s199
      %p201 = scmp.eq.s32.totalorder %s200, 0
      %s203 = sadd.s32 %s202, 1
      %s204 = scalar_select %p201, %s202, %s203
      %p207 = pneg %p201
      %p208 = scmp.eq.s32.totalorder %s14, 7
      %p209 = por %p207, %p208
      %p210 = scmp.ne.s32.totalorder %s202, %s205
      %p211 = scmp.eq.s32.totalorder %s14, 0
      %p212 = por %p210, %p211
      %p213 = scmp.ne.s32.totalorder %s202, %s205
      %p214 = scmp.eq.s32.totalorder %s19, 7
      %p215 = por %p213, %p214
      %p216 = scmp.ne.s32.totalorder %s205, %s206
      %p217 = scmp.eq.s32.totalorder %s19, 0
      %p218 = por %p216, %p217
      %p219 = scmp.ne.s32.totalorder %s205, %s206
      %p220 = scmp.eq.s32.totalorder %s20, 7
      %p221 = por %p219, %p220
      %p223 = scmp.ne.s32.totalorder %s206, %s222
      %p224 = scmp.eq.s32.totalorder %s20, 0
      %p225 = por %p223, %p224
      %s226 = ssub.s32 %s21, %s33
      %p227 = scmp.eq.s32.totalorder %s226, 0
      %s229 = sadd.s32 %s228, 1
      %s230 = scalar_select %p227, %s228, %s229
      %p233 = pneg %p227
      %p234 = scmp.eq.s32.totalorder %s14, 7
      %p235 = por %p233, %p234
      %p236 = scmp.ne.s32.totalorder %s228, %s231
      %p237 = scmp.eq.s32.totalorder %s14, 0
      %p238 = por %p236, %p237
      %p239 = scmp.ne.s32.totalorder %s228, %s231
      %p240 = scmp.eq.s32.totalorder %s19, 7
      %p241 = por %p239, %p240
      %p242 = scmp.ne.s32.totalorder %s231, %s232
      %p243 = scmp.eq.s32.totalorder %s19, 0
      %p244 = por %p242, %p243
      %p245 = scmp.ne.s32.totalorder %s231, %s232
      %p246 = scmp.eq.s32.totalorder %s20, 7
      %p247 = por %p245, %p246
      %p249 = scmp.ne.s32.totalorder %s232, %s248
      %p250 = scmp.eq.s32.totalorder %s20, 0
      %p251 = por %p249, %p250
      %p252 = scmp.le.s32.totalorder 1, %s14
      %p253 = scmp.lt.s32.totalorder %s14, 9
      %p254 = pnand %p252, %p253
      %p255 = pneg %p254
      // Predicated region
      $region9: #{wkv6.1} parent=5 // pred_check
        _
      $region10: #{wkv6.1} parent=5 // pred_check_branch
        %257 = sbr.rel (%p254) target = $region12
      $region11: #{wkv6.1} parent=5 // pred_region
        %s258 = ssub.s32 %s14, 1
      $region12: #{wkv6.1} parent=5 // pred_fallthru
        _
      %p259 = scmp.lt.s32.totalorder %s14, 8
      // Predicated region
      $region13: #{wkv6.1} parent=5 // pred_check
        %p260 = pneg %p259
      $region14: #{wkv6.1} parent=5 // pred_check_branch
        %262 = sbr.rel (%p260) target = $region16
      $region15: #{wkv6.1} parent=5 // pred_region
        // Predicated region
        $region17: #{wkv6.1} parent=15 // pred_check
          %p263 = pneg %p48
        $region18: #{wkv6.1} parent=15 // pred_check_branch
          %265 = sbr.rel (%p263) target = $region20
        $region19: #{wkv6.1} parent=15 // pred_region
          %s266 = sand.u32 %s38, 1
          %s267 = sand.u32 %s38, 1
          %s268 = smul.addr %s267, 32
          %s269 = scalar_lea.vmem [#allocation3], %s268
          %s270 = smul.u32 4, %s22
          %s271 = smul.addr %s270, 2
          %s272 = sadd.s32 %s21, %s271
          %s273 = smul.addr %s272, 8
          %s274 = scalar_lea.vmem %s0, %s273
          // Predicated region
          $region21: #{wkv6.1} parent=19 // pred_check
            _
          $region22: #{wkv6.1} parent=19 // pred_check_branch
            %276 = sbr.rel (0) target = $region24
          $region23: #{wkv6.1} parent=19 // pred_region
            // Predicated region
            $region25: #{wkv6.1} parent=23 // pred_check
              _
            $region26: #{wkv6.1} parent=23 // pred_check_branch
              %278 = sbr.rel (0) target = $region28
            $region27: #{wkv6.1} parent=23 // pred_region
              // Predicated region
              $region40: #{wkv6.1} parent=27 // pred_check
                _
              $region41: #{wkv6.1} parent=27 // pred_check_branch
                %300 = sbr.rel (0) target = $region43
              $region42: #{wkv6.1} parent=27 // pred_region
                loop: start=0, step=1, limit=1
                $region44: #{wkv6.1} parent=42 // loop_pre_header
                  _
                $region45: #{wkv6.1} parent=42 // loop_header
                  %s302 = sphi 0, %s306
                  %p303 = scmp.ge.s32.totalorder %s302, 1
                  %s307 = sphi %s274, %s274
                  %s308 = sphi %s269, %s269
                $region46: #{wkv6.1} parent=42 // loop_header_branch
                  %305 = sbr.rel (%p303) target = $region50
                $region47: #{wkv6.1} parent=42 // loop_body
                  %v309 = vld [vmem:[%s307] sm:$0xff]
                  %310 = vst [vmem:[%s308] sm:$0xff] %v309
                  %v311 = vld [vmem:[%s307 + $0x10] sm:$0xff]
                  %312 = vst [vmem:[%s308 + $0x8] sm:$0xff] %v311
                  %v313 = vld [vmem:[%s307 + $0x20] sm:$0xff]
                  %314 = vst [vmem:[%s308 + $0x10] sm:$0xff] %v313
                  %v315 = vld [vmem:[%s307 + $0x30] sm:$0xff]
                  %316 = vst [vmem:[%s308 + $0x18] sm:$0xff] %v315
                $region48: #{wkv6.1} parent=42 // loop_footer
                  %s306 = sadd.s32 1, %s302
                $region49: #{wkv6.1} parent=42 // loop_footer_branch
                  %301 = sbr.rel target = $region45
                $region50: #{wkv6.1} parent=42 // loop_exit
                  _
              $region43: #{wkv6.1} parent=27 // pred_fallthru
                _
              // Predicated region
              $region51: #{wkv6.1} parent=27 // pred_check
                _
              $region52: #{wkv6.1} parent=27 // pred_check_branch
                %318 = sbr.rel target = $region54
              $region53: #{wkv6.1} parent=27 // pred_region
                _
              $region54: #{wkv6.1} parent=27 // pred_fallthru
                _
            $region28: #{wkv6.1} parent=23 // pred_fallthru
              _
            // Predicated region
            $region29: #{wkv6.1} parent=23 // pred_check
              _
            $region30: #{wkv6.1} parent=23 // pred_check_branch
              %280 = sbr.rel target = $region32
            $region31: #{wkv6.1} parent=23 // pred_region
              %s282 = ssub.s32 256, 1
              loop: start=0, step=1, limit=1
              $region33: #{wkv6.1} parent=31 // loop_pre_header
                _
              $region34: #{wkv6.1} parent=31 // loop_header
                %s284 = sphi 0, %s288
                %p285 = scmp.ge.s32.totalorder %s284, 1
                %s289 = sphi %s274, %s274
                %s290 = sphi %s269, %s269
              $region35: #{wkv6.1} parent=31 // loop_header_branch
                %287 = sbr.rel (%p285) target = $region39
              $region36: #{wkv6.1} parent=31 // loop_body
                %v291 = vld [vmem:[%s289] sm:%s282]
                %292 = vst [vmem:[%s290] sm:%s282] %v291
                %v293 = vld [vmem:[%s289 + $0x10] sm:%s282]
                %294 = vst [vmem:[%s290 + $0x8] sm:%s282] %v293
                %v295 = vld [vmem:[%s289 + $0x20] sm:%s282]
                %296 = vst [vmem:[%s290 + $0x10] sm:%s282] %v295
                %v297 = vld [vmem:[%s289 + $0x30] sm:%s282]
                %298 = vst [vmem:[%s290 + $0x18] sm:%s282] %v297
              $region37: #{wkv6.1} parent=31 // loop_footer
                %s288 = sadd.s32 1, %s284
              $region38: #{wkv6.1} parent=31 // loop_footer_branch
                %283 = sbr.rel target = $region34
              $region39: #{wkv6.1} parent=31 // loop_exit
                _
            $region32: #{wkv6.1} parent=23 // pred_fallthru
              _
          $region24: #{wkv6.1} parent=19 // pred_fallthru
            _
          %319 = vnop
        $region20: #{wkv6.1} parent=15 // pred_fallthru
          _
        // Predicated region
        $region55: #{wkv6.1} parent=15 // pred_check
          %p320 = pneg %p76
        $region56: #{wkv6.1} parent=15 // pred_check_branch
          %322 = sbr.rel (%p320) target = $region58
        $region57: #{wkv6.1} parent=15 // pred_region
          %s323 = sand.u32 %s66, 1
          %s324 = sand.u32 %s66, 1
          %s325 = smul.addr %s324, 32
          %s326 = scalar_lea.vmem [#allocation4], %s325
          %s327 = smul.u32 4, %s22
          %s328 = smul.addr %s327, 2
          %s329 = sadd.s32 %s21, %s328
          %s330 = smul.addr %s329, 8
          %s331 = scalar_lea.vmem %s1, %s330
          // Predicated region
          $region59: #{wkv6.1} parent=57 // pred_check
            _
          $region60: #{wkv6.1} parent=57 // pred_check_branch
            %333 = sbr.rel (0) target = $region62
          $region61: #{wkv6.1} parent=57 // pred_region
            // Predicated region
            $region63: #{wkv6.1} parent=61 // pred_check
              _
            $region64: #{wkv6.1} parent=61 // pred_check_branch
              %335 = sbr.rel (0) target = $region66
            $region65: #{wkv6.1} parent=61 // pred_region
              // Predicated region
              $region78: #{wkv6.1} parent=65 // pred_check
                _
              $region79: #{wkv6.1} parent=65 // pred_check_branch
                %357 = sbr.rel (0) target = $region81
              $region80: #{wkv6.1} parent=65 // pred_region
                loop: start=0, step=1, limit=1
                $region82: #{wkv6.1} parent=80 // loop_pre_header
                  _
                $region83: #{wkv6.1} parent=80 // loop_header
                  %s359 = sphi 0, %s363
                  %p360 = scmp.ge.s32.totalorder %s359, 1
                  %s364 = sphi %s331, %s331
                  %s365 = sphi %s326, %s326
                $region84: #{wkv6.1} parent=80 // loop_header_branch
                  %362 = sbr.rel (%p360) target = $region88
                $region85: #{wkv6.1} parent=80 // loop_body
                  %v366 = vld [vmem:[%s364] sm:$0xff]
                  %367 = vst [vmem:[%s365] sm:$0xff] %v366
                  %v368 = vld [vmem:[%s364 + $0x10] sm:$0xff]
                  %369 = vst [vmem:[%s365 + $0x8] sm:$0xff] %v368
                  %v370 = vld [vmem:[%s364 + $0x20] sm:$0xff]
                  %371 = vst [vmem:[%s365 + $0x10] sm:$0xff] %v370
                  %v372 = vld [vmem:[%s364 + $0x30] sm:$0xff]
                  %373 = vst [vmem:[%s365 + $0x18] sm:$0xff] %v372
                $region86: #{wkv6.1} parent=80 // loop_footer
                  %s363 = sadd.s32 1, %s359
                $region87: #{wkv6.1} parent=80 // loop_footer_branch
                  %358 = sbr.rel target = $region83
                $region88: #{wkv6.1} parent=80 // loop_exit
                  _
              $region81: #{wkv6.1} parent=65 // pred_fallthru
                _
              // Predicated region
              $region89: #{wkv6.1} parent=65 // pred_check
                _
              $region90: #{wkv6.1} parent=65 // pred_check_branch
                %375 = sbr.rel target = $region92
              $region91: #{wkv6.1} parent=65 // pred_region
                _
              $region92: #{wkv6.1} parent=65 // pred_fallthru
                _
            $region66: #{wkv6.1} parent=61 // pred_fallthru
              _
            // Predicated region
            $region67: #{wkv6.1} parent=61 // pred_check
              _
            $region68: #{wkv6.1} parent=61 // pred_check_branch
              %337 = sbr.rel target = $region70
            $region69: #{wkv6.1} parent=61 // pred_region
              %s339 = ssub.s32 256, 1
              loop: start=0, step=1, limit=1
              $region71: #{wkv6.1} parent=69 // loop_pre_header
                _
              $region72: #{wkv6.1} parent=69 // loop_header
                %s341 = sphi 0, %s345
                %p342 = scmp.ge.s32.totalorder %s341, 1
                %s346 = sphi %s331, %s331
                %s347 = sphi %s326, %s326
              $region73: #{wkv6.1} parent=69 // loop_header_branch
                %344 = sbr.rel (%p342) target = $region77
              $region74: #{wkv6.1} parent=69 // loop_body
                %v348 = vld [vmem:[%s346] sm:%s339]
                %349 = vst [vmem:[%s347] sm:%s339] %v348
                %v350 = vld [vmem:[%s346 + $0x10] sm:%s339]
                %351 = vst [vmem:[%s347 + $0x8] sm:%s339] %v350
                %v352 = vld [vmem:[%s346 + $0x20] sm:%s339]
                %353 = vst [vmem:[%s347 + $0x10] sm:%s339] %v352
                %v354 = vld [vmem:[%s346 + $0x30] sm:%s339]
                %355 = vst [vmem:[%s347 + $0x18] sm:%s339] %v354
              $region75: #{wkv6.1} parent=69 // loop_footer
                %s345 = sadd.s32 1, %s341
              $region76: #{wkv6.1} parent=69 // loop_footer_branch
                %340 = sbr.rel target = $region72
              $region77: #{wkv6.1} parent=69 // loop_exit
                _
            $region70: #{wkv6.1} parent=61 // pred_fallthru
              _
          $region62: #{wkv6.1} parent=57 // pred_fallthru
            _
          %376 = vnop
        $region58: #{wkv6.1} parent=15 // pred_fallthru
          _
        // Predicated region
        $region93: #{wkv6.1} parent=15 // pred_check
          %p377 = pneg %p104
        $region94: #{wkv6.1} parent=15 // pred_check_branch
          %379 = sbr.rel (%p377) target = $region96
        $region95: #{wkv6.1} parent=15 // pred_region
          %s380 = sand.u32 %s94, 1
          %s381 = sand.u32 %s94, 1
          %s382 = smul.addr %s381, 32
          %s383 = scalar_lea.vmem [#allocation5], %s382
          %s384 = smul.u32 4, %s22
          %s385 = smul.addr %s384, 2
          %s386 = sadd.s32 %s21, %s385
          %s387 = smul.addr %s386, 8
          %s388 = scalar_lea.vmem %s2, %s387
          // Predicated region
          $region97: #{wkv6.1} parent=95 // pred_check
            _
          $region98: #{wkv6.1} parent=95 // pred_check_branch
            %390 = sbr.rel (0) target = $region100
          $region99: #{wkv6.1} parent=95 // pred_region
            // Predicated region
            $region101: #{wkv6.1} parent=99 // pred_check
              _
            $region102: #{wkv6.1} parent=99 // pred_check_branch
              %392 = sbr.rel (0) target = $region104
            $region103: #{wkv6.1} parent=99 // pred_region
              // Predicated region
              $region116: #{wkv6.1} parent=103 // pred_check
                _
              $region117: #{wkv6.1} parent=103 // pred_check_branch
                %414 = sbr.rel (0) target = $region119
              $region118: #{wkv6.1} parent=103 // pred_region
                loop: start=0, step=1, limit=1
                $region120: #{wkv6.1} parent=118 // loop_pre_header
                  _
                $region121: #{wkv6.1} parent=118 // loop_header
                  %s416 = sphi 0, %s420
                  %p417 = scmp.ge.s32.totalorder %s416, 1
                  %s421 = sphi %s388, %s388
                  %s422 = sphi %s383, %s383
                $region122: #{wkv6.1} parent=118 // loop_header_branch
                  %419 = sbr.rel (%p417) target = $region126
                $region123: #{wkv6.1} parent=118 // loop_body
                  %v423 = vld [vmem:[%s421] sm:$0xff]
                  %424 = vst [vmem:[%s422] sm:$0xff] %v423
                  %v425 = vld [vmem:[%s421 + $0x10] sm:$0xff]
                  %426 = vst [vmem:[%s422 + $0x8] sm:$0xff] %v425
                  %v427 = vld [vmem:[%s421 + $0x20] sm:$0xff]
                  %428 = vst [vmem:[%s422 + $0x10] sm:$0xff] %v427
                  %v429 = vld [vmem:[%s421 + $0x30] sm:$0xff]
                  %430 = vst [vmem:[%s422 + $0x18] sm:$0xff] %v429
                $region124: #{wkv6.1} parent=118 // loop_footer
                  %s420 = sadd.s32 1, %s416
                $region125: #{wkv6.1} parent=118 // loop_footer_branch
                  %415 = sbr.rel target = $region121
                $region126: #{wkv6.1} parent=118 // loop_exit
                  _
              $region119: #{wkv6.1} parent=103 // pred_fallthru
                _
              // Predicated region
              $region127: #{wkv6.1} parent=103 // pred_check
                _
              $region128: #{wkv6.1} parent=103 // pred_check_branch
                %432 = sbr.rel target = $region130
              $region129: #{wkv6.1} parent=103 // pred_region
                _
              $region130: #{wkv6.1} parent=103 // pred_fallthru
                _
            $region104: #{wkv6.1} parent=99 // pred_fallthru
              _
            // Predicated region
            $region105: #{wkv6.1} parent=99 // pred_check
              _
            $region106: #{wkv6.1} parent=99 // pred_check_branch
              %394 = sbr.rel target = $region108
            $region107: #{wkv6.1} parent=99 // pred_region
              %s396 = ssub.s32 256, 1
              loop: start=0, step=1, limit=1
              $region109: #{wkv6.1} parent=107 // loop_pre_header
                _
              $region110: #{wkv6.1} parent=107 // loop_header
                %s398 = sphi 0, %s402
                %p399 = scmp.ge.s32.totalorder %s398, 1
                %s403 = sphi %s388, %s388
                %s404 = sphi %s383, %s383
              $region111: #{wkv6.1} parent=107 // loop_header_branch
                %401 = sbr.rel (%p399) target = $region115
              $region112: #{wkv6.1} parent=107 // loop_body
                %v405 = vld [vmem:[%s403] sm:%s396]
                %406 = vst [vmem:[%s404] sm:%s396] %v405
                %v407 = vld [vmem:[%s403 + $0x10] sm:%s396]
                %408 = vst [vmem:[%s404 + $0x8] sm:%s396] %v407
                %v409 = vld [vmem:[%s403 + $0x20] sm:%s396]
                %410 = vst [vmem:[%s404 + $0x10] sm:%s396] %v409
                %v411 = vld [vmem:[%s403 + $0x30] sm:%s396]
                %412 = vst [vmem:[%s404 + $0x18] sm:%s396] %v411
              $region113: #{wkv6.1} parent=107 // loop_footer
                %s402 = sadd.s32 1, %s398
              $region114: #{wkv6.1} parent=107 // loop_footer_branch
                %397 = sbr.rel target = $region110
              $region115: #{wkv6.1} parent=107 // loop_exit
                _
            $region108: #{wkv6.1} parent=99 // pred_fallthru
              _
          $region100: #{wkv6.1} parent=95 // pred_fallthru
            _
          %433 = vnop
        $region96: #{wkv6.1} parent=15 // pred_fallthru
          _
        // Predicated region
        $region131: #{wkv6.1} parent=15 // pred_check
          %p434 = pneg %p132
        $region132: #{wkv6.1} parent=15 // pred_check_branch
          %436 = sbr.rel (%p434) target = $region134
        $region133: #{wkv6.1} parent=15 // pred_region
          %s437 = sand.u32 %s122, 1
          %s438 = sand.u32 %s122, 1
          %s439 = smul.addr %s438, 32
          %s440 = scalar_lea.vmem [#allocation6], %s439
          %s441 = smul.u32 4, %s22
          %s442 = smul.addr %s441, 2
          %s443 = sadd.s32 %s21, %s442
          %s444 = smul.addr %s443, 8
          %s445 = scalar_lea.vmem %s3, %s444
          // Predicated region
          $region135: #{wkv6.1} parent=133 // pred_check
            _
          $region136: #{wkv6.1} parent=133 // pred_check_branch
            %447 = sbr.rel (0) target = $region138
          $region137: #{wkv6.1} parent=133 // pred_region
            // Predicated region
            $region139: #{wkv6.1} parent=137 // pred_check
              _
            $region140: #{wkv6.1} parent=137 // pred_check_branch
              %449 = sbr.rel (0) target = $region142
            $region141: #{wkv6.1} parent=137 // pred_region
              // Predicated region
              $region154: #{wkv6.1} parent=141 // pred_check
                _
              $region155: #{wkv6.1} parent=141 // pred_check_branch
                %471 = sbr.rel (0) target = $region157
              $region156: #{wkv6.1} parent=141 // pred_region
                loop: start=0, step=1, limit=1
                $region158: #{wkv6.1} parent=156 // loop_pre_header
                  _
                $region159: #{wkv6.1} parent=156 // loop_header
                  %s473 = sphi 0, %s477
                  %p474 = scmp.ge.s32.totalorder %s473, 1
                  %s478 = sphi %s445, %s445
                  %s479 = sphi %s440, %s440
                $region160: #{wkv6.1} parent=156 // loop_header_branch
                  %476 = sbr.rel (%p474) target = $region164
                $region161: #{wkv6.1} parent=156 // loop_body
                  %v480 = vld [vmem:[%s478] sm:$0xff]
                  %481 = vst [vmem:[%s479] sm:$0xff] %v480
                  %v482 = vld [vmem:[%s478 + $0x10] sm:$0xff]
                  %483 = vst [vmem:[%s479 + $0x8] sm:$0xff] %v482
                  %v484 = vld [vmem:[%s478 + $0x20] sm:$0xff]
                  %485 = vst [vmem:[%s479 + $0x10] sm:$0xff] %v484
                  %v486 = vld [vmem:[%s478 + $0x30] sm:$0xff]
                  %487 = vst [vmem:[%s479 + $0x18] sm:$0xff] %v486
                $region162: #{wkv6.1} parent=156 // loop_footer
                  %s477 = sadd.s32 1, %s473
                $region163: #{wkv6.1} parent=156 // loop_footer_branch
                  %472 = sbr.rel target = $region159
                $region164: #{wkv6.1} parent=156 // loop_exit
                  _
              $region157: #{wkv6.1} parent=141 // pred_fallthru
                _
              // Predicated region
              $region165: #{wkv6.1} parent=141 // pred_check
                _
              $region166: #{wkv6.1} parent=141 // pred_check_branch
                %489 = sbr.rel target = $region168
              $region167: #{wkv6.1} parent=141 // pred_region
                _
              $region168: #{wkv6.1} parent=141 // pred_fallthru
                _
            $region142: #{wkv6.1} parent=137 // pred_fallthru
              _
            // Predicated region
            $region143: #{wkv6.1} parent=137 // pred_check
              _
            $region144: #{wkv6.1} parent=137 // pred_check_branch
              %451 = sbr.rel target = $region146
            $region145: #{wkv6.1} parent=137 // pred_region
              %s453 = ssub.s32 256, 1
              loop: start=0, step=1, limit=1
              $region147: #{wkv6.1} parent=145 // loop_pre_header
                _
              $region148: #{wkv6.1} parent=145 // loop_header
                %s455 = sphi 0, %s459
                %p456 = scmp.ge.s32.totalorder %s455, 1
                %s460 = sphi %s445, %s445
                %s461 = sphi %s440, %s440
              $region149: #{wkv6.1} parent=145 // loop_header_branch
                %458 = sbr.rel (%p456) target = $region153
              $region150: #{wkv6.1} parent=145 // loop_body
                %v462 = vld [vmem:[%s460] sm:%s453]
                %463 = vst [vmem:[%s461] sm:%s453] %v462
                %v464 = vld [vmem:[%s460 + $0x10] sm:%s453]
                %465 = vst [vmem:[%s461 + $0x8] sm:%s453] %v464
                %v466 = vld [vmem:[%s460 + $0x20] sm:%s453]
                %467 = vst [vmem:[%s461 + $0x10] sm:%s453] %v466
                %v468 = vld [vmem:[%s460 + $0x30] sm:%s453]
                %469 = vst [vmem:[%s461 + $0x18] sm:%s453] %v468
              $region151: #{wkv6.1} parent=145 // loop_footer
                %s459 = sadd.s32 1, %s455
              $region152: #{wkv6.1} parent=145 // loop_footer_branch
                %454 = sbr.rel target = $region148
              $region153: #{wkv6.1} parent=145 // loop_exit
                _
            $region146: #{wkv6.1} parent=137 // pred_fallthru
              _
          $region138: #{wkv6.1} parent=133 // pred_fallthru
            _
          %490 = vnop
        $region134: #{wkv6.1} parent=15 // pred_fallthru
          _
        // Predicated region
        $region169: #{wkv6.1} parent=15 // pred_check
          %p491 = pneg %p158
        $region170: #{wkv6.1} parent=15 // pred_check_branch
          %493 = sbr.rel (%p491) target = $region172
        $region171: #{wkv6.1} parent=15 // pred_region
          %p494 = scmp.lt.s32.totalorder %s21, 1
          %s495 = scalar_select %p494, %s21, 1
          %s496 = scalar_lea.vmem %s4, %s495
        $region172: #{wkv6.1} parent=15 // pred_fallthru
          _
        // Predicated region
        $region173: #{wkv6.1} parent=15 // pred_check
          %p497 = pneg %p184
        $region174: #{wkv6.1} parent=15 // pred_check_branch
          %499 = sbr.rel (%p497) target = $region176
        $region175: #{wkv6.1} parent=15 // pred_region
          %p500 = scmp.lt.s32.totalorder %s21, 1
          %s501 = scalar_select %p500, %s21, 1
          %s502 = smul.addr %s501, 16
          %s503 = smul.addr %s502, 8
          %s504 = scalar_lea.vmem %s5, %s503
        $region176: #{wkv6.1} parent=15 // pred_fallthru
          _
      $region16: #{wkv6.1} parent=5 // pred_fallthru
        _
      %p505 = scmp.le.s32.totalorder 1, %s14
      %p506 = scmp.lt.s32.totalorder %s14, 9
      %p507 = pnand %p505, %p506
      %p508 = pneg %p507
      // Predicated region
      $region177: #{wkv6.1} parent=5 // pred_check
        _
      $region178: #{wkv6.1} parent=5 // pred_check_branch
        %510 = sbr.rel (%p507) target = $region180
      $region179: #{wkv6.1} parent=5 // pred_region
        %s511 = ssub.s32 %s14, 1
        %s512 = sand.u32 %s41, 1
        %s513 = sand.u32 %s41, 1
        %s514 = smul.addr %s513, 32
        %s515 = scalar_lea.vmem [#allocation3], %s514
        // Predicated region
        $region181: #{wkv6.1} parent=179 // pred_check
          %p516 = pneg %p54
        $region182: #{wkv6.1} parent=179 // pred_check_branch
          %518 = sbr.rel (%p516) target = $region184
        $region183: #{wkv6.1} parent=179 // pred_region
          _
        $region184: #{wkv6.1} parent=179 // pred_fallthru
          _
        %s519 = sand.u32 %s69, 1
        %s520 = sand.u32 %s69, 1
        %s521 = smul.addr %s520, 32
        %s522 = scalar_lea.vmem [#allocation4], %s521
        // Predicated region
        $region185: #{wkv6.1} parent=179 // pred_check
          %p523 = pneg %p82
        $region186: #{wkv6.1} parent=179 // pred_check_branch
          %525 = sbr.rel (%p523) target = $region188
        $region187: #{wkv6.1} parent=179 // pred_region
          _
        $region188: #{wkv6.1} parent=179 // pred_fallthru
          _
        %s526 = sand.u32 %s97, 1
        %s527 = sand.u32 %s97, 1
        %s528 = smul.addr %s527, 32
        %s529 = scalar_lea.vmem [#allocation5], %s528
        // Predicated region
        $region189: #{wkv6.1} parent=179 // pred_check
          %p530 = pneg %p110
        $region190: #{wkv6.1} parent=179 // pred_check_branch
          %532 = sbr.rel (%p530) target = $region192
        $region191: #{wkv6.1} parent=179 // pred_region
          _
        $region192: #{wkv6.1} parent=179 // pred_fallthru
          _
        %s533 = sand.u32 %s125, 1
        %s534 = sand.u32 %s125, 1
        %s535 = smul.addr %s534, 32
        %s536 = scalar_lea.vmem [#allocation6], %s535
        // Predicated region
        $region193: #{wkv6.1} parent=179 // pred_check
          %p537 = pneg %p138
        $region194: #{wkv6.1} parent=179 // pred_check_branch
          %539 = sbr.rel (%p537) target = $region196
        $region195: #{wkv6.1} parent=179 // pred_region
          _
        $region196: #{wkv6.1} parent=179 // pred_fallthru
          _
        %s540 = sand.u32 %s41, 1
        %s541 = sand.u32 %s41, 1
        %s542 = smul.addr %s541, 32
        %s543 = scalar_lea.vmem [#allocation3], %s542
        %p544 = pneg %p54
        %p545 = pneg %p51
        %s546 = sand.u32 %s69, 1
        %s547 = sand.u32 %s69, 1
        %s548 = smul.addr %s547, 32
        %s549 = scalar_lea.vmem [#allocation4], %s548
        %p550 = pneg %p82
        %p551 = pneg %p79
        %s552 = sand.u32 %s97, 1
        %s553 = sand.u32 %s97, 1
        %s554 = smul.addr %s553, 32
        %s555 = scalar_lea.vmem [#allocation5], %s554
        %p556 = pneg %p110
        %p557 = pneg %p107
        %s558 = sand.u32 %s125, 1
        %s559 = sand.u32 %s125, 1
        %s560 = smul.addr %s559, 32
        %s561 = scalar_lea.vmem [#allocation6], %s560
        %p562 = pneg %p138
        %p563 = pneg %p135
        %p564 = scmp.lt.s32.totalorder %s23, 1
        %s565 = scalar_select %p564, %s23, 1
        %s566 = scalar_lea.vmem %s4, %s565
        %p567 = pneg %p164
        %p568 = pneg %p161
        %p569 = scmp.lt.s32.totalorder %s23, 1
        %s570 = scalar_select %p569, %s23, 1
        %s571 = smul.addr %s570, 16
        %s572 = smul.addr %s571, 8
        %s573 = scalar_lea.vmem %s5, %s572
        %p574 = pneg %p190
        %p575 = pneg %p187
        %p576 = pneg %p218
        %p577 = pneg %p215
        %s578 = sand.u32 %s205, 1
        %s579 = sand.u32 %s205, 1
        %s580 = smul.addr %s579, 32
        %s581 = scalar_lea.vmem [#allocation7], %s580
        %p582 = pneg %p244
        %p583 = pneg %p241
        %p584 = scmp.lt.s32.totalorder %s23, 1
        %s585 = scalar_select %p584, %s23, 1
        %s586 = smul.addr %s585, 16
        %s587 = smul.addr %s586, 8
        %s588 = scalar_lea.vmem %s7, %s587
        %s589 = smul.u32 4, %s24
        %s590 = smul.u32 4, %s24
        %s591 = smul.u32 4, %s24
        %s592 = smul.u32 4, %s24
        %p593 = scmp.lt.s32.totalorder %s23, 1
        %s594 = scalar_select %p593, %s23, 1
        %s595 = scalar_lea.vmem %s4, %s594
        %p596 = scmp.lt.s32.totalorder %s23, 1
        %s597 = scalar_select %p596, %s23, 1
        %s598 = smul.addr %s597, 16
        %s599 = smul.addr %s598, 8
        %s600 = scalar_lea.vmem %s5, %s599
        %s601 = smul.u32 4, %s24
        %p602 = scmp.lt.s32.totalorder %s23, 1
        %s603 = scalar_select %p602, %s23, 1
        %s604 = smul.addr %s603, 16
        %s605 = smul.addr %s604, 8
        %s606 = scalar_lea.vmem %s7, %s605
        %p607 = scmp.eq.s32.totalorder %s24, 0
        // Predicated region
        $region197: #{wkv6.1} parent=179 // pred_check
          %p608 = pneg %p607
        $region198: #{wkv6.1} parent=179 // pred_check_branch
          %610 = sbr.rel (%p608) target = $region200
        $region199: #{wkv6.1} parent=179 // pred_region
          %v611 = vld [vmem:[%s600] sm:$0xff]
          %v612 = vld [vmem:[%s600 + $0x8] sm:$0xff]
          %v613 = vld [vmem:[%s600 + $0x10] sm:$0xff]
          %v614 = vld [vmem:[%s600 + $0x18] sm:$0xff]
          %v615 = vld [vmem:[%s600 + $0x20] sm:$0xff]
          %v616 = vld [vmem:[%s600 + $0x28] sm:$0xff]
          %v617 = vld [vmem:[%s600 + $0x30] sm:$0xff]
          %v618 = vld [vmem:[%s600 + $0x38] sm:$0xff]
          %v619 = vld [vmem:[%s600 + $0x40] sm:$0xff]
          %v620 = vld [vmem:[%s600 + $0x48] sm:$0xff]
          %v621 = vld [vmem:[%s600 + $0x50] sm:$0xff]
          %v622 = vld [vmem:[%s600 + $0x58] sm:$0xff]
          %v623 = vld [vmem:[%s600 + $0x60] sm:$0xff]
          %v624 = vld [vmem:[%s600 + $0x68] sm:$0xff]
          %v625 = vld [vmem:[%s600 + $0x70] sm:$0xff]
          %v626 = vld [vmem:[%s600 + $0x78] sm:$0xff]
          %vm627 = vcmask 523264
          %628 = vst.msk [vmem:[#allocation2] sm:$0xff] %vm627, %v611
          %629 = vst.msk [vmem:[#allocation2 + $0x8] sm:$0xff] %vm627, %v612
          %630 = vst.msk [vmem:[#allocation2 + $0x10] sm:$0xff] %vm627, %v613
          %631 = vst.msk [vmem:[#allocation2 + $0x18] sm:$0xff] %vm627, %v614
          %632 = vst.msk [vmem:[#allocation2 + $0x20] sm:$0xff] %vm627, %v615
          %633 = vst.msk [vmem:[#allocation2 + $0x28] sm:$0xff] %vm627, %v616
          %634 = vst.msk [vmem:[#allocation2 + $0x30] sm:$0xff] %vm627, %v617
          %635 = vst.msk [vmem:[#allocation2 + $0x38] sm:$0xff] %vm627, %v618
          %636 = vst.msk [vmem:[#allocation2 + $0x40] sm:$0xff] %vm627, %v619
          %637 = vst.msk [vmem:[#allocation2 + $0x48] sm:$0xff] %vm627, %v620
          %638 = vst.msk [vmem:[#allocation2 + $0x50] sm:$0xff] %vm627, %v621
          %639 = vst.msk [vmem:[#allocation2 + $0x58] sm:$0xff] %vm627, %v622
          %640 = vst.msk [vmem:[#allocation2 + $0x60] sm:$0xff] %vm627, %v623
          %641 = vst.msk [vmem:[#allocation2 + $0x68] sm:$0xff] %vm627, %v624
          %642 = vst.msk [vmem:[#allocation2 + $0x70] sm:$0xff] %vm627, %v625
          %643 = vst.msk [vmem:[#allocation2 + $0x78] sm:$0xff] %vm627, %v626
        $region200: #{wkv6.1} parent=179 // pred_fallthru
          _
        %v644 = vld [vmem:[%s515] sm:$0xff]
        %v645 = vld [vmem:[%s515 + $0x8] sm:$0xff]
        %v646 = vld [vmem:[%s515 + $0x10] sm:$0xff]
        %v647 = vld [vmem:[%s515 + $0x18] sm:$0xff]
        %v648 = vld [vmem:[%s522] sm:$0xff]
        %v649 = vld [vmem:[%s522 + $0x8] sm:$0xff]
        %v650 = vld [vmem:[%s522 + $0x10] sm:$0xff]
        %v651 = vld [vmem:[%s522 + $0x18] sm:$0xff]
        %v652 = vld [vmem:[%s529] sm:$0xff]
        %v653 = vld [vmem:[%s529 + $0x8] sm:$0xff]
        %v654 = vld [vmem:[%s529 + $0x10] sm:$0xff]
        %v655 = vld [vmem:[%s529 + $0x18] sm:$0xff]
        %v656 = vld [vmem:[%s536] sm:$0xff]
        %v657 = vld [vmem:[%s536 + $0x8] sm:$0xff]
        %v658 = vld [vmem:[%s536 + $0x10] sm:$0xff]
        %v659 = vld [vmem:[%s536 + $0x18] sm:$0xff]
        %v660 = vlog2.pop %v656
        %v661 = vmul.f32 %v660, 0.6931472
        %v662 = vlog2.pop %v657
        %v663 = vmul.f32 %v662, 0.6931472
        %v664 = vlog2.pop %v658
        %v665 = vmul.f32 %v664, 0.6931472
        %v666 = vlog2.pop %v659
        %v667 = vmul.f32 %v666, 0.6931472
        %v668 = vld [vmem:[%s595] sm:$0x1]
        %v669 = vlaneseq
        %v670 = vshrl.u32 %v669, 7
        %v671 = vadd.s32 %v670, 8
        %v672 = vadd.s32 %v670, 16
        %v673 = vadd.s32 %v670, 24
        %v674 = vlaneseq
        %v675 = vand.u32 %v674, 127
        %vm676 = vcmp.le.s32.totalorder %v675, %v670
        %vm677 = vcmp.le.s32.totalorder %v675, %v671
        %vm678 = vcmp.le.s32.totalorder %v675, %v672
        %vm679 = vcmp.le.s32.totalorder %v675, %v673
        %v680 = vsel %vm676, 1, 0
        %v681 = vsel %vm677, 1, 0
        %v682 = vsel %vm678, 1, 0
        %v683 = vsel %vm679, 1, 0
        %v684 = vcvt.s32.f32 %v680
        %v685 = vcvt.s32.f32 %v681
        %v686 = vcvt.s32.f32 %v682
        %v687 = vcvt.s32.f32 %v683
        %vm688 = vcmp.lt.s32.totalorder %v675, %v670
        %vm689 = vcmp.lt.s32.totalorder %v675, %v671
        %vm690 = vcmp.lt.s32.totalorder %v675, %v672
        %vm691 = vcmp.lt.s32.totalorder %v675, %v673
        %vm692 = vcmask 261120
        %v694 = vsel %vm692, %v684, 0
        %v697 = vsel %vm692, %v685, 0
        %v700 = vsel %vm692, %v686, 0
        %v703 = vsel %vm692, %v687, 0
        %705 = vmatprep.subr.mxu0 0.0
        %706 = vmatpush1.msra.mxu0 0.0
        %707 = vmatprep.subr.mxu0 0.0
        %708 = vmatpush1.msra.mxu0 0.0
        %709 = vmatprep.subr.mxu0 0.0
        %710 = vmatpush1.msra.mxu0 0.0
        %711 = vmatprep.subr.mxu0 0.0
        %712 = vmatpush1.msra.mxu0 0.0
        %713 = vmatprep.subr.mxu0 0.0
        %714 = vmatpush1.msra.mxu0 0.0
        %715 = vmatprep.subr.mxu0 0.0
        %716 = vmatpush1.msra.mxu0 0.0
        %717 = vmatprep.subr.mxu0 0.0
        %718 = vmatpush1.msra.mxu0 0.0
        %719 = vmatprep.subr.mxu0 0.0
        %720 = vmatpush1.msra.mxu0 0.0
        %721 = vmatprep.subr.mxu0 0.0
        %722 = vmatpush1.msra.mxu0 0.0
        %723 = vmatprep.subr.mxu0 0.0
        %724 = vmatpush1.msra.mxu0 0.0
        %725 = vmatprep.subr.mxu0 0.0
        %726 = vmatpush1.msra.mxu0 0.0
        %727 = vmatprep.subr.mxu0 0.0
        %728 = vmatpush1.msra.mxu0 0.0
        %729 = vmatprep.subr.mxu0 0.0
        %v730 = vand.u32 %v667, 4294901760
        %731 = vmatpush1.msra.mxu0 %v730
        %732 = vmatprep.subr.mxu0 0.0
        %v733 = vand.u32 %v665, 4294901760
        %734 = vmatpush1.msra.mxu0 %v733
        %735 = vmatprep.subr.mxu0 0.0
        %v736 = vand.u32 %v663, 4294901760
        %737 = vmatpush1.msra.mxu0 %v736
        %738 = vmatprep.subr.mxu0 0.0
        %v739 = vand.u32 %v661, 4294901760
        %740 = vmatpush1.msra.mxu0 %v739
        %741 = vmatprep.subr.mxu0 0.0
        %742 = vmatpush2.msra.mxu0 0.0
        %743 = vmatprep.subr.mxu0 0.0
        %744 = vmatpush2.msra.mxu0 0.0
        %745 = vmatprep.subr.mxu0 0.0
        %746 = vmatpush2.msra.mxu0 0.0
        %747 = vmatprep.subr.mxu0 0.0
        %748 = vmatpush2.msra.mxu0 0.0
        %749 = vmatprep.subr.mxu0 0.0
        %750 = vmatpush2.msra.mxu0 0.0
        %751 = vmatprep.subr.mxu0 0.0
        %752 = vmatpush2.msra.mxu0 0.0
        %753 = vmatprep.subr.mxu0 0.0
        %754 = vmatpush2.msra.mxu0 0.0
        %755 = vmatprep.subr.mxu0 0.0
        %756 = vmatpush2.msra.mxu0 0.0
        %757 = vmatprep.subr.mxu0 0.0
        %758 = vmatpush2.msra.mxu0 0.0
        %759 = vmatprep.subr.mxu0 0.0
        %760 = vmatpush2.msra.mxu0 0.0
        %761 = vmatprep.subr.mxu0 0.0
        %762 = vmatpush2.msra.mxu0 0.0
        %763 = vmatprep.subr.mxu0 0.0
        %764 = vmatpush2.msra.mxu0 0.0
        %765 = vmatprep.subr.mxu0 0.0
        %766 = vmatpush2.msra.mxu0 0.0
        %767 = vmatprep.subr.mxu0 0.0
        %768 = vmatpush2.msra.mxu0 0.0
        %769 = vmatprep.subr.mxu0 0.0
        %770 = vmatpush2.msra.mxu0 0.0
        %771 = vmatprep.subr.mxu0 0.0
        %772 = vmatpush2.msra.mxu0 0.0
        %773 = vmatprep.mubr.f32.mxu0 0.0
        %v774 = vand.u32 %v694, 4294901760
        %v775 = vsub.f32 %v694, %v774
        %v776 = vand.u32 %v775, 4294901760
        %v777 = vsub.f32 %v775, %v776
        %v778 = vand.u32 %v777, 4294901760
        %779 = vmatmul.mubr.f32.gmra.mxu0 %v778
        %v780 = vpop.f32.mrf.mxu0
        %v781 = vadd.f32 0.0, %v780
        %v782 = vpop.f32.mrf.mxu0
        %783 = vmatprep.mubr.f32.mxu0 0.0
        %v784 = vand.u32 %v697, 4294901760
        %v785 = vsub.f32 %v697, %v784
        %v786 = vand.u32 %v785, 4294901760
        %v787 = vsub.f32 %v785, %v786
        %v788 = vand.u32 %v787, 4294901760
        %789 = vmatmul.mubr.f32.gmra.mxu0 %v788
        %v790 = vpop.f32.mrf.mxu0
        %v791 = vadd.f32 0.0, %v790
        %v792 = vpop.f32.mrf.mxu0
        %793 = vmatprep.mubr.f32.mxu0 0.0
        %v794 = vand.u32 %v700, 4294901760
        %v795 = vsub.f32 %v700, %v794
        %v796 = vand.u32 %v795, 4294901760
        %v797 = vsub.f32 %v795, %v796
        %v798 = vand.u32 %v797, 4294901760
        %799 = vmatmul.mubr.f32.gmra.mxu0 %v798
        %v800 = vpop.f32.mrf.mxu0
        %v801 = vadd.f32 0.0, %v800
        %v802 = vpop.f32.mrf.mxu0
        %803 = vmatprep.mubr.f32.mxu0 0.0
        %v804 = vand.u32 %v703, 4294901760
        %v805 = vsub.f32 %v703, %v804
        %v806 = vand.u32 %v805, 4294901760
        %v807 = vsub.f32 %v805, %v806
        %v808 = vand.u32 %v807, 4294901760
        %809 = vmatmul.mubr.f32.gmra.mxu0 %v808
        %v810 = vpop.f32.mrf.mxu0
        %v811 = vadd.f32 0.0, %v810
        %v812 = vpop.f32.mrf.mxu0
        %813 = vdwg.mxu0
        %814 = vmatprep.subr.mxu0 0.0
        %815 = vmatpush1.msra.mxu0 0.0
        %816 = vmatprep.subr.mxu0 0.0
        %817 = vmatpush1.msra.mxu0 0.0
        %818 = vmatprep.subr.mxu0 0.0
        %819 = vmatpush1.msra.mxu0 0.0
        %820 = vmatprep.subr.mxu0 0.0
        %821 = vmatpush1.msra.mxu0 0.0
        %822 = vmatprep.subr.mxu0 0.0
        %823 = vmatpush1.msra.mxu0 0.0
        %824 = vmatprep.subr.mxu0 0.0
        %825 = vmatpush1.msra.mxu0 0.0
        %826 = vmatprep.subr.mxu0 0.0
        %827 = vmatpush1.msra.mxu0 0.0
        %828 = vmatprep.subr.mxu0 0.0
        %829 = vmatpush1.msra.mxu0 0.0
        %830 = vmatprep.subr.mxu0 0.0
        %831 = vmatpush1.msra.mxu0 0.0
        %832 = vmatprep.subr.mxu0 0.0
        %833 = vmatpush1.msra.mxu0 0.0
        %834 = vmatprep.subr.mxu0 0.0
        %835 = vmatpush1.msra.mxu0 0.0
        %836 = vmatprep.subr.mxu0 0.0
        %837 = vmatpush1.msra.mxu0 0.0
        %838 = vmatprep.subr.mxu0 0.0
        %v839 = vand.u32 %v667, 4294901760
        %v840 = vsub.f32 %v667, %v839
        %v841 = vand.u32 %v840, 4294901760
        %v842 = vsub.f32 %v840, %v841
        %v843 = vand.u32 %v842, 4294901760
        %844 = vmatpush1.msra.mxu0 %v843
        %845 = vmatprep.subr.mxu0 0.0
        %v846 = vand.u32 %v665, 4294901760
        %v847 = vsub.f32 %v665, %v846
        %v848 = vand.u32 %v847, 4294901760
        %v849 = vsub.f32 %v847, %v848
        %v850 = vand.u32 %v849, 4294901760
        %851 = vmatpush1.msra.mxu0 %v850
        %852 = vmatprep.subr.mxu0 0.0
        %v853 = vand.u32 %v663, 4294901760
        %v854 = vsub.f32 %v663, %v853
        %v855 = vand.u32 %v854, 4294901760
        %v856 = vsub.f32 %v854, %v855
        %v857 = vand.u32 %v856, 4294901760
        %858 = vmatpush1.msra.mxu0 %v857
        %859 = vmatprep.subr.mxu0 0.0
        %v860 = vand.u32 %v661, 4294901760
        %v861 = vsub.f32 %v661, %v860
        %v862 = vand.u32 %v861, 4294901760
        %v863 = vsub.f32 %v861, %v862
        %v864 = vand.u32 %v863, 4294901760
        %865 = vmatpush1.msra.mxu0 %v864
        %866 = vmatprep.subr.mxu0 0.0
        %867 = vmatpush2.msra.mxu0 0.0
        %868 = vmatprep.subr.mxu0 0.0
        %869 = vmatpush2.msra.mxu0 0.0
        %870 = vmatprep.subr.mxu0 0.0
        %871 = vmatpush2.msra.mxu0 0.0
        %872 = vmatprep.subr.mxu0 0.0
        %873 = vmatpush2.msra.mxu0 0.0
        %874 = vmatprep.subr.mxu0 0.0
        %875 = vmatpush2.msra.mxu0 0.0
        %876 = vmatprep.subr.mxu0 0.0
        %877 = vmatpush2.msra.mxu0 0.0
        %878 = vmatprep.subr.mxu0 0.0
        %879 = vmatpush2.msra.mxu0 0.0
        %880 = vmatprep.subr.mxu0 0.0
        %881 = vmatpush2.msra.mxu0 0.0
        %882 = vmatprep.subr.mxu0 0.0
        %883 = vmatpush2.msra.mxu0 0.0
        %884 = vmatprep.subr.mxu0 0.0
        %885 = vmatpush2.msra.mxu0 0.0
        %886 = vmatprep.subr.mxu0 0.0
        %887 = vmatpush2.msra.mxu0 0.0
        %888 = vmatprep.subr.mxu0 0.0
        %889 = vmatpush2.msra.mxu0 0.0
        %890 = vmatprep.subr.mxu0 0.0
        %891 = vmatpush2.msra.mxu0 0.0
        %892 = vmatprep.subr.mxu0 0.0
        %893 = vmatpush2.msra.mxu0 0.0
        %894 = vmatprep.subr.mxu0 0.0
        %895 = vmatpush2.msra.mxu0 0.0
        %896 = vmatprep.subr.mxu0 0.0
        %897 = vmatpush2.msra.mxu0 0.0
        %898 = vmatprep.mubr.f32.mxu0 0.0
        %v899 = vand.u32 %v694, 4294901760
        %900 = vmatmul.mubr.f32.gmra.mxu0 %v899
        %v901 = vpop.f32.mrf.mxu0
        %v902 = vadd.f32 %v781, %v901
        %v903 = vpop.f32.mrf.mxu0
        %904 = vmatprep.mubr.f32.mxu0 0.0
        %v905 = vand.u32 %v697, 4294901760
        %906 = vmatmul.mubr.f32.gmra.mxu0 %v905
        %v907 = vpop.f32.mrf.mxu0
        %v908 = vadd.f32 %v791, %v907
        %v909 = vpop.f32.mrf.mxu0
        %910 = vmatprep.mubr.f32.mxu0 0.0
        %v911 = vand.u32 %v700, 4294901760
        %912 = vmatmul.mubr.f32.gmra.mxu0 %v911
        %v913 = vpop.f32.mrf.mxu0
        %v914 = vadd.f32 %v801, %v913
        %v915 = vpop.f32.mrf.mxu0
        %916 = vmatprep.mubr.f32.mxu0 0.0
        %v917 = vand.u32 %v703, 4294901760
        %918 = vmatmul.mubr.f32.gmra.mxu0 %v917
        %v919 = vpop.f32.mrf.mxu0
        %v920 = vadd.f32 %v811, %v919
        %v921 = vpop.f32.mrf.mxu0
        %922 = vdwg.mxu0
        %923 = vmatprep.subr.mxu0 0.0
        %924 = vmatpush1.msra.mxu0 0.0
        %925 = vmatprep.subr.mxu0 0.0
        %926 = vmatpush1.msra.mxu0 0.0
        %927 = vmatprep.subr.mxu0 0.0
        %928 = vmatpush1.msra.mxu0 0.0
        %929 = vmatprep.subr.mxu0 0.0
        %930 = vmatpush1.msra.mxu0 0.0
        %931 = vmatprep.subr.mxu0 0.0
        %932 = vmatpush1.msra.mxu0 0.0
        %933 = vmatprep.subr.mxu0 0.0
        %934 = vmatpush1.msra.mxu0 0.0
        %935 = vmatprep.subr.mxu0 0.0
        %936 = vmatpush1.msra.mxu0 0.0
        %937 = vmatprep.subr.mxu0 0.0
        %938 = vmatpush1.msra.mxu0 0.0
        %939 = vmatprep.subr.mxu0 0.0
        %940 = vmatpush1.msra.mxu0 0.0
        %941 = vmatprep.subr.mxu0 0.0
        %942 = vmatpush1.msra.mxu0 0.0
        %943 = vmatprep.subr.mxu0 0.0
        %944 = vmatpush1.msra.mxu0 0.0
        %945 = vmatprep.subr.mxu0 0.0
        %946 = vmatpush1.msra.mxu0 0.0
        %947 = vmatprep.subr.mxu0 0.0
        %v948 = vand.u32 %v667, 4294901760
        %v949 = vsub.f32 %v667, %v948
        %950 = vmatpush1.msra.mxu0 %v949
        %951 = vmatprep.subr.mxu0 0.0
        %v952 = vand.u32 %v665, 4294901760
        %v953 = vsub.f32 %v665, %v952
        %954 = vmatpush1.msra.mxu0 %v953
        %955 = vmatprep.subr.mxu0 0.0
        %v956 = vand.u32 %v663, 4294901760
        %v957 = vsub.f32 %v663, %v956
        %958 = vmatpush1.msra.mxu0 %v957
        %959 = vmatprep.subr.mxu0 0.0
        %v960 = vand.u32 %v661, 4294901760
        %v961 = vsub.f32 %v661, %v960
        %962 = vmatpush1.msra.mxu0 %v961
        %963 = vmatprep.subr.mxu0 0.0
        %964 = vmatpush2.msra.mxu0 0.0
        %965 = vmatprep.subr.mxu0 0.0
        %966 = vmatpush2.msra.mxu0 0.0
        %967 = vmatprep.subr.mxu0 0.0
        %968 = vmatpush2.msra.mxu0 0.0
        %969 = vmatprep.subr.mxu0 0.0
        %970 = vmatpush2.msra.mxu0 0.0
        %971 = vmatprep.subr.mxu0 0.0
        %972 = vmatpush2.msra.mxu0 0.0
        %973 = vmatprep.subr.mxu0 0.0
        %974 = vmatpush2.msra.mxu0 0.0
        %975 = vmatprep.subr.mxu0 0.0
        %976 = vmatpush2.msra.mxu0 0.0
        %977 = vmatprep.subr.mxu0 0.0
        %978 = vmatpush2.msra.mxu0 0.0
        %979 = vmatprep.subr.mxu0 0.0
        %980 = vmatpush2.msra.mxu0 0.0
        %981 = vmatprep.subr.mxu0 0.0
        %982 = vmatpush2.msra.mxu0 0.0
        %983 = vmatprep.subr.mxu0 0.0
        %984 = vmatpush2.msra.mxu0 0.0
        %985 = vmatprep.subr.mxu0 0.0
        %986 = vmatpush2.msra.mxu0 0.0
        %987 = vmatprep.subr.mxu0 0.0
        %988 = vmatpush2.msra.mxu0 0.0
        %989 = vmatprep.subr.mxu0 0.0
        %990 = vmatpush2.msra.mxu0 0.0
        %991 = vmatprep.subr.mxu0 0.0
        %992 = vmatpush2.msra.mxu0 0.0
        %993 = vmatprep.subr.mxu0 0.0
        %994 = vmatpush2.msra.mxu0 0.0
        %995 = vmatprep.mubr.f32.mxu0 0.0
        %v996 = vand.u32 %v694, 4294901760
        %v997 = vsub.f32 %v694, %v996
        %998 = vmatmul.mubr.f32.gmra.mxu0 %v997
        %v999 = vpop.f32.mrf.mxu0
        %v1000 = vadd.f32 %v902, %v999
        %v1001 = vpop.f32.mrf.mxu0
        %1002 = vmatprep.mubr.f32.mxu0 0.0
        %v1003 = vand.u32 %v697, 4294901760
        %v1004 = vsub.f32 %v697, %v1003
        %1005 = vmatmul.mubr.f32.gmra.mxu0 %v1004
        %v1006 = vpop.f32.mrf.mxu0
        %v1007 = vadd.f32 %v908, %v1006
        %v1008 = vpop.f32.mrf.mxu0
        %1009 = vmatprep.mubr.f32.mxu0 0.0
        %v1010 = vand.u32 %v700, 4294901760
        %v1011 = vsub.f32 %v700, %v1010
        %1012 = vmatmul.mubr.f32.gmra.mxu0 %v1011
        %v1013 = vpop.f32.mrf.mxu0
        %v1014 = vadd.f32 %v914, %v1013
        %v1015 = vpop.f32.mrf.mxu0
        %1016 = vmatprep.mubr.f32.mxu0 0.0
        %v1017 = vand.u32 %v703, 4294901760
        %v1018 = vsub.f32 %v703, %v1017
        %1019 = vmatmul.mubr.f32.gmra.mxu0 %v1018
        %v1020 = vpop.f32.mrf.mxu0
        %v1021 = vadd.f32 %v920, %v1020
        %v1022 = vpop.f32.mrf.mxu0
        %1023 = vdwg.mxu0
        %1024 = vmatprep.subr.mxu0 0.0
        %1025 = vmatpush1.msra.mxu0 0.0
        %1026 = vmatprep.subr.mxu0 0.0
        %1027 = vmatpush1.msra.mxu0 0.0
        %1028 = vmatprep.subr.mxu0 0.0
        %1029 = vmatpush1.msra.mxu0 0.0
        %1030 = vmatprep.subr.mxu0 0.0
        %1031 = vmatpush1.msra.mxu0 0.0
        %1032 = vmatprep.subr.mxu0 0.0
        %1033 = vmatpush1.msra.mxu0 0.0
        %1034 = vmatprep.subr.mxu0 0.0
        %1035 = vmatpush1.msra.mxu0 0.0
        %1036 = vmatprep.subr.mxu0 0.0
        %1037 = vmatpush1.msra.mxu0 0.0
        %1038 = vmatprep.subr.mxu0 0.0
        %1039 = vmatpush1.msra.mxu0 0.0
        %1040 = vmatprep.subr.mxu0 0.0
        %1041 = vmatpush1.msra.mxu0 0.0
        %1042 = vmatprep.subr.mxu0 0.0
        %1043 = vmatpush1.msra.mxu0 0.0
        %1044 = vmatprep.subr.mxu0 0.0
        %1045 = vmatpush1.msra.mxu0 0.0
        %1046 = vmatprep.subr.mxu0 0.0
        %1047 = vmatpush1.msra.mxu0 0.0
        %1048 = vmatprep.subr.mxu0 0.0
        %v1049 = vand.u32 %v667, 4294901760
        %1050 = vmatpush1.msra.mxu0 %v1049
        %1051 = vmatprep.subr.mxu0 0.0
        %v1052 = vand.u32 %v665, 4294901760
        %1053 = vmatpush1.msra.mxu0 %v1052
        %1054 = vmatprep.subr.mxu0 0.0
        %v1055 = vand.u32 %v663, 4294901760
        %1056 = vmatpush1.msra.mxu0 %v1055
        %1057 = vmatprep.subr.mxu0 0.0
        %v1058 = vand.u32 %v661, 4294901760
        %1059 = vmatpush1.msra.mxu0 %v1058
        %1060 = vmatprep.subr.mxu0 0.0
        %1061 = vmatpush2.msra.mxu0 0.0
        %1062 = vmatprep.subr.mxu0 0.0
        %1063 = vmatpush2.msra.mxu0 0.0
        %1064 = vmatprep.subr.mxu0 0.0
        %1065 = vmatpush2.msra.mxu0 0.0
        %1066 = vmatprep.subr.mxu0 0.0
        %1067 = vmatpush2.msra.mxu0 0.0
        %1068 = vmatprep.subr.mxu0 0.0
        %1069 = vmatpush2.msra.mxu0 0.0
        %1070 = vmatprep.subr.mxu0 0.0
        %1071 = vmatpush2.msra.mxu0 0.0
        %1072 = vmatprep.subr.mxu0 0.0
        %1073 = vmatpush2.msra.mxu0 0.0
        %1074 = vmatprep.subr.mxu0 0.0
        %1075 = vmatpush2.msra.mxu0 0.0
        %1076 = vmatprep.subr.mxu0 0.0
        %1077 = vmatpush2.msra.mxu0 0.0
        %1078 = vmatprep.subr.mxu0 0.0
        %1079 = vmatpush2.msra.mxu0 0.0
        %1080 = vmatprep.subr.mxu0 0.0
        %1081 = vmatpush2.msra.mxu0 0.0
        %1082 = vmatprep.subr.mxu0 0.0
        %1083 = vmatpush2.msra.mxu0 0.0
        %1084 = vmatprep.subr.mxu0 0.0
        %1085 = vmatpush2.msra.mxu0 0.0
        %1086 = vmatprep.subr.mxu0 0.0
        %1087 = vmatpush2.msra.mxu0 0.0
        %1088 = vmatprep.subr.mxu0 0.0
        %1089 = vmatpush2.msra.mxu0 0.0
        %1090 = vmatprep.subr.mxu0 0.0
        %1091 = vmatpush2.msra.mxu0 0.0
        %1092 = vmatprep.mubr.f32.mxu0 0.0
        %v1093 = vand.u32 %v694, 4294901760
        %v1094 = vsub.f32 %v694, %v1093
        %v1095 = vand.u32 %v1094, 4294901760
        %1096 = vmatmul.mubr.f32.gmra.mxu0 %v1095
        %v1097 = vpop.f32.mrf.mxu0
        %v1098 = vadd.f32 %v1000, %v1097
        %v1099 = vpop.f32.mrf.mxu0
        %1100 = vmatprep.mubr.f32.mxu0 0.0
        %v1101 = vand.u32 %v697, 4294901760
        %v1102 = vsub.f32 %v697, %v1101
        %v1103 = vand.u32 %v1102, 4294901760
        %1104 = vmatmul.mubr.f32.gmra.mxu0 %v1103
        %v1105 = vpop.f32.mrf.mxu0
        %v1106 = vadd.f32 %v1007, %v1105
        %v1107 = vpop.f32.mrf.mxu0
        %1108 = vmatprep.mubr.f32.mxu0 0.0
        %v1109 = vand.u32 %v700, 4294901760
        %v1110 = vsub.f32 %v700, %v1109
        %v1111 = vand.u32 %v1110, 4294901760
        %1112 = vmatmul.mubr.f32.gmra.mxu0 %v1111
        %v1113 = vpop.f32.mrf.mxu0
        %v1114 = vadd.f32 %v1014, %v1113
        %v1115 = vpop.f32.mrf.mxu0
        %1116 = vmatprep.mubr.f32.mxu0 0.0
        %v1117 = vand.u32 %v703, 4294901760
        %v1118 = vsub.f32 %v703, %v1117
        %v1119 = vand.u32 %v1118, 4294901760
        %1120 = vmatmul.mubr.f32.gmra.mxu0 %v1119
        %v1121 = vpop.f32.mrf.mxu0
        %v1122 = vadd.f32 %v1021, %v1121
        %v1123 = vpop.f32.mrf.mxu0
        %1124 = vdwg.mxu0
        %1125 = vmatprep.subr.mxu0 0.0
        %1126 = vmatpush1.msra.mxu0 0.0
        %1127 = vmatprep.subr.mxu0 0.0
        %1128 = vmatpush1.msra.mxu0 0.0
        %1129 = vmatprep.subr.mxu0 0.0
        %1130 = vmatpush1.msra.mxu0 0.0
        %1131 = vmatprep.subr.mxu0 0.0
        %1132 = vmatpush1.msra.mxu0 0.0
        %1133 = vmatprep.subr.mxu0 0.0
        %1134 = vmatpush1.msra.mxu0 0.0
        %1135 = vmatprep.subr.mxu0 0.0
        %1136 = vmatpush1.msra.mxu0 0.0
        %1137 = vmatprep.subr.mxu0 0.0
        %1138 = vmatpush1.msra.mxu0 0.0
        %1139 = vmatprep.subr.mxu0 0.0
        %1140 = vmatpush1.msra.mxu0 0.0
        %1141 = vmatprep.subr.mxu0 0.0
        %1142 = vmatpush1.msra.mxu0 0.0
        %1143 = vmatprep.subr.mxu0 0.0
        %1144 = vmatpush1.msra.mxu0 0.0
        %1145 = vmatprep.subr.mxu0 0.0
        %1146 = vmatpush1.msra.mxu0 0.0
        %1147 = vmatprep.subr.mxu0 0.0
        %1148 = vmatpush1.msra.mxu0 0.0
        %1149 = vmatprep.subr.mxu0 0.0
        %v1150 = vand.u32 %v667, 4294901760
        %v1151 = vsub.f32 %v667, %v1150
        %v1152 = vand.u32 %v1151, 4294901760
        %1153 = vmatpush1.msra.mxu0 %v1152
        %1154 = vmatprep.subr.mxu0 0.0
        %v1155 = vand.u32 %v665, 4294901760
        %v1156 = vsub.f32 %v665, %v1155
        %v1157 = vand.u32 %v1156, 4294901760
        %1158 = vmatpush1.msra.mxu0 %v1157
        %1159 = vmatprep.subr.mxu0 0.0
        %v1160 = vand.u32 %v663, 4294901760
        %v1161 = vsub.f32 %v663, %v1160
        %v1162 = vand.u32 %v1161, 4294901760
        %1163 = vmatpush1.msra.mxu0 %v1162
        %1164 = vmatprep.subr.mxu0 0.0
        %v1165 = vand.u32 %v661, 4294901760
        %v1166 = vsub.f32 %v661, %v1165
        %v1167 = vand.u32 %v1166, 4294901760
        %1168 = vmatpush1.msra.mxu0 %v1167
        %1169 = vmatprep.subr.mxu0 0.0
        %1170 = vmatpush2.msra.mxu0 0.0
        %1171 = vmatprep.subr.mxu0 0.0
        %1172 = vmatpush2.msra.mxu0 0.0
        %1173 = vmatprep.subr.mxu0 0.0
        %1174 = vmatpush2.msra.mxu0 0.0
        %1175 = vmatprep.subr.mxu0 0.0
        %1176 = vmatpush2.msra.mxu0 0.0
        %1177 = vmatprep.subr.mxu0 0.0
        %1178 = vmatpush2.msra.mxu0 0.0
        %1179 = vmatprep.subr.mxu0 0.0
        %1180 = vmatpush2.msra.mxu0 0.0
        %1181 = vmatprep.subr.mxu0 0.0
        %1182 = vmatpush2.msra.mxu0 0.0
        %1183 = vmatprep.subr.mxu0 0.0
        %1184 = vmatpush2.msra.mxu0 0.0
        %1185 = vmatprep.subr.mxu0 0.0
        %1186 = vmatpush2.msra.mxu0 0.0
        %1187 = vmatprep.subr.mxu0 0.0
        %1188 = vmatpush2.msra.mxu0 0.0
        %1189 = vmatprep.subr.mxu0 0.0
        %1190 = vmatpush2.msra.mxu0 0.0
        %1191 = vmatprep.subr.mxu0 0.0
        %1192 = vmatpush2.msra.mxu0 0.0
        %1193 = vmatprep.subr.mxu0 0.0
        %1194 = vmatpush2.msra.mxu0 0.0
        %1195 = vmatprep.subr.mxu0 0.0
        %1196 = vmatpush2.msra.mxu0 0.0
        %1197 = vmatprep.subr.mxu0 0.0
        %1198 = vmatpush2.msra.mxu0 0.0
        %1199 = vmatprep.subr.mxu0 0.0
        %1200 = vmatpush2.msra.mxu0 0.0
        %1201 = vmatprep.mubr.f32.mxu0 0.0
        %v1202 = vand.u32 %v694, 4294901760
        %1203 = vmatmul.mubr.f32.gmra.mxu0 %v1202
        %v1204 = vpop.f32.mrf.mxu0
        %v1205 = vadd.f32 %v1098, %v1204
        %v1206 = vpop.f32.mrf.mxu0
        %1207 = vmatprep.mubr.f32.mxu0 0.0
        %v1208 = vand.u32 %v697, 4294901760
        %1209 = vmatmul.mubr.f32.gmra.mxu0 %v1208
        %v1210 = vpop.f32.mrf.mxu0
        %v1211 = vadd.f32 %v1106, %v1210
        %v1212 = vpop.f32.mrf.mxu0
        %1213 = vmatprep.mubr.f32.mxu0 0.0
        %v1214 = vand.u32 %v700, 4294901760
        %1215 = vmatmul.mubr.f32.gmra.mxu0 %v1214
        %v1216 = vpop.f32.mrf.mxu0
        %v1217 = vadd.f32 %v1114, %v1216
        %v1218 = vpop.f32.mrf.mxu0
        %1219 = vmatprep.mubr.f32.mxu0 0.0
        %v1220 = vand.u32 %v703, 4294901760
        %1221 = vmatmul.mubr.f32.gmra.mxu0 %v1220
        %v1222 = vpop.f32.mrf.mxu0
        %v1223 = vadd.f32 %v1122, %v1222
        %v1224 = vpop.f32.mrf.mxu0
        %1225 = vdwg.mxu0
        %1226 = vmatprep.subr.mxu0 0.0
        %1227 = vmatpush1.msra.mxu0 0.0
        %1228 = vmatprep.subr.mxu0 0.0
        %1229 = vmatpush1.msra.mxu0 0.0
        %1230 = vmatprep.subr.mxu0 0.0
        %1231 = vmatpush1.msra.mxu0 0.0
        %1232 = vmatprep.subr.mxu0 0.0
        %1233 = vmatpush1.msra.mxu0 0.0
        %1234 = vmatprep.subr.mxu0 0.0
        %1235 = vmatpush1.msra.mxu0 0.0
        %1236 = vmatprep.subr.mxu0 0.0
        %1237 = vmatpush1.msra.mxu0 0.0
        %1238 = vmatprep.subr.mxu0 0.0
        %1239 = vmatpush1.msra.mxu0 0.0
        %1240 = vmatprep.subr.mxu0 0.0
        %1241 = vmatpush1.msra.mxu0 0.0
        %1242 = vmatprep.subr.mxu0 0.0
        %1243 = vmatpush1.msra.mxu0 0.0
        %1244 = vmatprep.subr.mxu0 0.0
        %1245 = vmatpush1.msra.mxu0 0.0
        %1246 = vmatprep.subr.mxu0 0.0
        %1247 = vmatpush1.msra.mxu0 0.0
        %1248 = vmatprep.subr.mxu0 0.0
        %1249 = vmatpush1.msra.mxu0 0.0
        %1250 = vmatprep.subr.mxu0 0.0
        %v1251 = vand.u32 %v667, 4294901760
        %1252 = vmatpush1.msra.mxu0 %v1251
        %1253 = vmatprep.subr.mxu0 0.0
        %v1254 = vand.u32 %v665, 4294901760
        %1255 = vmatpush1.msra.mxu0 %v1254
        %1256 = vmatprep.subr.mxu0 0.0
        %v1257 = vand.u32 %v663, 4294901760
        %1258 = vmatpush1.msra.mxu0 %v1257
        %1259 = vmatprep.subr.mxu0 0.0
        %v1260 = vand.u32 %v661, 4294901760
        %1261 = vmatpush1.msra.mxu0 %v1260
        %1262 = vmatprep.subr.mxu0 0.0
        %1263 = vmatpush2.msra.mxu0 0.0
        %1264 = vmatprep.subr.mxu0 0.0
        %1265 = vmatpush2.msra.mxu0 0.0
        %1266 = vmatprep.subr.mxu0 0.0
        %1267 = vmatpush2.msra.mxu0 0.0
        %1268 = vmatprep.subr.mxu0 0.0
        %1269 = vmatpush2.msra.mxu0 0.0
        %1270 = vmatprep.subr.mxu0 0.0
        %1271 = vmatpush2.msra.mxu0 0.0
        %1272 = vmatprep.subr.mxu0 0.0
        %1273 = vmatpush2.msra.mxu0 0.0
        %1274 = vmatprep.subr.mxu0 0.0
        %1275 = vmatpush2.msra.mxu0 0.0
        %1276 = vmatprep.subr.mxu0 0.0
        %1277 = vmatpush2.msra.mxu0 0.0
        %1278 = vmatprep.subr.mxu0 0.0
        %1279 = vmatpush2.msra.mxu0 0.0
        %1280 = vmatprep.subr.mxu0 0.0
        %1281 = vmatpush2.msra.mxu0 0.0
        %1282 = vmatprep.subr.mxu0 0.0
        %1283 = vmatpush2.msra.mxu0 0.0
        %1284 = vmatprep.subr.mxu0 0.0
        %1285 = vmatpush2.msra.mxu0 0.0
        %1286 = vmatprep.subr.mxu0 0.0
        %1287 = vmatpush2.msra.mxu0 0.0
        %1288 = vmatprep.subr.mxu0 0.0
        %1289 = vmatpush2.msra.mxu0 0.0
        %1290 = vmatprep.subr.mxu0 0.0
        %1291 = vmatpush2.msra.mxu0 0.0
        %1292 = vmatprep.subr.mxu0 0.0
        %1293 = vmatpush2.msra.mxu0 0.0
        %1294 = vmatprep.mubr.f32.mxu0 0.0
        %v1295 = vand.u32 %v694, 4294901760
        %1296 = vmatmul.mubr.f32.gmra.mxu0 %v1295
        %v1297 = vpop.f32.mrf.mxu0
        %v1298 = vadd.f32 %v1205, %v1297
        %v1299 = vpop.f32.mrf.mxu0
        %1300 = vmatprep.mubr.f32.mxu0 0.0
        %v1301 = vand.u32 %v697, 4294901760
        %1302 = vmatmul.mubr.f32.gmra.mxu0 %v1301
        %v1303 = vpop.f32.mrf.mxu0
        %v1304 = vadd.f32 %v1211, %v1303
        %v1305 = vpop.f32.mrf.mxu0
        %1306 = vmatprep.mubr.f32.mxu0 0.0
        %v1307 = vand.u32 %v700, 4294901760
        %1308 = vmatmul.mubr.f32.gmra.mxu0 %v1307
        %v1309 = vpop.f32.mrf.mxu0
        %v1310 = vadd.f32 %v1217, %v1309
        %v1311 = vpop.f32.mrf.mxu0
        %1312 = vmatprep.mubr.f32.mxu0 0.0
        %v1313 = vand.u32 %v703, 4294901760
        %1314 = vmatmul.mubr.f32.gmra.mxu0 %v1313
        %v1315 = vpop.f32.mrf.mxu0
        %v1316 = vadd.f32 %v1223, %v1315
        %v1317 = vpop.f32.mrf.mxu0
        %1318 = vdwg.mxu0
        %v1319 = vsub.f32 %v1298, %v661
        %v1320 = vsub.f32 %v1304, %v663
        %v1321 = vsub.f32 %v1310, %v665
        %v1322 = vsub.f32 %v1316, %v667
        %v1323 = vmul.f32 %v1319, 1.442695
        %v1324 = vpow.pop %v1323
        %v1325 = vmul.f32 %v1320, 1.442695
        %v1326 = vpow.pop %v1325
        %v1327 = vmul.f32 %v1321, 1.442695
        %v1328 = vpow.pop %v1327
        %v1329 = vmul.f32 %v1322, 1.442695
        %v1330 = vpow.pop %v1329
        %v1331 = vmul.f32 %v652, %v1324
        %v1332 = vmul.f32 %v653, %v1326
        %v1333 = vmul.f32 %v654, %v1328
        %v1334 = vmul.f32 %v655, %v1330
        %v1335 = vsub.f32 0.0, %v1298
        %v1336 = vsub.f32 0.0, %v1304
        %v1337 = vsub.f32 0.0, %v1310
        %v1338 = vsub.f32 0.0, %v1316
        %v1339 = vmul.f32 %v1335, 1.442695
        %v1340 = vpow.pop %v1339
        %v1341 = vmul.f32 %v1336, 1.442695
        %v1342 = vpow.pop %v1341
        %v1343 = vmul.f32 %v1337, 1.442695
        %v1344 = vpow.pop %v1343
        %v1345 = vmul.f32 %v1338, 1.442695
        %v1346 = vpow.pop %v1345
        %v1347 = vmul.f32 %v644, %v1340
        %v1348 = vmul.f32 %v645, %v1342
        %v1349 = vmul.f32 %v646, %v1344
        %v1350 = vmul.f32 %v647, %v1346
        %v1351 = vlaneseq
        %v1352 = vshrl.u32 %v1351, 7
        %v1353 = vsub.s32 7, %v1352
        %v1354 = vrot.slane %v1316, %v1353
        %v1355 = vsub.f32 %v1354, %v1298
        %v1356 = vsub.f32 %v1354, %v1304
        %v1357 = vsub.f32 %v1354, %v1310
        %v1358 = vsub.f32 %v1354, %v1316
        %v1359 = vmul.f32 %v1355, 1.442695
        %v1360 = vpow.pop %v1359
        %v1361 = vmul.f32 %v1356, 1.442695
        %v1362 = vpow.pop %v1361
        %v1363 = vmul.f32 %v1357, 1.442695
        %v1364 = vpow.pop %v1363
        %v1365 = vmul.f32 %v1358, 1.442695
        %v1366 = vpow.pop %v1365
        %v1367 = vmul.f32 %v644, %v1360
        %v1368 = vmul.f32 %v645, %v1362
        %v1369 = vmul.f32 %v646, %v1364
        %v1370 = vmul.f32 %v647, %v1366
        %v1371 = vmul.f32 %v1316, 1.442695
        %v1372 = vpow.pop %v1371
        %v1374 = vlaneseq
        %v1375 = vshrl.u32 %v1374, 7
        %v1376 = vsub.s32 0, %v1375
        %v1377 = vrot.slane %v668, %v1376
        %v1379 = vmul.f32 %v652, %v1377
        %v1380 = vmul.f32 %v653, %v1377
        %v1381 = vmul.f32 %v654, %v1377
        %v1382 = vmul.f32 %v655, %v1377
        %v1383 = vmul.f32 %v1379, %v644
        %v1384 = vmul.f32 %v1380, %v645
        %v1385 = vmul.f32 %v1381, %v646
        %v1386 = vmul.f32 %v1382, %v647
        %v1387 = vld [vmem:[#allocation2] sm:$0xff]
        %v1388 = vld [vmem:[#allocation2 + $0x8] sm:$0xff]
        %v1389 = vld [vmem:[#allocation2 + $0x10] sm:$0xff]
        %v1390 = vld [vmem:[#allocation2 + $0x18] sm:$0xff]
        %v1391 = vld [vmem:[#allocation2 + $0x20] sm:$0xff]
        %v1392 = vld [vmem:[#allocation2 + $0x28] sm:$0xff]
        %v1393 = vld [vmem:[#allocation2 + $0x30] sm:$0xff]
        %v1394 = vld [vmem:[#allocation2 + $0x38] sm:$0xff]
        %vm1395 = vcmask 523264
        %v1396 = vsel %vm1395, %v1383, 0.0
        %1397 = vadd.xlane.f32.xlu0 %v1396
        %v1398 = vpop.xlane.xlu0 %1397
        %v1399 = vsel %vm1395, %v1384, 0.0
        %1400 = vadd.xlane.f32.xlu0 %v1399
        %v1401 = vpop.xlane.xlu0 %1400
        %v1402 = vsel %vm1395, %v1385, 0.0
        %1403 = vadd.xlane.f32.xlu0 %v1402
        %v1404 = vpop.xlane.xlu0 %1403
        %v1405 = vsel %vm1395, %v1386, 0.0
        %1406 = vadd.xlane.f32.xlu0 %v1405
        %v1407 = vpop.xlane.xlu0 %1406
        %v1409 = vsel %vm1395, %v1331, 0
        %v1412 = vsel %vm1395, %v1332, 0
        %v1415 = vsel %vm1395, %v1333, 0
        %v1418 = vsel %vm1395, %v1334, 0
        %v1421 = vsel %vm1395, %v1387, 0
        %v1424 = vsel %vm1395, %v1388, 0
        %v1427 = vsel %vm1395, %v1389, 0
        %v1430 = vsel %vm1395, %v1390, 0
        %v1433 = vsel %vm1395, %v1391, 0
        %v1436 = vsel %vm1395, %v1392, 0
        %v1439 = vsel %vm1395, %v1393, 0
        %v1442 = vsel %vm1395, %v1394, 0
        %1444 = vmatprep.subr.mxu0 0.0
        %1445 = vmatpush1.xpose.msra.mxu0 0.0
        %1446 = vmatprep.subr.mxu0 0.0
        %1447 = vmatpush1.xpose.msra.mxu0 0.0
        %1448 = vmatprep.subr.mxu0 0.0
        %1449 = vmatpush1.xpose.msra.mxu0 0.0
        %1450 = vmatprep.subr.mxu0 0.0
        %1451 = vmatpush1.xpose.msra.mxu0 0.0
        %1452 = vmatprep.subr.mxu0 0.0
        %1453 = vmatpush1.xpose.msra.mxu0 0.0
        %1454 = vmatprep.subr.mxu0 0.0
        %1455 = vmatpush1.xpose.msra.mxu0 0.0
        %1456 = vmatprep.subr.mxu0 0.0
        %1457 = vmatpush1.xpose.msra.mxu0 0.0
        %1458 = vmatprep.subr.mxu0 0.0
        %1459 = vmatpush1.xpose.msra.mxu0 0.0
        %1460 = vmatprep.subr.mxu0 0.0
        %v1461 = vand.u32 %v1442, 4294901760
        %1462 = vmatpush1.xpose.msra.mxu0 %v1461
        %1463 = vmatprep.subr.mxu0 0.0
        %v1464 = vand.u32 %v1439, 4294901760
        %1465 = vmatpush1.xpose.msra.mxu0 %v1464
        %1466 = vmatprep.subr.mxu0 0.0
        %v1467 = vand.u32 %v1436, 4294901760
        %1468 = vmatpush1.xpose.msra.mxu0 %v1467
        %1469 = vmatprep.subr.mxu0 0.0
        %v1470 = vand.u32 %v1433, 4294901760
        %1471 = vmatpush1.xpose.msra.mxu0 %v1470
        %1472 = vmatprep.subr.mxu0 0.0
        %v1473 = vand.u32 %v1430, 4294901760
        %1474 = vmatpush1.xpose.msra.mxu0 %v1473
        %1475 = vmatprep.subr.mxu0 0.0
        %v1476 = vand.u32 %v1427, 4294901760
        %1477 = vmatpush1.xpose.msra.mxu0 %v1476
        %1478 = vmatprep.subr.mxu0 0.0
        %v1479 = vand.u32 %v1424, 4294901760
        %1480 = vmatpush1.xpose.msra.mxu0 %v1479
        %1481 = vmatprep.subr.mxu0 0.0
        %v1482 = vand.u32 %v1421, 4294901760
        %1483 = vmatpush1.xpose.msra.mxu0 %v1482
        %1484 = vmatprep.subr.mxu0 0.0
        %1485 = vmatpush2.xpose.msra.mxu0 0.0
        %1486 = vmatprep.subr.mxu0 0.0
        %1487 = vmatpush2.xpose.msra.mxu0 0.0
        %1488 = vmatprep.subr.mxu0 0.0
        %1489 = vmatpush2.xpose.msra.mxu0 0.0
        %1490 = vmatprep.subr.mxu0 0.0
        %1491 = vmatpush2.xpose.msra.mxu0 0.0
        %1492 = vmatprep.subr.mxu0 0.0
        %1493 = vmatpush2.xpose.msra.mxu0 0.0
        %1494 = vmatprep.subr.mxu0 0.0
        %1495 = vmatpush2.xpose.msra.mxu0 0.0
        %1496 = vmatprep.subr.mxu0 0.0
        %1497 = vmatpush2.xpose.msra.mxu0 0.0
        %1498 = vmatprep.subr.mxu0 0.0
        %1499 = vmatpush2.xpose.msra.mxu0 0.0
        %1500 = vmatprep.subr.mxu0 0.0
        %1501 = vmatpush2.xpose.msra.mxu0 0.0
        %1502 = vmatprep.subr.mxu0 0.0
        %1503 = vmatpush2.xpose.msra.mxu0 0.0
        %1504 = vmatprep.subr.mxu0 0.0
        %1505 = vmatpush2.xpose.msra.mxu0 0.0
        %1506 = vmatprep.subr.mxu0 0.0
        %1507 = vmatpush2.xpose.msra.mxu0 0.0
        %1508 = vmatprep.subr.mxu0 0.0
        %1509 = vmatpush2.xpose.msra.mxu0 0.0
        %1510 = vmatprep.subr.mxu0 0.0
        %1511 = vmatpush2.xpose.msra.mxu0 0.0
        %1512 = vmatprep.subr.mxu0 0.0
        %1513 = vmatpush2.xpose.msra.mxu0 0.0
        %1514 = vmatprep.subr.mxu0 0.0
        %1515 = vmatpush2.xpose.msra.mxu0 0.0
        %1516 = vmatprep.mubr.f32.mxu0 0.0
        %v1517 = vand.u32 %v1409, 4294901760
        %v1518 = vsub.f32 %v1409, %v1517
        %v1519 = vand.u32 %v1518, 4294901760
        %v1520 = vsub.f32 %v1518, %v1519
        %v1521 = vand.u32 %v1520, 4294901760
        %1522 = vmatmul.mubr.f32.gmra.mxu0 %v1521
        %v1523 = vpop.f32.mrf.mxu0
        %v1524 = vadd.f32 0.0, %v1523
        %v1525 = vpop.f32.mrf.mxu0
        %1526 = vmatprep.mubr.f32.mxu0 0.0
        %v1527 = vand.u32 %v1412, 4294901760
        %v1528 = vsub.f32 %v1412, %v1527
        %v1529 = vand.u32 %v1528, 4294901760
        %v1530 = vsub.f32 %v1528, %v1529
        %v1531 = vand.u32 %v1530, 4294901760
        %1532 = vmatmul.mubr.f32.gmra.mxu0 %v1531
        %v1533 = vpop.f32.mrf.mxu0
        %v1534 = vadd.f32 0.0, %v1533
        %v1535 = vpop.f32.mrf.mxu0
        %1536 = vmatprep.mubr.f32.mxu0 0.0
        %v1537 = vand.u32 %v1415, 4294901760
        %v1538 = vsub.f32 %v1415, %v1537
        %v1539 = vand.u32 %v1538, 4294901760
        %v1540 = vsub.f32 %v1538, %v1539
        %v1541 = vand.u32 %v1540, 4294901760
        %1542 = vmatmul.mubr.f32.gmra.mxu0 %v1541
        %v1543 = vpop.f32.mrf.mxu0
        %v1544 = vadd.f32 0.0, %v1543
        %v1545 = vpop.f32.mrf.mxu0
        %1546 = vmatprep.mubr.f32.mxu0 0.0
        %v1547 = vand.u32 %v1418, 4294901760
        %v1548 = vsub.f32 %v1418, %v1547
        %v1549 = vand.u32 %v1548, 4294901760
        %v1550 = vsub.f32 %v1548, %v1549
        %v1551 = vand.u32 %v1550, 4294901760
        %1552 = vmatmul.mubr.f32.gmra.mxu0 %v1551
        %v1553 = vpop.f32.mrf.mxu0
        %v1554 = vadd.f32 0.0, %v1553
        %v1555 = vpop.f32.mrf.mxu0
        %1556 = vdwg.mxu0
        %1557 = vmatprep.subr.mxu0 0.0
        %1558 = vmatpush1.xpose.msra.mxu0 0.0
        %1559 = vmatprep.subr.mxu0 0.0
        %1560 = vmatpush1.xpose.msra.mxu0 0.0
        %1561 = vmatprep.subr.mxu0 0.0
        %1562 = vmatpush1.xpose.msra.mxu0 0.0
        %1563 = vmatprep.subr.mxu0 0.0
        %1564 = vmatpush1.xpose.msra.mxu0 0.0
        %1565 = vmatprep.subr.mxu0 0.0
        %1566 = vmatpush1.xpose.msra.mxu0 0.0
        %1567 = vmatprep.subr.mxu0 0.0
        %1568 = vmatpush1.xpose.msra.mxu0 0.0
        %1569 = vmatprep.subr.mxu0 0.0
        %1570 = vmatpush1.xpose.msra.mxu0 0.0
        %1571 = vmatprep.subr.mxu0 0.0
        %1572 = vmatpush1.xpose.msra.mxu0 0.0
        %1573 = vmatprep.subr.mxu0 0.0
        %v1574 = vand.u32 %v1442, 4294901760
        %v1575 = vsub.f32 %v1442, %v1574
        %v1576 = vand.u32 %v1575, 4294901760
        %v1577 = vsub.f32 %v1575, %v1576
        %v1578 = vand.u32 %v1577, 4294901760
        %1579 = vmatpush1.xpose.msra.mxu0 %v1578
        %1580 = vmatprep.subr.mxu0 0.0
        %v1581 = vand.u32 %v1439, 4294901760
        %v1582 = vsub.f32 %v1439, %v1581
        %v1583 = vand.u32 %v1582, 4294901760
        %v1584 = vsub.f32 %v1582, %v1583
        %v1585 = vand.u32 %v1584, 4294901760
        %1586 = vmatpush1.xpose.msra.mxu0 %v1585
        %1587 = vmatprep.subr.mxu0 0.0
        %v1588 = vand.u32 %v1436, 4294901760
        %v1589 = vsub.f32 %v1436, %v1588
        %v1590 = vand.u32 %v1589, 4294901760
        %v1591 = vsub.f32 %v1589, %v1590
        %v1592 = vand.u32 %v1591, 4294901760
        %1593 = vmatpush1.xpose.msra.mxu0 %v1592
        %1594 = vmatprep.subr.mxu0 0.0
        %v1595 = vand.u32 %v1433, 4294901760
        %v1596 = vsub.f32 %v1433, %v1595
        %v1597 = vand.u32 %v1596, 4294901760
        %v1598 = vsub.f32 %v1596, %v1597
        %v1599 = vand.u32 %v1598, 4294901760
        %1600 = vmatpush1.xpose.msra.mxu0 %v1599
        %1601 = vmatprep.subr.mxu0 0.0
        %v1602 = vand.u32 %v1430, 4294901760
        %v1603 = vsub.f32 %v1430, %v1602
        %v1604 = vand.u32 %v1603, 4294901760
        %v1605 = vsub.f32 %v1603, %v1604
        %v1606 = vand.u32 %v1605, 4294901760
        %1607 = vmatpush1.xpose.msra.mxu0 %v1606
        %1608 = vmatprep.subr.mxu0 0.0
        %v1609 = vand.u32 %v1427, 4294901760
        %v1610 = vsub.f32 %v1427, %v1609
        %v1611 = vand.u32 %v1610, 4294901760
        %v1612 = vsub.f32 %v1610, %v1611
        %v1613 = vand.u32 %v1612, 4294901760
        %1614 = vmatpush1.xpose.msra.mxu0 %v1613
        %1615 = vmatprep.subr.mxu0 0.0
        %v1616 = vand.u32 %v1424, 4294901760
        %v1617 = vsub.f32 %v1424, %v1616
        %v1618 = vand.u32 %v1617, 4294901760
        %v1619 = vsub.f32 %v1617, %v1618
        %v1620 = vand.u32 %v1619, 4294901760
        %1621 = vmatpush1.xpose.msra.mxu0 %v1620
        %1622 = vmatprep.subr.mxu0 0.0
        %v1623 = vand.u32 %v1421, 4294901760
        %v1624 = vsub.f32 %v1421, %v1623
        %v1625 = vand.u32 %v1624, 4294901760
        %v1626 = vsub.f32 %v1624, %v1625
        %v1627 = vand.u32 %v1626, 4294901760
        %1628 = vmatpush1.xpose.msra.mxu0 %v1627
        %1629 = vmatprep.subr.mxu0 0.0
        %1630 = vmatpush2.xpose.msra.mxu0 0.0
        %1631 = vmatprep.subr.mxu0 0.0
        %1632 = vmatpush2.xpose.msra.mxu0 0.0
        %1633 = vmatprep.subr.mxu0 0.0
        %1634 = vmatpush2.xpose.msra.mxu0 0.0
        %1635 = vmatprep.subr.mxu0 0.0
        %1636 = vmatpush2.xpose.msra.mxu0 0.0
        %1637 = vmatprep.subr.mxu0 0.0
        %1638 = vmatpush2.xpose.msra.mxu0 0.0
        %1639 = vmatprep.subr.mxu0 0.0
        %1640 = vmatpush2.xpose.msra.mxu0 0.0
        %1641 = vmatprep.subr.mxu0 0.0
        %1642 = vmatpush2.xpose.msra.mxu0 0.0
        %1643 = vmatprep.subr.mxu0 0.0
        %1644 = vmatpush2.xpose.msra.mxu0 0.0
        %1645 = vmatprep.subr.mxu0 0.0
        %1646 = vmatpush2.xpose.msra.mxu0 0.0
        %1647 = vmatprep.subr.mxu0 0.0
        %1648 = vmatpush2.xpose.msra.mxu0 0.0
        %1649 = vmatprep.subr.mxu0 0.0
        %1650 = vmatpush2.xpose.msra.mxu0 0.0
        %1651 = vmatprep.subr.mxu0 0.0
        %1652 = vmatpush2.xpose.msra.mxu0 0.0
        %1653 = vmatprep.subr.mxu0 0.0
        %1654 = vmatpush2.xpose.msra.mxu0 0.0
        %1655 = vmatprep.subr.mxu0 0.0
        %1656 = vmatpush2.xpose.msra.mxu0 0.0
        %1657 = vmatprep.subr.mxu0 0.0
        %1658 = vmatpush2.xpose.msra.mxu0 0.0
        %1659 = vmatprep.subr.mxu0 0.0
        %1660 = vmatpush2.xpose.msra.mxu0 0.0
        %1661 = vmatprep.mubr.f32.mxu0 0.0
        %v1662 = vand.u32 %v1409, 4294901760
        %1663 = vmatmul.mubr.f32.gmra.mxu0 %v1662
        %v1664 = vpop.f32.mrf.mxu0
        %v1665 = vadd.f32 %v1524, %v1664
        %v1666 = vpop.f32.mrf.mxu0
        %1667 = vmatprep.mubr.f32.mxu0 0.0
        %v1668 = vand.u32 %v1412, 4294901760
        %1669 = vmatmul.mubr.f32.gmra.mxu0 %v1668
        %v1670 = vpop.f32.mrf.mxu0
        %v1671 = vadd.f32 %v1534, %v1670
        %v1672 = vpop.f32.mrf.mxu0
        %1673 = vmatprep.mubr.f32.mxu0 0.0
        %v1674 = vand.u32 %v1415, 4294901760
        %1675 = vmatmul.mubr.f32.gmra.mxu0 %v1674
        %v1676 = vpop.f32.mrf.mxu0
        %v1677 = vadd.f32 %v1544, %v1676
        %v1678 = vpop.f32.mrf.mxu0
        %1679 = vmatprep.mubr.f32.mxu0 0.0
        %v1680 = vand.u32 %v1418, 4294901760
        %1681 = vmatmul.mubr.f32.gmra.mxu0 %v1680
        %v1682 = vpop.f32.mrf.mxu0
        %v1683 = vadd.f32 %v1554, %v1682
        %v1684 = vpop.f32.mrf.mxu0
        %1685 = vdwg.mxu0
        %1686 = vmatprep.subr.mxu0 0.0
        %1687 = vmatpush1.xpose.msra.mxu0 0.0
        %1688 = vmatprep.subr.mxu0 0.0
        %1689 = vmatpush1.xpose.msra.mxu0 0.0
        %1690 = vmatprep.subr.mxu0 0.0
        %1691 = vmatpush1.xpose.msra.mxu0 0.0
        %1692 = vmatprep.subr.mxu0 0.0
        %1693 = vmatpush1.xpose.msra.mxu0 0.0
        %1694 = vmatprep.subr.mxu0 0.0
        %1695 = vmatpush1.xpose.msra.mxu0 0.0
        %1696 = vmatprep.subr.mxu0 0.0
        %1697 = vmatpush1.xpose.msra.mxu0 0.0
        %1698 = vmatprep.subr.mxu0 0.0
        %1699 = vmatpush1.xpose.msra.mxu0 0.0
        %1700 = vmatprep.subr.mxu0 0.0
        %1701 = vmatpush1.xpose.msra.mxu0 0.0
        %1702 = vmatprep.subr.mxu0 0.0
        %v1703 = vand.u32 %v1442, 4294901760
        %v1704 = vsub.f32 %v1442, %v1703
        %1705 = vmatpush1.xpose.msra.mxu0 %v1704
        %1706 = vmatprep.subr.mxu0 0.0
        %v1707 = vand.u32 %v1439, 4294901760
        %v1708 = vsub.f32 %v1439, %v1707
        %1709 = vmatpush1.xpose.msra.mxu0 %v1708
        %1710 = vmatprep.subr.mxu0 0.0
        %v1711 = vand.u32 %v1436, 4294901760
        %v1712 = vsub.f32 %v1436, %v1711
        %1713 = vmatpush1.xpose.msra.mxu0 %v1712
        %1714 = vmatprep.subr.mxu0 0.0
        %v1715 = vand.u32 %v1433, 4294901760
        %v1716 = vsub.f32 %v1433, %v1715
        %1717 = vmatpush1.xpose.msra.mxu0 %v1716
        %1718 = vmatprep.subr.mxu0 0.0
        %v1719 = vand.u32 %v1430, 4294901760
        %v1720 = vsub.f32 %v1430, %v1719
        %1721 = vmatpush1.xpose.msra.mxu0 %v1720
        %1722 = vmatprep.subr.mxu0 0.0
        %v1723 = vand.u32 %v1427, 4294901760
        %v1724 = vsub.f32 %v1427, %v1723
        %1725 = vmatpush1.xpose.msra.mxu0 %v1724
        %1726 = vmatprep.subr.mxu0 0.0
        %v1727 = vand.u32 %v1424, 4294901760
        %v1728 = vsub.f32 %v1424, %v1727
        %1729 = vmatpush1.xpose.msra.mxu0 %v1728
        %1730 = vmatprep.subr.mxu0 0.0
        %v1731 = vand.u32 %v1421, 4294901760
        %v1732 = vsub.f32 %v1421, %v1731
        %1733 = vmatpush1.xpose.msra.mxu0 %v1732
        %1734 = vmatprep.subr.mxu0 0.0
        %1735 = vmatpush2.xpose.msra.mxu0 0.0
        %1736 = vmatprep.subr.mxu0 0.0
        %1737 = vmatpush2.xpose.msra.mxu0 0.0
        %1738 = vmatprep.subr.mxu0 0.0
        %1739 = vmatpush2.xpose.msra.mxu0 0.0
        %1740 = vmatprep.subr.mxu0 0.0
        %1741 = vmatpush2.xpose.msra.mxu0 0.0
        %1742 = vmatprep.subr.mxu0 0.0
        %1743 = vmatpush2.xpose.msra.mxu0 0.0
        %1744 = vmatprep.subr.mxu0 0.0
        %1745 = vmatpush2.xpose.msra.mxu0 0.0
        %1746 = vmatprep.subr.mxu0 0.0
        %1747 = vmatpush2.xpose.msra.mxu0 0.0
        %1748 = vmatprep.subr.mxu0 0.0
        %1749 = vmatpush2.xpose.msra.mxu0 0.0
        %1750 = vmatprep.subr.mxu0 0.0
        %1751 = vmatpush2.xpose.msra.mxu0 0.0
        %1752 = vmatprep.subr.mxu0 0.0
        %1753 = vmatpush2.xpose.msra.mxu0 0.0
        %1754 = vmatprep.subr.mxu0 0.0
        %1755 = vmatpush2.xpose.msra.mxu0 0.0
        %1756 = vmatprep.subr.mxu0 0.0
        %1757 = vmatpush2.xpose.msra.mxu0 0.0
        %1758 = vmatprep.subr.mxu0 0.0
        %1759 = vmatpush2.xpose.msra.mxu0 0.0
        %1760 = vmatprep.subr.mxu0 0.0
        %1761 = vmatpush2.xpose.msra.mxu0 0.0
        %1762 = vmatprep.subr.mxu0 0.0
        %1763 = vmatpush2.xpose.msra.mxu0 0.0
        %1764 = vmatprep.subr.mxu0 0.0
        %1765 = vmatpush2.xpose.msra.mxu0 0.0
        %1766 = vmatprep.mubr.f32.mxu0 0.0
        %v1767 = vand.u32 %v1409, 4294901760
        %v1768 = vsub.f32 %v1409, %v1767
        %1769 = vmatmul.mubr.f32.gmra.mxu0 %v1768
        %v1770 = vpop.f32.mrf.mxu0
        %v1771 = vadd.f32 %v1665, %v1770
        %v1772 = vpop.f32.mrf.mxu0
        %1773 = vmatprep.mubr.f32.mxu0 0.0
        %v1774 = vand.u32 %v1412, 4294901760
        %v1775 = vsub.f32 %v1412, %v1774
        %1776 = vmatmul.mubr.f32.gmra.mxu0 %v1775
        %v1777 = vpop.f32.mrf.mxu0
        %v1778 = vadd.f32 %v1671, %v1777
        %v1779 = vpop.f32.mrf.mxu0
        %1780 = vmatprep.mubr.f32.mxu0 0.0
        %v1781 = vand.u32 %v1415, 4294901760
        %v1782 = vsub.f32 %v1415, %v1781
        %1783 = vmatmul.mubr.f32.gmra.mxu0 %v1782
        %v1784 = vpop.f32.mrf.mxu0
        %v1785 = vadd.f32 %v1677, %v1784
        %v1786 = vpop.f32.mrf.mxu0
        %1787 = vmatprep.mubr.f32.mxu0 0.0
        %v1788 = vand.u32 %v1418, 4294901760
        %v1789 = vsub.f32 %v1418, %v1788
        %1790 = vmatmul.mubr.f32.gmra.mxu0 %v1789
        %v1791 = vpop.f32.mrf.mxu0
        %v1792 = vadd.f32 %v1683, %v1791
        %v1793 = vpop.f32.mrf.mxu0
        %1794 = vdwg.mxu0
        %1795 = vmatprep.subr.mxu0 0.0
        %1796 = vmatpush1.xpose.msra.mxu0 0.0
        %1797 = vmatprep.subr.mxu0 0.0
        %1798 = vmatpush1.xpose.msra.mxu0 0.0
        %1799 = vmatprep.subr.mxu0 0.0
        %1800 = vmatpush1.xpose.msra.mxu0 0.0
        %1801 = vmatprep.subr.mxu0 0.0
        %1802 = vmatpush1.xpose.msra.mxu0 0.0
        %1803 = vmatprep.subr.mxu0 0.0
        %1804 = vmatpush1.xpose.msra.mxu0 0.0
        %1805 = vmatprep.subr.mxu0 0.0
        %1806 = vmatpush1.xpose.msra.mxu0 0.0
        %1807 = vmatprep.subr.mxu0 0.0
        %1808 = vmatpush1.xpose.msra.mxu0 0.0
        %1809 = vmatprep.subr.mxu0 0.0
        %1810 = vmatpush1.xpose.msra.mxu0 0.0
        %1811 = vmatprep.subr.mxu0 0.0
        %v1812 = vand.u32 %v1442, 4294901760
        %1813 = vmatpush1.xpose.msra.mxu0 %v1812
        %1814 = vmatprep.subr.mxu0 0.0
        %v1815 = vand.u32 %v1439, 4294901760
        %1816 = vmatpush1.xpose.msra.mxu0 %v1815
        %1817 = vmatprep.subr.mxu0 0.0
        %v1818 = vand.u32 %v1436, 4294901760
        %1819 = vmatpush1.xpose.msra.mxu0 %v1818
        %1820 = vmatprep.subr.mxu0 0.0
        %v1821 = vand.u32 %v1433, 4294901760
        %1822 = vmatpush1.xpose.msra.mxu0 %v1821
        %1823 = vmatprep.subr.mxu0 0.0
        %v1824 = vand.u32 %v1430, 4294901760
        %1825 = vmatpush1.xpose.msra.mxu0 %v1824
        %1826 = vmatprep.subr.mxu0 0.0
        %v1827 = vand.u32 %v1427, 4294901760
        %1828 = vmatpush1.xpose.msra.mxu0 %v1827
        %1829 = vmatprep.subr.mxu0 0.0
        %v1830 = vand.u32 %v1424, 4294901760
        %1831 = vmatpush1.xpose.msra.mxu0 %v1830
        %1832 = vmatprep.subr.mxu0 0.0
        %v1833 = vand.u32 %v1421, 4294901760
        %1834 = vmatpush1.xpose.msra.mxu0 %v1833
        %1835 = vmatprep.subr.mxu0 0.0
        %1836 = vmatpush2.xpose.msra.mxu0 0.0
        %1837 = vmatprep.subr.mxu0 0.0
        %1838 = vmatpush2.xpose.msra.mxu0 0.0
        %1839 = vmatprep.subr.mxu0 0.0
        %1840 = vmatpush2.xpose.msra.mxu0 0.0
        %1841 = vmatprep.subr.mxu0 0.0
        %1842 = vmatpush2.xpose.msra.mxu0 0.0
        %1843 = vmatprep.subr.mxu0 0.0
        %1844 = vmatpush2.xpose.msra.mxu0 0.0
        %1845 = vmatprep.subr.mxu0 0.0
        %1846 = vmatpush2.xpose.msra.mxu0 0.0
        %1847 = vmatprep.subr.mxu0 0.0
        %1848 = vmatpush2.xpose.msra.mxu0 0.0
        %1849 = vmatprep.subr.mxu0 0.0
        %1850 = vmatpush2.xpose.msra.mxu0 0.0
        %1851 = vmatprep.subr.mxu0 0.0
        %1852 = vmatpush2.xpose.msra.mxu0 0.0
        %1853 = vmatprep.subr.mxu0 0.0
        %1854 = vmatpush2.xpose.msra.mxu0 0.0
        %1855 = vmatprep.subr.mxu0 0.0
        %1856 = vmatpush2.xpose.msra.mxu0 0.0
        %1857 = vmatprep.subr.mxu0 0.0
        %1858 = vmatpush2.xpose.msra.mxu0 0.0
        %1859 = vmatprep.subr.mxu0 0.0
        %1860 = vmatpush2.xpose.msra.mxu0 0.0
        %1861 = vmatprep.subr.mxu0 0.0
        %1862 = vmatpush2.xpose.msra.mxu0 0.0
        %1863 = vmatprep.subr.mxu0 0.0
        %1864 = vmatpush2.xpose.msra.mxu0 0.0
        %1865 = vmatprep.subr.mxu0 0.0
        %1866 = vmatpush2.xpose.msra.mxu0 0.0
        %1867 = vmatprep.mubr.f32.mxu0 0.0
        %v1868 = vand.u32 %v1409, 4294901760
        %v1869 = vsub.f32 %v1409, %v1868
        %v1870 = vand.u32 %v1869, 4294901760
        %1871 = vmatmul.mubr.f32.gmra.mxu0 %v1870
        %v1872 = vpop.f32.mrf.mxu0
        %v1873 = vadd.f32 %v1771, %v1872
        %v1874 = vpop.f32.mrf.mxu0
        %1875 = vmatprep.mubr.f32.mxu0 0.0
        %v1876 = vand.u32 %v1412, 4294901760
        %v1877 = vsub.f32 %v1412, %v1876
        %v1878 = vand.u32 %v1877, 4294901760
        %1879 = vmatmul.mubr.f32.gmra.mxu0 %v1878
        %v1880 = vpop.f32.mrf.mxu0
        %v1881 = vadd.f32 %v1778, %v1880
        %v1882 = vpop.f32.mrf.mxu0
        %1883 = vmatprep.mubr.f32.mxu0 0.0
        %v1884 = vand.u32 %v1415, 4294901760
        %v1885 = vsub.f32 %v1415, %v1884
        %v1886 = vand.u32 %v1885, 4294901760
        %1887 = vmatmul.mubr.f32.gmra.mxu0 %v1886
        %v1888 = vpop.f32.mrf.mxu0
        %v1889 = vadd.f32 %v1785, %v1888
        %v1890 = vpop.f32.mrf.mxu0
        %1891 = vmatprep.mubr.f32.mxu0 0.0
        %v1892 = vand.u32 %v1418, 4294901760
        %v1893 = vsub.f32 %v1418, %v1892
        %v1894 = vand.u32 %v1893, 4294901760
        %1895 = vmatmul.mubr.f32.gmra.mxu0 %v1894
        %v1896 = vpop.f32.mrf.mxu0
        %v1897 = vadd.f32 %v1792, %v1896
        %v1898 = vpop.f32.mrf.mxu0
        %1899 = vdwg.mxu0
        %1900 = vmatprep.subr.mxu0 0.0
        %1901 = vmatpush1.xpose.msra.mxu0 0.0
        %1902 = vmatprep.subr.mxu0 0.0
        %1903 = vmatpush1.xpose.msra.mxu0 0.0
        %1904 = vmatprep.subr.mxu0 0.0
        %1905 = vmatpush1.xpose.msra.mxu0 0.0
        %1906 = vmatprep.subr.mxu0 0.0
        %1907 = vmatpush1.xpose.msra.mxu0 0.0
        %1908 = vmatprep.subr.mxu0 0.0
        %1909 = vmatpush1.xpose.msra.mxu0 0.0
        %1910 = vmatprep.subr.mxu0 0.0
        %1911 = vmatpush1.xpose.msra.mxu0 0.0
        %1912 = vmatprep.subr.mxu0 0.0
        %1913 = vmatpush1.xpose.msra.mxu0 0.0
        %1914 = vmatprep.subr.mxu0 0.0
        %1915 = vmatpush1.xpose.msra.mxu0 0.0
        %1916 = vmatprep.subr.mxu0 0.0
        %v1917 = vand.u32 %v1442, 4294901760
        %v1918 = vsub.f32 %v1442, %v1917
        %v1919 = vand.u32 %v1918, 4294901760
        %1920 = vmatpush1.xpose.msra.mxu0 %v1919
        %1921 = vmatprep.subr.mxu0 0.0
        %v1922 = vand.u32 %v1439, 4294901760
        %v1923 = vsub.f32 %v1439, %v1922
        %v1924 = vand.u32 %v1923, 4294901760
        %1925 = vmatpush1.xpose.msra.mxu0 %v1924
        %1926 = vmatprep.subr.mxu0 0.0
        %v1927 = vand.u32 %v1436, 4294901760
        %v1928 = vsub.f32 %v1436, %v1927
        %v1929 = vand.u32 %v1928, 4294901760
        %1930 = vmatpush1.xpose.msra.mxu0 %v1929
        %1931 = vmatprep.subr.mxu0 0.0
        %v1932 = vand.u32 %v1433, 4294901760
        %v1933 = vsub.f32 %v1433, %v1932
        %v1934 = vand.u32 %v1933, 4294901760
        %1935 = vmatpush1.xpose.msra.mxu0 %v1934
        %1936 = vmatprep.subr.mxu0 0.0
        %v1937 = vand.u32 %v1430, 4294901760
        %v1938 = vsub.f32 %v1430, %v1937
        %v1939 = vand.u32 %v1938, 4294901760
        %1940 = vmatpush1.xpose.msra.mxu0 %v1939
        %1941 = vmatprep.subr.mxu0 0.0
        %v1942 = vand.u32 %v1427, 4294901760
        %v1943 = vsub.f32 %v1427, %v1942
        %v1944 = vand.u32 %v1943, 4294901760
        %1945 = vmatpush1.xpose.msra.mxu0 %v1944
        %1946 = vmatprep.subr.mxu0 0.0
        %v1947 = vand.u32 %v1424, 4294901760
        %v1948 = vsub.f32 %v1424, %v1947
        %v1949 = vand.u32 %v1948, 4294901760
        %1950 = vmatpush1.xpose.msra.mxu0 %v1949
        %1951 = vmatprep.subr.mxu0 0.0
        %v1952 = vand.u32 %v1421, 4294901760
        %v1953 = vsub.f32 %v1421, %v1952
        %v1954 = vand.u32 %v1953, 4294901760
        %1955 = vmatpush1.xpose.msra.mxu0 %v1954
        %1956 = vmatprep.subr.mxu0 0.0
        %1957 = vmatpush2.xpose.msra.mxu0 0.0
        %1958 = vmatprep.subr.mxu0 0.0
        %1959 = vmatpush2.xpose.msra.mxu0 0.0
        %1960 = vmatprep.subr.mxu0 0.0
        %1961 = vmatpush2.xpose.msra.mxu0 0.0
        %1962 = vmatprep.subr.mxu0 0.0
        %1963 = vmatpush2.xpose.msra.mxu0 0.0
        %1964 = vmatprep.subr.mxu0 0.0
        %1965 = vmatpush2.xpose.msra.mxu0 0.0
        %1966 = vmatprep.subr.mxu0 0.0
        %1967 = vmatpush2.xpose.msra.mxu0 0.0
        %1968 = vmatprep.subr.mxu0 0.0
        %1969 = vmatpush2.xpose.msra.mxu0 0.0
        %1970 = vmatprep.subr.mxu0 0.0
        %1971 = vmatpush2.xpose.msra.mxu0 0.0
        %1972 = vmatprep.subr.mxu0 0.0
        %1973 = vmatpush2.xpose.msra.mxu0 0.0
        %1974 = vmatprep.subr.mxu0 0.0
        %1975 = vmatpush2.xpose.msra.mxu0 0.0
        %1976 = vmatprep.subr.mxu0 0.0
        %1977 = vmatpush2.xpose.msra.mxu0 0.0
        %1978 = vmatprep.subr.mxu0 0.0
        %1979 = vmatpush2.xpose.msra.mxu0 0.0
        %1980 = vmatprep.subr.mxu0 0.0
        %1981 = vmatpush2.xpose.msra.mxu0 0.0
        %1982 = vmatprep.subr.mxu0 0.0
        %1983 = vmatpush2.xpose.msra.mxu0 0.0
        %1984 = vmatprep.subr.mxu0 0.0
        %1985 = vmatpush2.xpose.msra.mxu0 0.0
        %1986 = vmatprep.subr.mxu0 0.0
        %1987 = vmatpush2.xpose.msra.mxu0 0.0
        %1988 = vmatprep.mubr.f32.mxu0 0.0
        %v1989 = vand.u32 %v1409, 4294901760
        %1990 = vmatmul.mubr.f32.gmra.mxu0 %v1989
        %v1991 = vpop.f32.mrf.mxu0
        %v1992 = vadd.f32 %v1873, %v1991
        %v1993 = vpop.f32.mrf.mxu0
        %1994 = vmatprep.mubr.f32.mxu0 0.0
        %v1995 = vand.u32 %v1412, 4294901760
        %1996 = vmatmul.mubr.f32.gmra.mxu0 %v1995
        %v1997 = vpop.f32.mrf.mxu0
        %v1998 = vadd.f32 %v1881, %v1997
        %v1999 = vpop.f32.mrf.mxu0
        %2000 = vmatprep.mubr.f32.mxu0 0.0
        %v2001 = vand.u32 %v1415, 4294901760
        %2002 = vmatmul.mubr.f32.gmra.mxu0 %v2001
        %v2003 = vpop.f32.mrf.mxu0
        %v2004 = vadd.f32 %v1889, %v2003
        %v2005 = vpop.f32.mrf.mxu0
        %2006 = vmatprep.mubr.f32.mxu0 0.0
        %v2007 = vand.u32 %v1418, 4294901760
        %2008 = vmatmul.mubr.f32.gmra.mxu0 %v2007
        %v2009 = vpop.f32.mrf.mxu0
        %v2010 = vadd.f32 %v1897, %v2009
        %v2011 = vpop.f32.mrf.mxu0
        %2012 = vdwg.mxu0
        %2013 = vmatprep.subr.mxu0 0.0
        %2014 = vmatpush1.xpose.msra.mxu0 0.0
        %2015 = vmatprep.subr.mxu0 0.0
        %2016 = vmatpush1.xpose.msra.mxu0 0.0
        %2017 = vmatprep.subr.mxu0 0.0
        %2018 = vmatpush1.xpose.msra.mxu0 0.0
        %2019 = vmatprep.subr.mxu0 0.0
        %2020 = vmatpush1.xpose.msra.mxu0 0.0
        %2021 = vmatprep.subr.mxu0 0.0
        %2022 = vmatpush1.xpose.msra.mxu0 0.0
        %2023 = vmatprep.subr.mxu0 0.0
        %2024 = vmatpush1.xpose.msra.mxu0 0.0
        %2025 = vmatprep.subr.mxu0 0.0
        %2026 = vmatpush1.xpose.msra.mxu0 0.0
        %2027 = vmatprep.subr.mxu0 0.0
        %2028 = vmatpush1.xpose.msra.mxu0 0.0
        %2029 = vmatprep.subr.mxu0 0.0
        %v2030 = vand.u32 %v1442, 4294901760
        %2031 = vmatpush1.xpose.msra.mxu0 %v2030
        %2032 = vmatprep.subr.mxu0 0.0
        %v2033 = vand.u32 %v1439, 4294901760
        %2034 = vmatpush1.xpose.msra.mxu0 %v2033
        %2035 = vmatprep.subr.mxu0 0.0
        %v2036 = vand.u32 %v1436, 4294901760
        %2037 = vmatpush1.xpose.msra.mxu0 %v2036
        %2038 = vmatprep.subr.mxu0 0.0
        %v2039 = vand.u32 %v1433, 4294901760
        %2040 = vmatpush1.xpose.msra.mxu0 %v2039
        %2041 = vmatprep.subr.mxu0 0.0
        %v2042 = vand.u32 %v1430, 4294901760
        %2043 = vmatpush1.xpose.msra.mxu0 %v2042
        %2044 = vmatprep.subr.mxu0 0.0
        %v2045 = vand.u32 %v1427, 4294901760
        %2046 = vmatpush1.xpose.msra.mxu0 %v2045
        %2047 = vmatprep.subr.mxu0 0.0
        %v2048 = vand.u32 %v1424, 4294901760
        %2049 = vmatpush1.xpose.msra.mxu0 %v2048
        %2050 = vmatprep.subr.mxu0 0.0
        %v2051 = vand.u32 %v1421, 4294901760
        %2052 = vmatpush1.xpose.msra.mxu0 %v2051
        %2053 = vmatprep.subr.mxu0 0.0
        %2054 = vmatpush2.xpose.msra.mxu0 0.0
        %2055 = vmatprep.subr.mxu0 0.0
        %2056 = vmatpush2.xpose.msra.mxu0 0.0
        %2057 = vmatprep.subr.mxu0 0.0
        %2058 = vmatpush2.xpose.msra.mxu0 0.0
        %2059 = vmatprep.subr.mxu0 0.0
        %2060 = vmatpush2.xpose.msra.mxu0 0.0
        %2061 = vmatprep.subr.mxu0 0.0
        %2062 = vmatpush2.xpose.msra.mxu0 0.0
        %2063 = vmatprep.subr.mxu0 0.0
        %2064 = vmatpush2.xpose.msra.mxu0 0.0
        %2065 = vmatprep.subr.mxu0 0.0
        %2066 = vmatpush2.xpose.msra.mxu0 0.0
        %2067 = vmatprep.subr.mxu0 0.0
        %2068 = vmatpush2.xpose.msra.mxu0 0.0
        %2069 = vmatprep.subr.mxu0 0.0
        %2070 = vmatpush2.xpose.msra.mxu0 0.0
        %2071 = vmatprep.subr.mxu0 0.0
        %2072 = vmatpush2.xpose.msra.mxu0 0.0
        %2073 = vmatprep.subr.mxu0 0.0
        %2074 = vmatpush2.xpose.msra.mxu0 0.0
        %2075 = vmatprep.subr.mxu0 0.0
        %2076 = vmatpush2.xpose.msra.mxu0 0.0
        %2077 = vmatprep.subr.mxu0 0.0
        %2078 = vmatpush2.xpose.msra.mxu0 0.0
        %2079 = vmatprep.subr.mxu0 0.0
        %2080 = vmatpush2.xpose.msra.mxu0 0.0
        %2081 = vmatprep.subr.mxu0 0.0
        %2082 = vmatpush2.xpose.msra.mxu0 0.0
        %2083 = vmatprep.subr.mxu0 0.0
        %2084 = vmatpush2.xpose.msra.mxu0 0.0
        %2085 = vmatprep.mubr.f32.mxu0 0.0
        %v2086 = vand.u32 %v1409, 4294901760
        %2087 = vmatmul.mubr.f32.gmra.mxu0 %v2086
        %v2088 = vpop.f32.mrf.mxu0
        %v2089 = vadd.f32 %v1992, %v2088
        %v2090 = vpop.f32.mrf.mxu0
        %2091 = vmatprep.mubr.f32.mxu0 0.0
        %v2092 = vand.u32 %v1412, 4294901760
        %2093 = vmatmul.mubr.f32.gmra.mxu0 %v2092
        %v2094 = vpop.f32.mrf.mxu0
        %v2095 = vadd.f32 %v1998, %v2094
        %v2096 = vpop.f32.mrf.mxu0
        %2097 = vmatprep.mubr.f32.mxu0 0.0
        %v2098 = vand.u32 %v1415, 4294901760
        %2099 = vmatmul.mubr.f32.gmra.mxu0 %v2098
        %v2100 = vpop.f32.mrf.mxu0
        %v2101 = vadd.f32 %v2004, %v2100
        %v2102 = vpop.f32.mrf.mxu0
        %2103 = vmatprep.mubr.f32.mxu0 0.0
        %v2104 = vand.u32 %v1418, 4294901760
        %2105 = vmatmul.mubr.f32.gmra.mxu0 %v2104
        %v2106 = vpop.f32.mrf.mxu0
        %v2107 = vadd.f32 %v2010, %v2106
        %v2108 = vpop.f32.mrf.mxu0
        %2109 = vdwg.mxu0
        %v2111 = vsel %vm1395, %v1347, 0
        %v2114 = vsel %vm1395, %v1348, 0
        %v2117 = vsel %vm1395, %v1349, 0
        %v2120 = vsel %vm1395, %v1350, 0
        %2122 = vmatprep.subr.mxu0 0.0
        %2123 = vmatpush1.xpose.msra.mxu0 0.0
        %2124 = vmatprep.subr.mxu0 0.0
        %2125 = vmatpush1.xpose.msra.mxu0 0.0
        %2126 = vmatprep.subr.mxu0 0.0
        %2127 = vmatpush1.xpose.msra.mxu0 0.0
        %2128 = vmatprep.subr.mxu0 0.0
        %2129 = vmatpush1.xpose.msra.mxu0 0.0
        %2130 = vmatprep.subr.mxu0 0.0
        %2131 = vmatpush1.xpose.msra.mxu0 0.0
        %2132 = vmatprep.subr.mxu0 0.0
        %2133 = vmatpush1.xpose.msra.mxu0 0.0
        %2134 = vmatprep.subr.mxu0 0.0
        %2135 = vmatpush1.xpose.msra.mxu0 0.0
        %2136 = vmatprep.subr.mxu0 0.0
        %2137 = vmatpush1.xpose.msra.mxu0 0.0
        %2138 = vmatprep.subr.mxu0 0.0
        %2139 = vmatpush1.xpose.msra.mxu0 0.0
        %2140 = vmatprep.subr.mxu0 0.0
        %2141 = vmatpush1.xpose.msra.mxu0 0.0
        %2142 = vmatprep.subr.mxu0 0.0
        %2143 = vmatpush1.xpose.msra.mxu0 0.0
        %2144 = vmatprep.subr.mxu0 0.0
        %2145 = vmatpush1.xpose.msra.mxu0 0.0
        %2146 = vmatprep.subr.mxu0 0.0
        %v2147 = vand.u32 %v2120, 4294901760
        %2148 = vmatpush1.xpose.msra.mxu0 %v2147
        %2149 = vmatprep.subr.mxu0 0.0
        %v2150 = vand.u32 %v2117, 4294901760
        %2151 = vmatpush1.xpose.msra.mxu0 %v2150
        %2152 = vmatprep.subr.mxu0 0.0
        %v2153 = vand.u32 %v2114, 4294901760
        %2154 = vmatpush1.xpose.msra.mxu0 %v2153
        %2155 = vmatprep.subr.mxu0 0.0
        %v2156 = vand.u32 %v2111, 4294901760
        %2157 = vmatpush1.xpose.msra.mxu0 %v2156
        %2158 = vmatprep.subr.mxu0 0.0
        %2159 = vmatpush2.xpose.msra.mxu0 0.0
        %2160 = vmatprep.subr.mxu0 0.0
        %2161 = vmatpush2.xpose.msra.mxu0 0.0
        %2162 = vmatprep.subr.mxu0 0.0
        %2163 = vmatpush2.xpose.msra.mxu0 0.0
        %2164 = vmatprep.subr.mxu0 0.0
        %2165 = vmatpush2.xpose.msra.mxu0 0.0
        %2166 = vmatprep.subr.mxu0 0.0
        %2167 = vmatpush2.xpose.msra.mxu0 0.0
        %2168 = vmatprep.subr.mxu0 0.0
        %2169 = vmatpush2.xpose.msra.mxu0 0.0
        %2170 = vmatprep.subr.mxu0 0.0
        %2171 = vmatpush2.xpose.msra.mxu0 0.0
        %2172 = vmatprep.subr.mxu0 0.0
        %2173 = vmatpush2.xpose.msra.mxu0 0.0
        %2174 = vmatprep.subr.mxu0 0.0
        %2175 = vmatpush2.xpose.msra.mxu0 0.0
        %2176 = vmatprep.subr.mxu0 0.0
        %2177 = vmatpush2.xpose.msra.mxu0 0.0
        %2178 = vmatprep.subr.mxu0 0.0
        %2179 = vmatpush2.xpose.msra.mxu0 0.0
        %2180 = vmatprep.subr.mxu0 0.0
        %2181 = vmatpush2.xpose.msra.mxu0 0.0
        %2182 = vmatprep.subr.mxu0 0.0
        %2183 = vmatpush2.xpose.msra.mxu0 0.0
        %2184 = vmatprep.subr.mxu0 0.0
        %2185 = vmatpush2.xpose.msra.mxu0 0.0
        %2186 = vmatprep.subr.mxu0 0.0
        %2187 = vmatpush2.xpose.msra.mxu0 0.0
        %2188 = vmatprep.subr.mxu0 0.0
        %2189 = vmatpush2.xpose.msra.mxu0 0.0
        %2190 = vmatprep.mubr.f32.mxu0 0.0
        %v2191 = vand.u32 %v1409, 4294901760
        %v2192 = vsub.f32 %v1409, %v2191
        %v2193 = vand.u32 %v2192, 4294901760
        %v2194 = vsub.f32 %v2192, %v2193
        %v2195 = vand.u32 %v2194, 4294901760
        %2196 = vmatmul.mubr.f32.gmra.mxu0 %v2195
        %v2197 = vpop.f32.mrf.mxu0
        %v2198 = vadd.f32 0.0, %v2197
        %v2199 = vpop.f32.mrf.mxu0
        %2200 = vmatprep.mubr.f32.mxu0 0.0
        %v2201 = vand.u32 %v1412, 4294901760
        %v2202 = vsub.f32 %v1412, %v2201
        %v2203 = vand.u32 %v2202, 4294901760
        %v2204 = vsub.f32 %v2202, %v2203
        %v2205 = vand.u32 %v2204, 4294901760
        %2206 = vmatmul.mubr.f32.gmra.mxu0 %v2205
        %v2207 = vpop.f32.mrf.mxu0
        %v2208 = vadd.f32 0.0, %v2207
        %v2209 = vpop.f32.mrf.mxu0
        %2210 = vmatprep.mubr.f32.mxu0 0.0
        %v2211 = vand.u32 %v1415, 4294901760
        %v2212 = vsub.f32 %v1415, %v2211
        %v2213 = vand.u32 %v2212, 4294901760
        %v2214 = vsub.f32 %v2212, %v2213
        %v2215 = vand.u32 %v2214, 4294901760
        %2216 = vmatmul.mubr.f32.gmra.mxu0 %v2215
        %v2217 = vpop.f32.mrf.mxu0
        %v2218 = vadd.f32 0.0, %v2217
        %v2219 = vpop.f32.mrf.mxu0
        %2220 = vmatprep.mubr.f32.mxu0 0.0
        %v2221 = vand.u32 %v1418, 4294901760
        %v2222 = vsub.f32 %v1418, %v2221
        %v2223 = vand.u32 %v2222, 4294901760
        %v2224 = vsub.f32 %v2222, %v2223
        %v2225 = vand.u32 %v2224, 4294901760
        %2226 = vmatmul.mubr.f32.gmra.mxu0 %v2225
        %v2227 = vpop.f32.mrf.mxu0
        %v2228 = vadd.f32 0.0, %v2227
        %v2229 = vpop.f32.mrf.mxu0
        %2230 = vdwg.mxu0
        %2231 = vmatprep.subr.mxu0 0.0
        %2232 = vmatpush1.xpose.msra.mxu0 0.0
        %2233 = vmatprep.subr.mxu0 0.0
        %2234 = vmatpush1.xpose.msra.mxu0 0.0
        %2235 = vmatprep.subr.mxu0 0.0
        %2236 = vmatpush1.xpose.msra.mxu0 0.0
        %2237 = vmatprep.subr.mxu0 0.0
        %2238 = vmatpush1.xpose.msra.mxu0 0.0
        %2239 = vmatprep.subr.mxu0 0.0
        %2240 = vmatpush1.xpose.msra.mxu0 0.0
        %2241 = vmatprep.subr.mxu0 0.0
        %2242 = vmatpush1.xpose.msra.mxu0 0.0
        %2243 = vmatprep.subr.mxu0 0.0
        %2244 = vmatpush1.xpose.msra.mxu0 0.0
        %2245 = vmatprep.subr.mxu0 0.0
        %2246 = vmatpush1.xpose.msra.mxu0 0.0
        %2247 = vmatprep.subr.mxu0 0.0
        %2248 = vmatpush1.xpose.msra.mxu0 0.0
        %2249 = vmatprep.subr.mxu0 0.0
        %2250 = vmatpush1.xpose.msra.mxu0 0.0
        %2251 = vmatprep.subr.mxu0 0.0
        %2252 = vmatpush1.xpose.msra.mxu0 0.0
        %2253 = vmatprep.subr.mxu0 0.0
        %2254 = vmatpush1.xpose.msra.mxu0 0.0
        %2255 = vmatprep.subr.mxu0 0.0
        %v2256 = vand.u32 %v2120, 4294901760
        %v2257 = vsub.f32 %v2120, %v2256
        %v2258 = vand.u32 %v2257, 4294901760
        %v2259 = vsub.f32 %v2257, %v2258
        %v2260 = vand.u32 %v2259, 4294901760
        %2261 = vmatpush1.xpose.msra.mxu0 %v2260
        %2262 = vmatprep.subr.mxu0 0.0
        %v2263 = vand.u32 %v2117, 4294901760
        %v2264 = vsub.f32 %v2117, %v2263
        %v2265 = vand.u32 %v2264, 4294901760
        %v2266 = vsub.f32 %v2264, %v2265
        %v2267 = vand.u32 %v2266, 4294901760
        %2268 = vmatpush1.xpose.msra.mxu0 %v2267
        %2269 = vmatprep.subr.mxu0 0.0
        %v2270 = vand.u32 %v2114, 4294901760
        %v2271 = vsub.f32 %v2114, %v2270
        %v2272 = vand.u32 %v2271, 4294901760
        %v2273 = vsub.f32 %v2271, %v2272
        %v2274 = vand.u32 %v2273, 4294901760
        %2275 = vmatpush1.xpose.msra.mxu0 %v2274
        %2276 = vmatprep.subr.mxu0 0.0
        %v2277 = vand.u32 %v2111, 4294901760
        %v2278 = vsub.f32 %v2111, %v2277
        %v2279 = vand.u32 %v2278, 4294901760
        %v2280 = vsub.f32 %v2278, %v2279
        %v2281 = vand.u32 %v2280, 4294901760
        %2282 = vmatpush1.xpose.msra.mxu0 %v2281
        %2283 = vmatprep.subr.mxu0 0.0
        %2284 = vmatpush2.xpose.msra.mxu0 0.0
        %2285 = vmatprep.subr.mxu0 0.0
        %2286 = vmatpush2.xpose.msra.mxu0 0.0
        %2287 = vmatprep.subr.mxu0 0.0
        %2288 = vmatpush2.xpose.msra.mxu0 0.0
        %2289 = vmatprep.subr.mxu0 0.0
        %2290 = vmatpush2.xpose.msra.mxu0 0.0
        %2291 = vmatprep.subr.mxu0 0.0
        %2292 = vmatpush2.xpose.msra.mxu0 0.0
        %2293 = vmatprep.subr.mxu0 0.0
        %2294 = vmatpush2.xpose.msra.mxu0 0.0
        %2295 = vmatprep.subr.mxu0 0.0
        %2296 = vmatpush2.xpose.msra.mxu0 0.0
        %2297 = vmatprep.subr.mxu0 0.0
        %2298 = vmatpush2.xpose.msra.mxu0 0.0
        %2299 = vmatprep.subr.mxu0 0.0
        %2300 = vmatpush2.xpose.msra.mxu0 0.0
        %2301 = vmatprep.subr.mxu0 0.0
        %2302 = vmatpush2.xpose.msra.mxu0 0.0
        %2303 = vmatprep.subr.mxu0 0.0
        %2304 = vmatpush2.xpose.msra.mxu0 0.0
        %2305 = vmatprep.subr.mxu0 0.0
        %2306 = vmatpush2.xpose.msra.mxu0 0.0
        %2307 = vmatprep.subr.mxu0 0.0
        %2308 = vmatpush2.xpose.msra.mxu0 0.0
        %2309 = vmatprep.subr.mxu0 0.0
        %2310 = vmatpush2.xpose.msra.mxu0 0.0
        %2311 = vmatprep.subr.mxu0 0.0
        %2312 = vmatpush2.xpose.msra.mxu0 0.0
        %2313 = vmatprep.subr.mxu0 0.0
        %2314 = vmatpush2.xpose.msra.mxu0 0.0
        %2315 = vmatprep.mubr.f32.mxu0 0.0
        %v2316 = vand.u32 %v1409, 4294901760
        %2317 = vmatmul.mubr.f32.gmra.mxu0 %v2316
        %v2318 = vpop.f32.mrf.mxu0
        %v2319 = vadd.f32 %v2198, %v2318
        %v2320 = vpop.f32.mrf.mxu0
        %2321 = vmatprep.mubr.f32.mxu0 0.0
        %v2322 = vand.u32 %v1412, 4294901760
        %2323 = vmatmul.mubr.f32.gmra.mxu0 %v2322
        %v2324 = vpop.f32.mrf.mxu0
        %v2325 = vadd.f32 %v2208, %v2324
        %v2326 = vpop.f32.mrf.mxu0
        %2327 = vmatprep.mubr.f32.mxu0 0.0
        %v2328 = vand.u32 %v1415, 4294901760
        %2329 = vmatmul.mubr.f32.gmra.mxu0 %v2328
        %v2330 = vpop.f32.mrf.mxu0
        %v2331 = vadd.f32 %v2218, %v2330
        %v2332 = vpop.f32.mrf.mxu0
        %2333 = vmatprep.mubr.f32.mxu0 0.0
        %v2334 = vand.u32 %v1418, 4294901760
        %2335 = vmatmul.mubr.f32.gmra.mxu0 %v2334
        %v2336 = vpop.f32.mrf.mxu0
        %v2337 = vadd.f32 %v2228, %v2336
        %v2338 = vpop.f32.mrf.mxu0
        %2339 = vdwg.mxu0
        %2340 = vmatprep.subr.mxu0 0.0
        %2341 = vmatpush1.xpose.msra.mxu0 0.0
        %2342 = vmatprep.subr.mxu0 0.0
        %2343 = vmatpush1.xpose.msra.mxu0 0.0
        %2344 = vmatprep.subr.mxu0 0.0
        %2345 = vmatpush1.xpose.msra.mxu0 0.0
        %2346 = vmatprep.subr.mxu0 0.0
        %2347 = vmatpush1.xpose.msra.mxu0 0.0
        %2348 = vmatprep.subr.mxu0 0.0
        %2349 = vmatpush1.xpose.msra.mxu0 0.0
        %2350 = vmatprep.subr.mxu0 0.0
        %2351 = vmatpush1.xpose.msra.mxu0 0.0
        %2352 = vmatprep.subr.mxu0 0.0
        %2353 = vmatpush1.xpose.msra.mxu0 0.0
        %2354 = vmatprep.subr.mxu0 0.0
        %2355 = vmatpush1.xpose.msra.mxu0 0.0
        %2356 = vmatprep.subr.mxu0 0.0
        %2357 = vmatpush1.xpose.msra.mxu0 0.0
        %2358 = vmatprep.subr.mxu0 0.0
        %2359 = vmatpush1.xpose.msra.mxu0 0.0
        %2360 = vmatprep.subr.mxu0 0.0
        %2361 = vmatpush1.xpose.msra.mxu0 0.0
        %2362 = vmatprep.subr.mxu0 0.0
        %2363 = vmatpush1.xpose.msra.mxu0 0.0
        %2364 = vmatprep.subr.mxu0 0.0
        %v2365 = vand.u32 %v2120, 4294901760
        %v2366 = vsub.f32 %v2120, %v2365
        %2367 = vmatpush1.xpose.msra.mxu0 %v2366
        %2368 = vmatprep.subr.mxu0 0.0
        %v2369 = vand.u32 %v2117, 4294901760
        %v2370 = vsub.f32 %v2117, %v2369
        %2371 = vmatpush1.xpose.msra.mxu0 %v2370
        %2372 = vmatprep.subr.mxu0 0.0
        %v2373 = vand.u32 %v2114, 4294901760
        %v2374 = vsub.f32 %v2114, %v2373
        %2375 = vmatpush1.xpose.msra.mxu0 %v2374
        %2376 = vmatprep.subr.mxu0 0.0
        %v2377 = vand.u32 %v2111, 4294901760
        %v2378 = vsub.f32 %v2111, %v2377
        %2379 = vmatpush1.xpose.msra.mxu0 %v2378
        %2380 = vmatprep.subr.mxu0 0.0
        %2381 = vmatpush2.xpose.msra.mxu0 0.0
        %2382 = vmatprep.subr.mxu0 0.0
        %2383 = vmatpush2.xpose.msra.mxu0 0.0
        %2384 = vmatprep.subr.mxu0 0.0
        %2385 = vmatpush2.xpose.msra.mxu0 0.0
        %2386 = vmatprep.subr.mxu0 0.0
        %2387 = vmatpush2.xpose.msra.mxu0 0.0
        %2388 = vmatprep.subr.mxu0 0.0
        %2389 = vmatpush2.xpose.msra.mxu0 0.0
        %2390 = vmatprep.subr.mxu0 0.0
        %2391 = vmatpush2.xpose.msra.mxu0 0.0
        %2392 = vmatprep.subr.mxu0 0.0
        %2393 = vmatpush2.xpose.msra.mxu0 0.0
        %2394 = vmatprep.subr.mxu0 0.0
        %2395 = vmatpush2.xpose.msra.mxu0 0.0
        %2396 = vmatprep.subr.mxu0 0.0
        %2397 = vmatpush2.xpose.msra.mxu0 0.0
        %2398 = vmatprep.subr.mxu0 0.0
        %2399 = vmatpush2.xpose.msra.mxu0 0.0
        %2400 = vmatprep.subr.mxu0 0.0
        %2401 = vmatpush2.xpose.msra.mxu0 0.0
        %2402 = vmatprep.subr.mxu0 0.0
        %2403 = vmatpush2.xpose.msra.mxu0 0.0
        %2404 = vmatprep.subr.mxu0 0.0
        %2405 = vmatpush2.xpose.msra.mxu0 0.0
        %2406 = vmatprep.subr.mxu0 0.0
        %2407 = vmatpush2.xpose.msra.mxu0 0.0
        %2408 = vmatprep.subr.mxu0 0.0
        %2409 = vmatpush2.xpose.msra.mxu0 0.0
        %2410 = vmatprep.subr.mxu0 0.0
        %2411 = vmatpush2.xpose.msra.mxu0 0.0
        %2412 = vmatprep.mubr.f32.mxu0 0.0
        %v2413 = vand.u32 %v1409, 4294901760
        %v2414 = vsub.f32 %v1409, %v2413
        %2415 = vmatmul.mubr.f32.gmra.mxu0 %v2414
        %v2416 = vpop.f32.mrf.mxu0
        %v2417 = vadd.f32 %v2319, %v2416
        %v2418 = vpop.f32.mrf.mxu0
        %2419 = vmatprep.mubr.f32.mxu0 0.0
        %v2420 = vand.u32 %v1412, 4294901760
        %v2421 = vsub.f32 %v1412, %v2420
        %2422 = vmatmul.mubr.f32.gmra.mxu0 %v2421
        %v2423 = vpop.f32.mrf.mxu0
        %v2424 = vadd.f32 %v2325, %v2423
        %v2425 = vpop.f32.mrf.mxu0
        %2426 = vmatprep.mubr.f32.mxu0 0.0
        %v2427 = vand.u32 %v1415, 4294901760
        %v2428 = vsub.f32 %v1415, %v2427
        %2429 = vmatmul.mubr.f32.gmra.mxu0 %v2428
        %v2430 = vpop.f32.mrf.mxu0
        %v2431 = vadd.f32 %v2331, %v2430
        %v2432 = vpop.f32.mrf.mxu0
        %2433 = vmatprep.mubr.f32.mxu0 0.0
        %v2434 = vand.u32 %v1418, 4294901760
        %v2435 = vsub.f32 %v1418, %v2434
        %2436 = vmatmul.mubr.f32.gmra.mxu0 %v2435
        %v2437 = vpop.f32.mrf.mxu0
        %v2438 = vadd.f32 %v2337, %v2437
        %v2439 = vpop.f32.mrf.mxu0
        %2440 = vdwg.mxu0
        %2441 = vmatprep.subr.mxu0 0.0
        %2442 = vmatpush1.xpose.msra.mxu0 0.0
        %2443 = vmatprep.subr.mxu0 0.0
        %2444 = vmatpush1.xpose.msra.mxu0 0.0
        %2445 = vmatprep.subr.mxu0 0.0
        %2446 = vmatpush1.xpose.msra.mxu0 0.0
        %2447 = vmatprep.subr.mxu0 0.0
        %2448 = vmatpush1.xpose.msra.mxu0 0.0
        %2449 = vmatprep.subr.mxu0 0.0
        %2450 = vmatpush1.xpose.msra.mxu0 0.0
        %2451 = vmatprep.subr.mxu0 0.0
        %2452 = vmatpush1.xpose.msra.mxu0 0.0
        %2453 = vmatprep.subr.mxu0 0.0
        %2454 = vmatpush1.xpose.msra.mxu0 0.0
        %2455 = vmatprep.subr.mxu0 0.0
        %2456 = vmatpush1.xpose.msra.mxu0 0.0
        %2457 = vmatprep.subr.mxu0 0.0
        %2458 = vmatpush1.xpose.msra.mxu0 0.0
        %2459 = vmatprep.subr.mxu0 0.0
        %2460 = vmatpush1.xpose.msra.mxu0 0.0
        %2461 = vmatprep.subr.mxu0 0.0
        %2462 = vmatpush1.xpose.msra.mxu0 0.0
        %2463 = vmatprep.subr.mxu0 0.0
        %2464 = vmatpush1.xpose.msra.mxu0 0.0
        %2465 = vmatprep.subr.mxu0 0.0
        %v2466 = vand.u32 %v2120, 4294901760
        %2467 = vmatpush1.xpose.msra.mxu0 %v2466
        %2468 = vmatprep.subr.mxu0 0.0
        %v2469 = vand.u32 %v2117, 4294901760
        %2470 = vmatpush1.xpose.msra.mxu0 %v2469
        %2471 = vmatprep.subr.mxu0 0.0
        %v2472 = vand.u32 %v2114, 4294901760
        %2473 = vmatpush1.xpose.msra.mxu0 %v2472
        %2474 = vmatprep.subr.mxu0 0.0
        %v2475 = vand.u32 %v2111, 4294901760
        %2476 = vmatpush1.xpose.msra.mxu0 %v2475
        %2477 = vmatprep.subr.mxu0 0.0
        %2478 = vmatpush2.xpose.msra.mxu0 0.0
        %2479 = vmatprep.subr.mxu0 0.0
        %2480 = vmatpush2.xpose.msra.mxu0 0.0
        %2481 = vmatprep.subr.mxu0 0.0
        %2482 = vmatpush2.xpose.msra.mxu0 0.0
        %2483 = vmatprep.subr.mxu0 0.0
        %2484 = vmatpush2.xpose.msra.mxu0 0.0
        %2485 = vmatprep.subr.mxu0 0.0
        %2486 = vmatpush2.xpose.msra.mxu0 0.0
        %2487 = vmatprep.subr.mxu0 0.0
        %2488 = vmatpush2.xpose.msra.mxu0 0.0
        %2489 = vmatprep.subr.mxu0 0.0
        %2490 = vmatpush2.xpose.msra.mxu0 0.0
        %2491 = vmatprep.subr.mxu0 0.0
        %2492 = vmatpush2.xpose.msra.mxu0 0.0
        %2493 = vmatprep.subr.mxu0 0.0
        %2494 = vmatpush2.xpose.msra.mxu0 0.0
        %2495 = vmatprep.subr.mxu0 0.0
        %2496 = vmatpush2.xpose.msra.mxu0 0.0
        %2497 = vmatprep.subr.mxu0 0.0
        %2498 = vmatpush2.xpose.msra.mxu0 0.0
        %2499 = vmatprep.subr.mxu0 0.0
        %2500 = vmatpush2.xpose.msra.mxu0 0.0
        %2501 = vmatprep.subr.mxu0 0.0
        %2502 = vmatpush2.xpose.msra.mxu0 0.0
        %2503 = vmatprep.subr.mxu0 0.0
        %2504 = vmatpush2.xpose.msra.mxu0 0.0
        %2505 = vmatprep.subr.mxu0 0.0
        %2506 = vmatpush2.xpose.msra.mxu0 0.0
        %2507 = vmatprep.subr.mxu0 0.0
        %2508 = vmatpush2.xpose.msra.mxu0 0.0
        %2509 = vmatprep.mubr.f32.mxu0 0.0
        %v2510 = vand.u32 %v1409, 4294901760
        %v2511 = vsub.f32 %v1409, %v2510
        %v2512 = vand.u32 %v2511, 4294901760
        %2513 = vmatmul.mubr.f32.gmra.mxu0 %v2512
        %v2514 = vpop.f32.mrf.mxu0
        %v2515 = vadd.f32 %v2417, %v2514
        %v2516 = vpop.f32.mrf.mxu0
        %2517 = vmatprep.mubr.f32.mxu0 0.0
        %v2518 = vand.u32 %v1412, 4294901760
        %v2519 = vsub.f32 %v1412, %v2518
        %v2520 = vand.u32 %v2519, 4294901760
        %2521 = vmatmul.mubr.f32.gmra.mxu0 %v2520
        %v2522 = vpop.f32.mrf.mxu0
        %v2523 = vadd.f32 %v2424, %v2522
        %v2524 = vpop.f32.mrf.mxu0
        %2525 = vmatprep.mubr.f32.mxu0 0.0
        %v2526 = vand.u32 %v1415, 4294901760
        %v2527 = vsub.f32 %v1415, %v2526
        %v2528 = vand.u32 %v2527, 4294901760
        %2529 = vmatmul.mubr.f32.gmra.mxu0 %v2528
        %v2530 = vpop.f32.mrf.mxu0
        %v2531 = vadd.f32 %v2431, %v2530
        %v2532 = vpop.f32.mrf.mxu0
        %2533 = vmatprep.mubr.f32.mxu0 0.0
        %v2534 = vand.u32 %v1418, 4294901760
        %v2535 = vsub.f32 %v1418, %v2534
        %v2536 = vand.u32 %v2535, 4294901760
        %2537 = vmatmul.mubr.f32.gmra.mxu0 %v2536
        %v2538 = vpop.f32.mrf.mxu0
        %v2539 = vadd.f32 %v2438, %v2538
        %v2540 = vpop.f32.mrf.mxu0
        %2541 = vdwg.mxu0
        %2542 = vmatprep.subr.mxu0 0.0
        %2543 = vmatpush1.xpose.msra.mxu0 0.0
        %2544 = vmatprep.subr.mxu0 0.0
        %2545 = vmatpush1.xpose.msra.mxu0 0.0
        %2546 = vmatprep.subr.mxu0 0.0
        %2547 = vmatpush1.xpose.msra.mxu0 0.0
        %2548 = vmatprep.subr.mxu0 0.0
        %2549 = vmatpush1.xpose.msra.mxu0 0.0
        %2550 = vmatprep.subr.mxu0 0.0
        %2551 = vmatpush1.xpose.msra.mxu0 0.0
        %2552 = vmatprep.subr.mxu0 0.0
        %2553 = vmatpush1.xpose.msra.mxu0 0.0
        %2554 = vmatprep.subr.mxu0 0.0
        %2555 = vmatpush1.xpose.msra.mxu0 0.0
        %2556 = vmatprep.subr.mxu0 0.0
        %2557 = vmatpush1.xpose.msra.mxu0 0.0
        %2558 = vmatprep.subr.mxu0 0.0
        %2559 = vmatpush1.xpose.msra.mxu0 0.0
        %2560 = vmatprep.subr.mxu0 0.0
        %2561 = vmatpush1.xpose.msra.mxu0 0.0
        %2562 = vmatprep.subr.mxu0 0.0
        %2563 = vmatpush1.xpose.msra.mxu0 0.0
        %2564 = vmatprep.subr.mxu0 0.0
        %2565 = vmatpush1.xpose.msra.mxu0 0.0
        %2566 = vmatprep.subr.mxu0 0.0
        %v2567 = vand.u32 %v2120, 4294901760
        %v2568 = vsub.f32 %v2120, %v2567
        %v2569 = vand.u32 %v2568, 4294901760
        %2570 = vmatpush1.xpose.msra.mxu0 %v2569
        %2571 = vmatprep.subr.mxu0 0.0
        %v2572 = vand.u32 %v2117, 4294901760
        %v2573 = vsub.f32 %v2117, %v2572
        %v2574 = vand.u32 %v2573, 4294901760
        %2575 = vmatpush1.xpose.msra.mxu0 %v2574
        %2576 = vmatprep.subr.mxu0 0.0
        %v2577 = vand.u32 %v2114, 4294901760
        %v2578 = vsub.f32 %v2114, %v2577
        %v2579 = vand.u32 %v2578, 4294901760
        %2580 = vmatpush1.xpose.msra.mxu0 %v2579
        %2581 = vmatprep.subr.mxu0 0.0
        %v2582 = vand.u32 %v2111, 4294901760
        %v2583 = vsub.f32 %v2111, %v2582
        %v2584 = vand.u32 %v2583, 4294901760
        %2585 = vmatpush1.xpose.msra.mxu0 %v2584
        %2586 = vmatprep.subr.mxu0 0.0
        %2587 = vmatpush2.xpose.msra.mxu0 0.0
        %2588 = vmatprep.subr.mxu0 0.0
        %2589 = vmatpush2.xpose.msra.mxu0 0.0
        %2590 = vmatprep.subr.mxu0 0.0
        %2591 = vmatpush2.xpose.msra.mxu0 0.0
        %2592 = vmatprep.subr.mxu0 0.0
        %2593 = vmatpush2.xpose.msra.mxu0 0.0
        %2594 = vmatprep.subr.mxu0 0.0
        %2595 = vmatpush2.xpose.msra.mxu0 0.0
        %2596 = vmatprep.subr.mxu0 0.0
        %2597 = vmatpush2.xpose.msra.mxu0 0.0
        %2598 = vmatprep.subr.mxu0 0.0
        %2599 = vmatpush2.xpose.msra.mxu0 0.0
        %2600 = vmatprep.subr.mxu0 0.0
        %2601 = vmatpush2.xpose.msra.mxu0 0.0
        %2602 = vmatprep.subr.mxu0 0.0
        %2603 = vmatpush2.xpose.msra.mxu0 0.0
        %2604 = vmatprep.subr.mxu0 0.0
        %2605 = vmatpush2.xpose.msra.mxu0 0.0
        %2606 = vmatprep.subr.mxu0 0.0
        %2607 = vmatpush2.xpose.msra.mxu0 0.0
        %2608 = vmatprep.subr.mxu0 0.0
        %2609 = vmatpush2.xpose.msra.mxu0 0.0
        %2610 = vmatprep.subr.mxu0 0.0
        %2611 = vmatpush2.xpose.msra.mxu0 0.0
        %2612 = vmatprep.subr.mxu0 0.0
        %2613 = vmatpush2.xpose.msra.mxu0 0.0
        %2614 = vmatprep.subr.mxu0 0.0
        %2615 = vmatpush2.xpose.msra.mxu0 0.0
        %2616 = vmatprep.subr.mxu0 0.0
        %2617 = vmatpush2.xpose.msra.mxu0 0.0
        %2618 = vmatprep.mubr.f32.mxu0 0.0
        %v2619 = vand.u32 %v1409, 4294901760
        %2620 = vmatmul.mubr.f32.gmra.mxu0 %v2619
        %v2621 = vpop.f32.mrf.mxu0
        %v2622 = vadd.f32 %v2515, %v2621
        %v2623 = vpop.f32.mrf.mxu0
        %2624 = vmatprep.mubr.f32.mxu0 0.0
        %v2625 = vand.u32 %v1412, 4294901760
        %2626 = vmatmul.mubr.f32.gmra.mxu0 %v2625
        %v2627 = vpop.f32.mrf.mxu0
        %v2628 = vadd.f32 %v2523, %v2627
        %v2629 = vpop.f32.mrf.mxu0
        %2630 = vmatprep.mubr.f32.mxu0 0.0
        %v2631 = vand.u32 %v1415, 4294901760
        %2632 = vmatmul.mubr.f32.gmra.mxu0 %v2631
        %v2633 = vpop.f32.mrf.mxu0
        %v2634 = vadd.f32 %v2531, %v2633
        %v2635 = vpop.f32.mrf.mxu0
        %2636 = vmatprep.mubr.f32.mxu0 0.0
        %v2637 = vand.u32 %v1418, 4294901760
        %2638 = vmatmul.mubr.f32.gmra.mxu0 %v2637
        %v2639 = vpop.f32.mrf.mxu0
        %v2640 = vadd.f32 %v2539, %v2639
        %v2641 = vpop.f32.mrf.mxu0
        %2642 = vdwg.mxu0
        %2643 = vmatprep.subr.mxu0 0.0
        %2644 = vmatpush1.xpose.msra.mxu0 0.0
        %2645 = vmatprep.subr.mxu0 0.0
        %2646 = vmatpush1.xpose.msra.mxu0 0.0
        %2647 = vmatprep.subr.mxu0 0.0
        %2648 = vmatpush1.xpose.msra.mxu0 0.0
        %2649 = vmatprep.subr.mxu0 0.0
        %2650 = vmatpush1.xpose.msra.mxu0 0.0
        %2651 = vmatprep.subr.mxu0 0.0
        %2652 = vmatpush1.xpose.msra.mxu0 0.0
        %2653 = vmatprep.subr.mxu0 0.0
        %2654 = vmatpush1.xpose.msra.mxu0 0.0
        %2655 = vmatprep.subr.mxu0 0.0
        %2656 = vmatpush1.xpose.msra.mxu0 0.0
        %2657 = vmatprep.subr.mxu0 0.0
        %2658 = vmatpush1.xpose.msra.mxu0 0.0
        %2659 = vmatprep.subr.mxu0 0.0
        %2660 = vmatpush1.xpose.msra.mxu0 0.0
        %2661 = vmatprep.subr.mxu0 0.0
        %2662 = vmatpush1.xpose.msra.mxu0 0.0
        %2663 = vmatprep.subr.mxu0 0.0
        %2664 = vmatpush1.xpose.msra.mxu0 0.0
        %2665 = vmatprep.subr.mxu0 0.0
        %2666 = vmatpush1.xpose.msra.mxu0 0.0
        %2667 = vmatprep.subr.mxu0 0.0
        %v2668 = vand.u32 %v2120, 4294901760
        %2669 = vmatpush1.xpose.msra.mxu0 %v2668
        %2670 = vmatprep.subr.mxu0 0.0
        %v2671 = vand.u32 %v2117, 4294901760
        %2672 = vmatpush1.xpose.msra.mxu0 %v2671
        %2673 = vmatprep.subr.mxu0 0.0
        %v2674 = vand.u32 %v2114, 4294901760
        %2675 = vmatpush1.xpose.msra.mxu0 %v2674
        %2676 = vmatprep.subr.mxu0 0.0
        %v2677 = vand.u32 %v2111, 4294901760
        %2678 = vmatpush1.xpose.msra.mxu0 %v2677
        %2679 = vmatprep.subr.mxu0 0.0
        %2680 = vmatpush2.xpose.msra.mxu0 0.0
        %2681 = vmatprep.subr.mxu0 0.0
        %2682 = vmatpush2.xpose.msra.mxu0 0.0
        %2683 = vmatprep.subr.mxu0 0.0
        %2684 = vmatpush2.xpose.msra.mxu0 0.0
        %2685 = vmatprep.subr.mxu0 0.0
        %2686 = vmatpush2.xpose.msra.mxu0 0.0
        %2687 = vmatprep.subr.mxu0 0.0
        %2688 = vmatpush2.xpose.msra.mxu0 0.0
        %2689 = vmatprep.subr.mxu0 0.0
        %2690 = vmatpush2.xpose.msra.mxu0 0.0
        %2691 = vmatprep.subr.mxu0 0.0
        %2692 = vmatpush2.xpose.msra.mxu0 0.0
        %2693 = vmatprep.subr.mxu0 0.0
        %2694 = vmatpush2.xpose.msra.mxu0 0.0
        %2695 = vmatprep.subr.mxu0 0.0
        %2696 = vmatpush2.xpose.msra.mxu0 0.0
        %2697 = vmatprep.subr.mxu0 0.0
        %2698 = vmatpush2.xpose.msra.mxu0 0.0
        %2699 = vmatprep.subr.mxu0 0.0
        %2700 = vmatpush2.xpose.msra.mxu0 0.0
        %2701 = vmatprep.subr.mxu0 0.0
        %2702 = vmatpush2.xpose.msra.mxu0 0.0
        %2703 = vmatprep.subr.mxu0 0.0
        %2704 = vmatpush2.xpose.msra.mxu0 0.0
        %2705 = vmatprep.subr.mxu0 0.0
        %2706 = vmatpush2.xpose.msra.mxu0 0.0
        %2707 = vmatprep.subr.mxu0 0.0
        %2708 = vmatpush2.xpose.msra.mxu0 0.0
        %2709 = vmatprep.subr.mxu0 0.0
        %2710 = vmatpush2.xpose.msra.mxu0 0.0
        %2711 = vmatprep.mubr.f32.mxu0 0.0
        %v2712 = vand.u32 %v1409, 4294901760
        %2713 = vmatmul.mubr.f32.gmra.mxu0 %v2712
        %v2714 = vpop.f32.mrf.mxu0
        %v2715 = vadd.f32 %v2622, %v2714
        %v2716 = vpop.f32.mrf.mxu0
        %2717 = vmatprep.mubr.f32.mxu0 0.0
        %v2718 = vand.u32 %v1412, 4294901760
        %2719 = vmatmul.mubr.f32.gmra.mxu0 %v2718
        %v2720 = vpop.f32.mrf.mxu0
        %v2721 = vadd.f32 %v2628, %v2720
        %v2722 = vpop.f32.mrf.mxu0
        %2723 = vmatprep.mubr.f32.mxu0 0.0
        %v2724 = vand.u32 %v1415, 4294901760
        %2725 = vmatmul.mubr.f32.gmra.mxu0 %v2724
        %v2726 = vpop.f32.mrf.mxu0
        %v2727 = vadd.f32 %v2634, %v2726
        %v2728 = vpop.f32.mrf.mxu0
        %2729 = vmatprep.mubr.f32.mxu0 0.0
        %v2730 = vand.u32 %v1418, 4294901760
        %2731 = vmatmul.mubr.f32.gmra.mxu0 %v2730
        %v2732 = vpop.f32.mrf.mxu0
        %v2733 = vadd.f32 %v2640, %v2732
        %v2734 = vpop.f32.mrf.mxu0
        %2735 = vdwg.mxu0
        %v2736 = vsel %vm688, %v2715, 0.0
        %v2737 = vsel %vm689, %v2721, 0.0
        %v2738 = vsel %vm690, %v2727, 0.0
        %v2739 = vsel %vm691, %v2733, 0.0
        %v2741 = vsel %vm692, %v2736, 0
        %v2744 = vsel %vm692, %v2737, 0
        %v2747 = vsel %vm692, %v2738, 0
        %v2750 = vsel %vm692, %v2739, 0
        %2752 = vmatprep.subr.mxu0 0.0
        %2753 = vmatpush1.msra.mxu0 0.0
        %2754 = vmatprep.subr.mxu0 0.0
        %2755 = vmatpush1.msra.mxu0 0.0
        %2756 = vmatprep.subr.mxu0 0.0
        %2757 = vmatpush1.msra.mxu0 0.0
        %2758 = vmatprep.subr.mxu0 0.0
        %2759 = vmatpush1.msra.mxu0 0.0
        %2760 = vmatprep.subr.mxu0 0.0
        %2761 = vmatpush1.msra.mxu0 0.0
        %2762 = vmatprep.subr.mxu0 0.0
        %2763 = vmatpush1.msra.mxu0 0.0
        %2764 = vmatprep.subr.mxu0 0.0
        %2765 = vmatpush1.msra.mxu0 0.0
        %2766 = vmatprep.subr.mxu0 0.0
        %2767 = vmatpush1.msra.mxu0 0.0
        %2768 = vmatprep.subr.mxu0 0.0
        %2769 = vmatpush1.msra.mxu0 0.0
        %2770 = vmatprep.subr.mxu0 0.0
        %2771 = vmatpush1.msra.mxu0 0.0
        %2772 = vmatprep.subr.mxu0 0.0
        %2773 = vmatpush1.msra.mxu0 0.0
        %2774 = vmatprep.subr.mxu0 0.0
        %2775 = vmatpush1.msra.mxu0 0.0
        %2776 = vmatprep.subr.mxu0 0.0
        %v2777 = vand.u32 %v651, 4294901760
        %2778 = vmatpush1.msra.mxu0 %v2777
        %2779 = vmatprep.subr.mxu0 0.0
        %v2780 = vand.u32 %v650, 4294901760
        %2781 = vmatpush1.msra.mxu0 %v2780
        %2782 = vmatprep.subr.mxu0 0.0
        %v2783 = vand.u32 %v649, 4294901760
        %2784 = vmatpush1.msra.mxu0 %v2783
        %2785 = vmatprep.subr.mxu0 0.0
        %v2786 = vand.u32 %v648, 4294901760
        %2787 = vmatpush1.msra.mxu0 %v2786
        %2788 = vmatprep.subr.mxu0 0.0
        %2789 = vmatpush2.msra.mxu0 0.0
        %2790 = vmatprep.subr.mxu0 0.0
        %2791 = vmatpush2.msra.mxu0 0.0
        %2792 = vmatprep.subr.mxu0 0.0
        %2793 = vmatpush2.msra.mxu0 0.0
        %2794 = vmatprep.subr.mxu0 0.0
        %2795 = vmatpush2.msra.mxu0 0.0
        %2796 = vmatprep.subr.mxu0 0.0
        %2797 = vmatpush2.msra.mxu0 0.0
        %2798 = vmatprep.subr.mxu0 0.0
        %2799 = vmatpush2.msra.mxu0 0.0
        %2800 = vmatprep.subr.mxu0 0.0
        %2801 = vmatpush2.msra.mxu0 0.0
        %2802 = vmatprep.subr.mxu0 0.0
        %2803 = vmatpush2.msra.mxu0 0.0
        %2804 = vmatprep.subr.mxu0 0.0
        %2805 = vmatpush2.msra.mxu0 0.0
        %2806 = vmatprep.subr.mxu0 0.0
        %2807 = vmatpush2.msra.mxu0 0.0
        %2808 = vmatprep.subr.mxu0 0.0
        %2809 = vmatpush2.msra.mxu0 0.0
        %2810 = vmatprep.subr.mxu0 0.0
        %2811 = vmatpush2.msra.mxu0 0.0
        %2812 = vmatprep.subr.mxu0 0.0
        %2813 = vmatpush2.msra.mxu0 0.0
        %2814 = vmatprep.subr.mxu0 0.0
        %2815 = vmatpush2.msra.mxu0 0.0
        %2816 = vmatprep.subr.mxu0 0.0
        %2817 = vmatpush2.msra.mxu0 0.0
        %2818 = vmatprep.subr.mxu0 0.0
        %2819 = vmatpush2.msra.mxu0 0.0
        %2820 = vmatprep.mubr.f32.mxu0 0.0
        %v2821 = vand.u32 %v2741, 4294901760
        %v2822 = vsub.f32 %v2741, %v2821
        %v2823 = vand.u32 %v2822, 4294901760
        %v2824 = vsub.f32 %v2822, %v2823
        %v2825 = vand.u32 %v2824, 4294901760
        %2826 = vmatmul.mubr.f32.gmra.mxu0 %v2825
        %v2827 = vpop.f32.mrf.mxu0
        %v2828 = vadd.f32 0.0, %v2827
        %v2829 = vpop.f32.mrf.mxu0
        %2830 = vmatprep.mubr.f32.mxu0 0.0
        %v2831 = vand.u32 %v2744, 4294901760
        %v2832 = vsub.f32 %v2744, %v2831
        %v2833 = vand.u32 %v2832, 4294901760
        %v2834 = vsub.f32 %v2832, %v2833
        %v2835 = vand.u32 %v2834, 4294901760
        %2836 = vmatmul.mubr.f32.gmra.mxu0 %v2835
        %v2837 = vpop.f32.mrf.mxu0
        %v2838 = vadd.f32 0.0, %v2837
        %v2839 = vpop.f32.mrf.mxu0
        %2840 = vmatprep.mubr.f32.mxu0 0.0
        %v2841 = vand.u32 %v2747, 4294901760
        %v2842 = vsub.f32 %v2747, %v2841
        %v2843 = vand.u32 %v2842, 4294901760
        %v2844 = vsub.f32 %v2842, %v2843
        %v2845 = vand.u32 %v2844, 4294901760
        %2846 = vmatmul.mubr.f32.gmra.mxu0 %v2845
        %v2847 = vpop.f32.mrf.mxu0
        %v2848 = vadd.f32 0.0, %v2847
        %v2849 = vpop.f32.mrf.mxu0
        %2850 = vmatprep.mubr.f32.mxu0 0.0
        %v2851 = vand.u32 %v2750, 4294901760
        %v2852 = vsub.f32 %v2750, %v2851
        %v2853 = vand.u32 %v2852, 4294901760
        %v2854 = vsub.f32 %v2852, %v2853
        %v2855 = vand.u32 %v2854, 4294901760
        %2856 = vmatmul.mubr.f32.gmra.mxu0 %v2855
        %v2857 = vpop.f32.mrf.mxu0
        %v2858 = vadd.f32 0.0, %v2857
        %v2859 = vpop.f32.mrf.mxu0
        %2860 = vdwg.mxu0
        %2861 = vmatprep.subr.mxu0 0.0
        %2862 = vmatpush1.msra.mxu0 0.0
        %2863 = vmatprep.subr.mxu0 0.0
        %2864 = vmatpush1.msra.mxu0 0.0
        %2865 = vmatprep.subr.mxu0 0.0
        %2866 = vmatpush1.msra.mxu0 0.0
        %2867 = vmatprep.subr.mxu0 0.0
        %2868 = vmatpush1.msra.mxu0 0.0
        %2869 = vmatprep.subr.mxu0 0.0
        %2870 = vmatpush1.msra.mxu0 0.0
        %2871 = vmatprep.subr.mxu0 0.0
        %2872 = vmatpush1.msra.mxu0 0.0
        %2873 = vmatprep.subr.mxu0 0.0
        %2874 = vmatpush1.msra.mxu0 0.0
        %2875 = vmatprep.subr.mxu0 0.0
        %2876 = vmatpush1.msra.mxu0 0.0
        %2877 = vmatprep.subr.mxu0 0.0
        %2878 = vmatpush1.msra.mxu0 0.0
        %2879 = vmatprep.subr.mxu0 0.0
        %2880 = vmatpush1.msra.mxu0 0.0
        %2881 = vmatprep.subr.mxu0 0.0
        %2882 = vmatpush1.msra.mxu0 0.0
        %2883 = vmatprep.subr.mxu0 0.0
        %2884 = vmatpush1.msra.mxu0 0.0
        %2885 = vmatprep.subr.mxu0 0.0
        %v2886 = vand.u32 %v651, 4294901760
        %v2887 = vsub.f32 %v651, %v2886
        %v2888 = vand.u32 %v2887, 4294901760
        %v2889 = vsub.f32 %v2887, %v2888
        %v2890 = vand.u32 %v2889, 4294901760
        %2891 = vmatpush1.msra.mxu0 %v2890
        %2892 = vmatprep.subr.mxu0 0.0
        %v2893 = vand.u32 %v650, 4294901760
        %v2894 = vsub.f32 %v650, %v2893
        %v2895 = vand.u32 %v2894, 4294901760
        %v2896 = vsub.f32 %v2894, %v2895
        %v2897 = vand.u32 %v2896, 4294901760
        %2898 = vmatpush1.msra.mxu0 %v2897
        %2899 = vmatprep.subr.mxu0 0.0
        %v2900 = vand.u32 %v649, 4294901760
        %v2901 = vsub.f32 %v649, %v2900
        %v2902 = vand.u32 %v2901, 4294901760
        %v2903 = vsub.f32 %v2901, %v2902
        %v2904 = vand.u32 %v2903, 4294901760
        %2905 = vmatpush1.msra.mxu0 %v2904
        %2906 = vmatprep.subr.mxu0 0.0
        %v2907 = vand.u32 %v648, 4294901760
        %v2908 = vsub.f32 %v648, %v2907
        %v2909 = vand.u32 %v2908, 4294901760
        %v2910 = vsub.f32 %v2908, %v2909
        %v2911 = vand.u32 %v2910, 4294901760
        %2912 = vmatpush1.msra.mxu0 %v2911
        %2913 = vmatprep.subr.mxu0 0.0
        %2914 = vmatpush2.msra.mxu0 0.0
        %2915 = vmatprep.subr.mxu0 0.0
        %2916 = vmatpush2.msra.mxu0 0.0
        %2917 = vmatprep.subr.mxu0 0.0
        %2918 = vmatpush2.msra.mxu0 0.0
        %2919 = vmatprep.subr.mxu0 0.0
        %2920 = vmatpush2.msra.mxu0 0.0
        %2921 = vmatprep.subr.mxu0 0.0
        %2922 = vmatpush2.msra.mxu0 0.0
        %2923 = vmatprep.subr.mxu0 0.0
        %2924 = vmatpush2.msra.mxu0 0.0
        %2925 = vmatprep.subr.mxu0 0.0
        %2926 = vmatpush2.msra.mxu0 0.0
        %2927 = vmatprep.subr.mxu0 0.0
        %2928 = vmatpush2.msra.mxu0 0.0
        %2929 = vmatprep.subr.mxu0 0.0
        %2930 = vmatpush2.msra.mxu0 0.0
        %2931 = vmatprep.subr.mxu0 0.0
        %2932 = vmatpush2.msra.mxu0 0.0
        %2933 = vmatprep.subr.mxu0 0.0
        %2934 = vmatpush2.msra.mxu0 0.0
        %2935 = vmatprep.subr.mxu0 0.0
        %2936 = vmatpush2.msra.mxu0 0.0
        %2937 = vmatprep.subr.mxu0 0.0
        %2938 = vmatpush2.msra.mxu0 0.0
        %2939 = vmatprep.subr.mxu0 0.0
        %2940 = vmatpush2.msra.mxu0 0.0
        %2941 = vmatprep.subr.mxu0 0.0
        %2942 = vmatpush2.msra.mxu0 0.0
        %2943 = vmatprep.subr.mxu0 0.0
        %2944 = vmatpush2.msra.mxu0 0.0
        %2945 = vmatprep.mubr.f32.mxu0 0.0
        %v2946 = vand.u32 %v2741, 4294901760
        %2947 = vmatmul.mubr.f32.gmra.mxu0 %v2946
        %v2948 = vpop.f32.mrf.mxu0
        %v2949 = vadd.f32 %v2828, %v2948
        %v2950 = vpop.f32.mrf.mxu0
        %2951 = vmatprep.mubr.f32.mxu0 0.0
        %v2952 = vand.u32 %v2744, 4294901760
        %2953 = vmatmul.mubr.f32.gmra.mxu0 %v2952
        %v2954 = vpop.f32.mrf.mxu0
        %v2955 = vadd.f32 %v2838, %v2954
        %v2956 = vpop.f32.mrf.mxu0
        %2957 = vmatprep.mubr.f32.mxu0 0.0
        %v2958 = vand.u32 %v2747, 4294901760
        %2959 = vmatmul.mubr.f32.gmra.mxu0 %v2958
        %v2960 = vpop.f32.mrf.mxu0
        %v2961 = vadd.f32 %v2848, %v2960
        %v2962 = vpop.f32.mrf.mxu0
        %2963 = vmatprep.mubr.f32.mxu0 0.0
        %v2964 = vand.u32 %v2750, 4294901760
        %2965 = vmatmul.mubr.f32.gmra.mxu0 %v2964
        %v2966 = vpop.f32.mrf.mxu0
        %v2967 = vadd.f32 %v2858, %v2966
        %v2968 = vpop.f32.mrf.mxu0
        %2969 = vdwg.mxu0
        %2970 = vmatprep.subr.mxu0 0.0
        %2971 = vmatpush1.msra.mxu0 0.0
        %2972 = vmatprep.subr.mxu0 0.0
        %2973 = vmatpush1.msra.mxu0 0.0
        %2974 = vmatprep.subr.mxu0 0.0
        %2975 = vmatpush1.msra.mxu0 0.0
        %2976 = vmatprep.subr.mxu0 0.0
        %2977 = vmatpush1.msra.mxu0 0.0
        %2978 = vmatprep.subr.mxu0 0.0
        %2979 = vmatpush1.msra.mxu0 0.0
        %2980 = vmatprep.subr.mxu0 0.0
        %2981 = vmatpush1.msra.mxu0 0.0
        %2982 = vmatprep.subr.mxu0 0.0
        %2983 = vmatpush1.msra.mxu0 0.0
        %2984 = vmatprep.subr.mxu0 0.0
        %2985 = vmatpush1.msra.mxu0 0.0
        %2986 = vmatprep.subr.mxu0 0.0
        %2987 = vmatpush1.msra.mxu0 0.0
        %2988 = vmatprep.subr.mxu0 0.0
        %2989 = vmatpush1.msra.mxu0 0.0
        %2990 = vmatprep.subr.mxu0 0.0
        %2991 = vmatpush1.msra.mxu0 0.0
        %2992 = vmatprep.subr.mxu0 0.0
        %2993 = vmatpush1.msra.mxu0 0.0
        %2994 = vmatprep.subr.mxu0 0.0
        %v2995 = vand.u32 %v651, 4294901760
        %v2996 = vsub.f32 %v651, %v2995
        %2997 = vmatpush1.msra.mxu0 %v2996
        %2998 = vmatprep.subr.mxu0 0.0
        %v2999 = vand.u32 %v650, 4294901760
        %v3000 = vsub.f32 %v650, %v2999
        %3001 = vmatpush1.msra.mxu0 %v3000
        %3002 = vmatprep.subr.mxu0 0.0
        %v3003 = vand.u32 %v649, 4294901760
        %v3004 = vsub.f32 %v649, %v3003
        %3005 = vmatpush1.msra.mxu0 %v3004
        %3006 = vmatprep.subr.mxu0 0.0
        %v3007 = vand.u32 %v648, 4294901760
        %v3008 = vsub.f32 %v648, %v3007
        %3009 = vmatpush1.msra.mxu0 %v3008
        %3010 = vmatprep.subr.mxu0 0.0
        %3011 = vmatpush2.msra.mxu0 0.0
        %3012 = vmatprep.subr.mxu0 0.0
        %3013 = vmatpush2.msra.mxu0 0.0
        %3014 = vmatprep.subr.mxu0 0.0
        %3015 = vmatpush2.msra.mxu0 0.0
        %3016 = vmatprep.subr.mxu0 0.0
        %3017 = vmatpush2.msra.mxu0 0.0
        %3018 = vmatprep.subr.mxu0 0.0
        %3019 = vmatpush2.msra.mxu0 0.0
        %3020 = vmatprep.subr.mxu0 0.0
        %3021 = vmatpush2.msra.mxu0 0.0
        %3022 = vmatprep.subr.mxu0 0.0
        %3023 = vmatpush2.msra.mxu0 0.0
        %3024 = vmatprep.subr.mxu0 0.0
        %3025 = vmatpush2.msra.mxu0 0.0
        %3026 = vmatprep.subr.mxu0 0.0
        %3027 = vmatpush2.msra.mxu0 0.0
        %3028 = vmatprep.subr.mxu0 0.0
        %3029 = vmatpush2.msra.mxu0 0.0
        %3030 = vmatprep.subr.mxu0 0.0
        %3031 = vmatpush2.msra.mxu0 0.0
        %3032 = vmatprep.subr.mxu0 0.0
        %3033 = vmatpush2.msra.mxu0 0.0
        %3034 = vmatprep.subr.mxu0 0.0
        %3035 = vmatpush2.msra.mxu0 0.0
        %3036 = vmatprep.subr.mxu0 0.0
        %3037 = vmatpush2.msra.mxu0 0.0
        %3038 = vmatprep.subr.mxu0 0.0
        %3039 = vmatpush2.msra.mxu0 0.0
        %3040 = vmatprep.subr.mxu0 0.0
        %3041 = vmatpush2.msra.mxu0 0.0
        %3042 = vmatprep.mubr.f32.mxu0 0.0
        %v3043 = vand.u32 %v2741, 4294901760
        %v3044 = vsub.f32 %v2741, %v3043
        %3045 = vmatmul.mubr.f32.gmra.mxu0 %v3044
        %v3046 = vpop.f32.mrf.mxu0
        %v3047 = vadd.f32 %v2949, %v3046
        %v3048 = vpop.f32.mrf.mxu0
        %3049 = vmatprep.mubr.f32.mxu0 0.0
        %v3050 = vand.u32 %v2744, 4294901760
        %v3051 = vsub.f32 %v2744, %v3050
        %3052 = vmatmul.mubr.f32.gmra.mxu0 %v3051
        %v3053 = vpop.f32.mrf.mxu0
        %v3054 = vadd.f32 %v2955, %v3053
        %v3055 = vpop.f32.mrf.mxu0
        %3056 = vmatprep.mubr.f32.mxu0 0.0
        %v3057 = vand.u32 %v2747, 4294901760
        %v3058 = vsub.f32 %v2747, %v3057
        %3059 = vmatmul.mubr.f32.gmra.mxu0 %v3058
        %v3060 = vpop.f32.mrf.mxu0
        %v3061 = vadd.f32 %v2961, %v3060
        %v3062 = vpop.f32.mrf.mxu0
        %3063 = vmatprep.mubr.f32.mxu0 0.0
        %v3064 = vand.u32 %v2750, 4294901760
        %v3065 = vsub.f32 %v2750, %v3064
        %3066 = vmatmul.mubr.f32.gmra.mxu0 %v3065
        %v3067 = vpop.f32.mrf.mxu0
        %v3068 = vadd.f32 %v2967, %v3067
        %v3069 = vpop.f32.mrf.mxu0
        %3070 = vdwg.mxu0
        %3071 = vmatprep.subr.mxu0 0.0
        %3072 = vmatpush1.msra.mxu0 0.0
        %3073 = vmatprep.subr.mxu0 0.0
        %3074 = vmatpush1.msra.mxu0 0.0
        %3075 = vmatprep.subr.mxu0 0.0
        %3076 = vmatpush1.msra.mxu0 0.0
        %3077 = vmatprep.subr.mxu0 0.0
        %3078 = vmatpush1.msra.mxu0 0.0
        %3079 = vmatprep.subr.mxu0 0.0
        %3080 = vmatpush1.msra.mxu0 0.0
        %3081 = vmatprep.subr.mxu0 0.0
        %3082 = vmatpush1.msra.mxu0 0.0
        %3083 = vmatprep.subr.mxu0 0.0
        %3084 = vmatpush1.msra.mxu0 0.0
        %3085 = vmatprep.subr.mxu0 0.0
        %3086 = vmatpush1.msra.mxu0 0.0
        %3087 = vmatprep.subr.mxu0 0.0
        %3088 = vmatpush1.msra.mxu0 0.0
        %3089 = vmatprep.subr.mxu0 0.0
        %3090 = vmatpush1.msra.mxu0 0.0
        %3091 = vmatprep.subr.mxu0 0.0
        %3092 = vmatpush1.msra.mxu0 0.0
        %3093 = vmatprep.subr.mxu0 0.0
        %3094 = vmatpush1.msra.mxu0 0.0
        %3095 = vmatprep.subr.mxu0 0.0
        %v3096 = vand.u32 %v651, 4294901760
        %3097 = vmatpush1.msra.mxu0 %v3096
        %3098 = vmatprep.subr.mxu0 0.0
        %v3099 = vand.u32 %v650, 4294901760
        %3100 = vmatpush1.msra.mxu0 %v3099
        %3101 = vmatprep.subr.mxu0 0.0
        %v3102 = vand.u32 %v649, 4294901760
        %3103 = vmatpush1.msra.mxu0 %v3102
        %3104 = vmatprep.subr.mxu0 0.0
        %v3105 = vand.u32 %v648, 4294901760
        %3106 = vmatpush1.msra.mxu0 %v3105
        %3107 = vmatprep.subr.mxu0 0.0
        %3108 = vmatpush2.msra.mxu0 0.0
        %3109 = vmatprep.subr.mxu0 0.0
        %3110 = vmatpush2.msra.mxu0 0.0
        %3111 = vmatprep.subr.mxu0 0.0
        %3112 = vmatpush2.msra.mxu0 0.0
        %3113 = vmatprep.subr.mxu0 0.0
        %3114 = vmatpush2.msra.mxu0 0.0
        %3115 = vmatprep.subr.mxu0 0.0
        %3116 = vmatpush2.msra.mxu0 0.0
        %3117 = vmatprep.subr.mxu0 0.0
        %3118 = vmatpush2.msra.mxu0 0.0
        %3119 = vmatprep.subr.mxu0 0.0
        %3120 = vmatpush2.msra.mxu0 0.0
        %3121 = vmatprep.subr.mxu0 0.0
        %3122 = vmatpush2.msra.mxu0 0.0
        %3123 = vmatprep.subr.mxu0 0.0
        %3124 = vmatpush2.msra.mxu0 0.0
        %3125 = vmatprep.subr.mxu0 0.0
        %3126 = vmatpush2.msra.mxu0 0.0
        %3127 = vmatprep.subr.mxu0 0.0
        %3128 = vmatpush2.msra.mxu0 0.0
        %3129 = vmatprep.subr.mxu0 0.0
        %3130 = vmatpush2.msra.mxu0 0.0
        %3131 = vmatprep.subr.mxu0 0.0
        %3132 = vmatpush2.msra.mxu0 0.0
        %3133 = vmatprep.subr.mxu0 0.0
        %3134 = vmatpush2.msra.mxu0 0.0
        %3135 = vmatprep.subr.mxu0 0.0
        %3136 = vmatpush2.msra.mxu0 0.0
        %3137 = vmatprep.subr.mxu0 0.0
        %3138 = vmatpush2.msra.mxu0 0.0
        %3139 = vmatprep.mubr.f32.mxu0 0.0
        %v3140 = vand.u32 %v2741, 4294901760
        %v3141 = vsub.f32 %v2741, %v3140
        %v3142 = vand.u32 %v3141, 4294901760
        %3143 = vmatmul.mubr.f32.gmra.mxu0 %v3142
        %v3144 = vpop.f32.mrf.mxu0
        %v3145 = vadd.f32 %v3047, %v3144
        %v3146 = vpop.f32.mrf.mxu0
        %3147 = vmatprep.mubr.f32.mxu0 0.0
        %v3148 = vand.u32 %v2744, 4294901760
        %v3149 = vsub.f32 %v2744, %v3148
        %v3150 = vand.u32 %v3149, 4294901760
        %3151 = vmatmul.mubr.f32.gmra.mxu0 %v3150
        %v3152 = vpop.f32.mrf.mxu0
        %v3153 = vadd.f32 %v3054, %v3152
        %v3154 = vpop.f32.mrf.mxu0
        %3155 = vmatprep.mubr.f32.mxu0 0.0
        %v3156 = vand.u32 %v2747, 4294901760
        %v3157 = vsub.f32 %v2747, %v3156
        %v3158 = vand.u32 %v3157, 4294901760
        %3159 = vmatmul.mubr.f32.gmra.mxu0 %v3158
        %v3160 = vpop.f32.mrf.mxu0
        %v3161 = vadd.f32 %v3061, %v3160
        %v3162 = vpop.f32.mrf.mxu0
        %3163 = vmatprep.mubr.f32.mxu0 0.0
        %v3164 = vand.u32 %v2750, 4294901760
        %v3165 = vsub.f32 %v2750, %v3164
        %v3166 = vand.u32 %v3165, 4294901760
        %3167 = vmatmul.mubr.f32.gmra.mxu0 %v3166
        %v3168 = vpop.f32.mrf.mxu0
        %v3169 = vadd.f32 %v3068, %v3168
        %v3170 = vpop.f32.mrf.mxu0
        %3171 = vdwg.mxu0
        %3172 = vmatprep.subr.mxu0 0.0
        %3173 = vmatpush1.msra.mxu0 0.0
        %3174 = vmatprep.subr.mxu0 0.0
        %3175 = vmatpush1.msra.mxu0 0.0
        %3176 = vmatprep.subr.mxu0 0.0
        %3177 = vmatpush1.msra.mxu0 0.0
        %3178 = vmatprep.subr.mxu0 0.0
        %3179 = vmatpush1.msra.mxu0 0.0
        %3180 = vmatprep.subr.mxu0 0.0
        %3181 = vmatpush1.msra.mxu0 0.0
        %3182 = vmatprep.subr.mxu0 0.0
        %3183 = vmatpush1.msra.mxu0 0.0
        %3184 = vmatprep.subr.mxu0 0.0
        %3185 = vmatpush1.msra.mxu0 0.0
        %3186 = vmatprep.subr.mxu0 0.0
        %3187 = vmatpush1.msra.mxu0 0.0
        %3188 = vmatprep.subr.mxu0 0.0
        %3189 = vmatpush1.msra.mxu0 0.0
        %3190 = vmatprep.subr.mxu0 0.0
        %3191 = vmatpush1.msra.mxu0 0.0
        %3192 = vmatprep.subr.mxu0 0.0
        %3193 = vmatpush1.msra.mxu0 0.0
        %3194 = vmatprep.subr.mxu0 0.0
        %3195 = vmatpush1.msra.mxu0 0.0
        %3196 = vmatprep.subr.mxu0 0.0
        %v3197 = vand.u32 %v651, 4294901760
        %v3198 = vsub.f32 %v651, %v3197
        %v3199 = vand.u32 %v3198, 4294901760
        %3200 = vmatpush1.msra.mxu0 %v3199
        %3201 = vmatprep.subr.mxu0 0.0
        %v3202 = vand.u32 %v650, 4294901760
        %v3203 = vsub.f32 %v650, %v3202
        %v3204 = vand.u32 %v3203, 4294901760
        %3205 = vmatpush1.msra.mxu0 %v3204
        %3206 = vmatprep.subr.mxu0 0.0
        %v3207 = vand.u32 %v649, 4294901760
        %v3208 = vsub.f32 %v649, %v3207
        %v3209 = vand.u32 %v3208, 4294901760
        %3210 = vmatpush1.msra.mxu0 %v3209
        %3211 = vmatprep.subr.mxu0 0.0
        %v3212 = vand.u32 %v648, 4294901760
        %v3213 = vsub.f32 %v648, %v3212
        %v3214 = vand.u32 %v3213, 4294901760
        %3215 = vmatpush1.msra.mxu0 %v3214
        %3216 = vmatprep.subr.mxu0 0.0
        %3217 = vmatpush2.msra.mxu0 0.0
        %3218 = vmatprep.subr.mxu0 0.0
        %3219 = vmatpush2.msra.mxu0 0.0
        %3220 = vmatprep.subr.mxu0 0.0
        %3221 = vmatpush2.msra.mxu0 0.0
        %3222 = vmatprep.subr.mxu0 0.0
        %3223 = vmatpush2.msra.mxu0 0.0
        %3224 = vmatprep.subr.mxu0 0.0
        %3225 = vmatpush2.msra.mxu0 0.0
        %3226 = vmatprep.subr.mxu0 0.0
        %3227 = vmatpush2.msra.mxu0 0.0
        %3228 = vmatprep.subr.mxu0 0.0
        %3229 = vmatpush2.msra.mxu0 0.0
        %3230 = vmatprep.subr.mxu0 0.0
        %3231 = vmatpush2.msra.mxu0 0.0
        %3232 = vmatprep.subr.mxu0 0.0
        %3233 = vmatpush2.msra.mxu0 0.0
        %3234 = vmatprep.subr.mxu0 0.0
        %3235 = vmatpush2.msra.mxu0 0.0
        %3236 = vmatprep.subr.mxu0 0.0
        %3237 = vmatpush2.msra.mxu0 0.0
        %3238 = vmatprep.subr.mxu0 0.0
        %3239 = vmatpush2.msra.mxu0 0.0
        %3240 = vmatprep.subr.mxu0 0.0
        %3241 = vmatpush2.msra.mxu0 0.0
        %3242 = vmatprep.subr.mxu0 0.0
        %3243 = vmatpush2.msra.mxu0 0.0
        %3244 = vmatprep.subr.mxu0 0.0
        %3245 = vmatpush2.msra.mxu0 0.0
        %3246 = vmatprep.subr.mxu0 0.0
        %3247 = vmatpush2.msra.mxu0 0.0
        %3248 = vmatprep.mubr.f32.mxu0 0.0
        %v3249 = vand.u32 %v2741, 4294901760
        %3250 = vmatmul.mubr.f32.gmra.mxu0 %v3249
        %v3251 = vpop.f32.mrf.mxu0
        %v3252 = vadd.f32 %v3145, %v3251
        %v3253 = vpop.f32.mrf.mxu0
        %3254 = vmatprep.mubr.f32.mxu0 0.0
        %v3255 = vand.u32 %v2744, 4294901760
        %3256 = vmatmul.mubr.f32.gmra.mxu0 %v3255
        %v3257 = vpop.f32.mrf.mxu0
        %v3258 = vadd.f32 %v3153, %v3257
        %v3259 = vpop.f32.mrf.mxu0
        %3260 = vmatprep.mubr.f32.mxu0 0.0
        %v3261 = vand.u32 %v2747, 4294901760
        %3262 = vmatmul.mubr.f32.gmra.mxu0 %v3261
        %v3263 = vpop.f32.mrf.mxu0
        %v3264 = vadd.f32 %v3161, %v3263
        %v3265 = vpop.f32.mrf.mxu0
        %3266 = vmatprep.mubr.f32.mxu0 0.0
        %v3267 = vand.u32 %v2750, 4294901760
        %3268 = vmatmul.mubr.f32.gmra.mxu0 %v3267
        %v3269 = vpop.f32.mrf.mxu0
        %v3270 = vadd.f32 %v3169, %v3269
        %v3271 = vpop.f32.mrf.mxu0
        %3272 = vdwg.mxu0
        %3273 = vmatprep.subr.mxu0 0.0
        %3274 = vmatpush1.msra.mxu0 0.0
        %3275 = vmatprep.subr.mxu0 0.0
        %3276 = vmatpush1.msra.mxu0 0.0
        %3277 = vmatprep.subr.mxu0 0.0
        %3278 = vmatpush1.msra.mxu0 0.0
        %3279 = vmatprep.subr.mxu0 0.0
        %3280 = vmatpush1.msra.mxu0 0.0
        %3281 = vmatprep.subr.mxu0 0.0
        %3282 = vmatpush1.msra.mxu0 0.0
        %3283 = vmatprep.subr.mxu0 0.0
        %3284 = vmatpush1.msra.mxu0 0.0
        %3285 = vmatprep.subr.mxu0 0.0
        %3286 = vmatpush1.msra.mxu0 0.0
        %3287 = vmatprep.subr.mxu0 0.0
        %3288 = vmatpush1.msra.mxu0 0.0
        %3289 = vmatprep.subr.mxu0 0.0
        %3290 = vmatpush1.msra.mxu0 0.0
        %3291 = vmatprep.subr.mxu0 0.0
        %3292 = vmatpush1.msra.mxu0 0.0
        %3293 = vmatprep.subr.mxu0 0.0
        %3294 = vmatpush1.msra.mxu0 0.0
        %3295 = vmatprep.subr.mxu0 0.0
        %3296 = vmatpush1.msra.mxu0 0.0
        %3297 = vmatprep.subr.mxu0 0.0
        %v3298 = vand.u32 %v651, 4294901760
        %3299 = vmatpush1.msra.mxu0 %v3298
        %3300 = vmatprep.subr.mxu0 0.0
        %v3301 = vand.u32 %v650, 4294901760
        %3302 = vmatpush1.msra.mxu0 %v3301
        %3303 = vmatprep.subr.mxu0 0.0
        %v3304 = vand.u32 %v649, 4294901760
        %3305 = vmatpush1.msra.mxu0 %v3304
        %3306 = vmatprep.subr.mxu0 0.0
        %v3307 = vand.u32 %v648, 4294901760
        %3308 = vmatpush1.msra.mxu0 %v3307
        %3309 = vmatprep.subr.mxu0 0.0
        %3310 = vmatpush2.msra.mxu0 0.0
        %3311 = vmatprep.subr.mxu0 0.0
        %3312 = vmatpush2.msra.mxu0 0.0
        %3313 = vmatprep.subr.mxu0 0.0
        %3314 = vmatpush2.msra.mxu0 0.0
        %3315 = vmatprep.subr.mxu0 0.0
        %3316 = vmatpush2.msra.mxu0 0.0
        %3317 = vmatprep.subr.mxu0 0.0
        %3318 = vmatpush2.msra.mxu0 0.0
        %3319 = vmatprep.subr.mxu0 0.0
        %3320 = vmatpush2.msra.mxu0 0.0
        %3321 = vmatprep.subr.mxu0 0.0
        %3322 = vmatpush2.msra.mxu0 0.0
        %3323 = vmatprep.subr.mxu0 0.0
        %3324 = vmatpush2.msra.mxu0 0.0
        %3325 = vmatprep.subr.mxu0 0.0
        %3326 = vmatpush2.msra.mxu0 0.0
        %3327 = vmatprep.subr.mxu0 0.0
        %3328 = vmatpush2.msra.mxu0 0.0
        %3329 = vmatprep.subr.mxu0 0.0
        %3330 = vmatpush2.msra.mxu0 0.0
        %3331 = vmatprep.subr.mxu0 0.0
        %3332 = vmatpush2.msra.mxu0 0.0
        %3333 = vmatprep.subr.mxu0 0.0
        %3334 = vmatpush2.msra.mxu0 0.0
        %3335 = vmatprep.subr.mxu0 0.0
        %3336 = vmatpush2.msra.mxu0 0.0
        %3337 = vmatprep.subr.mxu0 0.0
        %3338 = vmatpush2.msra.mxu0 0.0
        %3339 = vmatprep.subr.mxu0 0.0
        %3340 = vmatpush2.msra.mxu0 0.0
        %3341 = vmatprep.mubr.f32.mxu0 0.0
        %v3342 = vand.u32 %v2741, 4294901760
        %3343 = vmatmul.mubr.f32.gmra.mxu0 %v3342
        %v3344 = vpop.f32.mrf.mxu0
        %v3345 = vadd.f32 %v3252, %v3344
        %v3346 = vpop.f32.mrf.mxu0
        %3347 = vmatprep.mubr.f32.mxu0 0.0
        %v3348 = vand.u32 %v2744, 4294901760
        %3349 = vmatmul.mubr.f32.gmra.mxu0 %v3348
        %v3350 = vpop.f32.mrf.mxu0
        %v3351 = vadd.f32 %v3258, %v3350
        %v3352 = vpop.f32.mrf.mxu0
        %3353 = vmatprep.mubr.f32.mxu0 0.0
        %v3354 = vand.u32 %v2747, 4294901760
        %3355 = vmatmul.mubr.f32.gmra.mxu0 %v3354
        %v3356 = vpop.f32.mrf.mxu0
        %v3357 = vadd.f32 %v3264, %v3356
        %v3358 = vpop.f32.mrf.mxu0
        %3359 = vmatprep.mubr.f32.mxu0 0.0
        %v3360 = vand.u32 %v2750, 4294901760
        %3361 = vmatmul.mubr.f32.gmra.mxu0 %v3360
        %v3362 = vpop.f32.mrf.mxu0
        %v3363 = vadd.f32 %v3270, %v3362
        %v3364 = vpop.f32.mrf.mxu0
        %3365 = vdwg.mxu0
        %v3366 = vmul.f32 %v1398, %v648
        %v3367 = vmul.f32 %v1401, %v649
        %v3368 = vmul.f32 %v1404, %v650
        %v3369 = vmul.f32 %v1407, %v651
        %v3370 = vadd.f32 %v3366, %v2089
        %v3371 = vadd.f32 %v3367, %v2095
        %v3372 = vadd.f32 %v3368, %v2101
        %v3373 = vadd.f32 %v3369, %v2107
        %v3374 = vadd.f32 %v3370, %v3345
        %v3375 = vadd.f32 %v3371, %v3351
        %v3376 = vadd.f32 %v3372, %v3357
        %v3377 = vadd.f32 %v3373, %v3363
        %3378 = vst.msk [vmem:[%s581] sm:$0xff] %vm1395, %v3374
        %3379 = vst.msk [vmem:[%s581 + $0x8] sm:$0xff] %vm1395, %v3375
        %3380 = vst.msk [vmem:[%s581 + $0x10] sm:$0xff] %vm1395, %v3376
        %3381 = vst.msk [vmem:[%s581 + $0x18] sm:$0xff] %vm1395, %v3377
        %v3382 = vlaneseq
        %v3383 = vshrl.u32 %v3382, 7
        %v3384 = vsub.s32 7, %v3383
        %v3385 = vrot.slane %v1372, %v3384
        %v3386 = vmul.f32 %v3385, %v1387
        %v3387 = vmul.f32 %v3385, %v1388
        %v3388 = vmul.f32 %v3385, %v1389
        %v3389 = vmul.f32 %v3385, %v1390
        %v3390 = vmul.f32 %v3385, %v1391
        %v3391 = vmul.f32 %v3385, %v1392
        %v3392 = vmul.f32 %v3385, %v1393
        %v3393 = vmul.f32 %v3385, %v1394
        %3394 = vxpose.xlu0.b32.start [1/16] %v648, 128
        %3395 = vxpose.xlu0.b32.cont [2/16] %v649, 128
        %3396 = vxpose.xlu0.b32.cont [3/16] %v650, 128
        %3397 = vxpose.xlu0.b32.cont [4/16] %v651, 128
        %3398 = vxpose.xlu0.b32.cont [5/16] 0.0, 128
        %3399 = vxpose.xlu0.b32.cont [6/16] 0.0, 128
        %3400 = vxpose.xlu0.b32.cont [7/16] 0.0, 128
        %3401 = vxpose.xlu0.b32.cont [8/16] 0.0, 128
        %3402 = vxpose.xlu0.b32.cont [9/16] 0.0, 128
        %3403 = vxpose.xlu0.b32.cont [10/16] 0.0, 128
        %3404 = vxpose.xlu0.b32.cont [11/16] 0.0, 128
        %3405 = vxpose.xlu0.b32.cont [12/16] 0.0, 128
        %3406 = vxpose.xlu0.b32.cont [13/16] 0.0, 128
        %3407 = vxpose.xlu0.b32.cont [14/16] 0.0, 128
        %3408 = vxpose.xlu0.b32.cont [15/16] 0.0, 128
        %3409 = vxpose.xlu0.b32.end [16/16] 0.0, 128
        %v3410 = vpop.trf.xlu0
        %v3411 = vpop.trf.xlu0
        %v3412 = vpop.trf.xlu0
        %v3413 = vpop.trf.xlu0
        %v3414 = vpop.trf.xlu0
        %v3415 = vpop.trf.xlu0
        %v3416 = vpop.trf.xlu0
        %v3417 = vpop.trf.xlu0
        %v3418 = vpop.trf.xlu0
        %v3419 = vpop.trf.xlu0
        %v3420 = vpop.trf.xlu0
        %v3421 = vpop.trf.xlu0
        %v3422 = vpop.trf.xlu0
        %v3423 = vpop.trf.xlu0
        %v3424 = vpop.trf.xlu0
        %v3425 = vpop.trf.xlu0
        %v3427 = vsel %vm692, %v3410, 0
        %v3430 = vsel %vm692, %v3411, 0
        %v3433 = vsel %vm692, %v3412, 0
        %v3436 = vsel %vm692, %v3413, 0
        %v3439 = vsel %vm692, %v3414, 0
        %v3442 = vsel %vm692, %v3415, 0
        %v3445 = vsel %vm692, %v3416, 0
        %v3448 = vsel %vm692, %v3417, 0
        %3450 = vmatprep.subr.mxu0 0.0
        %3451 = vmatpush1.msra.mxu0 0.0
        %3452 = vmatprep.subr.mxu0 0.0
        %3453 = vmatpush1.msra.mxu0 0.0
        %3454 = vmatprep.subr.mxu0 0.0
        %3455 = vmatpush1.msra.mxu0 0.0
        %3456 = vmatprep.subr.mxu0 0.0
        %3457 = vmatpush1.msra.mxu0 0.0
        %3458 = vmatprep.subr.mxu0 0.0
        %3459 = vmatpush1.msra.mxu0 0.0
        %3460 = vmatprep.subr.mxu0 0.0
        %3461 = vmatpush1.msra.mxu0 0.0
        %3462 = vmatprep.subr.mxu0 0.0
        %3463 = vmatpush1.msra.mxu0 0.0
        %3464 = vmatprep.subr.mxu0 0.0
        %3465 = vmatpush1.msra.mxu0 0.0
        %3466 = vmatprep.subr.mxu0 0.0
        %3467 = vmatpush1.msra.mxu0 0.0
        %3468 = vmatprep.subr.mxu0 0.0
        %3469 = vmatpush1.msra.mxu0 0.0
        %3470 = vmatprep.subr.mxu0 0.0
        %3471 = vmatpush1.msra.mxu0 0.0
        %3472 = vmatprep.subr.mxu0 0.0
        %3473 = vmatpush1.msra.mxu0 0.0
        %3474 = vmatprep.subr.mxu0 0.0
        %v3475 = vand.u32 %v1370, 4294901760
        %3476 = vmatpush1.msra.mxu0 %v3475
        %3477 = vmatprep.subr.mxu0 0.0
        %v3478 = vand.u32 %v1369, 4294901760
        %3479 = vmatpush1.msra.mxu0 %v3478
        %3480 = vmatprep.subr.mxu0 0.0
        %v3481 = vand.u32 %v1368, 4294901760
        %3482 = vmatpush1.msra.mxu0 %v3481
        %3483 = vmatprep.subr.mxu0 0.0
        %v3484 = vand.u32 %v1367, 4294901760
        %3485 = vmatpush1.msra.mxu0 %v3484
        %3486 = vmatprep.subr.mxu0 0.0
        %3487 = vmatpush2.msra.mxu0 0.0
        %3488 = vmatprep.subr.mxu0 0.0
        %3489 = vmatpush2.msra.mxu0 0.0
        %3490 = vmatprep.subr.mxu0 0.0
        %3491 = vmatpush2.msra.mxu0 0.0
        %3492 = vmatprep.subr.mxu0 0.0
        %3493 = vmatpush2.msra.mxu0 0.0
        %3494 = vmatprep.subr.mxu0 0.0
        %3495 = vmatpush2.msra.mxu0 0.0
        %3496 = vmatprep.subr.mxu0 0.0
        %3497 = vmatpush2.msra.mxu0 0.0
        %3498 = vmatprep.subr.mxu0 0.0
        %3499 = vmatpush2.msra.mxu0 0.0
        %3500 = vmatprep.subr.mxu0 0.0
        %3501 = vmatpush2.msra.mxu0 0.0
        %3502 = vmatprep.subr.mxu0 0.0
        %3503 = vmatpush2.msra.mxu0 0.0
        %3504 = vmatprep.subr.mxu0 0.0
        %3505 = vmatpush2.msra.mxu0 0.0
        %3506 = vmatprep.subr.mxu0 0.0
        %3507 = vmatpush2.msra.mxu0 0.0
        %3508 = vmatprep.subr.mxu0 0.0
        %3509 = vmatpush2.msra.mxu0 0.0
        %3510 = vmatprep.subr.mxu0 0.0
        %3511 = vmatpush2.msra.mxu0 0.0
        %3512 = vmatprep.subr.mxu0 0.0
        %3513 = vmatpush2.msra.mxu0 0.0
        %3514 = vmatprep.subr.mxu0 0.0
        %3515 = vmatpush2.msra.mxu0 0.0
        %3516 = vmatprep.subr.mxu0 0.0
        %3517 = vmatpush2.msra.mxu0 0.0
        %3518 = vmatprep.mubr.f32.mxu0 0.0
        %v3519 = vand.u32 %v3427, 4294901760
        %v3520 = vsub.f32 %v3427, %v3519
        %v3521 = vand.u32 %v3520, 4294901760
        %v3522 = vsub.f32 %v3520, %v3521
        %v3523 = vand.u32 %v3522, 4294901760
        %3524 = vmatmul.mubr.f32.gmra.mxu0 %v3523
        %v3525 = vpop.f32.mrf.mxu0
        %v3526 = vadd.f32 0.0, %v3525
        %v3527 = vpop.f32.mrf.mxu0
        %3528 = vmatprep.mubr.f32.mxu0 0.0
        %v3529 = vand.u32 %v3430, 4294901760
        %v3530 = vsub.f32 %v3430, %v3529
        %v3531 = vand.u32 %v3530, 4294901760
        %v3532 = vsub.f32 %v3530, %v3531
        %v3533 = vand.u32 %v3532, 4294901760
        %3534 = vmatmul.mubr.f32.gmra.mxu0 %v3533
        %v3535 = vpop.f32.mrf.mxu0
        %v3536 = vadd.f32 0.0, %v3535
        %v3537 = vpop.f32.mrf.mxu0
        %3538 = vmatprep.mubr.f32.mxu0 0.0
        %v3539 = vand.u32 %v3433, 4294901760
        %v3540 = vsub.f32 %v3433, %v3539
        %v3541 = vand.u32 %v3540, 4294901760
        %v3542 = vsub.f32 %v3540, %v3541
        %v3543 = vand.u32 %v3542, 4294901760
        %3544 = vmatmul.mubr.f32.gmra.mxu0 %v3543
        %v3545 = vpop.f32.mrf.mxu0
        %v3546 = vadd.f32 0.0, %v3545
        %v3547 = vpop.f32.mrf.mxu0
        %3548 = vmatprep.mubr.f32.mxu0 0.0
        %v3549 = vand.u32 %v3436, 4294901760
        %v3550 = vsub.f32 %v3436, %v3549
        %v3551 = vand.u32 %v3550, 4294901760
        %v3552 = vsub.f32 %v3550, %v3551
        %v3553 = vand.u32 %v3552, 4294901760
        %3554 = vmatmul.mubr.f32.gmra.mxu0 %v3553
        %v3555 = vpop.f32.mrf.mxu0
        %v3556 = vadd.f32 0.0, %v3555
        %v3557 = vpop.f32.mrf.mxu0
        %3558 = vmatprep.mubr.f32.mxu0 0.0
        %v3559 = vand.u32 %v3439, 4294901760
        %v3560 = vsub.f32 %v3439, %v3559
        %v3561 = vand.u32 %v3560, 4294901760
        %v3562 = vsub.f32 %v3560, %v3561
        %v3563 = vand.u32 %v3562, 4294901760
        %3564 = vmatmul.mubr.f32.gmra.mxu0 %v3563
        %v3565 = vpop.f32.mrf.mxu0
        %v3566 = vadd.f32 0.0, %v3565
        %v3567 = vpop.f32.mrf.mxu0
        %3568 = vmatprep.mubr.f32.mxu0 0.0
        %v3569 = vand.u32 %v3442, 4294901760
        %v3570 = vsub.f32 %v3442, %v3569
        %v3571 = vand.u32 %v3570, 4294901760
        %v3572 = vsub.f32 %v3570, %v3571
        %v3573 = vand.u32 %v3572, 4294901760
        %3574 = vmatmul.mubr.f32.gmra.mxu0 %v3573
        %v3575 = vpop.f32.mrf.mxu0
        %v3576 = vadd.f32 0.0, %v3575
        %v3577 = vpop.f32.mrf.mxu0
        %3578 = vmatprep.mubr.f32.mxu0 0.0
        %v3579 = vand.u32 %v3445, 4294901760
        %v3580 = vsub.f32 %v3445, %v3579
        %v3581 = vand.u32 %v3580, 4294901760
        %v3582 = vsub.f32 %v3580, %v3581
        %v3583 = vand.u32 %v3582, 4294901760
        %3584 = vmatmul.mubr.f32.gmra.mxu0 %v3583
        %v3585 = vpop.f32.mrf.mxu0
        %v3586 = vadd.f32 0.0, %v3585
        %v3587 = vpop.f32.mrf.mxu0
        %3588 = vmatprep.mubr.f32.mxu0 0.0
        %v3589 = vand.u32 %v3448, 4294901760
        %v3590 = vsub.f32 %v3448, %v3589
        %v3591 = vand.u32 %v3590, 4294901760
        %v3592 = vsub.f32 %v3590, %v3591
        %v3593 = vand.u32 %v3592, 4294901760
        %3594 = vmatmul.mubr.f32.gmra.mxu0 %v3593
        %v3595 = vpop.f32.mrf.mxu0
        %v3596 = vadd.f32 0.0, %v3595
        %v3597 = vpop.f32.mrf.mxu0
        %3598 = vdwg.mxu0
        %3599 = vmatprep.subr.mxu0 0.0
        %3600 = vmatpush1.msra.mxu0 0.0
        %3601 = vmatprep.subr.mxu0 0.0
        %3602 = vmatpush1.msra.mxu0 0.0
        %3603 = vmatprep.subr.mxu0 0.0
        %3604 = vmatpush1.msra.mxu0 0.0
        %3605 = vmatprep.subr.mxu0 0.0
        %3606 = vmatpush1.msra.mxu0 0.0
        %3607 = vmatprep.subr.mxu0 0.0
        %3608 = vmatpush1.msra.mxu0 0.0
        %3609 = vmatprep.subr.mxu0 0.0
        %3610 = vmatpush1.msra.mxu0 0.0
        %3611 = vmatprep.subr.mxu0 0.0
        %3612 = vmatpush1.msra.mxu0 0.0
        %3613 = vmatprep.subr.mxu0 0.0
        %3614 = vmatpush1.msra.mxu0 0.0
        %3615 = vmatprep.subr.mxu0 0.0
        %3616 = vmatpush1.msra.mxu0 0.0
        %3617 = vmatprep.subr.mxu0 0.0
        %3618 = vmatpush1.msra.mxu0 0.0
        %3619 = vmatprep.subr.mxu0 0.0
        %3620 = vmatpush1.msra.mxu0 0.0
        %3621 = vmatprep.subr.mxu0 0.0
        %3622 = vmatpush1.msra.mxu0 0.0
        %3623 = vmatprep.subr.mxu0 0.0
        %v3624 = vand.u32 %v1370, 4294901760
        %v3625 = vsub.f32 %v1370, %v3624
        %v3626 = vand.u32 %v3625, 4294901760
        %v3627 = vsub.f32 %v3625, %v3626
        %v3628 = vand.u32 %v3627, 4294901760
        %3629 = vmatpush1.msra.mxu0 %v3628
        %3630 = vmatprep.subr.mxu0 0.0
        %v3631 = vand.u32 %v1369, 4294901760
        %v3632 = vsub.f32 %v1369, %v3631
        %v3633 = vand.u32 %v3632, 4294901760
        %v3634 = vsub.f32 %v3632, %v3633
        %v3635 = vand.u32 %v3634, 4294901760
        %3636 = vmatpush1.msra.mxu0 %v3635
        %3637 = vmatprep.subr.mxu0 0.0
        %v3638 = vand.u32 %v1368, 4294901760
        %v3639 = vsub.f32 %v1368, %v3638
        %v3640 = vand.u32 %v3639, 4294901760
        %v3641 = vsub.f32 %v3639, %v3640
        %v3642 = vand.u32 %v3641, 4294901760
        %3643 = vmatpush1.msra.mxu0 %v3642
        %3644 = vmatprep.subr.mxu0 0.0
        %v3645 = vand.u32 %v1367, 4294901760
        %v3646 = vsub.f32 %v1367, %v3645
        %v3647 = vand.u32 %v3646, 4294901760
        %v3648 = vsub.f32 %v3646, %v3647
        %v3649 = vand.u32 %v3648, 4294901760
        %3650 = vmatpush1.msra.mxu0 %v3649
        %3651 = vmatprep.subr.mxu0 0.0
        %3652 = vmatpush2.msra.mxu0 0.0
        %3653 = vmatprep.subr.mxu0 0.0
        %3654 = vmatpush2.msra.mxu0 0.0
        %3655 = vmatprep.subr.mxu0 0.0
        %3656 = vmatpush2.msra.mxu0 0.0
        %3657 = vmatprep.subr.mxu0 0.0
        %3658 = vmatpush2.msra.mxu0 0.0
        %3659 = vmatprep.subr.mxu0 0.0
        %3660 = vmatpush2.msra.mxu0 0.0
        %3661 = vmatprep.subr.mxu0 0.0
        %3662 = vmatpush2.msra.mxu0 0.0
        %3663 = vmatprep.subr.mxu0 0.0
        %3664 = vmatpush2.msra.mxu0 0.0
        %3665 = vmatprep.subr.mxu0 0.0
        %3666 = vmatpush2.msra.mxu0 0.0
        %3667 = vmatprep.subr.mxu0 0.0
        %3668 = vmatpush2.msra.mxu0 0.0
        %3669 = vmatprep.subr.mxu0 0.0
        %3670 = vmatpush2.msra.mxu0 0.0
        %3671 = vmatprep.subr.mxu0 0.0
        %3672 = vmatpush2.msra.mxu0 0.0
        %3673 = vmatprep.subr.mxu0 0.0
        %3674 = vmatpush2.msra.mxu0 0.0
        %3675 = vmatprep.subr.mxu0 0.0
        %3676 = vmatpush2.msra.mxu0 0.0
        %3677 = vmatprep.subr.mxu0 0.0
        %3678 = vmatpush2.msra.mxu0 0.0
        %3679 = vmatprep.subr.mxu0 0.0
        %3680 = vmatpush2.msra.mxu0 0.0
        %3681 = vmatprep.subr.mxu0 0.0
        %3682 = vmatpush2.msra.mxu0 0.0
        %3683 = vmatprep.mubr.f32.mxu0 0.0
        %v3684 = vand.u32 %v3427, 4294901760
        %3685 = vmatmul.mubr.f32.gmra.mxu0 %v3684
        %v3686 = vpop.f32.mrf.mxu0
        %v3687 = vadd.f32 %v3526, %v3686
        %v3688 = vpop.f32.mrf.mxu0
        %3689 = vmatprep.mubr.f32.mxu0 0.0
        %v3690 = vand.u32 %v3430, 4294901760
        %3691 = vmatmul.mubr.f32.gmra.mxu0 %v3690
        %v3692 = vpop.f32.mrf.mxu0
        %v3693 = vadd.f32 %v3536, %v3692
        %v3694 = vpop.f32.mrf.mxu0
        %3695 = vmatprep.mubr.f32.mxu0 0.0
        %v3696 = vand.u32 %v3433, 4294901760
        %3697 = vmatmul.mubr.f32.gmra.mxu0 %v3696
        %v3698 = vpop.f32.mrf.mxu0
        %v3699 = vadd.f32 %v3546, %v3698
        %v3700 = vpop.f32.mrf.mxu0
        %3701 = vmatprep.mubr.f32.mxu0 0.0
        %v3702 = vand.u32 %v3436, 4294901760
        %3703 = vmatmul.mubr.f32.gmra.mxu0 %v3702
        %v3704 = vpop.f32.mrf.mxu0
        %v3705 = vadd.f32 %v3556, %v3704
        %v3706 = vpop.f32.mrf.mxu0
        %3707 = vmatprep.mubr.f32.mxu0 0.0
        %v3708 = vand.u32 %v3439, 4294901760
        %3709 = vmatmul.mubr.f32.gmra.mxu0 %v3708
        %v3710 = vpop.f32.mrf.mxu0
        %v3711 = vadd.f32 %v3566, %v3710
        %v3712 = vpop.f32.mrf.mxu0
        %3713 = vmatprep.mubr.f32.mxu0 0.0
        %v3714 = vand.u32 %v3442, 4294901760
        %3715 = vmatmul.mubr.f32.gmra.mxu0 %v3714
        %v3716 = vpop.f32.mrf.mxu0
        %v3717 = vadd.f32 %v3576, %v3716
        %v3718 = vpop.f32.mrf.mxu0
        %3719 = vmatprep.mubr.f32.mxu0 0.0
        %v3720 = vand.u32 %v3445, 4294901760
        %3721 = vmatmul.mubr.f32.gmra.mxu0 %v3720
        %v3722 = vpop.f32.mrf.mxu0
        %v3723 = vadd.f32 %v3586, %v3722
        %v3724 = vpop.f32.mrf.mxu0
        %3725 = vmatprep.mubr.f32.mxu0 0.0
        %v3726 = vand.u32 %v3448, 4294901760
        %3727 = vmatmul.mubr.f32.gmra.mxu0 %v3726
        %v3728 = vpop.f32.mrf.mxu0
        %v3729 = vadd.f32 %v3596, %v3728
        %v3730 = vpop.f32.mrf.mxu0
        %3731 = vdwg.mxu0
        %3732 = vmatprep.subr.mxu0 0.0
        %3733 = vmatpush1.msra.mxu0 0.0
        %3734 = vmatprep.subr.mxu0 0.0
        %3735 = vmatpush1.msra.mxu0 0.0
        %3736 = vmatprep.subr.mxu0 0.0
        %3737 = vmatpush1.msra.mxu0 0.0
        %3738 = vmatprep.subr.mxu0 0.0
        %3739 = vmatpush1.msra.mxu0 0.0
        %3740 = vmatprep.subr.mxu0 0.0
        %3741 = vmatpush1.msra.mxu0 0.0
        %3742 = vmatprep.subr.mxu0 0.0
        %3743 = vmatpush1.msra.mxu0 0.0
        %3744 = vmatprep.subr.mxu0 0.0
        %3745 = vmatpush1.msra.mxu0 0.0
        %3746 = vmatprep.subr.mxu0 0.0
        %3747 = vmatpush1.msra.mxu0 0.0
        %3748 = vmatprep.subr.mxu0 0.0
        %3749 = vmatpush1.msra.mxu0 0.0
        %3750 = vmatprep.subr.mxu0 0.0
        %3751 = vmatpush1.msra.mxu0 0.0
        %3752 = vmatprep.subr.mxu0 0.0
        %3753 = vmatpush1.msra.mxu0 0.0
        %3754 = vmatprep.subr.mxu0 0.0
        %3755 = vmatpush1.msra.mxu0 0.0
        %3756 = vmatprep.subr.mxu0 0.0
        %v3757 = vand.u32 %v1370, 4294901760
        %v3758 = vsub.f32 %v1370, %v3757
        %3759 = vmatpush1.msra.mxu0 %v3758
        %3760 = vmatprep.subr.mxu0 0.0
        %v3761 = vand.u32 %v1369, 4294901760
        %v3762 = vsub.f32 %v1369, %v3761
        %3763 = vmatpush1.msra.mxu0 %v3762
        %3764 = vmatprep.subr.mxu0 0.0
        %v3765 = vand.u32 %v1368, 4294901760
        %v3766 = vsub.f32 %v1368, %v3765
        %3767 = vmatpush1.msra.mxu0 %v3766
        %3768 = vmatprep.subr.mxu0 0.0
        %v3769 = vand.u32 %v1367, 4294901760
        %v3770 = vsub.f32 %v1367, %v3769
        %3771 = vmatpush1.msra.mxu0 %v3770
        %3772 = vmatprep.subr.mxu0 0.0
        %3773 = vmatpush2.msra.mxu0 0.0
        %3774 = vmatprep.subr.mxu0 0.0
        %3775 = vmatpush2.msra.mxu0 0.0
        %3776 = vmatprep.subr.mxu0 0.0
        %3777 = vmatpush2.msra.mxu0 0.0
        %3778 = vmatprep.subr.mxu0 0.0
        %3779 = vmatpush2.msra.mxu0 0.0
        %3780 = vmatprep.subr.mxu0 0.0
        %3781 = vmatpush2.msra.mxu0 0.0
        %3782 = vmatprep.subr.mxu0 0.0
        %3783 = vmatpush2.msra.mxu0 0.0
        %3784 = vmatprep.subr.mxu0 0.0
        %3785 = vmatpush2.msra.mxu0 0.0
        %3786 = vmatprep.subr.mxu0 0.0
        %3787 = vmatpush2.msra.mxu0 0.0
        %3788 = vmatprep.subr.mxu0 0.0
        %3789 = vmatpush2.msra.mxu0 0.0
        %3790 = vmatprep.subr.mxu0 0.0
        %3791 = vmatpush2.msra.mxu0 0.0
        %3792 = vmatprep.subr.mxu0 0.0
        %3793 = vmatpush2.msra.mxu0 0.0
        %3794 = vmatprep.subr.mxu0 0.0
        %3795 = vmatpush2.msra.mxu0 0.0
        %3796 = vmatprep.subr.mxu0 0.0
        %3797 = vmatpush2.msra.mxu0 0.0
        %3798 = vmatprep.subr.mxu0 0.0
        %3799 = vmatpush2.msra.mxu0 0.0
        %3800 = vmatprep.subr.mxu0 0.0
        %3801 = vmatpush2.msra.mxu0 0.0
        %3802 = vmatprep.subr.mxu0 0.0
        %3803 = vmatpush2.msra.mxu0 0.0
        %3804 = vmatprep.mubr.f32.mxu0 0.0
        %v3805 = vand.u32 %v3427, 4294901760
        %v3806 = vsub.f32 %v3427, %v3805
        %3807 = vmatmul.mubr.f32.gmra.mxu0 %v3806
        %v3808 = vpop.f32.mrf.mxu0
        %v3809 = vadd.f32 %v3687, %v3808
        %v3810 = vpop.f32.mrf.mxu0
        %3811 = vmatprep.mubr.f32.mxu0 0.0
        %v3812 = vand.u32 %v3430, 4294901760
        %v3813 = vsub.f32 %v3430, %v3812
        %3814 = vmatmul.mubr.f32.gmra.mxu0 %v3813
        %v3815 = vpop.f32.mrf.mxu0
        %v3816 = vadd.f32 %v3693, %v3815
        %v3817 = vpop.f32.mrf.mxu0
        %3818 = vmatprep.mubr.f32.mxu0 0.0
        %v3819 = vand.u32 %v3433, 4294901760
        %v3820 = vsub.f32 %v3433, %v3819
        %3821 = vmatmul.mubr.f32.gmra.mxu0 %v3820
        %v3822 = vpop.f32.mrf.mxu0
        %v3823 = vadd.f32 %v3699, %v3822
        %v3824 = vpop.f32.mrf.mxu0
        %3825 = vmatprep.mubr.f32.mxu0 0.0
        %v3826 = vand.u32 %v3436, 4294901760
        %v3827 = vsub.f32 %v3436, %v3826
        %3828 = vmatmul.mubr.f32.gmra.mxu0 %v3827
        %v3829 = vpop.f32.mrf.mxu0
        %v3830 = vadd.f32 %v3705, %v3829
        %v3831 = vpop.f32.mrf.mxu0
        %3832 = vmatprep.mubr.f32.mxu0 0.0
        %v3833 = vand.u32 %v3439, 4294901760
        %v3834 = vsub.f32 %v3439, %v3833
        %3835 = vmatmul.mubr.f32.gmra.mxu0 %v3834
        %v3836 = vpop.f32.mrf.mxu0
        %v3837 = vadd.f32 %v3711, %v3836
        %v3838 = vpop.f32.mrf.mxu0
        %3839 = vmatprep.mubr.f32.mxu0 0.0
        %v3840 = vand.u32 %v3442, 4294901760
        %v3841 = vsub.f32 %v3442, %v3840
        %3842 = vmatmul.mubr.f32.gmra.mxu0 %v3841
        %v3843 = vpop.f32.mrf.mxu0
        %v3844 = vadd.f32 %v3717, %v3843
        %v3845 = vpop.f32.mrf.mxu0
        %3846 = vmatprep.mubr.f32.mxu0 0.0
        %v3847 = vand.u32 %v3445, 4294901760
        %v3848 = vsub.f32 %v3445, %v3847
        %3849 = vmatmul.mubr.f32.gmra.mxu0 %v3848
        %v3850 = vpop.f32.mrf.mxu0
        %v3851 = vadd.f32 %v3723, %v3850
        %v3852 = vpop.f32.mrf.mxu0
        %3853 = vmatprep.mubr.f32.mxu0 0.0
        %v3854 = vand.u32 %v3448, 4294901760
        %v3855 = vsub.f32 %v3448, %v3854
        %3856 = vmatmul.mubr.f32.gmra.mxu0 %v3855
        %v3857 = vpop.f32.mrf.mxu0
        %v3858 = vadd.f32 %v3729, %v3857
        %v3859 = vpop.f32.mrf.mxu0
        %3860 = vdwg.mxu0
        %3861 = vmatprep.subr.mxu0 0.0
        %3862 = vmatpush1.msra.mxu0 0.0
        %3863 = vmatprep.subr.mxu0 0.0
        %3864 = vmatpush1.msra.mxu0 0.0
        %3865 = vmatprep.subr.mxu0 0.0
        %3866 = vmatpush1.msra.mxu0 0.0
        %3867 = vmatprep.subr.mxu0 0.0
        %3868 = vmatpush1.msra.mxu0 0.0
        %3869 = vmatprep.subr.mxu0 0.0
        %3870 = vmatpush1.msra.mxu0 0.0
        %3871 = vmatprep.subr.mxu0 0.0
        %3872 = vmatpush1.msra.mxu0 0.0
        %3873 = vmatprep.subr.mxu0 0.0
        %3874 = vmatpush1.msra.mxu0 0.0
        %3875 = vmatprep.subr.mxu0 0.0
        %3876 = vmatpush1.msra.mxu0 0.0
        %3877 = vmatprep.subr.mxu0 0.0
        %3878 = vmatpush1.msra.mxu0 0.0
        %3879 = vmatprep.subr.mxu0 0.0
        %3880 = vmatpush1.msra.mxu0 0.0
        %3881 = vmatprep.subr.mxu0 0.0
        %3882 = vmatpush1.msra.mxu0 0.0
        %3883 = vmatprep.subr.mxu0 0.0
        %3884 = vmatpush1.msra.mxu0 0.0
        %3885 = vmatprep.subr.mxu0 0.0
        %v3886 = vand.u32 %v1370, 4294901760
        %3887 = vmatpush1.msra.mxu0 %v3886
        %3888 = vmatprep.subr.mxu0 0.0
        %v3889 = vand.u32 %v1369, 4294901760
        %3890 = vmatpush1.msra.mxu0 %v3889
        %3891 = vmatprep.subr.mxu0 0.0
        %v3892 = vand.u32 %v1368, 4294901760
        %3893 = vmatpush1.msra.mxu0 %v3892
        %3894 = vmatprep.subr.mxu0 0.0
        %v3895 = vand.u32 %v1367, 4294901760
        %3896 = vmatpush1.msra.mxu0 %v3895
        %3897 = vmatprep.subr.mxu0 0.0
        %3898 = vmatpush2.msra.mxu0 0.0
        %3899 = vmatprep.subr.mxu0 0.0
        %3900 = vmatpush2.msra.mxu0 0.0
        %3901 = vmatprep.subr.mxu0 0.0
        %3902 = vmatpush2.msra.mxu0 0.0
        %3903 = vmatprep.subr.mxu0 0.0
        %3904 = vmatpush2.msra.mxu0 0.0
        %3905 = vmatprep.subr.mxu0 0.0
        %3906 = vmatpush2.msra.mxu0 0.0
        %3907 = vmatprep.subr.mxu0 0.0
        %3908 = vmatpush2.msra.mxu0 0.0
        %3909 = vmatprep.subr.mxu0 0.0
        %3910 = vmatpush2.msra.mxu0 0.0
        %3911 = vmatprep.subr.mxu0 0.0
        %3912 = vmatpush2.msra.mxu0 0.0
        %3913 = vmatprep.subr.mxu0 0.0
        %3914 = vmatpush2.msra.mxu0 0.0
        %3915 = vmatprep.subr.mxu0 0.0
        %3916 = vmatpush2.msra.mxu0 0.0
        %3917 = vmatprep.subr.mxu0 0.0
        %3918 = vmatpush2.msra.mxu0 0.0
        %3919 = vmatprep.subr.mxu0 0.0
        %3920 = vmatpush2.msra.mxu0 0.0
        %3921 = vmatprep.subr.mxu0 0.0
        %3922 = vmatpush2.msra.mxu0 0.0
        %3923 = vmatprep.subr.mxu0 0.0
        %3924 = vmatpush2.msra.mxu0 0.0
        %3925 = vmatprep.subr.mxu0 0.0
        %3926 = vmatpush2.msra.mxu0 0.0
        %3927 = vmatprep.subr.mxu0 0.0
        %3928 = vmatpush2.msra.mxu0 0.0
        %3929 = vmatprep.mubr.f32.mxu0 0.0
        %v3930 = vand.u32 %v3427, 4294901760
        %v3931 = vsub.f32 %v3427, %v3930
        %v3932 = vand.u32 %v3931, 4294901760
        %3933 = vmatmul.mubr.f32.gmra.mxu0 %v3932
        %v3934 = vpop.f32.mrf.mxu0
        %v3935 = vadd.f32 %v3809, %v3934
        %v3936 = vpop.f32.mrf.mxu0
        %3937 = vmatprep.mubr.f32.mxu0 0.0
        %v3938 = vand.u32 %v3430, 4294901760
        %v3939 = vsub.f32 %v3430, %v3938
        %v3940 = vand.u32 %v3939, 4294901760
        %3941 = vmatmul.mubr.f32.gmra.mxu0 %v3940
        %v3942 = vpop.f32.mrf.mxu0
        %v3943 = vadd.f32 %v3816, %v3942
        %v3944 = vpop.f32.mrf.mxu0
        %3945 = vmatprep.mubr.f32.mxu0 0.0
        %v3946 = vand.u32 %v3433, 4294901760
        %v3947 = vsub.f32 %v3433, %v3946
        %v3948 = vand.u32 %v3947, 4294901760
        %3949 = vmatmul.mubr.f32.gmra.mxu0 %v3948
        %v3950 = vpop.f32.mrf.mxu0
        %v3951 = vadd.f32 %v3823, %v3950
        %v3952 = vpop.f32.mrf.mxu0
        %3953 = vmatprep.mubr.f32.mxu0 0.0
        %v3954 = vand.u32 %v3436, 4294901760
        %v3955 = vsub.f32 %v3436, %v3954
        %v3956 = vand.u32 %v3955, 4294901760
        %3957 = vmatmul.mubr.f32.gmra.mxu0 %v3956
        %v3958 = vpop.f32.mrf.mxu0
        %v3959 = vadd.f32 %v3830, %v3958
        %v3960 = vpop.f32.mrf.mxu0
        %3961 = vmatprep.mubr.f32.mxu0 0.0
        %v3962 = vand.u32 %v3439, 4294901760
        %v3963 = vsub.f32 %v3439, %v3962
        %v3964 = vand.u32 %v3963, 4294901760
        %3965 = vmatmul.mubr.f32.gmra.mxu0 %v3964
        %v3966 = vpop.f32.mrf.mxu0
        %v3967 = vadd.f32 %v3837, %v3966
        %v3968 = vpop.f32.mrf.mxu0
        %3969 = vmatprep.mubr.f32.mxu0 0.0
        %v3970 = vand.u32 %v3442, 4294901760
        %v3971 = vsub.f32 %v3442, %v3970
        %v3972 = vand.u32 %v3971, 4294901760
        %3973 = vmatmul.mubr.f32.gmra.mxu0 %v3972
        %v3974 = vpop.f32.mrf.mxu0
        %v3975 = vadd.f32 %v3844, %v3974
        %v3976 = vpop.f32.mrf.mxu0
        %3977 = vmatprep.mubr.f32.mxu0 0.0
        %v3978 = vand.u32 %v3445, 4294901760
        %v3979 = vsub.f32 %v3445, %v3978
        %v3980 = vand.u32 %v3979, 4294901760
        %3981 = vmatmul.mubr.f32.gmra.mxu0 %v3980
        %v3982 = vpop.f32.mrf.mxu0
        %v3983 = vadd.f32 %v3851, %v3982
        %v3984 = vpop.f32.mrf.mxu0
        %3985 = vmatprep.mubr.f32.mxu0 0.0
        %v3986 = vand.u32 %v3448, 4294901760
        %v3987 = vsub.f32 %v3448, %v3986
        %v3988 = vand.u32 %v3987, 4294901760
        %3989 = vmatmul.mubr.f32.gmra.mxu0 %v3988
        %v3990 = vpop.f32.mrf.mxu0
        %v3991 = vadd.f32 %v3858, %v3990
        %v3992 = vpop.f32.mrf.mxu0
        %3993 = vdwg.mxu0
        %3994 = vmatprep.subr.mxu0 0.0
        %3995 = vmatpush1.msra.mxu0 0.0
        %3996 = vmatprep.subr.mxu0 0.0
        %3997 = vmatpush1.msra.mxu0 0.0
        %3998 = vmatprep.subr.mxu0 0.0
        %3999 = vmatpush1.msra.mxu0 0.0
        %4000 = vmatprep.subr.mxu0 0.0
        %4001 = vmatpush1.msra.mxu0 0.0
        %4002 = vmatprep.subr.mxu0 0.0
        %4003 = vmatpush1.msra.mxu0 0.0
        %4004 = vmatprep.subr.mxu0 0.0
        %4005 = vmatpush1.msra.mxu0 0.0
        %4006 = vmatprep.subr.mxu0 0.0
        %4007 = vmatpush1.msra.mxu0 0.0
        %4008 = vmatprep.subr.mxu0 0.0
        %4009 = vmatpush1.msra.mxu0 0.0
        %4010 = vmatprep.subr.mxu0 0.0
        %4011 = vmatpush1.msra.mxu0 0.0
        %4012 = vmatprep.subr.mxu0 0.0
        %4013 = vmatpush1.msra.mxu0 0.0
        %4014 = vmatprep.subr.mxu0 0.0
        %4015 = vmatpush1.msra.mxu0 0.0
        %4016 = vmatprep.subr.mxu0 0.0
        %4017 = vmatpush1.msra.mxu0 0.0
        %4018 = vmatprep.subr.mxu0 0.0
        %v4019 = vand.u32 %v1370, 4294901760
        %v4020 = vsub.f32 %v1370, %v4019
        %v4021 = vand.u32 %v4020, 4294901760
        %4022 = vmatpush1.msra.mxu0 %v4021
        %4023 = vmatprep.subr.mxu0 0.0
        %v4024 = vand.u32 %v1369, 4294901760
        %v4025 = vsub.f32 %v1369, %v4024
        %v4026 = vand.u32 %v4025, 4294901760
        %4027 = vmatpush1.msra.mxu0 %v4026
        %4028 = vmatprep.subr.mxu0 0.0
        %v4029 = vand.u32 %v1368, 4294901760
        %v4030 = vsub.f32 %v1368, %v4029
        %v4031 = vand.u32 %v4030, 4294901760
        %4032 = vmatpush1.msra.mxu0 %v4031
        %4033 = vmatprep.subr.mxu0 0.0
        %v4034 = vand.u32 %v1367, 4294901760
        %v4035 = vsub.f32 %v1367, %v4034
        %v4036 = vand.u32 %v4035, 4294901760
        %4037 = vmatpush1.msra.mxu0 %v4036
        %4038 = vmatprep.subr.mxu0 0.0
        %4039 = vmatpush2.msra.mxu0 0.0
        %4040 = vmatprep.subr.mxu0 0.0
        %4041 = vmatpush2.msra.mxu0 0.0
        %4042 = vmatprep.subr.mxu0 0.0
        %4043 = vmatpush2.msra.mxu0 0.0
        %4044 = vmatprep.subr.mxu0 0.0
        %4045 = vmatpush2.msra.mxu0 0.0
        %4046 = vmatprep.subr.mxu0 0.0
        %4047 = vmatpush2.msra.mxu0 0.0
        %4048 = vmatprep.subr.mxu0 0.0
        %4049 = vmatpush2.msra.mxu0 0.0
        %4050 = vmatprep.subr.mxu0 0.0
        %4051 = vmatpush2.msra.mxu0 0.0
        %4052 = vmatprep.subr.mxu0 0.0
        %4053 = vmatpush2.msra.mxu0 0.0
        %4054 = vmatprep.subr.mxu0 0.0
        %4055 = vmatpush2.msra.mxu0 0.0
        %4056 = vmatprep.subr.mxu0 0.0
        %4057 = vmatpush2.msra.mxu0 0.0
        %4058 = vmatprep.subr.mxu0 0.0
        %4059 = vmatpush2.msra.mxu0 0.0
        %4060 = vmatprep.subr.mxu0 0.0
        %4061 = vmatpush2.msra.mxu0 0.0
        %4062 = vmatprep.subr.mxu0 0.0
        %4063 = vmatpush2.msra.mxu0 0.0
        %4064 = vmatprep.subr.mxu0 0.0
        %4065 = vmatpush2.msra.mxu0 0.0
        %4066 = vmatprep.subr.mxu0 0.0
        %4067 = vmatpush2.msra.mxu0 0.0
        %4068 = vmatprep.subr.mxu0 0.0
        %4069 = vmatpush2.msra.mxu0 0.0
        %4070 = vmatprep.mubr.f32.mxu0 0.0
        %v4071 = vand.u32 %v3427, 4294901760
        %4072 = vmatmul.mubr.f32.gmra.mxu0 %v4071
        %v4073 = vpop.f32.mrf.mxu0
        %v4074 = vadd.f32 %v3935, %v4073
        %v4075 = vpop.f32.mrf.mxu0
        %4076 = vmatprep.mubr.f32.mxu0 0.0
        %v4077 = vand.u32 %v3430, 4294901760
        %4078 = vmatmul.mubr.f32.gmra.mxu0 %v4077
        %v4079 = vpop.f32.mrf.mxu0
        %v4080 = vadd.f32 %v3943, %v4079
        %v4081 = vpop.f32.mrf.mxu0
        %4082 = vmatprep.mubr.f32.mxu0 0.0
        %v4083 = vand.u32 %v3433, 4294901760
        %4084 = vmatmul.mubr.f32.gmra.mxu0 %v4083
        %v4085 = vpop.f32.mrf.mxu0
        %v4086 = vadd.f32 %v3951, %v4085
        %v4087 = vpop.f32.mrf.mxu0
        %4088 = vmatprep.mubr.f32.mxu0 0.0
        %v4089 = vand.u32 %v3436, 4294901760
        %4090 = vmatmul.mubr.f32.gmra.mxu0 %v4089
        %v4091 = vpop.f32.mrf.mxu0
        %v4092 = vadd.f32 %v3959, %v4091
        %v4093 = vpop.f32.mrf.mxu0
        %4094 = vmatprep.mubr.f32.mxu0 0.0
        %v4095 = vand.u32 %v3439, 4294901760
        %4096 = vmatmul.mubr.f32.gmra.mxu0 %v4095
        %v4097 = vpop.f32.mrf.mxu0
        %v4098 = vadd.f32 %v3967, %v4097
        %v4099 = vpop.f32.mrf.mxu0
        %4100 = vmatprep.mubr.f32.mxu0 0.0
        %v4101 = vand.u32 %v3442, 4294901760
        %4102 = vmatmul.mubr.f32.gmra.mxu0 %v4101
        %v4103 = vpop.f32.mrf.mxu0
        %v4104 = vadd.f32 %v3975, %v4103
        %v4105 = vpop.f32.mrf.mxu0
        %4106 = vmatprep.mubr.f32.mxu0 0.0
        %v4107 = vand.u32 %v3445, 4294901760
        %4108 = vmatmul.mubr.f32.gmra.mxu0 %v4107
        %v4109 = vpop.f32.mrf.mxu0
        %v4110 = vadd.f32 %v3983, %v4109
        %v4111 = vpop.f32.mrf.mxu0
        %4112 = vmatprep.mubr.f32.mxu0 0.0
        %v4113 = vand.u32 %v3448, 4294901760
        %4114 = vmatmul.mubr.f32.gmra.mxu0 %v4113
        %v4115 = vpop.f32.mrf.mxu0
        %v4116 = vadd.f32 %v3991, %v4115
        %v4117 = vpop.f32.mrf.mxu0
        %4118 = vdwg.mxu0
        %4119 = vmatprep.subr.mxu0 0.0
        %4120 = vmatpush1.msra.mxu0 0.0
        %4121 = vmatprep.subr.mxu0 0.0
        %4122 = vmatpush1.msra.mxu0 0.0
        %4123 = vmatprep.subr.mxu0 0.0
        %4124 = vmatpush1.msra.mxu0 0.0
        %4125 = vmatprep.subr.mxu0 0.0
        %4126 = vmatpush1.msra.mxu0 0.0
        %4127 = vmatprep.subr.mxu0 0.0
        %4128 = vmatpush1.msra.mxu0 0.0
        %4129 = vmatprep.subr.mxu0 0.0
        %4130 = vmatpush1.msra.mxu0 0.0
        %4131 = vmatprep.subr.mxu0 0.0
        %4132 = vmatpush1.msra.mxu0 0.0
        %4133 = vmatprep.subr.mxu0 0.0
        %4134 = vmatpush1.msra.mxu0 0.0
        %4135 = vmatprep.subr.mxu0 0.0
        %4136 = vmatpush1.msra.mxu0 0.0
        %4137 = vmatprep.subr.mxu0 0.0
        %4138 = vmatpush1.msra.mxu0 0.0
        %4139 = vmatprep.subr.mxu0 0.0
        %4140 = vmatpush1.msra.mxu0 0.0
        %4141 = vmatprep.subr.mxu0 0.0
        %4142 = vmatpush1.msra.mxu0 0.0
        %4143 = vmatprep.subr.mxu0 0.0
        %v4144 = vand.u32 %v1370, 4294901760
        %4145 = vmatpush1.msra.mxu0 %v4144
        %4146 = vmatprep.subr.mxu0 0.0
        %v4147 = vand.u32 %v1369, 4294901760
        %4148 = vmatpush1.msra.mxu0 %v4147
        %4149 = vmatprep.subr.mxu0 0.0
        %v4150 = vand.u32 %v1368, 4294901760
        %4151 = vmatpush1.msra.mxu0 %v4150
        %4152 = vmatprep.subr.mxu0 0.0
        %v4153 = vand.u32 %v1367, 4294901760
        %4154 = vmatpush1.msra.mxu0 %v4153
        %4155 = vmatprep.subr.mxu0 0.0
        %4156 = vmatpush2.msra.mxu0 0.0
        %4157 = vmatprep.subr.mxu0 0.0
        %4158 = vmatpush2.msra.mxu0 0.0
        %4159 = vmatprep.subr.mxu0 0.0
        %4160 = vmatpush2.msra.mxu0 0.0
        %4161 = vmatprep.subr.mxu0 0.0
        %4162 = vmatpush2.msra.mxu0 0.0
        %4163 = vmatprep.subr.mxu0 0.0
        %4164 = vmatpush2.msra.mxu0 0.0
        %4165 = vmatprep.subr.mxu0 0.0
        %4166 = vmatpush2.msra.mxu0 0.0
        %4167 = vmatprep.subr.mxu0 0.0
        %4168 = vmatpush2.msra.mxu0 0.0
        %4169 = vmatprep.subr.mxu0 0.0
        %4170 = vmatpush2.msra.mxu0 0.0
        %4171 = vmatprep.subr.mxu0 0.0
        %4172 = vmatpush2.msra.mxu0 0.0
        %4173 = vmatprep.subr.mxu0 0.0
        %4174 = vmatpush2.msra.mxu0 0.0
        %4175 = vmatprep.subr.mxu0 0.0
        %4176 = vmatpush2.msra.mxu0 0.0
        %4177 = vmatprep.subr.mxu0 0.0
        %4178 = vmatpush2.msra.mxu0 0.0
        %4179 = vmatprep.subr.mxu0 0.0
        %4180 = vmatpush2.msra.mxu0 0.0
        %4181 = vmatprep.subr.mxu0 0.0
        %4182 = vmatpush2.msra.mxu0 0.0
        %4183 = vmatprep.subr.mxu0 0.0
        %4184 = vmatpush2.msra.mxu0 0.0
        %4185 = vmatprep.subr.mxu0 0.0
        %4186 = vmatpush2.msra.mxu0 0.0
        %4187 = vmatprep.mubr.f32.mxu0 0.0
        %v4188 = vand.u32 %v3427, 4294901760
        %4189 = vmatmul.mubr.f32.gmra.mxu0 %v4188
        %v4190 = vpop.f32.mrf.mxu0
        %v4191 = vadd.f32 %v4074, %v4190
        %v4192 = vpop.f32.mrf.mxu0
        %4193 = vmatprep.mubr.f32.mxu0 0.0
        %v4194 = vand.u32 %v3430, 4294901760
        %4195 = vmatmul.mubr.f32.gmra.mxu0 %v4194
        %v4196 = vpop.f32.mrf.mxu0
        %v4197 = vadd.f32 %v4080, %v4196
        %v4198 = vpop.f32.mrf.mxu0
        %4199 = vmatprep.mubr.f32.mxu0 0.0
        %v4200 = vand.u32 %v3433, 4294901760
        %4201 = vmatmul.mubr.f32.gmra.mxu0 %v4200
        %v4202 = vpop.f32.mrf.mxu0
        %v4203 = vadd.f32 %v4086, %v4202
        %v4204 = vpop.f32.mrf.mxu0
        %4205 = vmatprep.mubr.f32.mxu0 0.0
        %v4206 = vand.u32 %v3436, 4294901760
        %4207 = vmatmul.mubr.f32.gmra.mxu0 %v4206
        %v4208 = vpop.f32.mrf.mxu0
        %v4209 = vadd.f32 %v4092, %v4208
        %v4210 = vpop.f32.mrf.mxu0
        %4211 = vmatprep.mubr.f32.mxu0 0.0
        %v4212 = vand.u32 %v3439, 4294901760
        %4213 = vmatmul.mubr.f32.gmra.mxu0 %v4212
        %v4214 = vpop.f32.mrf.mxu0
        %v4215 = vadd.f32 %v4098, %v4214
        %v4216 = vpop.f32.mrf.mxu0
        %4217 = vmatprep.mubr.f32.mxu0 0.0
        %v4218 = vand.u32 %v3442, 4294901760
        %4219 = vmatmul.mubr.f32.gmra.mxu0 %v4218
        %v4220 = vpop.f32.mrf.mxu0
        %v4221 = vadd.f32 %v4104, %v4220
        %v4222 = vpop.f32.mrf.mxu0
        %4223 = vmatprep.mubr.f32.mxu0 0.0
        %v4224 = vand.u32 %v3445, 4294901760
        %4225 = vmatmul.mubr.f32.gmra.mxu0 %v4224
        %v4226 = vpop.f32.mrf.mxu0
        %v4227 = vadd.f32 %v4110, %v4226
        %v4228 = vpop.f32.mrf.mxu0
        %4229 = vmatprep.mubr.f32.mxu0 0.0
        %v4230 = vand.u32 %v3448, 4294901760
        %4231 = vmatmul.mubr.f32.gmra.mxu0 %v4230
        %v4232 = vpop.f32.mrf.mxu0
        %v4233 = vadd.f32 %v4116, %v4232
        %v4234 = vpop.f32.mrf.mxu0
        %4235 = vdwg.mxu0
        %v4236 = vadd.f32 %v3386, %v4191
        %v4237 = vadd.f32 %v3387, %v4197
        %v4238 = vadd.f32 %v3388, %v4203
        %v4239 = vadd.f32 %v3389, %v4209
        %v4240 = vadd.f32 %v3390, %v4215
        %v4241 = vadd.f32 %v3391, %v4221
        %v4242 = vadd.f32 %v3392, %v4227
        %v4243 = vadd.f32 %v3393, %v4233
        %4244 = vst.msk [vmem:[#allocation2] sm:$0xff] %vm1395, %v4236
        %4245 = vst.msk [vmem:[#allocation2 + $0x8] sm:$0xff] %vm1395, %v4237
        %4246 = vst.msk [vmem:[#allocation2 + $0x10] sm:$0xff] %vm1395, %v4238
        %4247 = vst.msk [vmem:[#allocation2 + $0x18] sm:$0xff] %vm1395, %v4239
        %4248 = vst.msk [vmem:[#allocation2 + $0x20] sm:$0xff] %vm1395, %v4240
        %4249 = vst.msk [vmem:[#allocation2 + $0x28] sm:$0xff] %vm1395, %v4241
        %4250 = vst.msk [vmem:[#allocation2 + $0x30] sm:$0xff] %vm1395, %v4242
        %4251 = vst.msk [vmem:[#allocation2 + $0x38] sm:$0xff] %vm1395, %v4243
        %s4252 = scalar_lea.vmem [#allocation2], 64
        %v4253 = vld [vmem:[%s4252] sm:$0xff]
        %v4254 = vld [vmem:[%s4252 + $0x8] sm:$0xff]
        %v4255 = vld [vmem:[%s4252 + $0x10] sm:$0xff]
        %v4256 = vld [vmem:[%s4252 + $0x18] sm:$0xff]
        %v4257 = vld [vmem:[%s4252 + $0x20] sm:$0xff]
        %v4258 = vld [vmem:[%s4252 + $0x28] sm:$0xff]
        %v4259 = vld [vmem:[%s4252 + $0x30] sm:$0xff]
        %v4260 = vld [vmem:[%s4252 + $0x38] sm:$0xff]
        %4265 = vrot.lane.b32.xlu0 %v1383, 64
        %v4266 = vpop.permute.xlu0 %4265
        %4267 = vrot.lane.b32.xlu0 %v1384, 64
        %v4268 = vpop.permute.xlu0 %4267
        %4269 = vrot.lane.b32.xlu0 %v1385, 64
        %v4270 = vpop.permute.xlu0 %4269
        %4271 = vrot.lane.b32.xlu0 %v1386, 64
        %v4272 = vpop.permute.xlu0 %4271
        %v4277 = vsel %vm1395, %v4266, 0.0
        %4278 = vadd.xlane.f32.xlu0 %v4277
        %v4279 = vpop.xlane.xlu0 %4278
        %v4280 = vsel %vm1395, %v4268, 0.0
        %4281 = vadd.xlane.f32.xlu0 %v4280
        %v4282 = vpop.xlane.xlu0 %4281
        %v4283 = vsel %vm1395, %v4270, 0.0
        %4284 = vadd.xlane.f32.xlu0 %v4283
        %v4285 = vpop.xlane.xlu0 %4284
        %v4286 = vsel %vm1395, %v4272, 0.0
        %4287 = vadd.xlane.f32.xlu0 %v4286
        %v4288 = vpop.xlane.xlu0 %4287
        %4289 = vrot.lane.b32.xlu0 %v1331, 64
        %v4290 = vpop.permute.xlu0 %4289
        %4291 = vrot.lane.b32.xlu0 %v1332, 64
        %v4292 = vpop.permute.xlu0 %4291
        %4293 = vrot.lane.b32.xlu0 %v1333, 64
        %v4294 = vpop.permute.xlu0 %4293
        %4295 = vrot.lane.b32.xlu0 %v1334, 64
        %v4296 = vpop.permute.xlu0 %4295
        %v4297 = vsel %vm1395, %v4290, 0
        %v4299 = vsel %vm1395, %v4292, 0
        %v4301 = vsel %vm1395, %v4294, 0
        %v4303 = vsel %vm1395, %v4296, 0
        %v4306 = vsel %vm1395, %v4253, 0
        %v4309 = vsel %vm1395, %v4254, 0
        %v4312 = vsel %vm1395, %v4255, 0
        %v4315 = vsel %vm1395, %v4256, 0
        %v4318 = vsel %vm1395, %v4257, 0
        %v4321 = vsel %vm1395, %v4258, 0
        %v4324 = vsel %vm1395, %v4259, 0
        %v4327 = vsel %vm1395, %v4260, 0
        %4329 = vmatprep.subr.mxu0 0.0
        %4330 = vmatpush1.xpose.msra.mxu0 0.0
        %4331 = vmatprep.subr.mxu0 0.0
        %4332 = vmatpush1.xpose.msra.mxu0 0.0
        %4333 = vmatprep.subr.mxu0 0.0
        %4334 = vmatpush1.xpose.msra.mxu0 0.0
        %4335 = vmatprep.subr.mxu0 0.0
        %4336 = vmatpush1.xpose.msra.mxu0 0.0
        %4337 = vmatprep.subr.mxu0 0.0
        %4338 = vmatpush1.xpose.msra.mxu0 0.0
        %4339 = vmatprep.subr.mxu0 0.0
        %4340 = vmatpush1.xpose.msra.mxu0 0.0
        %4341 = vmatprep.subr.mxu0 0.0
        %4342 = vmatpush1.xpose.msra.mxu0 0.0
        %4343 = vmatprep.subr.mxu0 0.0
        %4344 = vmatpush1.xpose.msra.mxu0 0.0
        %4345 = vmatprep.subr.mxu0 0.0
        %v4346 = vand.u32 %v4327, 4294901760
        %4347 = vmatpush1.xpose.msra.mxu0 %v4346
        %4348 = vmatprep.subr.mxu0 0.0
        %v4349 = vand.u32 %v4324, 4294901760
        %4350 = vmatpush1.xpose.msra.mxu0 %v4349
        %4351 = vmatprep.subr.mxu0 0.0
        %v4352 = vand.u32 %v4321, 4294901760
        %4353 = vmatpush1.xpose.msra.mxu0 %v4352
        %4354 = vmatprep.subr.mxu0 0.0
        %v4355 = vand.u32 %v4318, 4294901760
        %4356 = vmatpush1.xpose.msra.mxu0 %v4355
        %4357 = vmatprep.subr.mxu0 0.0
        %v4358 = vand.u32 %v4315, 4294901760
        %4359 = vmatpush1.xpose.msra.mxu0 %v4358
        %4360 = vmatprep.subr.mxu0 0.0
        %v4361 = vand.u32 %v4312, 4294901760
        %4362 = vmatpush1.xpose.msra.mxu0 %v4361
        %4363 = vmatprep.subr.mxu0 0.0
        %v4364 = vand.u32 %v4309, 4294901760
        %4365 = vmatpush1.xpose.msra.mxu0 %v4364
        %4366 = vmatprep.subr.mxu0 0.0
        %v4367 = vand.u32 %v4306, 4294901760
        %4368 = vmatpush1.xpose.msra.mxu0 %v4367
        %4369 = vmatprep.subr.mxu0 0.0
        %4370 = vmatpush2.xpose.msra.mxu0 0.0
        %4371 = vmatprep.subr.mxu0 0.0
        %4372 = vmatpush2.xpose.msra.mxu0 0.0
        %4373 = vmatprep.subr.mxu0 0.0
        %4374 = vmatpush2.xpose.msra.mxu0 0.0
        %4375 = vmatprep.subr.mxu0 0.0
        %4376 = vmatpush2.xpose.msra.mxu0 0.0
        %4377 = vmatprep.subr.mxu0 0.0
        %4378 = vmatpush2.xpose.msra.mxu0 0.0
        %4379 = vmatprep.subr.mxu0 0.0
        %4380 = vmatpush2.xpose.msra.mxu0 0.0
        %4381 = vmatprep.subr.mxu0 0.0
        %4382 = vmatpush2.xpose.msra.mxu0 0.0
        %4383 = vmatprep.subr.mxu0 0.0
        %4384 = vmatpush2.xpose.msra.mxu0 0.0
        %4385 = vmatprep.subr.mxu0 0.0
        %4386 = vmatpush2.xpose.msra.mxu0 0.0
        %4387 = vmatprep.subr.mxu0 0.0
        %4388 = vmatpush2.xpose.msra.mxu0 0.0
        %4389 = vmatprep.subr.mxu0 0.0
        %4390 = vmatpush2.xpose.msra.mxu0 0.0
        %4391 = vmatprep.subr.mxu0 0.0
        %4392 = vmatpush2.xpose.msra.mxu0 0.0
        %4393 = vmatprep.subr.mxu0 0.0
        %4394 = vmatpush2.xpose.msra.mxu0 0.0
        %4395 = vmatprep.subr.mxu0 0.0
        %4396 = vmatpush2.xpose.msra.mxu0 0.0
        %4397 = vmatprep.subr.mxu0 0.0
        %4398 = vmatpush2.xpose.msra.mxu0 0.0
        %4399 = vmatprep.subr.mxu0 0.0
        %4400 = vmatpush2.xpose.msra.mxu0 0.0
        %4401 = vmatprep.mubr.f32.mxu0 0.0
        %v4402 = vand.u32 %v4297, 4294901760
        %v4403 = vsub.f32 %v4297, %v4402
        %v4404 = vand.u32 %v4403, 4294901760
        %v4405 = vsub.f32 %v4403, %v4404
        %v4406 = vand.u32 %v4405, 4294901760
        %4407 = vmatmul.mubr.f32.gmra.mxu0 %v4406
        %v4408 = vpop.f32.mrf.mxu0
        %v4409 = vadd.f32 0.0, %v4408
        %v4410 = vpop.f32.mrf.mxu0
        %4411 = vmatprep.mubr.f32.mxu0 0.0
        %v4412 = vand.u32 %v4299, 4294901760
        %v4413 = vsub.f32 %v4299, %v4412
        %v4414 = vand.u32 %v4413, 4294901760
        %v4415 = vsub.f32 %v4413, %v4414
        %v4416 = vand.u32 %v4415, 4294901760
        %4417 = vmatmul.mubr.f32.gmra.mxu0 %v4416
        %v4418 = vpop.f32.mrf.mxu0
        %v4419 = vadd.f32 0.0, %v4418
        %v4420 = vpop.f32.mrf.mxu0
        %4421 = vmatprep.mubr.f32.mxu0 0.0
        %v4422 = vand.u32 %v4301, 4294901760
        %v4423 = vsub.f32 %v4301, %v4422
        %v4424 = vand.u32 %v4423, 4294901760
        %v4425 = vsub.f32 %v4423, %v4424
        %v4426 = vand.u32 %v4425, 4294901760
        %4427 = vmatmul.mubr.f32.gmra.mxu0 %v4426
        %v4428 = vpop.f32.mrf.mxu0
        %v4429 = vadd.f32 0.0, %v4428
        %v4430 = vpop.f32.mrf.mxu0
        %4431 = vmatprep.mubr.f32.mxu0 0.0
        %v4432 = vand.u32 %v4303, 4294901760
        %v4433 = vsub.f32 %v4303, %v4432
        %v4434 = vand.u32 %v4433, 4294901760
        %v4435 = vsub.f32 %v4433, %v4434
        %v4436 = vand.u32 %v4435, 4294901760
        %4437 = vmatmul.mubr.f32.gmra.mxu0 %v4436
        %v4438 = vpop.f32.mrf.mxu0
        %v4439 = vadd.f32 0.0, %v4438
        %v4440 = vpop.f32.mrf.mxu0
        %4441 = vdwg.mxu0
        %4442 = vmatprep.subr.mxu0 0.0
        %4443 = vmatpush1.xpose.msra.mxu0 0.0
        %4444 = vmatprep.subr.mxu0 0.0
        %4445 = vmatpush1.xpose.msra.mxu0 0.0
        %4446 = vmatprep.subr.mxu0 0.0
        %4447 = vmatpush1.xpose.msra.mxu0 0.0
        %4448 = vmatprep.subr.mxu0 0.0
        %4449 = vmatpush1.xpose.msra.mxu0 0.0
        %4450 = vmatprep.subr.mxu0 0.0
        %4451 = vmatpush1.xpose.msra.mxu0 0.0
        %4452 = vmatprep.subr.mxu0 0.0
        %4453 = vmatpush1.xpose.msra.mxu0 0.0
        %4454 = vmatprep.subr.mxu0 0.0
        %4455 = vmatpush1.xpose.msra.mxu0 0.0
        %4456 = vmatprep.subr.mxu0 0.0
        %4457 = vmatpush1.xpose.msra.mxu0 0.0
        %4458 = vmatprep.subr.mxu0 0.0
        %v4459 = vand.u32 %v4327, 4294901760
        %v4460 = vsub.f32 %v4327, %v4459
        %v4461 = vand.u32 %v4460, 4294901760
        %v4462 = vsub.f32 %v4460, %v4461
        %v4463 = vand.u32 %v4462, 4294901760
        %4464 = vmatpush1.xpose.msra.mxu0 %v4463
        %4465 = vmatprep.subr.mxu0 0.0
        %v4466 = vand.u32 %v4324, 4294901760
        %v4467 = vsub.f32 %v4324, %v4466
        %v4468 = vand.u32 %v4467, 4294901760
        %v4469 = vsub.f32 %v4467, %v4468
        %v4470 = vand.u32 %v4469, 4294901760
        %4471 = vmatpush1.xpose.msra.mxu0 %v4470
        %4472 = vmatprep.subr.mxu0 0.0
        %v4473 = vand.u32 %v4321, 4294901760
        %v4474 = vsub.f32 %v4321, %v4473
        %v4475 = vand.u32 %v4474, 4294901760
        %v4476 = vsub.f32 %v4474, %v4475
        %v4477 = vand.u32 %v4476, 4294901760
        %4478 = vmatpush1.xpose.msra.mxu0 %v4477
        %4479 = vmatprep.subr.mxu0 0.0
        %v4480 = vand.u32 %v4318, 4294901760
        %v4481 = vsub.f32 %v4318, %v4480
        %v4482 = vand.u32 %v4481, 4294901760
        %v4483 = vsub.f32 %v4481, %v4482
        %v4484 = vand.u32 %v4483, 4294901760
        %4485 = vmatpush1.xpose.msra.mxu0 %v4484
        %4486 = vmatprep.subr.mxu0 0.0
        %v4487 = vand.u32 %v4315, 4294901760
        %v4488 = vsub.f32 %v4315, %v4487
        %v4489 = vand.u32 %v4488, 4294901760
        %v4490 = vsub.f32 %v4488, %v4489
        %v4491 = vand.u32 %v4490, 4294901760
        %4492 = vmatpush1.xpose.msra.mxu0 %v4491
        %4493 = vmatprep.subr.mxu0 0.0
        %v4494 = vand.u32 %v4312, 4294901760
        %v4495 = vsub.f32 %v4312, %v4494
        %v4496 = vand.u32 %v4495, 4294901760
        %v4497 = vsub.f32 %v4495, %v4496
        %v4498 = vand.u32 %v4497, 4294901760
        %4499 = vmatpush1.xpose.msra.mxu0 %v4498
        %4500 = vmatprep.subr.mxu0 0.0
        %v4501 = vand.u32 %v4309, 4294901760
        %v4502 = vsub.f32 %v4309, %v4501
        %v4503 = vand.u32 %v4502, 4294901760
        %v4504 = vsub.f32 %v4502, %v4503
        %v4505 = vand.u32 %v4504, 4294901760
        %4506 = vmatpush1.xpose.msra.mxu0 %v4505
        %4507 = vmatprep.subr.mxu0 0.0
        %v4508 = vand.u32 %v4306, 4294901760
        %v4509 = vsub.f32 %v4306, %v4508
        %v4510 = vand.u32 %v4509, 4294901760
        %v4511 = vsub.f32 %v4509, %v4510
        %v4512 = vand.u32 %v4511, 4294901760
        %4513 = vmatpush1.xpose.msra.mxu0 %v4512
        %4514 = vmatprep.subr.mxu0 0.0
        %4515 = vmatpush2.xpose.msra.mxu0 0.0
        %4516 = vmatprep.subr.mxu0 0.0
        %4517 = vmatpush2.xpose.msra.mxu0 0.0
        %4518 = vmatprep.subr.mxu0 0.0
        %4519 = vmatpush2.xpose.msra.mxu0 0.0
        %4520 = vmatprep.subr.mxu0 0.0
        %4521 = vmatpush2.xpose.msra.mxu0 0.0
        %4522 = vmatprep.subr.mxu0 0.0
        %4523 = vmatpush2.xpose.msra.mxu0 0.0
        %4524 = vmatprep.subr.mxu0 0.0
        %4525 = vmatpush2.xpose.msra.mxu0 0.0
        %4526 = vmatprep.subr.mxu0 0.0
        %4527 = vmatpush2.xpose.msra.mxu0 0.0
        %4528 = vmatprep.subr.mxu0 0.0
        %4529 = vmatpush2.xpose.msra.mxu0 0.0
        %4530 = vmatprep.subr.mxu0 0.0
        %4531 = vmatpush2.xpose.msra.mxu0 0.0
        %4532 = vmatprep.subr.mxu0 0.0
        %4533 = vmatpush2.xpose.msra.mxu0 0.0
        %4534 = vmatprep.subr.mxu0 0.0
        %4535 = vmatpush2.xpose.msra.mxu0 0.0
        %4536 = vmatprep.subr.mxu0 0.0
        %4537 = vmatpush2.xpose.msra.mxu0 0.0
        %4538 = vmatprep.subr.mxu0 0.0
        %4539 = vmatpush2.xpose.msra.mxu0 0.0
        %4540 = vmatprep.subr.mxu0 0.0
        %4541 = vmatpush2.xpose.msra.mxu0 0.0
        %4542 = vmatprep.subr.mxu0 0.0
        %4543 = vmatpush2.xpose.msra.mxu0 0.0
        %4544 = vmatprep.subr.mxu0 0.0
        %4545 = vmatpush2.xpose.msra.mxu0 0.0
        %4546 = vmatprep.mubr.f32.mxu0 0.0
        %v4547 = vand.u32 %v4297, 4294901760
        %4548 = vmatmul.mubr.f32.gmra.mxu0 %v4547
        %v4549 = vpop.f32.mrf.mxu0
        %v4550 = vadd.f32 %v4409, %v4549
        %v4551 = vpop.f32.mrf.mxu0
        %4552 = vmatprep.mubr.f32.mxu0 0.0
        %v4553 = vand.u32 %v4299, 4294901760
        %4554 = vmatmul.mubr.f32.gmra.mxu0 %v4553
        %v4555 = vpop.f32.mrf.mxu0
        %v4556 = vadd.f32 %v4419, %v4555
        %v4557 = vpop.f32.mrf.mxu0
        %4558 = vmatprep.mubr.f32.mxu0 0.0
        %v4559 = vand.u32 %v4301, 4294901760
        %4560 = vmatmul.mubr.f32.gmra.mxu0 %v4559
        %v4561 = vpop.f32.mrf.mxu0
        %v4562 = vadd.f32 %v4429, %v4561
        %v4563 = vpop.f32.mrf.mxu0
        %4564 = vmatprep.mubr.f32.mxu0 0.0
        %v4565 = vand.u32 %v4303, 4294901760
        %4566 = vmatmul.mubr.f32.gmra.mxu0 %v4565
        %v4567 = vpop.f32.mrf.mxu0
        %v4568 = vadd.f32 %v4439, %v4567
        %v4569 = vpop.f32.mrf.mxu0
        %4570 = vdwg.mxu0
        %4571 = vmatprep.subr.mxu0 0.0
        %4572 = vmatpush1.xpose.msra.mxu0 0.0
        %4573 = vmatprep.subr.mxu0 0.0
        %4574 = vmatpush1.xpose.msra.mxu0 0.0
        %4575 = vmatprep.subr.mxu0 0.0
        %4576 = vmatpush1.xpose.msra.mxu0 0.0
        %4577 = vmatprep.subr.mxu0 0.0
        %4578 = vmatpush1.xpose.msra.mxu0 0.0
        %4579 = vmatprep.subr.mxu0 0.0
        %4580 = vmatpush1.xpose.msra.mxu0 0.0
        %4581 = vmatprep.subr.mxu0 0.0
        %4582 = vmatpush1.xpose.msra.mxu0 0.0
        %4583 = vmatprep.subr.mxu0 0.0
        %4584 = vmatpush1.xpose.msra.mxu0 0.0
        %4585 = vmatprep.subr.mxu0 0.0
        %4586 = vmatpush1.xpose.msra.mxu0 0.0
        %4587 = vmatprep.subr.mxu0 0.0
        %v4588 = vand.u32 %v4327, 4294901760
        %v4589 = vsub.f32 %v4327, %v4588
        %4590 = vmatpush1.xpose.msra.mxu0 %v4589
        %4591 = vmatprep.subr.mxu0 0.0
        %v4592 = vand.u32 %v4324, 4294901760
        %v4593 = vsub.f32 %v4324, %v4592
        %4594 = vmatpush1.xpose.msra.mxu0 %v4593
        %4595 = vmatprep.subr.mxu0 0.0
        %v4596 = vand.u32 %v4321, 4294901760
        %v4597 = vsub.f32 %v4321, %v4596
        %4598 = vmatpush1.xpose.msra.mxu0 %v4597
        %4599 = vmatprep.subr.mxu0 0.0
        %v4600 = vand.u32 %v4318, 4294901760
        %v4601 = vsub.f32 %v4318, %v4600
        %4602 = vmatpush1.xpose.msra.mxu0 %v4601
        %4603 = vmatprep.subr.mxu0 0.0
        %v4604 = vand.u32 %v4315, 4294901760
        %v4605 = vsub.f32 %v4315, %v4604
        %4606 = vmatpush1.xpose.msra.mxu0 %v4605
        %4607 = vmatprep.subr.mxu0 0.0
        %v4608 = vand.u32 %v4312, 4294901760
        %v4609 = vsub.f32 %v4312, %v4608
        %4610 = vmatpush1.xpose.msra.mxu0 %v4609
        %4611 = vmatprep.subr.mxu0 0.0
        %v4612 = vand.u32 %v4309, 4294901760
        %v4613 = vsub.f32 %v4309, %v4612
        %4614 = vmatpush1.xpose.msra.mxu0 %v4613
        %4615 = vmatprep.subr.mxu0 0.0
        %v4616 = vand.u32 %v4306, 4294901760
        %v4617 = vsub.f32 %v4306, %v4616
        %4618 = vmatpush1.xpose.msra.mxu0 %v4617
        %4619 = vmatprep.subr.mxu0 0.0
        %4620 = vmatpush2.xpose.msra.mxu0 0.0
        %4621 = vmatprep.subr.mxu0 0.0
        %4622 = vmatpush2.xpose.msra.mxu0 0.0
        %4623 = vmatprep.subr.mxu0 0.0
        %4624 = vmatpush2.xpose.msra.mxu0 0.0
        %4625 = vmatprep.subr.mxu0 0.0
        %4626 = vmatpush2.xpose.msra.mxu0 0.0
        %4627 = vmatprep.subr.mxu0 0.0
        %4628 = vmatpush2.xpose.msra.mxu0 0.0
        %4629 = vmatprep.subr.mxu0 0.0
        %4630 = vmatpush2.xpose.msra.mxu0 0.0
        %4631 = vmatprep.subr.mxu0 0.0
        %4632 = vmatpush2.xpose.msra.mxu0 0.0
        %4633 = vmatprep.subr.mxu0 0.0
        %4634 = vmatpush2.xpose.msra.mxu0 0.0
        %4635 = vmatprep.subr.mxu0 0.0
        %4636 = vmatpush2.xpose.msra.mxu0 0.0
        %4637 = vmatprep.subr.mxu0 0.0
        %4638 = vmatpush2.xpose.msra.mxu0 0.0
        %4639 = vmatprep.subr.mxu0 0.0
        %4640 = vmatpush2.xpose.msra.mxu0 0.0
        %4641 = vmatprep.subr.mxu0 0.0
        %4642 = vmatpush2.xpose.msra.mxu0 0.0
        %4643 = vmatprep.subr.mxu0 0.0
        %4644 = vmatpush2.xpose.msra.mxu0 0.0
        %4645 = vmatprep.subr.mxu0 0.0
        %4646 = vmatpush2.xpose.msra.mxu0 0.0
        %4647 = vmatprep.subr.mxu0 0.0
        %4648 = vmatpush2.xpose.msra.mxu0 0.0
        %4649 = vmatprep.subr.mxu0 0.0
        %4650 = vmatpush2.xpose.msra.mxu0 0.0
        %4651 = vmatprep.mubr.f32.mxu0 0.0
        %v4652 = vand.u32 %v4297, 4294901760
        %v4653 = vsub.f32 %v4297, %v4652
        %4654 = vmatmul.mubr.f32.gmra.mxu0 %v4653
        %v4655 = vpop.f32.mrf.mxu0
        %v4656 = vadd.f32 %v4550, %v4655
        %v4657 = vpop.f32.mrf.mxu0
        %4658 = vmatprep.mubr.f32.mxu0 0.0
        %v4659 = vand.u32 %v4299, 4294901760
        %v4660 = vsub.f32 %v4299, %v4659
        %4661 = vmatmul.mubr.f32.gmra.mxu0 %v4660
        %v4662 = vpop.f32.mrf.mxu0
        %v4663 = vadd.f32 %v4556, %v4662
        %v4664 = vpop.f32.mrf.mxu0
        %4665 = vmatprep.mubr.f32.mxu0 0.0
        %v4666 = vand.u32 %v4301, 4294901760
        %v4667 = vsub.f32 %v4301, %v4666
        %4668 = vmatmul.mubr.f32.gmra.mxu0 %v4667
        %v4669 = vpop.f32.mrf.mxu0
        %v4670 = vadd.f32 %v4562, %v4669
        %v4671 = vpop.f32.mrf.mxu0
        %4672 = vmatprep.mubr.f32.mxu0 0.0
        %v4673 = vand.u32 %v4303, 4294901760
        %v4674 = vsub.f32 %v4303, %v4673
        %4675 = vmatmul.mubr.f32.gmra.mxu0 %v4674
        %v4676 = vpop.f32.mrf.mxu0
        %v4677 = vadd.f32 %v4568, %v4676
        %v4678 = vpop.f32.mrf.mxu0
        %4679 = vdwg.mxu0
        %4680 = vmatprep.subr.mxu0 0.0
        %4681 = vmatpush1.xpose.msra.mxu0 0.0
        %4682 = vmatprep.subr.mxu0 0.0
        %4683 = vmatpush1.xpose.msra.mxu0 0.0
        %4684 = vmatprep.subr.mxu0 0.0
        %4685 = vmatpush1.xpose.msra.mxu0 0.0
        %4686 = vmatprep.subr.mxu0 0.0
        %4687 = vmatpush1.xpose.msra.mxu0 0.0
        %4688 = vmatprep.subr.mxu0 0.0
        %4689 = vmatpush1.xpose.msra.mxu0 0.0
        %4690 = vmatprep.subr.mxu0 0.0
        %4691 = vmatpush1.xpose.msra.mxu0 0.0
        %4692 = vmatprep.subr.mxu0 0.0
        %4693 = vmatpush1.xpose.msra.mxu0 0.0
        %4694 = vmatprep.subr.mxu0 0.0
        %4695 = vmatpush1.xpose.msra.mxu0 0.0
        %4696 = vmatprep.subr.mxu0 0.0
        %v4697 = vand.u32 %v4327, 4294901760
        %4698 = vmatpush1.xpose.msra.mxu0 %v4697
        %4699 = vmatprep.subr.mxu0 0.0
        %v4700 = vand.u32 %v4324, 4294901760
        %4701 = vmatpush1.xpose.msra.mxu0 %v4700
        %4702 = vmatprep.subr.mxu0 0.0
        %v4703 = vand.u32 %v4321, 4294901760
        %4704 = vmatpush1.xpose.msra.mxu0 %v4703
        %4705 = vmatprep.subr.mxu0 0.0
        %v4706 = vand.u32 %v4318, 4294901760
        %4707 = vmatpush1.xpose.msra.mxu0 %v4706
        %4708 = vmatprep.subr.mxu0 0.0
        %v4709 = vand.u32 %v4315, 4294901760
        %4710 = vmatpush1.xpose.msra.mxu0 %v4709
        %4711 = vmatprep.subr.mxu0 0.0
        %v4712 = vand.u32 %v4312, 4294901760
        %4713 = vmatpush1.xpose.msra.mxu0 %v4712
        %4714 = vmatprep.subr.mxu0 0.0
        %v4715 = vand.u32 %v4309, 4294901760
        %4716 = vmatpush1.xpose.msra.mxu0 %v4715
        %4717 = vmatprep.subr.mxu0 0.0
        %v4718 = vand.u32 %v4306, 4294901760
        %4719 = vmatpush1.xpose.msra.mxu0 %v4718
        %4720 = vmatprep.subr.mxu0 0.0
        %4721 = vmatpush2.xpose.msra.mxu0 0.0
        %4722 = vmatprep.subr.mxu0 0.0
        %4723 = vmatpush2.xpose.msra.mxu0 0.0
        %4724 = vmatprep.subr.mxu0 0.0
        %4725 = vmatpush2.xpose.msra.mxu0 0.0
        %4726 = vmatprep.subr.mxu0 0.0
        %4727 = vmatpush2.xpose.msra.mxu0 0.0
        %4728 = vmatprep.subr.mxu0 0.0
        %4729 = vmatpush2.xpose.msra.mxu0 0.0
        %4730 = vmatprep.subr.mxu0 0.0
        %4731 = vmatpush2.xpose.msra.mxu0 0.0
        %4732 = vmatprep.subr.mxu0 0.0
        %4733 = vmatpush2.xpose.msra.mxu0 0.0
        %4734 = vmatprep.subr.mxu0 0.0
        %4735 = vmatpush2.xpose.msra.mxu0 0.0
        %4736 = vmatprep.subr.mxu0 0.0
        %4737 = vmatpush2.xpose.msra.mxu0 0.0
        %4738 = vmatprep.subr.mxu0 0.0
        %4739 = vmatpush2.xpose.msra.mxu0 0.0
        %4740 = vmatprep.subr.mxu0 0.0
        %4741 = vmatpush2.xpose.msra.mxu0 0.0
        %4742 = vmatprep.subr.mxu0 0.0
        %4743 = vmatpush2.xpose.msra.mxu0 0.0
        %4744 = vmatprep.subr.mxu0 0.0
        %4745 = vmatpush2.xpose.msra.mxu0 0.0
        %4746 = vmatprep.subr.mxu0 0.0
        %4747 = vmatpush2.xpose.msra.mxu0 0.0
        %4748 = vmatprep.subr.mxu0 0.0
        %4749 = vmatpush2.xpose.msra.mxu0 0.0
        %4750 = vmatprep.subr.mxu0 0.0
        %4751 = vmatpush2.xpose.msra.mxu0 0.0
        %4752 = vmatprep.mubr.f32.mxu0 0.0
        %v4753 = vand.u32 %v4297, 4294901760
        %v4754 = vsub.f32 %v4297, %v4753
        %v4755 = vand.u32 %v4754, 4294901760
        %4756 = vmatmul.mubr.f32.gmra.mxu0 %v4755
        %v4757 = vpop.f32.mrf.mxu0
        %v4758 = vadd.f32 %v4656, %v4757
        %v4759 = vpop.f32.mrf.mxu0
        %4760 = vmatprep.mubr.f32.mxu0 0.0
        %v4761 = vand.u32 %v4299, 4294901760
        %v4762 = vsub.f32 %v4299, %v4761
        %v4763 = vand.u32 %v4762, 4294901760
        %4764 = vmatmul.mubr.f32.gmra.mxu0 %v4763
        %v4765 = vpop.f32.mrf.mxu0
        %v4766 = vadd.f32 %v4663, %v4765
        %v4767 = vpop.f32.mrf.mxu0
        %4768 = vmatprep.mubr.f32.mxu0 0.0
        %v4769 = vand.u32 %v4301, 4294901760
        %v4770 = vsub.f32 %v4301, %v4769
        %v4771 = vand.u32 %v4770, 4294901760
        %4772 = vmatmul.mubr.f32.gmra.mxu0 %v4771
        %v4773 = vpop.f32.mrf.mxu0
        %v4774 = vadd.f32 %v4670, %v4773
        %v4775 = vpop.f32.mrf.mxu0
        %4776 = vmatprep.mubr.f32.mxu0 0.0
        %v4777 = vand.u32 %v4303, 4294901760
        %v4778 = vsub.f32 %v4303, %v4777
        %v4779 = vand.u32 %v4778, 4294901760
        %4780 = vmatmul.mubr.f32.gmra.mxu0 %v4779
        %v4781 = vpop.f32.mrf.mxu0
        %v4782 = vadd.f32 %v4677, %v4781
        %v4783 = vpop.f32.mrf.mxu0
        %4784 = vdwg.mxu0
        %4785 = vmatprep.subr.mxu0 0.0
        %4786 = vmatpush1.xpose.msra.mxu0 0.0
        %4787 = vmatprep.subr.mxu0 0.0
        %4788 = vmatpush1.xpose.msra.mxu0 0.0
        %4789 = vmatprep.subr.mxu0 0.0
        %4790 = vmatpush1.xpose.msra.mxu0 0.0
        %4791 = vmatprep.subr.mxu0 0.0
        %4792 = vmatpush1.xpose.msra.mxu0 0.0
        %4793 = vmatprep.subr.mxu0 0.0
        %4794 = vmatpush1.xpose.msra.mxu0 0.0
        %4795 = vmatprep.subr.mxu0 0.0
        %4796 = vmatpush1.xpose.msra.mxu0 0.0
        %4797 = vmatprep.subr.mxu0 0.0
        %4798 = vmatpush1.xpose.msra.mxu0 0.0
        %4799 = vmatprep.subr.mxu0 0.0
        %4800 = vmatpush1.xpose.msra.mxu0 0.0
        %4801 = vmatprep.subr.mxu0 0.0
        %v4802 = vand.u32 %v4327, 4294901760
        %v4803 = vsub.f32 %v4327, %v4802
        %v4804 = vand.u32 %v4803, 4294901760
        %4805 = vmatpush1.xpose.msra.mxu0 %v4804
        %4806 = vmatprep.subr.mxu0 0.0
        %v4807 = vand.u32 %v4324, 4294901760
        %v4808 = vsub.f32 %v4324, %v4807
        %v4809 = vand.u32 %v4808, 4294901760
        %4810 = vmatpush1.xpose.msra.mxu0 %v4809
        %4811 = vmatprep.subr.mxu0 0.0
        %v4812 = vand.u32 %v4321, 4294901760
        %v4813 = vsub.f32 %v4321, %v4812
        %v4814 = vand.u32 %v4813, 4294901760
        %4815 = vmatpush1.xpose.msra.mxu0 %v4814
        %4816 = vmatprep.subr.mxu0 0.0
        %v4817 = vand.u32 %v4318, 4294901760
        %v4818 = vsub.f32 %v4318, %v4817
        %v4819 = vand.u32 %v4818, 4294901760
        %4820 = vmatpush1.xpose.msra.mxu0 %v4819
        %4821 = vmatprep.subr.mxu0 0.0
        %v4822 = vand.u32 %v4315, 4294901760
        %v4823 = vsub.f32 %v4315, %v4822
        %v4824 = vand.u32 %v4823, 4294901760
        %4825 = vmatpush1.xpose.msra.mxu0 %v4824
        %4826 = vmatprep.subr.mxu0 0.0
        %v4827 = vand.u32 %v4312, 4294901760
        %v4828 = vsub.f32 %v4312, %v4827
        %v4829 = vand.u32 %v4828, 4294901760
        %4830 = vmatpush1.xpose.msra.mxu0 %v4829
        %4831 = vmatprep.subr.mxu0 0.0
        %v4832 = vand.u32 %v4309, 4294901760
        %v4833 = vsub.f32 %v4309, %v4832
        %v4834 = vand.u32 %v4833, 4294901760
        %4835 = vmatpush1.xpose.msra.mxu0 %v4834
        %4836 = vmatprep.subr.mxu0 0.0
        %v4837 = vand.u32 %v4306, 4294901760
        %v4838 = vsub.f32 %v4306, %v4837
        %v4839 = vand.u32 %v4838, 4294901760
        %4840 = vmatpush1.xpose.msra.mxu0 %v4839
        %4841 = vmatprep.subr.mxu0 0.0
        %4842 = vmatpush2.xpose.msra.mxu0 0.0
        %4843 = vmatprep.subr.mxu0 0.0
        %4844 = vmatpush2.xpose.msra.mxu0 0.0
        %4845 = vmatprep.subr.mxu0 0.0
        %4846 = vmatpush2.xpose.msra.mxu0 0.0
        %4847 = vmatprep.subr.mxu0 0.0
        %4848 = vmatpush2.xpose.msra.mxu0 0.0
        %4849 = vmatprep.subr.mxu0 0.0
        %4850 = vmatpush2.xpose.msra.mxu0 0.0
        %4851 = vmatprep.subr.mxu0 0.0
        %4852 = vmatpush2.xpose.msra.mxu0 0.0
        %4853 = vmatprep.subr.mxu0 0.0
        %4854 = vmatpush2.xpose.msra.mxu0 0.0
        %4855 = vmatprep.subr.mxu0 0.0
        %4856 = vmatpush2.xpose.msra.mxu0 0.0
        %4857 = vmatprep.subr.mxu0 0.0
        %4858 = vmatpush2.xpose.msra.mxu0 0.0
        %4859 = vmatprep.subr.mxu0 0.0
        %4860 = vmatpush2.xpose.msra.mxu0 0.0
        %4861 = vmatprep.subr.mxu0 0.0
        %4862 = vmatpush2.xpose.msra.mxu0 0.0
        %4863 = vmatprep.subr.mxu0 0.0
        %4864 = vmatpush2.xpose.msra.mxu0 0.0
        %4865 = vmatprep.subr.mxu0 0.0
        %4866 = vmatpush2.xpose.msra.mxu0 0.0
        %4867 = vmatprep.subr.mxu0 0.0
        %4868 = vmatpush2.xpose.msra.mxu0 0.0
        %4869 = vmatprep.subr.mxu0 0.0
        %4870 = vmatpush2.xpose.msra.mxu0 0.0
        %4871 = vmatprep.subr.mxu0 0.0
        %4872 = vmatpush2.xpose.msra.mxu0 0.0
        %4873 = vmatprep.mubr.f32.mxu0 0.0
        %v4874 = vand.u32 %v4297, 4294901760
        %4875 = vmatmul.mubr.f32.gmra.mxu0 %v4874
        %v4876 = vpop.f32.mrf.mxu0
        %v4877 = vadd.f32 %v4758, %v4876
        %v4878 = vpop.f32.mrf.mxu0
        %4879 = vmatprep.mubr.f32.mxu0 0.0
        %v4880 = vand.u32 %v4299, 4294901760
        %4881 = vmatmul.mubr.f32.gmra.mxu0 %v4880
        %v4882 = vpop.f32.mrf.mxu0
        %v4883 = vadd.f32 %v4766, %v4882
        %v4884 = vpop.f32.mrf.mxu0
        %4885 = vmatprep.mubr.f32.mxu0 0.0
        %v4886 = vand.u32 %v4301, 4294901760
        %4887 = vmatmul.mubr.f32.gmra.mxu0 %v4886
        %v4888 = vpop.f32.mrf.mxu0
        %v4889 = vadd.f32 %v4774, %v4888
        %v4890 = vpop.f32.mrf.mxu0
        %4891 = vmatprep.mubr.f32.mxu0 0.0
        %v4892 = vand.u32 %v4303, 4294901760
        %4893 = vmatmul.mubr.f32.gmra.mxu0 %v4892
        %v4894 = vpop.f32.mrf.mxu0
        %v4895 = vadd.f32 %v4782, %v4894
        %v4896 = vpop.f32.mrf.mxu0
        %4897 = vdwg.mxu0
        %4898 = vmatprep.subr.mxu0 0.0
        %4899 = vmatpush1.xpose.msra.mxu0 0.0
        %4900 = vmatprep.subr.mxu0 0.0
        %4901 = vmatpush1.xpose.msra.mxu0 0.0
        %4902 = vmatprep.subr.mxu0 0.0
        %4903 = vmatpush1.xpose.msra.mxu0 0.0
        %4904 = vmatprep.subr.mxu0 0.0
        %4905 = vmatpush1.xpose.msra.mxu0 0.0
        %4906 = vmatprep.subr.mxu0 0.0
        %4907 = vmatpush1.xpose.msra.mxu0 0.0
        %4908 = vmatprep.subr.mxu0 0.0
        %4909 = vmatpush1.xpose.msra.mxu0 0.0
        %4910 = vmatprep.subr.mxu0 0.0
        %4911 = vmatpush1.xpose.msra.mxu0 0.0
        %4912 = vmatprep.subr.mxu0 0.0
        %4913 = vmatpush1.xpose.msra.mxu0 0.0
        %4914 = vmatprep.subr.mxu0 0.0
        %v4915 = vand.u32 %v4327, 4294901760
        %4916 = vmatpush1.xpose.msra.mxu0 %v4915
        %4917 = vmatprep.subr.mxu0 0.0
        %v4918 = vand.u32 %v4324, 4294901760
        %4919 = vmatpush1.xpose.msra.mxu0 %v4918
        %4920 = vmatprep.subr.mxu0 0.0
        %v4921 = vand.u32 %v4321, 4294901760
        %4922 = vmatpush1.xpose.msra.mxu0 %v4921
        %4923 = vmatprep.subr.mxu0 0.0
        %v4924 = vand.u32 %v4318, 4294901760
        %4925 = vmatpush1.xpose.msra.mxu0 %v4924
        %4926 = vmatprep.subr.mxu0 0.0
        %v4927 = vand.u32 %v4315, 4294901760
        %4928 = vmatpush1.xpose.msra.mxu0 %v4927
        %4929 = vmatprep.subr.mxu0 0.0
        %v4930 = vand.u32 %v4312, 4294901760
        %4931 = vmatpush1.xpose.msra.mxu0 %v4930
        %4932 = vmatprep.subr.mxu0 0.0
        %v4933 = vand.u32 %v4309, 4294901760
        %4934 = vmatpush1.xpose.msra.mxu0 %v4933
        %4935 = vmatprep.subr.mxu0 0.0
        %v4936 = vand.u32 %v4306, 4294901760
        %4937 = vmatpush1.xpose.msra.mxu0 %v4936
        %4938 = vmatprep.subr.mxu0 0.0
        %4939 = vmatpush2.xpose.msra.mxu0 0.0
        %4940 = vmatprep.subr.mxu0 0.0
        %4941 = vmatpush2.xpose.msra.mxu0 0.0
        %4942 = vmatprep.subr.mxu0 0.0
        %4943 = vmatpush2.xpose.msra.mxu0 0.0
        %4944 = vmatprep.subr.mxu0 0.0
        %4945 = vmatpush2.xpose.msra.mxu0 0.0
        %4946 = vmatprep.subr.mxu0 0.0
        %4947 = vmatpush2.xpose.msra.mxu0 0.0
        %4948 = vmatprep.subr.mxu0 0.0
        %4949 = vmatpush2.xpose.msra.mxu0 0.0
        %4950 = vmatprep.subr.mxu0 0.0
        %4951 = vmatpush2.xpose.msra.mxu0 0.0
        %4952 = vmatprep.subr.mxu0 0.0
        %4953 = vmatpush2.xpose.msra.mxu0 0.0
        %4954 = vmatprep.subr.mxu0 0.0
        %4955 = vmatpush2.xpose.msra.mxu0 0.0
        %4956 = vmatprep.subr.mxu0 0.0
        %4957 = vmatpush2.xpose.msra.mxu0 0.0
        %4958 = vmatprep.subr.mxu0 0.0
        %4959 = vmatpush2.xpose.msra.mxu0 0.0
        %4960 = vmatprep.subr.mxu0 0.0
        %4961 = vmatpush2.xpose.msra.mxu0 0.0
        %4962 = vmatprep.subr.mxu0 0.0
        %4963 = vmatpush2.xpose.msra.mxu0 0.0
        %4964 = vmatprep.subr.mxu0 0.0
        %4965 = vmatpush2.xpose.msra.mxu0 0.0
        %4966 = vmatprep.subr.mxu0 0.0
        %4967 = vmatpush2.xpose.msra.mxu0 0.0
        %4968 = vmatprep.subr.mxu0 0.0
        %4969 = vmatpush2.xpose.msra.mxu0 0.0
        %4970 = vmatprep.mubr.f32.mxu0 0.0
        %v4971 = vand.u32 %v4297, 4294901760
        %4972 = vmatmul.mubr.f32.gmra.mxu0 %v4971
        %v4973 = vpop.f32.mrf.mxu0
        %v4974 = vadd.f32 %v4877, %v4973
        %v4975 = vpop.f32.mrf.mxu0
        %4976 = vmatprep.mubr.f32.mxu0 0.0
        %v4977 = vand.u32 %v4299, 4294901760
        %4978 = vmatmul.mubr.f32.gmra.mxu0 %v4977
        %v4979 = vpop.f32.mrf.mxu0
        %v4980 = vadd.f32 %v4883, %v4979
        %v4981 = vpop.f32.mrf.mxu0
        %4982 = vmatprep.mubr.f32.mxu0 0.0
        %v4983 = vand.u32 %v4301, 4294901760
        %4984 = vmatmul.mubr.f32.gmra.mxu0 %v4983
        %v4985 = vpop.f32.mrf.mxu0
        %v4986 = vadd.f32 %v4889, %v4985
        %v4987 = vpop.f32.mrf.mxu0
        %4988 = vmatprep.mubr.f32.mxu0 0.0
        %v4989 = vand.u32 %v4303, 4294901760
        %4990 = vmatmul.mubr.f32.gmra.mxu0 %v4989
        %v4991 = vpop.f32.mrf.mxu0
        %v4992 = vadd.f32 %v4895, %v4991
        %v4993 = vpop.f32.mrf.mxu0
        %4994 = vdwg.mxu0
        %4995 = vrot.lane.b32.xlu0 %v1347, 64
        %v4996 = vpop.permute.xlu0 %4995
        %4997 = vrot.lane.b32.xlu0 %v1348, 64
        %v4998 = vpop.permute.xlu0 %4997
        %4999 = vrot.lane.b32.xlu0 %v1349, 64
        %v5000 = vpop.permute.xlu0 %4999
        %5001 = vrot.lane.b32.xlu0 %v1350, 64
        %v5002 = vpop.permute.xlu0 %5001
        %v5003 = vsel %vm1395, %v4996, 0
        %v5005 = vsel %vm1395, %v4998, 0
        %v5007 = vsel %vm1395, %v5000, 0
        %v5009 = vsel %vm1395, %v5002, 0
        %5011 = vmatprep.subr.mxu0 0.0
        %5012 = vmatpush1.xpose.msra.mxu0 0.0
        %5013 = vmatprep.subr.mxu0 0.0
        %5014 = vmatpush1.xpose.msra.mxu0 0.0
        %5015 = vmatprep.subr.mxu0 0.0
        %5016 = vmatpush1.xpose.msra.mxu0 0.0
        %5017 = vmatprep.subr.mxu0 0.0
        %5018 = vmatpush1.xpose.msra.mxu0 0.0
        %5019 = vmatprep.subr.mxu0 0.0
        %5020 = vmatpush1.xpose.msra.mxu0 0.0
        %5021 = vmatprep.subr.mxu0 0.0
        %5022 = vmatpush1.xpose.msra.mxu0 0.0
        %5023 = vmatprep.subr.mxu0 0.0
        %5024 = vmatpush1.xpose.msra.mxu0 0.0
        %5025 = vmatprep.subr.mxu0 0.0
        %5026 = vmatpush1.xpose.msra.mxu0 0.0
        %5027 = vmatprep.subr.mxu0 0.0
        %5028 = vmatpush1.xpose.msra.mxu0 0.0
        %5029 = vmatprep.subr.mxu0 0.0
        %5030 = vmatpush1.xpose.msra.mxu0 0.0
        %5031 = vmatprep.subr.mxu0 0.0
        %5032 = vmatpush1.xpose.msra.mxu0 0.0
        %5033 = vmatprep.subr.mxu0 0.0
        %5034 = vmatpush1.xpose.msra.mxu0 0.0
        %5035 = vmatprep.subr.mxu0 0.0
        %v5036 = vand.u32 %v5009, 4294901760
        %5037 = vmatpush1.xpose.msra.mxu0 %v5036
        %5038 = vmatprep.subr.mxu0 0.0
        %v5039 = vand.u32 %v5007, 4294901760
        %5040 = vmatpush1.xpose.msra.mxu0 %v5039
        %5041 = vmatprep.subr.mxu0 0.0
        %v5042 = vand.u32 %v5005, 4294901760
        %5043 = vmatpush1.xpose.msra.mxu0 %v5042
        %5044 = vmatprep.subr.mxu0 0.0
        %v5045 = vand.u32 %v5003, 4294901760
        %5046 = vmatpush1.xpose.msra.mxu0 %v5045
        %5047 = vmatprep.subr.mxu0 0.0
        %5048 = vmatpush2.xpose.msra.mxu0 0.0
        %5049 = vmatprep.subr.mxu0 0.0
        %5050 = vmatpush2.xpose.msra.mxu0 0.0
        %5051 = vmatprep.subr.mxu0 0.0
        %5052 = vmatpush2.xpose.msra.mxu0 0.0
        %5053 = vmatprep.subr.mxu0 0.0
        %5054 = vmatpush2.xpose.msra.mxu0 0.0
        %5055 = vmatprep.subr.mxu0 0.0
        %5056 = vmatpush2.xpose.msra.mxu0 0.0
        %5057 = vmatprep.subr.mxu0 0.0
        %5058 = vmatpush2.xpose.msra.mxu0 0.0
        %5059 = vmatprep.subr.mxu0 0.0
        %5060 = vmatpush2.xpose.msra.mxu0 0.0
        %5061 = vmatprep.subr.mxu0 0.0
        %5062 = vmatpush2.xpose.msra.mxu0 0.0
        %5063 = vmatprep.subr.mxu0 0.0
        %5064 = vmatpush2.xpose.msra.mxu0 0.0
        %5065 = vmatprep.subr.mxu0 0.0
        %5066 = vmatpush2.xpose.msra.mxu0 0.0
        %5067 = vmatprep.subr.mxu0 0.0
        %5068 = vmatpush2.xpose.msra.mxu0 0.0
        %5069 = vmatprep.subr.mxu0 0.0
        %5070 = vmatpush2.xpose.msra.mxu0 0.0
        %5071 = vmatprep.subr.mxu0 0.0
        %5072 = vmatpush2.xpose.msra.mxu0 0.0
        %5073 = vmatprep.subr.mxu0 0.0
        %5074 = vmatpush2.xpose.msra.mxu0 0.0
        %5075 = vmatprep.subr.mxu0 0.0
        %5076 = vmatpush2.xpose.msra.mxu0 0.0
        %5077 = vmatprep.subr.mxu0 0.0
        %5078 = vmatpush2.xpose.msra.mxu0 0.0
        %5079 = vmatprep.mubr.f32.mxu0 0.0
        %v5080 = vand.u32 %v4297, 4294901760
        %v5081 = vsub.f32 %v4297, %v5080
        %v5082 = vand.u32 %v5081, 4294901760
        %v5083 = vsub.f32 %v5081, %v5082
        %v5084 = vand.u32 %v5083, 4294901760
        %5085 = vmatmul.mubr.f32.gmra.mxu0 %v5084
        %v5086 = vpop.f32.mrf.mxu0
        %v5087 = vadd.f32 0.0, %v5086
        %v5088 = vpop.f32.mrf.mxu0
        %5089 = vmatprep.mubr.f32.mxu0 0.0
        %v5090 = vand.u32 %v4299, 4294901760
        %v5091 = vsub.f32 %v4299, %v5090
        %v5092 = vand.u32 %v5091, 4294901760
        %v5093 = vsub.f32 %v5091, %v5092
        %v5094 = vand.u32 %v5093, 4294901760
        %5095 = vmatmul.mubr.f32.gmra.mxu0 %v5094
        %v5096 = vpop.f32.mrf.mxu0
        %v5097 = vadd.f32 0.0, %v5096
        %v5098 = vpop.f32.mrf.mxu0
        %5099 = vmatprep.mubr.f32.mxu0 0.0
        %v5100 = vand.u32 %v4301, 4294901760
        %v5101 = vsub.f32 %v4301, %v5100
        %v5102 = vand.u32 %v5101, 4294901760
        %v5103 = vsub.f32 %v5101, %v5102
        %v5104 = vand.u32 %v5103, 4294901760
        %5105 = vmatmul.mubr.f32.gmra.mxu0 %v5104
        %v5106 = vpop.f32.mrf.mxu0
        %v5107 = vadd.f32 0.0, %v5106
        %v5108 = vpop.f32.mrf.mxu0
        %5109 = vmatprep.mubr.f32.mxu0 0.0
        %v5110 = vand.u32 %v4303, 4294901760
        %v5111 = vsub.f32 %v4303, %v5110
        %v5112 = vand.u32 %v5111, 4294901760
        %v5113 = vsub.f32 %v5111, %v5112
        %v5114 = vand.u32 %v5113, 4294901760
        %5115 = vmatmul.mubr.f32.gmra.mxu0 %v5114
        %v5116 = vpop.f32.mrf.mxu0
        %v5117 = vadd.f32 0.0, %v5116
        %v5118 = vpop.f32.mrf.mxu0
        %5119 = vdwg.mxu0
        %5120 = vmatprep.subr.mxu0 0.0
        %5121 = vmatpush1.xpose.msra.mxu0 0.0
        %5122 = vmatprep.subr.mxu0 0.0
        %5123 = vmatpush1.xpose.msra.mxu0 0.0
        %5124 = vmatprep.subr.mxu0 0.0
        %5125 = vmatpush1.xpose.msra.mxu0 0.0
        %5126 = vmatprep.subr.mxu0 0.0
        %5127 = vmatpush1.xpose.msra.mxu0 0.0
        %5128 = vmatprep.subr.mxu0 0.0
        %5129 = vmatpush1.xpose.msra.mxu0 0.0
        %5130 = vmatprep.subr.mxu0 0.0
        %5131 = vmatpush1.xpose.msra.mxu0 0.0
        %5132 = vmatprep.subr.mxu0 0.0
        %5133 = vmatpush1.xpose.msra.mxu0 0.0
        %5134 = vmatprep.subr.mxu0 0.0
        %5135 = vmatpush1.xpose.msra.mxu0 0.0
        %5136 = vmatprep.subr.mxu0 0.0
        %5137 = vmatpush1.xpose.msra.mxu0 0.0
        %5138 = vmatprep.subr.mxu0 0.0
        %5139 = vmatpush1.xpose.msra.mxu0 0.0
        %5140 = vmatprep.subr.mxu0 0.0
        %5141 = vmatpush1.xpose.msra.mxu0 0.0
        %5142 = vmatprep.subr.mxu0 0.0
        %5143 = vmatpush1.xpose.msra.mxu0 0.0
        %5144 = vmatprep.subr.mxu0 0.0
        %v5145 = vand.u32 %v5009, 4294901760
        %v5146 = vsub.f32 %v5009, %v5145
        %v5147 = vand.u32 %v5146, 4294901760
        %v5148 = vsub.f32 %v5146, %v5147
        %v5149 = vand.u32 %v5148, 4294901760
        %5150 = vmatpush1.xpose.msra.mxu0 %v5149
        %5151 = vmatprep.subr.mxu0 0.0
        %v5152 = vand.u32 %v5007, 4294901760
        %v5153 = vsub.f32 %v5007, %v5152
        %v5154 = vand.u32 %v5153, 4294901760
        %v5155 = vsub.f32 %v5153, %v5154
        %v5156 = vand.u32 %v5155, 4294901760
        %5157 = vmatpush1.xpose.msra.mxu0 %v5156
        %5158 = vmatprep.subr.mxu0 0.0
        %v5159 = vand.u32 %v5005, 4294901760
        %v5160 = vsub.f32 %v5005, %v5159
        %v5161 = vand.u32 %v5160, 4294901760
        %v5162 = vsub.f32 %v5160, %v5161
        %v5163 = vand.u32 %v5162, 4294901760
        %5164 = vmatpush1.xpose.msra.mxu0 %v5163
        %5165 = vmatprep.subr.mxu0 0.0
        %v5166 = vand.u32 %v5003, 4294901760
        %v5167 = vsub.f32 %v5003, %v5166
        %v5168 = vand.u32 %v5167, 4294901760
        %v5169 = vsub.f32 %v5167, %v5168
        %v5170 = vand.u32 %v5169, 4294901760
        %5171 = vmatpush1.xpose.msra.mxu0 %v5170
        %5172 = vmatprep.subr.mxu0 0.0
        %5173 = vmatpush2.xpose.msra.mxu0 0.0
        %5174 = vmatprep.subr.mxu0 0.0
        %5175 = vmatpush2.xpose.msra.mxu0 0.0
        %5176 = vmatprep.subr.mxu0 0.0
        %5177 = vmatpush2.xpose.msra.mxu0 0.0
        %5178 = vmatprep.subr.mxu0 0.0
        %5179 = vmatpush2.xpose.msra.mxu0 0.0
        %5180 = vmatprep.subr.mxu0 0.0
        %5181 = vmatpush2.xpose.msra.mxu0 0.0
        %5182 = vmatprep.subr.mxu0 0.0
        %5183 = vmatpush2.xpose.msra.mxu0 0.0
        %5184 = vmatprep.subr.mxu0 0.0
        %5185 = vmatpush2.xpose.msra.mxu0 0.0
        %5186 = vmatprep.subr.mxu0 0.0
        %5187 = vmatpush2.xpose.msra.mxu0 0.0
        %5188 = vmatprep.subr.mxu0 0.0
        %5189 = vmatpush2.xpose.msra.mxu0 0.0
        %5190 = vmatprep.subr.mxu0 0.0
        %5191 = vmatpush2.xpose.msra.mxu0 0.0
        %5192 = vmatprep.subr.mxu0 0.0
        %5193 = vmatpush2.xpose.msra.mxu0 0.0
        %5194 = vmatprep.subr.mxu0 0.0
        %5195 = vmatpush2.xpose.msra.mxu0 0.0
        %5196 = vmatprep.subr.mxu0 0.0
        %5197 = vmatpush2.xpose.msra.mxu0 0.0
        %5198 = vmatprep.subr.mxu0 0.0
        %5199 = vmatpush2.xpose.msra.mxu0 0.0
        %5200 = vmatprep.subr.mxu0 0.0
        %5201 = vmatpush2.xpose.msra.mxu0 0.0
        %5202 = vmatprep.subr.mxu0 0.0
        %5203 = vmatpush2.xpose.msra.mxu0 0.0
        %5204 = vmatprep.mubr.f32.mxu0 0.0
        %v5205 = vand.u32 %v4297, 4294901760
        %5206 = vmatmul.mubr.f32.gmra.mxu0 %v5205
        %v5207 = vpop.f32.mrf.mxu0
        %v5208 = vadd.f32 %v5087, %v5207
        %v5209 = vpop.f32.mrf.mxu0
        %5210 = vmatprep.mubr.f32.mxu0 0.0
        %v5211 = vand.u32 %v4299, 4294901760
        %5212 = vmatmul.mubr.f32.gmra.mxu0 %v5211
        %v5213 = vpop.f32.mrf.mxu0
        %v5214 = vadd.f32 %v5097, %v5213
        %v5215 = vpop.f32.mrf.mxu0
        %5216 = vmatprep.mubr.f32.mxu0 0.0
        %v5217 = vand.u32 %v4301, 4294901760
        %5218 = vmatmul.mubr.f32.gmra.mxu0 %v5217
        %v5219 = vpop.f32.mrf.mxu0
        %v5220 = vadd.f32 %v5107, %v5219
        %v5221 = vpop.f32.mrf.mxu0
        %5222 = vmatprep.mubr.f32.mxu0 0.0
        %v5223 = vand.u32 %v4303, 4294901760
        %5224 = vmatmul.mubr.f32.gmra.mxu0 %v5223
        %v5225 = vpop.f32.mrf.mxu0
        %v5226 = vadd.f32 %v5117, %v5225
        %v5227 = vpop.f32.mrf.mxu0
        %5228 = vdwg.mxu0
        %5229 = vmatprep.subr.mxu0 0.0
        %5230 = vmatpush1.xpose.msra.mxu0 0.0
        %5231 = vmatprep.subr.mxu0 0.0
        %5232 = vmatpush1.xpose.msra.mxu0 0.0
        %5233 = vmatprep.subr.mxu0 0.0
        %5234 = vmatpush1.xpose.msra.mxu0 0.0
        %5235 = vmatprep.subr.mxu0 0.0
        %5236 = vmatpush1.xpose.msra.mxu0 0.0
        %5237 = vmatprep.subr.mxu0 0.0
        %5238 = vmatpush1.xpose.msra.mxu0 0.0
        %5239 = vmatprep.subr.mxu0 0.0
        %5240 = vmatpush1.xpose.msra.mxu0 0.0
        %5241 = vmatprep.subr.mxu0 0.0
        %5242 = vmatpush1.xpose.msra.mxu0 0.0
        %5243 = vmatprep.subr.mxu0 0.0
        %5244 = vmatpush1.xpose.msra.mxu0 0.0
        %5245 = vmatprep.subr.mxu0 0.0
        %5246 = vmatpush1.xpose.msra.mxu0 0.0
        %5247 = vmatprep.subr.mxu0 0.0
        %5248 = vmatpush1.xpose.msra.mxu0 0.0
        %5249 = vmatprep.subr.mxu0 0.0
        %5250 = vmatpush1.xpose.msra.mxu0 0.0
        %5251 = vmatprep.subr.mxu0 0.0
        %5252 = vmatpush1.xpose.msra.mxu0 0.0
        %5253 = vmatprep.subr.mxu0 0.0
        %v5254 = vand.u32 %v5009, 4294901760
        %v5255 = vsub.f32 %v5009, %v5254
        %5256 = vmatpush1.xpose.msra.mxu0 %v5255
        %5257 = vmatprep.subr.mxu0 0.0
        %v5258 = vand.u32 %v5007, 4294901760
        %v5259 = vsub.f32 %v5007, %v5258
        %5260 = vmatpush1.xpose.msra.mxu0 %v5259
        %5261 = vmatprep.subr.mxu0 0.0
        %v5262 = vand.u32 %v5005, 4294901760
        %v5263 = vsub.f32 %v5005, %v5262
        %5264 = vmatpush1.xpose.msra.mxu0 %v5263
        %5265 = vmatprep.subr.mxu0 0.0
        %v5266 = vand.u32 %v5003, 4294901760
        %v5267 = vsub.f32 %v5003, %v5266
        %5268 = vmatpush1.xpose.msra.mxu0 %v5267
        %5269 = vmatprep.subr.mxu0 0.0
        %5270 = vmatpush2.xpose.msra.mxu0 0.0
        %5271 = vmatprep.subr.mxu0 0.0
        %5272 = vmatpush2.xpose.msra.mxu0 0.0
        %5273 = vmatprep.subr.mxu0 0.0
        %5274 = vmatpush2.xpose.msra.mxu0 0.0
        %5275 = vmatprep.subr.mxu0 0.0
        %5276 = vmatpush2.xpose.msra.mxu0 0.0
        %5277 = vmatprep.subr.mxu0 0.0
        %5278 = vmatpush2.xpose.msra.mxu0 0.0
        %5279 = vmatprep.subr.mxu0 0.0
        %5280 = vmatpush2.xpose.msra.mxu0 0.0
        %5281 = vmatprep.subr.mxu0 0.0
        %5282 = vmatpush2.xpose.msra.mxu0 0.0
        %5283 = vmatprep.subr.mxu0 0.0
        %5284 = vmatpush2.xpose.msra.mxu0 0.0
        %5285 = vmatprep.subr.mxu0 0.0
        %5286 = vmatpush2.xpose.msra.mxu0 0.0
        %5287 = vmatprep.subr.mxu0 0.0
        %5288 = vmatpush2.xpose.msra.mxu0 0.0
        %5289 = vmatprep.subr.mxu0 0.0
        %5290 = vmatpush2.xpose.msra.mxu0 0.0
        %5291 = vmatprep.subr.mxu0 0.0
        %5292 = vmatpush2.xpose.msra.mxu0 0.0
        %5293 = vmatprep.subr.mxu0 0.0
        %5294 = vmatpush2.xpose.msra.mxu0 0.0
        %5295 = vmatprep.subr.mxu0 0.0
        %5296 = vmatpush2.xpose.msra.mxu0 0.0
        %5297 = vmatprep.subr.mxu0 0.0
        %5298 = vmatpush2.xpose.msra.mxu0 0.0
        %5299 = vmatprep.subr.mxu0 0.0
        %5300 = vmatpush2.xpose.msra.mxu0 0.0
        %5301 = vmatprep.mubr.f32.mxu0 0.0
        %v5302 = vand.u32 %v4297, 4294901760
        %v5303 = vsub.f32 %v4297, %v5302
        %5304 = vmatmul.mubr.f32.gmra.mxu0 %v5303
        %v5305 = vpop.f32.mrf.mxu0
        %v5306 = vadd.f32 %v5208, %v5305
        %v5307 = vpop.f32.mrf.mxu0
        %5308 = vmatprep.mubr.f32.mxu0 0.0
        %v5309 = vand.u32 %v4299, 4294901760
        %v5310 = vsub.f32 %v4299, %v5309
        %5311 = vmatmul.mubr.f32.gmra.mxu0 %v5310
        %v5312 = vpop.f32.mrf.mxu0
        %v5313 = vadd.f32 %v5214, %v5312
        %v5314 = vpop.f32.mrf.mxu0
        %5315 = vmatprep.mubr.f32.mxu0 0.0
        %v5316 = vand.u32 %v4301, 4294901760
        %v5317 = vsub.f32 %v4301, %v5316
        %5318 = vmatmul.mubr.f32.gmra.mxu0 %v5317
        %v5319 = vpop.f32.mrf.mxu0
        %v5320 = vadd.f32 %v5220, %v5319
        %v5321 = vpop.f32.mrf.mxu0
        %5322 = vmatprep.mubr.f32.mxu0 0.0
        %v5323 = vand.u32 %v4303, 4294901760
        %v5324 = vsub.f32 %v4303, %v5323
        %5325 = vmatmul.mubr.f32.gmra.mxu0 %v5324
        %v5326 = vpop.f32.mrf.mxu0
        %v5327 = vadd.f32 %v5226, %v5326
        %v5328 = vpop.f32.mrf.mxu0
        %5329 = vdwg.mxu0
        %5330 = vmatprep.subr.mxu0 0.0
        %5331 = vmatpush1.xpose.msra.mxu0 0.0
        %5332 = vmatprep.subr.mxu0 0.0
        %5333 = vmatpush1.xpose.msra.mxu0 0.0
        %5334 = vmatprep.subr.mxu0 0.0
        %5335 = vmatpush1.xpose.msra.mxu0 0.0
        %5336 = vmatprep.subr.mxu0 0.0
        %5337 = vmatpush1.xpose.msra.mxu0 0.0
        %5338 = vmatprep.subr.mxu0 0.0
        %5339 = vmatpush1.xpose.msra.mxu0 0.0
        %5340 = vmatprep.subr.mxu0 0.0
        %5341 = vmatpush1.xpose.msra.mxu0 0.0
        %5342 = vmatprep.subr.mxu0 0.0
        %5343 = vmatpush1.xpose.msra.mxu0 0.0
        %5344 = vmatprep.subr.mxu0 0.0
        %5345 = vmatpush1.xpose.msra.mxu0 0.0
        %5346 = vmatprep.subr.mxu0 0.0
        %5347 = vmatpush1.xpose.msra.mxu0 0.0
        %5348 = vmatprep.subr.mxu0 0.0
        %5349 = vmatpush1.xpose.msra.mxu0 0.0
        %5350 = vmatprep.subr.mxu0 0.0
        %5351 = vmatpush1.xpose.msra.mxu0 0.0
        %5352 = vmatprep.subr.mxu0 0.0
        %5353 = vmatpush1.xpose.msra.mxu0 0.0
        %5354 = vmatprep.subr.mxu0 0.0
        %v5355 = vand.u32 %v5009, 4294901760
        %5356 = vmatpush1.xpose.msra.mxu0 %v5355
        %5357 = vmatprep.subr.mxu0 0.0
        %v5358 = vand.u32 %v5007, 4294901760
        %5359 = vmatpush1.xpose.msra.mxu0 %v5358
        %5360 = vmatprep.subr.mxu0 0.0
        %v5361 = vand.u32 %v5005, 4294901760
        %5362 = vmatpush1.xpose.msra.mxu0 %v5361
        %5363 = vmatprep.subr.mxu0 0.0
        %v5364 = vand.u32 %v5003, 4294901760
        %5365 = vmatpush1.xpose.msra.mxu0 %v5364
        %5366 = vmatprep.subr.mxu0 0.0
        %5367 = vmatpush2.xpose.msra.mxu0 0.0
        %5368 = vmatprep.subr.mxu0 0.0
        %5369 = vmatpush2.xpose.msra.mxu0 0.0
        %5370 = vmatprep.subr.mxu0 0.0
        %5371 = vmatpush2.xpose.msra.mxu0 0.0
        %5372 = vmatprep.subr.mxu0 0.0
        %5373 = vmatpush2.xpose.msra.mxu0 0.0
        %5374 = vmatprep.subr.mxu0 0.0
        %5375 = vmatpush2.xpose.msra.mxu0 0.0
        %5376 = vmatprep.subr.mxu0 0.0
        %5377 = vmatpush2.xpose.msra.mxu0 0.0
        %5378 = vmatprep.subr.mxu0 0.0
        %5379 = vmatpush2.xpose.msra.mxu0 0.0
        %5380 = vmatprep.subr.mxu0 0.0
        %5381 = vmatpush2.xpose.msra.mxu0 0.0
        %5382 = vmatprep.subr.mxu0 0.0
        %5383 = vmatpush2.xpose.msra.mxu0 0.0
        %5384 = vmatprep.subr.mxu0 0.0
        %5385 = vmatpush2.xpose.msra.mxu0 0.0
        %5386 = vmatprep.subr.mxu0 0.0
        %5387 = vmatpush2.xpose.msra.mxu0 0.0
        %5388 = vmatprep.subr.mxu0 0.0
        %5389 = vmatpush2.xpose.msra.mxu0 0.0
        %5390 = vmatprep.subr.mxu0 0.0
        %5391 = vmatpush2.xpose.msra.mxu0 0.0
        %5392 = vmatprep.subr.mxu0 0.0
        %5393 = vmatpush2.xpose.msra.mxu0 0.0
        %5394 = vmatprep.subr.mxu0 0.0
        %5395 = vmatpush2.xpose.msra.mxu0 0.0
        %5396 = vmatprep.subr.mxu0 0.0
        %5397 = vmatpush2.xpose.msra.mxu0 0.0
        %5398 = vmatprep.mubr.f32.mxu0 0.0
        %v5399 = vand.u32 %v4297, 4294901760
        %v5400 = vsub.f32 %v4297, %v5399
        %v5401 = vand.u32 %v5400, 4294901760
        %5402 = vmatmul.mubr.f32.gmra.mxu0 %v5401
        %v5403 = vpop.f32.mrf.mxu0
        %v5404 = vadd.f32 %v5306, %v5403
        %v5405 = vpop.f32.mrf.mxu0
        %5406 = vmatprep.mubr.f32.mxu0 0.0
        %v5407 = vand.u32 %v4299, 4294901760
        %v5408 = vsub.f32 %v4299, %v5407
        %v5409 = vand.u32 %v5408, 4294901760
        %5410 = vmatmul.mubr.f32.gmra.mxu0 %v5409
        %v5411 = vpop.f32.mrf.mxu0
        %v5412 = vadd.f32 %v5313, %v5411
        %v5413 = vpop.f32.mrf.mxu0
        %5414 = vmatprep.mubr.f32.mxu0 0.0
        %v5415 = vand.u32 %v4301, 4294901760
        %v5416 = vsub.f32 %v4301, %v5415
        %v5417 = vand.u32 %v5416, 4294901760
        %5418 = vmatmul.mubr.f32.gmra.mxu0 %v5417
        %v5419 = vpop.f32.mrf.mxu0
        %v5420 = vadd.f32 %v5320, %v5419
        %v5421 = vpop.f32.mrf.mxu0
        %5422 = vmatprep.mubr.f32.mxu0 0.0
        %v5423 = vand.u32 %v4303, 4294901760
        %v5424 = vsub.f32 %v4303, %v5423
        %v5425 = vand.u32 %v5424, 4294901760
        %5426 = vmatmul.mubr.f32.gmra.mxu0 %v5425
        %v5427 = vpop.f32.mrf.mxu0
        %v5428 = vadd.f32 %v5327, %v5427
        %v5429 = vpop.f32.mrf.mxu0
        %5430 = vdwg.mxu0
        %5431 = vmatprep.subr.mxu0 0.0
        %5432 = vmatpush1.xpose.msra.mxu0 0.0
        %5433 = vmatprep.subr.mxu0 0.0
        %5434 = vmatpush1.xpose.msra.mxu0 0.0
        %5435 = vmatprep.subr.mxu0 0.0
        %5436 = vmatpush1.xpose.msra.mxu0 0.0
        %5437 = vmatprep.subr.mxu0 0.0
        %5438 = vmatpush1.xpose.msra.mxu0 0.0
        %5439 = vmatprep.subr.mxu0 0.0
        %5440 = vmatpush1.xpose.msra.mxu0 0.0
        %5441 = vmatprep.subr.mxu0 0.0
        %5442 = vmatpush1.xpose.msra.mxu0 0.0
        %5443 = vmatprep.subr.mxu0 0.0
        %5444 = vmatpush1.xpose.msra.mxu0 0.0
        %5445 = vmatprep.subr.mxu0 0.0
        %5446 = vmatpush1.xpose.msra.mxu0 0.0
        %5447 = vmatprep.subr.mxu0 0.0
        %5448 = vmatpush1.xpose.msra.mxu0 0.0
        %5449 = vmatprep.subr.mxu0 0.0
        %5450 = vmatpush1.xpose.msra.mxu0 0.0
        %5451 = vmatprep.subr.mxu0 0.0
        %5452 = vmatpush1.xpose.msra.mxu0 0.0
        %5453 = vmatprep.subr.mxu0 0.0
        %5454 = vmatpush1.xpose.msra.mxu0 0.0
        %5455 = vmatprep.subr.mxu0 0.0
        %v5456 = vand.u32 %v5009, 4294901760
        %v5457 = vsub.f32 %v5009, %v5456
        %v5458 = vand.u32 %v5457, 4294901760
        %5459 = vmatpush1.xpose.msra.mxu0 %v5458
        %5460 = vmatprep.subr.mxu0 0.0
        %v5461 = vand.u32 %v5007, 4294901760
        %v5462 = vsub.f32 %v5007, %v5461
        %v5463 = vand.u32 %v5462, 4294901760
        %5464 = vmatpush1.xpose.msra.mxu0 %v5463
        %5465 = vmatprep.subr.mxu0 0.0
        %v5466 = vand.u32 %v5005, 4294901760
        %v5467 = vsub.f32 %v5005, %v5466
        %v5468 = vand.u32 %v5467, 4294901760
        %5469 = vmatpush1.xpose.msra.mxu0 %v5468
        %5470 = vmatprep.subr.mxu0 0.0
        %v5471 = vand.u32 %v5003, 4294901760
        %v5472 = vsub.f32 %v5003, %v5471
        %v5473 = vand.u32 %v5472, 4294901760
        %5474 = vmatpush1.xpose.msra.mxu0 %v5473
        %5475 = vmatprep.subr.mxu0 0.0
        %5476 = vmatpush2.xpose.msra.mxu0 0.0
        %5477 = vmatprep.subr.mxu0 0.0
        %5478 = vmatpush2.xpose.msra.mxu0 0.0
        %5479 = vmatprep.subr.mxu0 0.0
        %5480 = vmatpush2.xpose.msra.mxu0 0.0
        %5481 = vmatprep.subr.mxu0 0.0
        %5482 = vmatpush2.xpose.msra.mxu0 0.0
        %5483 = vmatprep.subr.mxu0 0.0
        %5484 = vmatpush2.xpose.msra.mxu0 0.0
        %5485 = vmatprep.subr.mxu0 0.0
        %5486 = vmatpush2.xpose.msra.mxu0 0.0
        %5487 = vmatprep.subr.mxu0 0.0
        %5488 = vmatpush2.xpose.msra.mxu0 0.0
        %5489 = vmatprep.subr.mxu0 0.0
        %5490 = vmatpush2.xpose.msra.mxu0 0.0
        %5491 = vmatprep.subr.mxu0 0.0
        %5492 = vmatpush2.xpose.msra.mxu0 0.0
        %5493 = vmatprep.subr.mxu0 0.0
        %5494 = vmatpush2.xpose.msra.mxu0 0.0
        %5495 = vmatprep.subr.mxu0 0.0
        %5496 = vmatpush2.xpose.msra.mxu0 0.0
        %5497 = vmatprep.subr.mxu0 0.0
        %5498 = vmatpush2.xpose.msra.mxu0 0.0
        %5499 = vmatprep.subr.mxu0 0.0
        %5500 = vmatpush2.xpose.msra.mxu0 0.0
        %5501 = vmatprep.subr.mxu0 0.0
        %5502 = vmatpush2.xpose.msra.mxu0 0.0
        %5503 = vmatprep.subr.mxu0 0.0
        %5504 = vmatpush2.xpose.msra.mxu0 0.0
        %5505 = vmatprep.subr.mxu0 0.0
        %5506 = vmatpush2.xpose.msra.mxu0 0.0
        %5507 = vmatprep.mubr.f32.mxu0 0.0
        %v5508 = vand.u32 %v4297, 4294901760
        %5509 = vmatmul.mubr.f32.gmra.mxu0 %v5508
        %v5510 = vpop.f32.mrf.mxu0
        %v5511 = vadd.f32 %v5404, %v5510
        %v5512 = vpop.f32.mrf.mxu0
        %5513 = vmatprep.mubr.f32.mxu0 0.0
        %v5514 = vand.u32 %v4299, 4294901760
        %5515 = vmatmul.mubr.f32.gmra.mxu0 %v5514
        %v5516 = vpop.f32.mrf.mxu0
        %v5517 = vadd.f32 %v5412, %v5516
        %v5518 = vpop.f32.mrf.mxu0
        %5519 = vmatprep.mubr.f32.mxu0 0.0
        %v5520 = vand.u32 %v4301, 4294901760
        %5521 = vmatmul.mubr.f32.gmra.mxu0 %v5520
        %v5522 = vpop.f32.mrf.mxu0
        %v5523 = vadd.f32 %v5420, %v5522
        %v5524 = vpop.f32.mrf.mxu0
        %5525 = vmatprep.mubr.f32.mxu0 0.0
        %v5526 = vand.u32 %v4303, 4294901760
        %5527 = vmatmul.mubr.f32.gmra.mxu0 %v5526
        %v5528 = vpop.f32.mrf.mxu0
        %v5529 = vadd.f32 %v5428, %v5528
        %v5530 = vpop.f32.mrf.mxu0
        %5531 = vdwg.mxu0
        %5532 = vmatprep.subr.mxu0 0.0
        %5533 = vmatpush1.xpose.msra.mxu0 0.0
        %5534 = vmatprep.subr.mxu0 0.0
        %5535 = vmatpush1.xpose.msra.mxu0 0.0
        %5536 = vmatprep.subr.mxu0 0.0
        %5537 = vmatpush1.xpose.msra.mxu0 0.0
        %5538 = vmatprep.subr.mxu0 0.0
        %5539 = vmatpush1.xpose.msra.mxu0 0.0
        %5540 = vmatprep.subr.mxu0 0.0
        %5541 = vmatpush1.xpose.msra.mxu0 0.0
        %5542 = vmatprep.subr.mxu0 0.0
        %5543 = vmatpush1.xpose.msra.mxu0 0.0
        %5544 = vmatprep.subr.mxu0 0.0
        %5545 = vmatpush1.xpose.msra.mxu0 0.0
        %5546 = vmatprep.subr.mxu0 0.0
        %5547 = vmatpush1.xpose.msra.mxu0 0.0
        %5548 = vmatprep.subr.mxu0 0.0
        %5549 = vmatpush1.xpose.msra.mxu0 0.0
        %5550 = vmatprep.subr.mxu0 0.0
        %5551 = vmatpush1.xpose.msra.mxu0 0.0
        %5552 = vmatprep.subr.mxu0 0.0
        %5553 = vmatpush1.xpose.msra.mxu0 0.0
        %5554 = vmatprep.subr.mxu0 0.0
        %5555 = vmatpush1.xpose.msra.mxu0 0.0
        %5556 = vmatprep.subr.mxu0 0.0
        %v5557 = vand.u32 %v5009, 4294901760
        %5558 = vmatpush1.xpose.msra.mxu0 %v5557
        %5559 = vmatprep.subr.mxu0 0.0
        %v5560 = vand.u32 %v5007, 4294901760
        %5561 = vmatpush1.xpose.msra.mxu0 %v5560
        %5562 = vmatprep.subr.mxu0 0.0
        %v5563 = vand.u32 %v5005, 4294901760
        %5564 = vmatpush1.xpose.msra.mxu0 %v5563
        %5565 = vmatprep.subr.mxu0 0.0
        %v5566 = vand.u32 %v5003, 4294901760
        %5567 = vmatpush1.xpose.msra.mxu0 %v5566
        %5568 = vmatprep.subr.mxu0 0.0
        %5569 = vmatpush2.xpose.msra.mxu0 0.0
        %5570 = vmatprep.subr.mxu0 0.0
        %5571 = vmatpush2.xpose.msra.mxu0 0.0
        %5572 = vmatprep.subr.mxu0 0.0
        %5573 = vmatpush2.xpose.msra.mxu0 0.0
        %5574 = vmatprep.subr.mxu0 0.0
        %5575 = vmatpush2.xpose.msra.mxu0 0.0
        %5576 = vmatprep.subr.mxu0 0.0
        %5577 = vmatpush2.xpose.msra.mxu0 0.0
        %5578 = vmatprep.subr.mxu0 0.0
        %5579 = vmatpush2.xpose.msra.mxu0 0.0
        %5580 = vmatprep.subr.mxu0 0.0
        %5581 = vmatpush2.xpose.msra.mxu0 0.0
        %5582 = vmatprep.subr.mxu0 0.0
        %5583 = vmatpush2.xpose.msra.mxu0 0.0
        %5584 = vmatprep.subr.mxu0 0.0
        %5585 = vmatpush2.xpose.msra.mxu0 0.0
        %5586 = vmatprep.subr.mxu0 0.0
        %5587 = vmatpush2.xpose.msra.mxu0 0.0
        %5588 = vmatprep.subr.mxu0 0.0
        %5589 = vmatpush2.xpose.msra.mxu0 0.0
        %5590 = vmatprep.subr.mxu0 0.0
        %5591 = vmatpush2.xpose.msra.mxu0 0.0
        %5592 = vmatprep.subr.mxu0 0.0
        %5593 = vmatpush2.xpose.msra.mxu0 0.0
        %5594 = vmatprep.subr.mxu0 0.0
        %5595 = vmatpush2.xpose.msra.mxu0 0.0
        %5596 = vmatprep.subr.mxu0 0.0
        %5597 = vmatpush2.xpose.msra.mxu0 0.0
        %5598 = vmatprep.subr.mxu0 0.0
        %5599 = vmatpush2.xpose.msra.mxu0 0.0
        %5600 = vmatprep.mubr.f32.mxu0 0.0
        %v5601 = vand.u32 %v4297, 4294901760
        %5602 = vmatmul.mubr.f32.gmra.mxu0 %v5601
        %v5603 = vpop.f32.mrf.mxu0
        %v5604 = vadd.f32 %v5511, %v5603
        %v5605 = vpop.f32.mrf.mxu0
        %5606 = vmatprep.mubr.f32.mxu0 0.0
        %v5607 = vand.u32 %v4299, 4294901760
        %5608 = vmatmul.mubr.f32.gmra.mxu0 %v5607
        %v5609 = vpop.f32.mrf.mxu0
        %v5610 = vadd.f32 %v5517, %v5609
        %v5611 = vpop.f32.mrf.mxu0
        %5612 = vmatprep.mubr.f32.mxu0 0.0
        %v5613 = vand.u32 %v4301, 4294901760
        %5614 = vmatmul.mubr.f32.gmra.mxu0 %v5613
        %v5615 = vpop.f32.mrf.mxu0
        %v5616 = vadd.f32 %v5523, %v5615
        %v5617 = vpop.f32.mrf.mxu0
        %5618 = vmatprep.mubr.f32.mxu0 0.0
        %v5619 = vand.u32 %v4303, 4294901760
        %5620 = vmatmul.mubr.f32.gmra.mxu0 %v5619
        %v5621 = vpop.f32.mrf.mxu0
        %v5622 = vadd.f32 %v5529, %v5621
        %v5623 = vpop.f32.mrf.mxu0
        %5624 = vdwg.mxu0
        %v5625 = vsel %vm688, %v5604, 0.0
        %v5626 = vsel %vm689, %v5610, 0.0
        %v5627 = vsel %vm690, %v5616, 0.0
        %v5628 = vsel %vm691, %v5622, 0.0
        %5633 = vrot.lane.b32.xlu0 %v648, 64
        %v5634 = vpop.permute.xlu0 %5633
        %5635 = vrot.lane.b32.xlu0 %v649, 64
        %v5636 = vpop.permute.xlu0 %5635
        %5637 = vrot.lane.b32.xlu0 %v650, 64
        %v5638 = vpop.permute.xlu0 %5637
        %5639 = vrot.lane.b32.xlu0 %v651, 64
        %v5640 = vpop.permute.xlu0 %5639
        %v5646 = vsel %vm692, %v5625, 0
        %v5649 = vsel %vm692, %v5626, 0
        %v5652 = vsel %vm692, %v5627, 0
        %v5655 = vsel %vm692, %v5628, 0
        %5657 = vmatprep.subr.mxu0 0.0
        %5658 = vmatpush1.msra.mxu0 0.0
        %5659 = vmatprep.subr.mxu0 0.0
        %5660 = vmatpush1.msra.mxu0 0.0
        %5661 = vmatprep.subr.mxu0 0.0
        %5662 = vmatpush1.msra.mxu0 0.0
        %5663 = vmatprep.subr.mxu0 0.0
        %5664 = vmatpush1.msra.mxu0 0.0
        %5665 = vmatprep.subr.mxu0 0.0
        %5666 = vmatpush1.msra.mxu0 0.0
        %5667 = vmatprep.subr.mxu0 0.0
        %5668 = vmatpush1.msra.mxu0 0.0
        %5669 = vmatprep.subr.mxu0 0.0
        %5670 = vmatpush1.msra.mxu0 0.0
        %5671 = vmatprep.subr.mxu0 0.0
        %5672 = vmatpush1.msra.mxu0 0.0
        %5673 = vmatprep.subr.mxu0 0.0
        %5674 = vmatpush1.msra.mxu0 0.0
        %5675 = vmatprep.subr.mxu0 0.0
        %5676 = vmatpush1.msra.mxu0 0.0
        %5677 = vmatprep.subr.mxu0 0.0
        %5678 = vmatpush1.msra.mxu0 0.0
        %5679 = vmatprep.subr.mxu0 0.0
        %5680 = vmatpush1.msra.mxu0 0.0
        %5681 = vmatprep.subr.mxu0 0.0
        %v5682 = vand.u32 %v5640, 4294901760
        %5683 = vmatpush1.msra.mxu0 %v5682
        %5684 = vmatprep.subr.mxu0 0.0
        %v5685 = vand.u32 %v5638, 4294901760
        %5686 = vmatpush1.msra.mxu0 %v5685
        %5687 = vmatprep.subr.mxu0 0.0
        %v5688 = vand.u32 %v5636, 4294901760
        %5689 = vmatpush1.msra.mxu0 %v5688
        %5690 = vmatprep.subr.mxu0 0.0
        %v5691 = vand.u32 %v5634, 4294901760
        %5692 = vmatpush1.msra.mxu0 %v5691
        %5693 = vmatprep.subr.mxu0 0.0
        %5694 = vmatpush2.msra.mxu0 0.0
        %5695 = vmatprep.subr.mxu0 0.0
        %5696 = vmatpush2.msra.mxu0 0.0
        %5697 = vmatprep.subr.mxu0 0.0
        %5698 = vmatpush2.msra.mxu0 0.0
        %5699 = vmatprep.subr.mxu0 0.0
        %5700 = vmatpush2.msra.mxu0 0.0
        %5701 = vmatprep.subr.mxu0 0.0
        %5702 = vmatpush2.msra.mxu0 0.0
        %5703 = vmatprep.subr.mxu0 0.0
        %5704 = vmatpush2.msra.mxu0 0.0
        %5705 = vmatprep.subr.mxu0 0.0
        %5706 = vmatpush2.msra.mxu0 0.0
        %5707 = vmatprep.subr.mxu0 0.0
        %5708 = vmatpush2.msra.mxu0 0.0
        %5709 = vmatprep.subr.mxu0 0.0
        %5710 = vmatpush2.msra.mxu0 0.0
        %5711 = vmatprep.subr.mxu0 0.0
        %5712 = vmatpush2.msra.mxu0 0.0
        %5713 = vmatprep.subr.mxu0 0.0
        %5714 = vmatpush2.msra.mxu0 0.0
        %5715 = vmatprep.subr.mxu0 0.0
        %5716 = vmatpush2.msra.mxu0 0.0
        %5717 = vmatprep.subr.mxu0 0.0
        %5718 = vmatpush2.msra.mxu0 0.0
        %5719 = vmatprep.subr.mxu0 0.0
        %5720 = vmatpush2.msra.mxu0 0.0
        %5721 = vmatprep.subr.mxu0 0.0
        %5722 = vmatpush2.msra.mxu0 0.0
        %5723 = vmatprep.subr.mxu0 0.0
        %5724 = vmatpush2.msra.mxu0 0.0
        %5725 = vmatprep.mubr.f32.mxu0 0.0
        %v5726 = vand.u32 %v5646, 4294901760
        %v5727 = vsub.f32 %v5646, %v5726
        %v5728 = vand.u32 %v5727, 4294901760
        %v5729 = vsub.f32 %v5727, %v5728
        %v5730 = vand.u32 %v5729, 4294901760
        %5731 = vmatmul.mubr.f32.gmra.mxu0 %v5730
        %v5732 = vpop.f32.mrf.mxu0
        %v5733 = vadd.f32 0.0, %v5732
        %v5734 = vpop.f32.mrf.mxu0
        %5735 = vmatprep.mubr.f32.mxu0 0.0
        %v5736 = vand.u32 %v5649, 4294901760
        %v5737 = vsub.f32 %v5649, %v5736
        %v5738 = vand.u32 %v5737, 4294901760
        %v5739 = vsub.f32 %v5737, %v5738
        %v5740 = vand.u32 %v5739, 4294901760
        %5741 = vmatmul.mubr.f32.gmra.mxu0 %v5740
        %v5742 = vpop.f32.mrf.mxu0
        %v5743 = vadd.f32 0.0, %v5742
        %v5744 = vpop.f32.mrf.mxu0
        %5745 = vmatprep.mubr.f32.mxu0 0.0
        %v5746 = vand.u32 %v5652, 4294901760
        %v5747 = vsub.f32 %v5652, %v5746
        %v5748 = vand.u32 %v5747, 4294901760
        %v5749 = vsub.f32 %v5747, %v5748
        %v5750 = vand.u32 %v5749, 4294901760
        %5751 = vmatmul.mubr.f32.gmra.mxu0 %v5750
        %v5752 = vpop.f32.mrf.mxu0
        %v5753 = vadd.f32 0.0, %v5752
        %v5754 = vpop.f32.mrf.mxu0
        %5755 = vmatprep.mubr.f32.mxu0 0.0
        %v5756 = vand.u32 %v5655, 4294901760
        %v5757 = vsub.f32 %v5655, %v5756
        %v5758 = vand.u32 %v5757, 4294901760
        %v5759 = vsub.f32 %v5757, %v5758
        %v5760 = vand.u32 %v5759, 4294901760
        %5761 = vmatmul.mubr.f32.gmra.mxu0 %v5760
        %v5762 = vpop.f32.mrf.mxu0
        %v5763 = vadd.f32 0.0, %v5762
        %v5764 = vpop.f32.mrf.mxu0
        %5765 = vdwg.mxu0
        %5766 = vmatprep.subr.mxu0 0.0
        %5767 = vmatpush1.msra.mxu0 0.0
        %5768 = vmatprep.subr.mxu0 0.0
        %5769 = vmatpush1.msra.mxu0 0.0
        %5770 = vmatprep.subr.mxu0 0.0
        %5771 = vmatpush1.msra.mxu0 0.0
        %5772 = vmatprep.subr.mxu0 0.0
        %5773 = vmatpush1.msra.mxu0 0.0
        %5774 = vmatprep.subr.mxu0 0.0
        %5775 = vmatpush1.msra.mxu0 0.0
        %5776 = vmatprep.subr.mxu0 0.0
        %5777 = vmatpush1.msra.mxu0 0.0
        %5778 = vmatprep.subr.mxu0 0.0
        %5779 = vmatpush1.msra.mxu0 0.0
        %5780 = vmatprep.subr.mxu0 0.0
        %5781 = vmatpush1.msra.mxu0 0.0
        %5782 = vmatprep.subr.mxu0 0.0
        %5783 = vmatpush1.msra.mxu0 0.0
        %5784 = vmatprep.subr.mxu0 0.0
        %5785 = vmatpush1.msra.mxu0 0.0
        %5786 = vmatprep.subr.mxu0 0.0
        %5787 = vmatpush1.msra.mxu0 0.0
        %5788 = vmatprep.subr.mxu0 0.0
        %5789 = vmatpush1.msra.mxu0 0.0
        %5790 = vmatprep.subr.mxu0 0.0
        %v5791 = vand.u32 %v5640, 4294901760
        %v5792 = vsub.f32 %v5640, %v5791
        %v5793 = vand.u32 %v5792, 4294901760
        %v5794 = vsub.f32 %v5792, %v5793
        %v5795 = vand.u32 %v5794, 4294901760
        %5796 = vmatpush1.msra.mxu0 %v5795
        %5797 = vmatprep.subr.mxu0 0.0
        %v5798 = vand.u32 %v5638, 4294901760
        %v5799 = vsub.f32 %v5638, %v5798
        %v5800 = vand.u32 %v5799, 4294901760
        %v5801 = vsub.f32 %v5799, %v5800
        %v5802 = vand.u32 %v5801, 4294901760
        %5803 = vmatpush1.msra.mxu0 %v5802
        %5804 = vmatprep.subr.mxu0 0.0
        %v5805 = vand.u32 %v5636, 4294901760
        %v5806 = vsub.f32 %v5636, %v5805
        %v5807 = vand.u32 %v5806, 4294901760
        %v5808 = vsub.f32 %v5806, %v5807
        %v5809 = vand.u32 %v5808, 4294901760
        %5810 = vmatpush1.msra.mxu0 %v5809
        %5811 = vmatprep.subr.mxu0 0.0
        %v5812 = vand.u32 %v5634, 4294901760
        %v5813 = vsub.f32 %v5634, %v5812
        %v5814 = vand.u32 %v5813, 4294901760
        %v5815 = vsub.f32 %v5813, %v5814
        %v5816 = vand.u32 %v5815, 4294901760
        %5817 = vmatpush1.msra.mxu0 %v5816
        %5818 = vmatprep.subr.mxu0 0.0
        %5819 = vmatpush2.msra.mxu0 0.0
        %5820 = vmatprep.subr.mxu0 0.0
        %5821 = vmatpush2.msra.mxu0 0.0
        %5822 = vmatprep.subr.mxu0 0.0
        %5823 = vmatpush2.msra.mxu0 0.0
        %5824 = vmatprep.subr.mxu0 0.0
        %5825 = vmatpush2.msra.mxu0 0.0
        %5826 = vmatprep.subr.mxu0 0.0
        %5827 = vmatpush2.msra.mxu0 0.0
        %5828 = vmatprep.subr.mxu0 0.0
        %5829 = vmatpush2.msra.mxu0 0.0
        %5830 = vmatprep.subr.mxu0 0.0
        %5831 = vmatpush2.msra.mxu0 0.0
        %5832 = vmatprep.subr.mxu0 0.0
        %5833 = vmatpush2.msra.mxu0 0.0
        %5834 = vmatprep.subr.mxu0 0.0
        %5835 = vmatpush2.msra.mxu0 0.0
        %5836 = vmatprep.subr.mxu0 0.0
        %5837 = vmatpush2.msra.mxu0 0.0
        %5838 = vmatprep.subr.mxu0 0.0
        %5839 = vmatpush2.msra.mxu0 0.0
        %5840 = vmatprep.subr.mxu0 0.0
        %5841 = vmatpush2.msra.mxu0 0.0
        %5842 = vmatprep.subr.mxu0 0.0
        %5843 = vmatpush2.msra.mxu0 0.0
        %5844 = vmatprep.subr.mxu0 0.0
        %5845 = vmatpush2.msra.mxu0 0.0
        %5846 = vmatprep.subr.mxu0 0.0
        %5847 = vmatpush2.msra.mxu0 0.0
        %5848 = vmatprep.subr.mxu0 0.0
        %5849 = vmatpush2.msra.mxu0 0.0
        %5850 = vmatprep.mubr.f32.mxu0 0.0
        %v5851 = vand.u32 %v5646, 4294901760
        %5852 = vmatmul.mubr.f32.gmra.mxu0 %v5851
        %v5853 = vpop.f32.mrf.mxu0
        %v5854 = vadd.f32 %v5733, %v5853
        %v5855 = vpop.f32.mrf.mxu0
        %5856 = vmatprep.mubr.f32.mxu0 0.0
        %v5857 = vand.u32 %v5649, 4294901760
        %5858 = vmatmul.mubr.f32.gmra.mxu0 %v5857
        %v5859 = vpop.f32.mrf.mxu0
        %v5860 = vadd.f32 %v5743, %v5859
        %v5861 = vpop.f32.mrf.mxu0
        %5862 = vmatprep.mubr.f32.mxu0 0.0
        %v5863 = vand.u32 %v5652, 4294901760
        %5864 = vmatmul.mubr.f32.gmra.mxu0 %v5863
        %v5865 = vpop.f32.mrf.mxu0
        %v5866 = vadd.f32 %v5753, %v5865
        %v5867 = vpop.f32.mrf.mxu0
        %5868 = vmatprep.mubr.f32.mxu0 0.0
        %v5869 = vand.u32 %v5655, 4294901760
        %5870 = vmatmul.mubr.f32.gmra.mxu0 %v5869
        %v5871 = vpop.f32.mrf.mxu0
        %v5872 = vadd.f32 %v5763, %v5871
        %v5873 = vpop.f32.mrf.mxu0
        %5874 = vdwg.mxu0
        %5875 = vmatprep.subr.mxu0 0.0
        %5876 = vmatpush1.msra.mxu0 0.0
        %5877 = vmatprep.subr.mxu0 0.0
        %5878 = vmatpush1.msra.mxu0 0.0
        %5879 = vmatprep.subr.mxu0 0.0
        %5880 = vmatpush1.msra.mxu0 0.0
        %5881 = vmatprep.subr.mxu0 0.0
        %5882 = vmatpush1.msra.mxu0 0.0
        %5883 = vmatprep.subr.mxu0 0.0
        %5884 = vmatpush1.msra.mxu0 0.0
        %5885 = vmatprep.subr.mxu0 0.0
        %5886 = vmatpush1.msra.mxu0 0.0
        %5887 = vmatprep.subr.mxu0 0.0
        %5888 = vmatpush1.msra.mxu0 0.0
        %5889 = vmatprep.subr.mxu0 0.0
        %5890 = vmatpush1.msra.mxu0 0.0
        %5891 = vmatprep.subr.mxu0 0.0
        %5892 = vmatpush1.msra.mxu0 0.0
        %5893 = vmatprep.subr.mxu0 0.0
        %5894 = vmatpush1.msra.mxu0 0.0
        %5895 = vmatprep.subr.mxu0 0.0
        %5896 = vmatpush1.msra.mxu0 0.0
        %5897 = vmatprep.subr.mxu0 0.0
        %5898 = vmatpush1.msra.mxu0 0.0
        %5899 = vmatprep.subr.mxu0 0.0
        %v5900 = vand.u32 %v5640, 4294901760
        %v5901 = vsub.f32 %v5640, %v5900
        %5902 = vmatpush1.msra.mxu0 %v5901
        %5903 = vmatprep.subr.mxu0 0.0
        %v5904 = vand.u32 %v5638, 4294901760
        %v5905 = vsub.f32 %v5638, %v5904
        %5906 = vmatpush1.msra.mxu0 %v5905
        %5907 = vmatprep.subr.mxu0 0.0
        %v5908 = vand.u32 %v5636, 4294901760
        %v5909 = vsub.f32 %v5636, %v5908
        %5910 = vmatpush1.msra.mxu0 %v5909
        %5911 = vmatprep.subr.mxu0 0.0
        %v5912 = vand.u32 %v5634, 4294901760
        %v5913 = vsub.f32 %v5634, %v5912
        %5914 = vmatpush1.msra.mxu0 %v5913
        %5915 = vmatprep.subr.mxu0 0.0
        %5916 = vmatpush2.msra.mxu0 0.0
        %5917 = vmatprep.subr.mxu0 0.0
        %5918 = vmatpush2.msra.mxu0 0.0
        %5919 = vmatprep.subr.mxu0 0.0
        %5920 = vmatpush2.msra.mxu0 0.0
        %5921 = vmatprep.subr.mxu0 0.0
        %5922 = vmatpush2.msra.mxu0 0.0
        %5923 = vmatprep.subr.mxu0 0.0
        %5924 = vmatpush2.msra.mxu0 0.0
        %5925 = vmatprep.subr.mxu0 0.0
        %5926 = vmatpush2.msra.mxu0 0.0
        %5927 = vmatprep.subr.mxu0 0.0
        %5928 = vmatpush2.msra.mxu0 0.0
        %5929 = vmatprep.subr.mxu0 0.0
        %5930 = vmatpush2.msra.mxu0 0.0
        %5931 = vmatprep.subr.mxu0 0.0
        %5932 = vmatpush2.msra.mxu0 0.0
        %5933 = vmatprep.subr.mxu0 0.0
        %5934 = vmatpush2.msra.mxu0 0.0
        %5935 = vmatprep.subr.mxu0 0.0
        %5936 = vmatpush2.msra.mxu0 0.0
        %5937 = vmatprep.subr.mxu0 0.0
        %5938 = vmatpush2.msra.mxu0 0.0
        %5939 = vmatprep.subr.mxu0 0.0
        %5940 = vmatpush2.msra.mxu0 0.0
        %5941 = vmatprep.subr.mxu0 0.0
        %5942 = vmatpush2.msra.mxu0 0.0
        %5943 = vmatprep.subr.mxu0 0.0
        %5944 = vmatpush2.msra.mxu0 0.0
        %5945 = vmatprep.subr.mxu0 0.0
        %5946 = vmatpush2.msra.mxu0 0.0
        %5947 = vmatprep.mubr.f32.mxu0 0.0
        %v5948 = vand.u32 %v5646, 4294901760
        %v5949 = vsub.f32 %v5646, %v5948
        %5950 = vmatmul.mubr.f32.gmra.mxu0 %v5949
        %v5951 = vpop.f32.mrf.mxu0
        %v5952 = vadd.f32 %v5854, %v5951
        %v5953 = vpop.f32.mrf.mxu0
        %5954 = vmatprep.mubr.f32.mxu0 0.0
        %v5955 = vand.u32 %v5649, 4294901760
        %v5956 = vsub.f32 %v5649, %v5955
        %5957 = vmatmul.mubr.f32.gmra.mxu0 %v5956
        %v5958 = vpop.f32.mrf.mxu0
        %v5959 = vadd.f32 %v5860, %v5958
        %v5960 = vpop.f32.mrf.mxu0
        %5961 = vmatprep.mubr.f32.mxu0 0.0
        %v5962 = vand.u32 %v5652, 4294901760
        %v5963 = vsub.f32 %v5652, %v5962
        %5964 = vmatmul.mubr.f32.gmra.mxu0 %v5963
        %v5965 = vpop.f32.mrf.mxu0
        %v5966 = vadd.f32 %v5866, %v5965
        %v5967 = vpop.f32.mrf.mxu0
        %5968 = vmatprep.mubr.f32.mxu0 0.0
        %v5969 = vand.u32 %v5655, 4294901760
        %v5970 = vsub.f32 %v5655, %v5969
        %5971 = vmatmul.mubr.f32.gmra.mxu0 %v5970
        %v5972 = vpop.f32.mrf.mxu0
        %v5973 = vadd.f32 %v5872, %v5972
        %v5974 = vpop.f32.mrf.mxu0
        %5975 = vdwg.mxu0
        %5976 = vmatprep.subr.mxu0 0.0
        %5977 = vmatpush1.msra.mxu0 0.0
        %5978 = vmatprep.subr.mxu0 0.0
        %5979 = vmatpush1.msra.mxu0 0.0
        %5980 = vmatprep.subr.mxu0 0.0
        %5981 = vmatpush1.msra.mxu0 0.0
        %5982 = vmatprep.subr.mxu0 0.0
        %5983 = vmatpush1.msra.mxu0 0.0
        %5984 = vmatprep.subr.mxu0 0.0
        %5985 = vmatpush1.msra.mxu0 0.0
        %5986 = vmatprep.subr.mxu0 0.0
        %5987 = vmatpush1.msra.mxu0 0.0
        %5988 = vmatprep.subr.mxu0 0.0
        %5989 = vmatpush1.msra.mxu0 0.0
        %5990 = vmatprep.subr.mxu0 0.0
        %5991 = vmatpush1.msra.mxu0 0.0
        %5992 = vmatprep.subr.mxu0 0.0
        %5993 = vmatpush1.msra.mxu0 0.0
        %5994 = vmatprep.subr.mxu0 0.0
        %5995 = vmatpush1.msra.mxu0 0.0
        %5996 = vmatprep.subr.mxu0 0.0
        %5997 = vmatpush1.msra.mxu0 0.0
        %5998 = vmatprep.subr.mxu0 0.0
        %5999 = vmatpush1.msra.mxu0 0.0
        %6000 = vmatprep.subr.mxu0 0.0
        %v6001 = vand.u32 %v5640, 4294901760
        %6002 = vmatpush1.msra.mxu0 %v6001
        %6003 = vmatprep.subr.mxu0 0.0
        %v6004 = vand.u32 %v5638, 4294901760
        %6005 = vmatpush1.msra.mxu0 %v6004
        %6006 = vmatprep.subr.mxu0 0.0
        %v6007 = vand.u32 %v5636, 4294901760
        %6008 = vmatpush1.msra.mxu0 %v6007
        %6009 = vmatprep.subr.mxu0 0.0
        %v6010 = vand.u32 %v5634, 4294901760
        %6011 = vmatpush1.msra.mxu0 %v6010
        %6012 = vmatprep.subr.mxu0 0.0
        %6013 = vmatpush2.msra.mxu0 0.0
        %6014 = vmatprep.subr.mxu0 0.0
        %6015 = vmatpush2.msra.mxu0 0.0
        %6016 = vmatprep.subr.mxu0 0.0
        %6017 = vmatpush2.msra.mxu0 0.0
        %6018 = vmatprep.subr.mxu0 0.0
        %6019 = vmatpush2.msra.mxu0 0.0
        %6020 = vmatprep.subr.mxu0 0.0
        %6021 = vmatpush2.msra.mxu0 0.0
        %6022 = vmatprep.subr.mxu0 0.0
        %6023 = vmatpush2.msra.mxu0 0.0
        %6024 = vmatprep.subr.mxu0 0.0
        %6025 = vmatpush2.msra.mxu0 0.0
        %6026 = vmatprep.subr.mxu0 0.0
        %6027 = vmatpush2.msra.mxu0 0.0
        %6028 = vmatprep.subr.mxu0 0.0
        %6029 = vmatpush2.msra.mxu0 0.0
        %6030 = vmatprep.subr.mxu0 0.0
        %6031 = vmatpush2.msra.mxu0 0.0
        %6032 = vmatprep.subr.mxu0 0.0
        %6033 = vmatpush2.msra.mxu0 0.0
        %6034 = vmatprep.subr.mxu0 0.0
        %6035 = vmatpush2.msra.mxu0 0.0
        %6036 = vmatprep.subr.mxu0 0.0
        %6037 = vmatpush2.msra.mxu0 0.0
        %6038 = vmatprep.subr.mxu0 0.0
        %6039 = vmatpush2.msra.mxu0 0.0
        %6040 = vmatprep.subr.mxu0 0.0
        %6041 = vmatpush2.msra.mxu0 0.0
        %6042 = vmatprep.subr.mxu0 0.0
        %6043 = vmatpush2.msra.mxu0 0.0
        %6044 = vmatprep.mubr.f32.mxu0 0.0
        %v6045 = vand.u32 %v5646, 4294901760
        %v6046 = vsub.f32 %v5646, %v6045
        %v6047 = vand.u32 %v6046, 4294901760
        %6048 = vmatmul.mubr.f32.gmra.mxu0 %v6047
        %v6049 = vpop.f32.mrf.mxu0
        %v6050 = vadd.f32 %v5952, %v6049
        %v6051 = vpop.f32.mrf.mxu0
        %6052 = vmatprep.mubr.f32.mxu0 0.0
        %v6053 = vand.u32 %v5649, 4294901760
        %v6054 = vsub.f32 %v5649, %v6053
        %v6055 = vand.u32 %v6054, 4294901760
        %6056 = vmatmul.mubr.f32.gmra.mxu0 %v6055
        %v6057 = vpop.f32.mrf.mxu0
        %v6058 = vadd.f32 %v5959, %v6057
        %v6059 = vpop.f32.mrf.mxu0
        %6060 = vmatprep.mubr.f32.mxu0 0.0
        %v6061 = vand.u32 %v5652, 4294901760
        %v6062 = vsub.f32 %v5652, %v6061
        %v6063 = vand.u32 %v6062, 4294901760
        %6064 = vmatmul.mubr.f32.gmra.mxu0 %v6063
        %v6065 = vpop.f32.mrf.mxu0
        %v6066 = vadd.f32 %v5966, %v6065
        %v6067 = vpop.f32.mrf.mxu0
        %6068 = vmatprep.mubr.f32.mxu0 0.0
        %v6069 = vand.u32 %v5655, 4294901760
        %v6070 = vsub.f32 %v5655, %v6069
        %v6071 = vand.u32 %v6070, 4294901760
        %6072 = vmatmul.mubr.f32.gmra.mxu0 %v6071
        %v6073 = vpop.f32.mrf.mxu0
        %v6074 = vadd.f32 %v5973, %v6073
        %v6075 = vpop.f32.mrf.mxu0
        %6076 = vdwg.mxu0
        %6077 = vmatprep.subr.mxu0 0.0
        %6078 = vmatpush1.msra.mxu0 0.0
        %6079 = vmatprep.subr.mxu0 0.0
        %6080 = vmatpush1.msra.mxu0 0.0
        %6081 = vmatprep.subr.mxu0 0.0
        %6082 = vmatpush1.msra.mxu0 0.0
        %6083 = vmatprep.subr.mxu0 0.0
        %6084 = vmatpush1.msra.mxu0 0.0
        %6085 = vmatprep.subr.mxu0 0.0
        %6086 = vmatpush1.msra.mxu0 0.0
        %6087 = vmatprep.subr.mxu0 0.0
        %6088 = vmatpush1.msra.mxu0 0.0
        %6089 = vmatprep.subr.mxu0 0.0
        %6090 = vmatpush1.msra.mxu0 0.0
        %6091 = vmatprep.subr.mxu0 0.0
        %6092 = vmatpush1.msra.mxu0 0.0
        %6093 = vmatprep.subr.mxu0 0.0
        %6094 = vmatpush1.msra.mxu0 0.0
        %6095 = vmatprep.subr.mxu0 0.0
        %6096 = vmatpush1.msra.mxu0 0.0
        %6097 = vmatprep.subr.mxu0 0.0
        %6098 = vmatpush1.msra.mxu0 0.0
        %6099 = vmatprep.subr.mxu0 0.0
        %6100 = vmatpush1.msra.mxu0 0.0
        %6101 = vmatprep.subr.mxu0 0.0
        %v6102 = vand.u32 %v5640, 4294901760
        %v6103 = vsub.f32 %v5640, %v6102
        %v6104 = vand.u32 %v6103, 4294901760
        %6105 = vmatpush1.msra.mxu0 %v6104
        %6106 = vmatprep.subr.mxu0 0.0
        %v6107 = vand.u32 %v5638, 4294901760
        %v6108 = vsub.f32 %v5638, %v6107
        %v6109 = vand.u32 %v6108, 4294901760
        %6110 = vmatpush1.msra.mxu0 %v6109
        %6111 = vmatprep.subr.mxu0 0.0
        %v6112 = vand.u32 %v5636, 4294901760
        %v6113 = vsub.f32 %v5636, %v6112
        %v6114 = vand.u32 %v6113, 4294901760
        %6115 = vmatpush1.msra.mxu0 %v6114
        %6116 = vmatprep.subr.mxu0 0.0
        %v6117 = vand.u32 %v5634, 4294901760
        %v6118 = vsub.f32 %v5634, %v6117
        %v6119 = vand.u32 %v6118, 4294901760
        %6120 = vmatpush1.msra.mxu0 %v6119
        %6121 = vmatprep.subr.mxu0 0.0
        %6122 = vmatpush2.msra.mxu0 0.0
        %6123 = vmatprep.subr.mxu0 0.0
        %6124 = vmatpush2.msra.mxu0 0.0
        %6125 = vmatprep.subr.mxu0 0.0
        %6126 = vmatpush2.msra.mxu0 0.0
        %6127 = vmatprep.subr.mxu0 0.0
        %6128 = vmatpush2.msra.mxu0 0.0
        %6129 = vmatprep.subr.mxu0 0.0
        %6130 = vmatpush2.msra.mxu0 0.0
        %6131 = vmatprep.subr.mxu0 0.0
        %6132 = vmatpush2.msra.mxu0 0.0
        %6133 = vmatprep.subr.mxu0 0.0
        %6134 = vmatpush2.msra.mxu0 0.0
        %6135 = vmatprep.subr.mxu0 0.0
        %6136 = vmatpush2.msra.mxu0 0.0
        %6137 = vmatprep.subr.mxu0 0.0
        %6138 = vmatpush2.msra.mxu0 0.0
        %6139 = vmatprep.subr.mxu0 0.0
        %6140 = vmatpush2.msra.mxu0 0.0
        %6141 = vmatprep.subr.mxu0 0.0
        %6142 = vmatpush2.msra.mxu0 0.0
        %6143 = vmatprep.subr.mxu0 0.0
        %6144 = vmatpush2.msra.mxu0 0.0
        %6145 = vmatprep.subr.mxu0 0.0
        %6146 = vmatpush2.msra.mxu0 0.0
        %6147 = vmatprep.subr.mxu0 0.0
        %6148 = vmatpush2.msra.mxu0 0.0
        %6149 = vmatprep.subr.mxu0 0.0
        %6150 = vmatpush2.msra.mxu0 0.0
        %6151 = vmatprep.subr.mxu0 0.0
        %6152 = vmatpush2.msra.mxu0 0.0
        %6153 = vmatprep.mubr.f32.mxu0 0.0
        %v6154 = vand.u32 %v5646, 4294901760
        %6155 = vmatmul.mubr.f32.gmra.mxu0 %v6154
        %v6156 = vpop.f32.mrf.mxu0
        %v6157 = vadd.f32 %v6050, %v6156
        %v6158 = vpop.f32.mrf.mxu0
        %6159 = vmatprep.mubr.f32.mxu0 0.0
        %v6160 = vand.u32 %v5649, 4294901760
        %6161 = vmatmul.mubr.f32.gmra.mxu0 %v6160
        %v6162 = vpop.f32.mrf.mxu0
        %v6163 = vadd.f32 %v6058, %v6162
        %v6164 = vpop.f32.mrf.mxu0
        %6165 = vmatprep.mubr.f32.mxu0 0.0
        %v6166 = vand.u32 %v5652, 4294901760
        %6167 = vmatmul.mubr.f32.gmra.mxu0 %v6166
        %v6168 = vpop.f32.mrf.mxu0
        %v6169 = vadd.f32 %v6066, %v6168
        %v6170 = vpop.f32.mrf.mxu0
        %6171 = vmatprep.mubr.f32.mxu0 0.0
        %v6172 = vand.u32 %v5655, 4294901760
        %6173 = vmatmul.mubr.f32.gmra.mxu0 %v6172
        %v6174 = vpop.f32.mrf.mxu0
        %v6175 = vadd.f32 %v6074, %v6174
        %v6176 = vpop.f32.mrf.mxu0
        %6177 = vdwg.mxu0
        %6178 = vmatprep.subr.mxu0 0.0
        %6179 = vmatpush1.msra.mxu0 0.0
        %6180 = vmatprep.subr.mxu0 0.0
        %6181 = vmatpush1.msra.mxu0 0.0
        %6182 = vmatprep.subr.mxu0 0.0
        %6183 = vmatpush1.msra.mxu0 0.0
        %6184 = vmatprep.subr.mxu0 0.0
        %6185 = vmatpush1.msra.mxu0 0.0
        %6186 = vmatprep.subr.mxu0 0.0
        %6187 = vmatpush1.msra.mxu0 0.0
        %6188 = vmatprep.subr.mxu0 0.0
        %6189 = vmatpush1.msra.mxu0 0.0
        %6190 = vmatprep.subr.mxu0 0.0
        %6191 = vmatpush1.msra.mxu0 0.0
        %6192 = vmatprep.subr.mxu0 0.0
        %6193 = vmatpush1.msra.mxu0 0.0
        %6194 = vmatprep.subr.mxu0 0.0
        %6195 = vmatpush1.msra.mxu0 0.0
        %6196 = vmatprep.subr.mxu0 0.0
        %6197 = vmatpush1.msra.mxu0 0.0
        %6198 = vmatprep.subr.mxu0 0.0
        %6199 = vmatpush1.msra.mxu0 0.0
        %6200 = vmatprep.subr.mxu0 0.0
        %6201 = vmatpush1.msra.mxu0 0.0
        %6202 = vmatprep.subr.mxu0 0.0
        %v6203 = vand.u32 %v5640, 4294901760
        %6204 = vmatpush1.msra.mxu0 %v6203
        %6205 = vmatprep.subr.mxu0 0.0
        %v6206 = vand.u32 %v5638, 4294901760
        %6207 = vmatpush1.msra.mxu0 %v6206
        %6208 = vmatprep.subr.mxu0 0.0
        %v6209 = vand.u32 %v5636, 4294901760
        %6210 = vmatpush1.msra.mxu0 %v6209
        %6211 = vmatprep.subr.mxu0 0.0
        %v6212 = vand.u32 %v5634, 4294901760
        %6213 = vmatpush1.msra.mxu0 %v6212
        %6214 = vmatprep.subr.mxu0 0.0
        %6215 = vmatpush2.msra.mxu0 0.0
        %6216 = vmatprep.subr.mxu0 0.0
        %6217 = vmatpush2.msra.mxu0 0.0
        %6218 = vmatprep.subr.mxu0 0.0
        %6219 = vmatpush2.msra.mxu0 0.0
        %6220 = vmatprep.subr.mxu0 0.0
        %6221 = vmatpush2.msra.mxu0 0.0
        %6222 = vmatprep.subr.mxu0 0.0
        %6223 = vmatpush2.msra.mxu0 0.0
        %6224 = vmatprep.subr.mxu0 0.0
        %6225 = vmatpush2.msra.mxu0 0.0
        %6226 = vmatprep.subr.mxu0 0.0
        %6227 = vmatpush2.msra.mxu0 0.0
        %6228 = vmatprep.subr.mxu0 0.0
        %6229 = vmatpush2.msra.mxu0 0.0
        %6230 = vmatprep.subr.mxu0 0.0
        %6231 = vmatpush2.msra.mxu0 0.0
        %6232 = vmatprep.subr.mxu0 0.0
        %6233 = vmatpush2.msra.mxu0 0.0
        %6234 = vmatprep.subr.mxu0 0.0
        %6235 = vmatpush2.msra.mxu0 0.0
        %6236 = vmatprep.subr.mxu0 0.0
        %6237 = vmatpush2.msra.mxu0 0.0
        %6238 = vmatprep.subr.mxu0 0.0
        %6239 = vmatpush2.msra.mxu0 0.0
        %6240 = vmatprep.subr.mxu0 0.0
        %6241 = vmatpush2.msra.mxu0 0.0
        %6242 = vmatprep.subr.mxu0 0.0
        %6243 = vmatpush2.msra.mxu0 0.0
        %6244 = vmatprep.subr.mxu0 0.0
        %6245 = vmatpush2.msra.mxu0 0.0
        %6246 = vmatprep.mubr.f32.mxu0 0.0
        %v6247 = vand.u32 %v5646, 4294901760
        %6248 = vmatmul.mubr.f32.gmra.mxu0 %v6247
        %v6249 = vpop.f32.mrf.mxu0
        %v6250 = vadd.f32 %v6157, %v6249
        %v6251 = vpop.f32.mrf.mxu0
        %6252 = vmatprep.mubr.f32.mxu0 0.0
        %v6253 = vand.u32 %v5649, 4294901760
        %6254 = vmatmul.mubr.f32.gmra.mxu0 %v6253
        %v6255 = vpop.f32.mrf.mxu0
        %v6256 = vadd.f32 %v6163, %v6255
        %v6257 = vpop.f32.mrf.mxu0
        %6258 = vmatprep.mubr.f32.mxu0 0.0
        %v6259 = vand.u32 %v5652, 4294901760
        %6260 = vmatmul.mubr.f32.gmra.mxu0 %v6259
        %v6261 = vpop.f32.mrf.mxu0
        %v6262 = vadd.f32 %v6169, %v6261
        %v6263 = vpop.f32.mrf.mxu0
        %6264 = vmatprep.mubr.f32.mxu0 0.0
        %v6265 = vand.u32 %v5655, 4294901760
        %6266 = vmatmul.mubr.f32.gmra.mxu0 %v6265
        %v6267 = vpop.f32.mrf.mxu0
        %v6268 = vadd.f32 %v6175, %v6267
        %v6269 = vpop.f32.mrf.mxu0
        %6270 = vdwg.mxu0
        %v6271 = vmul.f32 %v4279, %v648
        %v6272 = vmul.f32 %v4282, %v649
        %v6273 = vmul.f32 %v4285, %v650
        %v6274 = vmul.f32 %v4288, %v651
        %6279 = vrot.lane.b32.xlu0 %v4974, 64
        %v6280 = vpop.permute.xlu0 %6279
        %6281 = vrot.lane.b32.xlu0 %v4980, 64
        %v6282 = vpop.permute.xlu0 %6281
        %6283 = vrot.lane.b32.xlu0 %v4986, 64
        %v6284 = vpop.permute.xlu0 %6283
        %6285 = vrot.lane.b32.xlu0 %v4992, 64
        %v6286 = vpop.permute.xlu0 %6285
        %v6291 = vadd.f32 %v6271, %v6280
        %v6292 = vadd.f32 %v6272, %v6282
        %v6293 = vadd.f32 %v6273, %v6284
        %v6294 = vadd.f32 %v6274, %v6286
        %6299 = vrot.lane.b32.xlu0 %v6250, 64
        %v6300 = vpop.permute.xlu0 %6299
        %6301 = vrot.lane.b32.xlu0 %v6256, 64
        %v6302 = vpop.permute.xlu0 %6301
        %6303 = vrot.lane.b32.xlu0 %v6262, 64
        %v6304 = vpop.permute.xlu0 %6303
        %6305 = vrot.lane.b32.xlu0 %v6268, 64
        %v6306 = vpop.permute.xlu0 %6305
        %v6311 = vadd.f32 %v6291, %v6300
        %v6312 = vadd.f32 %v6292, %v6302
        %v6313 = vadd.f32 %v6293, %v6304
        %v6314 = vadd.f32 %v6294, %v6306
        %vm6315 = vcmask 1048064
        %6316 = vst.msk [vmem:[%s581] sm:$0xff] %vm6315, %v6311
        %6317 = vst.msk [vmem:[%s581 + $0x8] sm:$0xff] %vm6315, %v6312
        %6318 = vst.msk [vmem:[%s581 + $0x10] sm:$0xff] %vm6315, %v6313
        %6319 = vst.msk [vmem:[%s581 + $0x18] sm:$0xff] %vm6315, %v6314
        %6320 = vrot.lane.b32.xlu0 %v4253, 64
        %v6321 = vpop.permute.xlu0 %6320
        %6322 = vrot.lane.b32.xlu0 %v4254, 64
        %v6323 = vpop.permute.xlu0 %6322
        %6324 = vrot.lane.b32.xlu0 %v4255, 64
        %v6325 = vpop.permute.xlu0 %6324
        %6326 = vrot.lane.b32.xlu0 %v4256, 64
        %v6327 = vpop.permute.xlu0 %6326
        %6328 = vrot.lane.b32.xlu0 %v4257, 64
        %v6329 = vpop.permute.xlu0 %6328
        %6330 = vrot.lane.b32.xlu0 %v4258, 64
        %v6331 = vpop.permute.xlu0 %6330
        %6332 = vrot.lane.b32.xlu0 %v4259, 64
        %v6333 = vpop.permute.xlu0 %6332
        %6334 = vrot.lane.b32.xlu0 %v4260, 64
        %v6335 = vpop.permute.xlu0 %6334
        %v6344 = vmul.f32 %v3385, %v6321
        %v6345 = vmul.f32 %v3385, %v6323
        %v6346 = vmul.f32 %v3385, %v6325
        %v6347 = vmul.f32 %v3385, %v6327
        %v6348 = vmul.f32 %v3385, %v6329
        %v6349 = vmul.f32 %v3385, %v6331
        %v6350 = vmul.f32 %v3385, %v6333
        %v6351 = vmul.f32 %v3385, %v6335
        %6352 = vxpose.xlu0.b32.start [1/16] %v5634, 128
        %6353 = vxpose.xlu0.b32.cont [2/16] %v5636, 128
        %6354 = vxpose.xlu0.b32.cont [3/16] %v5638, 128
        %6355 = vxpose.xlu0.b32.cont [4/16] %v5640, 128
        %6356 = vxpose.xlu0.b32.cont [5/16] 0.0, 128
        %6357 = vxpose.xlu0.b32.cont [6/16] 0.0, 128
        %6358 = vxpose.xlu0.b32.cont [7/16] 0.0, 128
        %6359 = vxpose.xlu0.b32.cont [8/16] 0.0, 128
        %6360 = vxpose.xlu0.b32.cont [9/16] 0.0, 128
        %6361 = vxpose.xlu0.b32.cont [10/16] 0.0, 128
        %6362 = vxpose.xlu0.b32.cont [11/16] 0.0, 128
        %6363 = vxpose.xlu0.b32.cont [12/16] 0.0, 128
        %6364 = vxpose.xlu0.b32.cont [13/16] 0.0, 128
        %6365 = vxpose.xlu0.b32.cont [14/16] 0.0, 128
        %6366 = vxpose.xlu0.b32.cont [15/16] 0.0, 128
        %6367 = vxpose.xlu0.b32.end [16/16] 0.0, 128
        %v6368 = vpop.trf.xlu0
        %v6369 = vpop.trf.xlu0
        %v6370 = vpop.trf.xlu0
        %v6371 = vpop.trf.xlu0
        %v6372 = vpop.trf.xlu0
        %v6373 = vpop.trf.xlu0
        %v6374 = vpop.trf.xlu0
        %v6375 = vpop.trf.xlu0
        %v6376 = vpop.trf.xlu0
        %v6377 = vpop.trf.xlu0
        %v6378 = vpop.trf.xlu0
        %v6379 = vpop.trf.xlu0
        %v6380 = vpop.trf.xlu0
        %v6381 = vpop.trf.xlu0
        %v6382 = vpop.trf.xlu0
        %v6383 = vpop.trf.xlu0
        %6388 = vrot.lane.b32.xlu0 %v1367, 64
        %v6389 = vpop.permute.xlu0 %6388
        %6390 = vrot.lane.b32.xlu0 %v1368, 64
        %v6391 = vpop.permute.xlu0 %6390
        %6392 = vrot.lane.b32.xlu0 %v1369, 64
        %v6393 = vpop.permute.xlu0 %6392
        %6394 = vrot.lane.b32.xlu0 %v1370, 64
        %v6395 = vpop.permute.xlu0 %6394
        %v6401 = vsel %vm692, %v6368, 0
        %v6404 = vsel %vm692, %v6369, 0
        %v6407 = vsel %vm692, %v6370, 0
        %v6410 = vsel %vm692, %v6371, 0
        %v6413 = vsel %vm692, %v6372, 0
        %v6416 = vsel %vm692, %v6373, 0
        %v6419 = vsel %vm692, %v6374, 0
        %v6422 = vsel %vm692, %v6375, 0
        %6424 = vmatprep.subr.mxu0 0.0
        %6425 = vmatpush1.msra.mxu0 0.0
        %6426 = vmatprep.subr.mxu0 0.0
        %6427 = vmatpush1.msra.mxu0 0.0
        %6428 = vmatprep.subr.mxu0 0.0
        %6429 = vmatpush1.msra.mxu0 0.0
        %6430 = vmatprep.subr.mxu0 0.0
        %6431 = vmatpush1.msra.mxu0 0.0
        %6432 = vmatprep.subr.mxu0 0.0
        %6433 = vmatpush1.msra.mxu0 0.0
        %6434 = vmatprep.subr.mxu0 0.0
        %6435 = vmatpush1.msra.mxu0 0.0
        %6436 = vmatprep.subr.mxu0 0.0
        %6437 = vmatpush1.msra.mxu0 0.0
        %6438 = vmatprep.subr.mxu0 0.0
        %6439 = vmatpush1.msra.mxu0 0.0
        %6440 = vmatprep.subr.mxu0 0.0
        %6441 = vmatpush1.msra.mxu0 0.0
        %6442 = vmatprep.subr.mxu0 0.0
        %6443 = vmatpush1.msra.mxu0 0.0
        %6444 = vmatprep.subr.mxu0 0.0
        %6445 = vmatpush1.msra.mxu0 0.0
        %6446 = vmatprep.subr.mxu0 0.0
        %6447 = vmatpush1.msra.mxu0 0.0
        %6448 = vmatprep.subr.mxu0 0.0
        %v6449 = vand.u32 %v6395, 4294901760
        %6450 = vmatpush1.msra.mxu0 %v6449
        %6451 = vmatprep.subr.mxu0 0.0
        %v6452 = vand.u32 %v6393, 4294901760
        %6453 = vmatpush1.msra.mxu0 %v6452
        %6454 = vmatprep.subr.mxu0 0.0
        %v6455 = vand.u32 %v6391, 4294901760
        %6456 = vmatpush1.msra.mxu0 %v6455
        %6457 = vmatprep.subr.mxu0 0.0
        %v6458 = vand.u32 %v6389, 4294901760
        %6459 = vmatpush1.msra.mxu0 %v6458
        %6460 = vmatprep.subr.mxu0 0.0
        %6461 = vmatpush2.msra.mxu0 0.0
        %6462 = vmatprep.subr.mxu0 0.0
        %6463 = vmatpush2.msra.mxu0 0.0
        %6464 = vmatprep.subr.mxu0 0.0
        %6465 = vmatpush2.msra.mxu0 0.0
        %6466 = vmatprep.subr.mxu0 0.0
        %6467 = vmatpush2.msra.mxu0 0.0
        %6468 = vmatprep.subr.mxu0 0.0
        %6469 = vmatpush2.msra.mxu0 0.0
        %6470 = vmatprep.subr.mxu0 0.0
        %6471 = vmatpush2.msra.mxu0 0.0
        %6472 = vmatprep.subr.mxu0 0.0
        %6473 = vmatpush2.msra.mxu0 0.0
        %6474 = vmatprep.subr.mxu0 0.0
        %6475 = vmatpush2.msra.mxu0 0.0
        %6476 = vmatprep.subr.mxu0 0.0
        %6477 = vmatpush2.msra.mxu0 0.0
        %6478 = vmatprep.subr.mxu0 0.0
        %6479 = vmatpush2.msra.mxu0 0.0
        %6480 = vmatprep.subr.mxu0 0.0
        %6481 = vmatpush2.msra.mxu0 0.0
        %6482 = vmatprep.subr.mxu0 0.0
        %6483 = vmatpush2.msra.mxu0 0.0
        %6484 = vmatprep.subr.mxu0 0.0
        %6485 = vmatpush2.msra.mxu0 0.0
        %6486 = vmatprep.subr.mxu0 0.0
        %6487 = vmatpush2.msra.mxu0 0.0
        %6488 = vmatprep.subr.mxu0 0.0
        %6489 = vmatpush2.msra.mxu0 0.0
        %6490 = vmatprep.subr.mxu0 0.0
        %6491 = vmatpush2.msra.mxu0 0.0
        %6492 = vmatprep.mubr.f32.mxu0 0.0
        %v6493 = vand.u32 %v6401, 4294901760
        %v6494 = vsub.f32 %v6401, %v6493
        %v6495 = vand.u32 %v6494, 4294901760
        %v6496 = vsub.f32 %v6494, %v6495
        %v6497 = vand.u32 %v6496, 4294901760
        %6498 = vmatmul.mubr.f32.gmra.mxu0 %v6497
        %v6499 = vpop.f32.mrf.mxu0
        %v6500 = vadd.f32 0.0, %v6499
        %v6501 = vpop.f32.mrf.mxu0
        %6502 = vmatprep.mubr.f32.mxu0 0.0
        %v6503 = vand.u32 %v6404, 4294901760
        %v6504 = vsub.f32 %v6404, %v6503
        %v6505 = vand.u32 %v6504, 4294901760
        %v6506 = vsub.f32 %v6504, %v6505
        %v6507 = vand.u32 %v6506, 4294901760
        %6508 = vmatmul.mubr.f32.gmra.mxu0 %v6507
        %v6509 = vpop.f32.mrf.mxu0
        %v6510 = vadd.f32 0.0, %v6509
        %v6511 = vpop.f32.mrf.mxu0
        %6512 = vmatprep.mubr.f32.mxu0 0.0
        %v6513 = vand.u32 %v6407, 4294901760
        %v6514 = vsub.f32 %v6407, %v6513
        %v6515 = vand.u32 %v6514, 4294901760
        %v6516 = vsub.f32 %v6514, %v6515
        %v6517 = vand.u32 %v6516, 4294901760
        %6518 = vmatmul.mubr.f32.gmra.mxu0 %v6517
        %v6519 = vpop.f32.mrf.mxu0
        %v6520 = vadd.f32 0.0, %v6519
        %v6521 = vpop.f32.mrf.mxu0
        %6522 = vmatprep.mubr.f32.mxu0 0.0
        %v6523 = vand.u32 %v6410, 4294901760
        %v6524 = vsub.f32 %v6410, %v6523
        %v6525 = vand.u32 %v6524, 4294901760
        %v6526 = vsub.f32 %v6524, %v6525
        %v6527 = vand.u32 %v6526, 4294901760
        %6528 = vmatmul.mubr.f32.gmra.mxu0 %v6527
        %v6529 = vpop.f32.mrf.mxu0
        %v6530 = vadd.f32 0.0, %v6529
        %v6531 = vpop.f32.mrf.mxu0
        %6532 = vmatprep.mubr.f32.mxu0 0.0
        %v6533 = vand.u32 %v6413, 4294901760
        %v6534 = vsub.f32 %v6413, %v6533
        %v6535 = vand.u32 %v6534, 4294901760
        %v6536 = vsub.f32 %v6534, %v6535
        %v6537 = vand.u32 %v6536, 4294901760
        %6538 = vmatmul.mubr.f32.gmra.mxu0 %v6537
        %v6539 = vpop.f32.mrf.mxu0
        %v6540 = vadd.f32 0.0, %v6539
        %v6541 = vpop.f32.mrf.mxu0
        %6542 = vmatprep.mubr.f32.mxu0 0.0
        %v6543 = vand.u32 %v6416, 4294901760
        %v6544 = vsub.f32 %v6416, %v6543
        %v6545 = vand.u32 %v6544, 4294901760
        %v6546 = vsub.f32 %v6544, %v6545
        %v6547 = vand.u32 %v6546, 4294901760
        %6548 = vmatmul.mubr.f32.gmra.mxu0 %v6547
        %v6549 = vpop.f32.mrf.mxu0
        %v6550 = vadd.f32 0.0, %v6549
        %v6551 = vpop.f32.mrf.mxu0
        %6552 = vmatprep.mubr.f32.mxu0 0.0
        %v6553 = vand.u32 %v6419, 4294901760
        %v6554 = vsub.f32 %v6419, %v6553
        %v6555 = vand.u32 %v6554, 4294901760
        %v6556 = vsub.f32 %v6554, %v6555
        %v6557 = vand.u32 %v6556, 4294901760
        %6558 = vmatmul.mubr.f32.gmra.mxu0 %v6557
        %v6559 = vpop.f32.mrf.mxu0
        %v6560 = vadd.f32 0.0, %v6559
        %v6561 = vpop.f32.mrf.mxu0
        %6562 = vmatprep.mubr.f32.mxu0 0.0
        %v6563 = vand.u32 %v6422, 4294901760
        %v6564 = vsub.f32 %v6422, %v6563
        %v6565 = vand.u32 %v6564, 4294901760
        %v6566 = vsub.f32 %v6564, %v6565
        %v6567 = vand.u32 %v6566, 4294901760
        %6568 = vmatmul.mubr.f32.gmra.mxu0 %v6567
        %v6569 = vpop.f32.mrf.mxu0
        %v6570 = vadd.f32 0.0, %v6569
        %v6571 = vpop.f32.mrf.mxu0
        %6572 = vdwg.mxu0
        %6573 = vmatprep.subr.mxu0 0.0
        %6574 = vmatpush1.msra.mxu0 0.0
        %6575 = vmatprep.subr.mxu0 0.0
        %6576 = vmatpush1.msra.mxu0 0.0
        %6577 = vmatprep.subr.mxu0 0.0
        %6578 = vmatpush1.msra.mxu0 0.0
        %6579 = vmatprep.subr.mxu0 0.0
        %6580 = vmatpush1.msra.mxu0 0.0
        %6581 = vmatprep.subr.mxu0 0.0
        %6582 = vmatpush1.msra.mxu0 0.0
        %6583 = vmatprep.subr.mxu0 0.0
        %6584 = vmatpush1.msra.mxu0 0.0
        %6585 = vmatprep.subr.mxu0 0.0
        %6586 = vmatpush1.msra.mxu0 0.0
        %6587 = vmatprep.subr.mxu0 0.0
        %6588 = vmatpush1.msra.mxu0 0.0
        %6589 = vmatprep.subr.mxu0 0.0
        %6590 = vmatpush1.msra.mxu0 0.0
        %6591 = vmatprep.subr.mxu0 0.0
        %6592 = vmatpush1.msra.mxu0 0.0
        %6593 = vmatprep.subr.mxu0 0.0
        %6594 = vmatpush1.msra.mxu0 0.0
        %6595 = vmatprep.subr.mxu0 0.0
        %6596 = vmatpush1.msra.mxu0 0.0
        %6597 = vmatprep.subr.mxu0 0.0
        %v6598 = vand.u32 %v6395, 4294901760
        %v6599 = vsub.f32 %v6395, %v6598
        %v6600 = vand.u32 %v6599, 4294901760
        %v6601 = vsub.f32 %v6599, %v6600
        %v6602 = vand.u32 %v6601, 4294901760
        %6603 = vmatpush1.msra.mxu0 %v6602
        %6604 = vmatprep.subr.mxu0 0.0
        %v6605 = vand.u32 %v6393, 4294901760
        %v6606 = vsub.f32 %v6393, %v6605
        %v6607 = vand.u32 %v6606, 4294901760
        %v6608 = vsub.f32 %v6606, %v6607
        %v6609 = vand.u32 %v6608, 4294901760
        %6610 = vmatpush1.msra.mxu0 %v6609
        %6611 = vmatprep.subr.mxu0 0.0
        %v6612 = vand.u32 %v6391, 4294901760
        %v6613 = vsub.f32 %v6391, %v6612
        %v6614 = vand.u32 %v6613, 4294901760
        %v6615 = vsub.f32 %v6613, %v6614
        %v6616 = vand.u32 %v6615, 4294901760
        %6617 = vmatpush1.msra.mxu0 %v6616
        %6618 = vmatprep.subr.mxu0 0.0
        %v6619 = vand.u32 %v6389, 4294901760
        %v6620 = vsub.f32 %v6389, %v6619
        %v6621 = vand.u32 %v6620, 4294901760
        %v6622 = vsub.f32 %v6620, %v6621
        %v6623 = vand.u32 %v6622, 4294901760
        %6624 = vmatpush1.msra.mxu0 %v6623
        %6625 = vmatprep.subr.mxu0 0.0
        %6626 = vmatpush2.msra.mxu0 0.0
        %6627 = vmatprep.subr.mxu0 0.0
        %6628 = vmatpush2.msra.mxu0 0.0
        %6629 = vmatprep.subr.mxu0 0.0
        %6630 = vmatpush2.msra.mxu0 0.0
        %6631 = vmatprep.subr.mxu0 0.0
        %6632 = vmatpush2.msra.mxu0 0.0
        %6633 = vmatprep.subr.mxu0 0.0
        %6634 = vmatpush2.msra.mxu0 0.0
        %6635 = vmatprep.subr.mxu0 0.0
        %6636 = vmatpush2.msra.mxu0 0.0
        %6637 = vmatprep.subr.mxu0 0.0
        %6638 = vmatpush2.msra.mxu0 0.0
        %6639 = vmatprep.subr.mxu0 0.0
        %6640 = vmatpush2.msra.mxu0 0.0
        %6641 = vmatprep.subr.mxu0 0.0
        %6642 = vmatpush2.msra.mxu0 0.0
        %6643 = vmatprep.subr.mxu0 0.0
        %6644 = vmatpush2.msra.mxu0 0.0
        %6645 = vmatprep.subr.mxu0 0.0
        %6646 = vmatpush2.msra.mxu0 0.0
        %6647 = vmatprep.subr.mxu0 0.0
        %6648 = vmatpush2.msra.mxu0 0.0
        %6649 = vmatprep.subr.mxu0 0.0
        %6650 = vmatpush2.msra.mxu0 0.0
        %6651 = vmatprep.subr.mxu0 0.0
        %6652 = vmatpush2.msra.mxu0 0.0
        %6653 = vmatprep.subr.mxu0 0.0
        %6654 = vmatpush2.msra.mxu0 0.0
        %6655 = vmatprep.subr.mxu0 0.0
        %6656 = vmatpush2.msra.mxu0 0.0
        %6657 = vmatprep.mubr.f32.mxu0 0.0
        %v6658 = vand.u32 %v6401, 4294901760
        %6659 = vmatmul.mubr.f32.gmra.mxu0 %v6658
        %v6660 = vpop.f32.mrf.mxu0
        %v6661 = vadd.f32 %v6500, %v6660
        %v6662 = vpop.f32.mrf.mxu0
        %6663 = vmatprep.mubr.f32.mxu0 0.0
        %v6664 = vand.u32 %v6404, 4294901760
        %6665 = vmatmul.mubr.f32.gmra.mxu0 %v6664
        %v6666 = vpop.f32.mrf.mxu0
        %v6667 = vadd.f32 %v6510, %v6666
        %v6668 = vpop.f32.mrf.mxu0
        %6669 = vmatprep.mubr.f32.mxu0 0.0
        %v6670 = vand.u32 %v6407, 4294901760
        %6671 = vmatmul.mubr.f32.gmra.mxu0 %v6670
        %v6672 = vpop.f32.mrf.mxu0
        %v6673 = vadd.f32 %v6520, %v6672
        %v6674 = vpop.f32.mrf.mxu0
        %6675 = vmatprep.mubr.f32.mxu0 0.0
        %v6676 = vand.u32 %v6410, 4294901760
        %6677 = vmatmul.mubr.f32.gmra.mxu0 %v6676
        %v6678 = vpop.f32.mrf.mxu0
        %v6679 = vadd.f32 %v6530, %v6678
        %v6680 = vpop.f32.mrf.mxu0
        %6681 = vmatprep.mubr.f32.mxu0 0.0
        %v6682 = vand.u32 %v6413, 4294901760
        %6683 = vmatmul.mubr.f32.gmra.mxu0 %v6682
        %v6684 = vpop.f32.mrf.mxu0
        %v6685 = vadd.f32 %v6540, %v6684
        %v6686 = vpop.f32.mrf.mxu0
        %6687 = vmatprep.mubr.f32.mxu0 0.0
        %v6688 = vand.u32 %v6416, 4294901760
        %6689 = vmatmul.mubr.f32.gmra.mxu0 %v6688
        %v6690 = vpop.f32.mrf.mxu0
        %v6691 = vadd.f32 %v6550, %v6690
        %v6692 = vpop.f32.mrf.mxu0
        %6693 = vmatprep.mubr.f32.mxu0 0.0
        %v6694 = vand.u32 %v6419, 4294901760
        %6695 = vmatmul.mubr.f32.gmra.mxu0 %v6694
        %v6696 = vpop.f32.mrf.mxu0
        %v6697 = vadd.f32 %v6560, %v6696
        %v6698 = vpop.f32.mrf.mxu0
        %6699 = vmatprep.mubr.f32.mxu0 0.0
        %v6700 = vand.u32 %v6422, 4294901760
        %6701 = vmatmul.mubr.f32.gmra.mxu0 %v6700
        %v6702 = vpop.f32.mrf.mxu0
        %v6703 = vadd.f32 %v6570, %v6702
        %v6704 = vpop.f32.mrf.mxu0
        %6705 = vdwg.mxu0
        %6706 = vmatprep.subr.mxu0 0.0
        %6707 = vmatpush1.msra.mxu0 0.0
        %6708 = vmatprep.subr.mxu0 0.0
        %6709 = vmatpush1.msra.mxu0 0.0
        %6710 = vmatprep.subr.mxu0 0.0
        %6711 = vmatpush1.msra.mxu0 0.0
        %6712 = vmatprep.subr.mxu0 0.0
        %6713 = vmatpush1.msra.mxu0 0.0
        %6714 = vmatprep.subr.mxu0 0.0
        %6715 = vmatpush1.msra.mxu0 0.0
        %6716 = vmatprep.subr.mxu0 0.0
        %6717 = vmatpush1.msra.mxu0 0.0
        %6718 = vmatprep.subr.mxu0 0.0
        %6719 = vmatpush1.msra.mxu0 0.0
        %6720 = vmatprep.subr.mxu0 0.0
        %6721 = vmatpush1.msra.mxu0 0.0
        %6722 = vmatprep.subr.mxu0 0.0
        %6723 = vmatpush1.msra.mxu0 0.0
        %6724 = vmatprep.subr.mxu0 0.0
        %6725 = vmatpush1.msra.mxu0 0.0
        %6726 = vmatprep.subr.mxu0 0.0
        %6727 = vmatpush1.msra.mxu0 0.0
        %6728 = vmatprep.subr.mxu0 0.0
        %6729 = vmatpush1.msra.mxu0 0.0
        %6730 = vmatprep.subr.mxu0 0.0
        %v6731 = vand.u32 %v6395, 4294901760
        %v6732 = vsub.f32 %v6395, %v6731
        %6733 = vmatpush1.msra.mxu0 %v6732
        %6734 = vmatprep.subr.mxu0 0.0
        %v6735 = vand.u32 %v6393, 4294901760
        %v6736 = vsub.f32 %v6393, %v6735
        %6737 = vmatpush1.msra.mxu0 %v6736
        %6738 = vmatprep.subr.mxu0 0.0
        %v6739 = vand.u32 %v6391, 4294901760
        %v6740 = vsub.f32 %v6391, %v6739
        %6741 = vmatpush1.msra.mxu0 %v6740
        %6742 = vmatprep.subr.mxu0 0.0
        %v6743 = vand.u32 %v6389, 4294901760
        %v6744 = vsub.f32 %v6389, %v6743
        %6745 = vmatpush1.msra.mxu0 %v6744
        %6746 = vmatprep.subr.mxu0 0.0
        %6747 = vmatpush2.msra.mxu0 0.0
        %6748 = vmatprep.subr.mxu0 0.0
        %6749 = vmatpush2.msra.mxu0 0.0
        %6750 = vmatprep.subr.mxu0 0.0
        %6751 = vmatpush2.msra.mxu0 0.0
        %6752 = vmatprep.subr.mxu0 0.0
        %6753 = vmatpush2.msra.mxu0 0.0
        %6754 = vmatprep.subr.mxu0 0.0
        %6755 = vmatpush2.msra.mxu0 0.0
        %6756 = vmatprep.subr.mxu0 0.0
        %6757 = vmatpush2.msra.mxu0 0.0
        %6758 = vmatprep.subr.mxu0 0.0
        %6759 = vmatpush2.msra.mxu0 0.0
        %6760 = vmatprep.subr.mxu0 0.0
        %6761 = vmatpush2.msra.mxu0 0.0
        %6762 = vmatprep.subr.mxu0 0.0
        %6763 = vmatpush2.msra.mxu0 0.0
        %6764 = vmatprep.subr.mxu0 0.0
        %6765 = vmatpush2.msra.mxu0 0.0
        %6766 = vmatprep.subr.mxu0 0.0
        %6767 = vmatpush2.msra.mxu0 0.0
        %6768 = vmatprep.subr.mxu0 0.0
        %6769 = vmatpush2.msra.mxu0 0.0
        %6770 = vmatprep.subr.mxu0 0.0
        %6771 = vmatpush2.msra.mxu0 0.0
        %6772 = vmatprep.subr.mxu0 0.0
        %6773 = vmatpush2.msra.mxu0 0.0
        %6774 = vmatprep.subr.mxu0 0.0
        %6775 = vmatpush2.msra.mxu0 0.0
        %6776 = vmatprep.subr.mxu0 0.0
        %6777 = vmatpush2.msra.mxu0 0.0
        %6778 = vmatprep.mubr.f32.mxu0 0.0
        %v6779 = vand.u32 %v6401, 4294901760
        %v6780 = vsub.f32 %v6401, %v6779
        %6781 = vmatmul.mubr.f32.gmra.mxu0 %v6780
        %v6782 = vpop.f32.mrf.mxu0
        %v6783 = vadd.f32 %v6661, %v6782
        %v6784 = vpop.f32.mrf.mxu0
        %6785 = vmatprep.mubr.f32.mxu0 0.0
        %v6786 = vand.u32 %v6404, 4294901760
        %v6787 = vsub.f32 %v6404, %v6786
        %6788 = vmatmul.mubr.f32.gmra.mxu0 %v6787
        %v6789 = vpop.f32.mrf.mxu0
        %v6790 = vadd.f32 %v6667, %v6789
        %v6791 = vpop.f32.mrf.mxu0
        %6792 = vmatprep.mubr.f32.mxu0 0.0
        %v6793 = vand.u32 %v6407, 4294901760
        %v6794 = vsub.f32 %v6407, %v6793
        %6795 = vmatmul.mubr.f32.gmra.mxu0 %v6794
        %v6796 = vpop.f32.mrf.mxu0
        %v6797 = vadd.f32 %v6673, %v6796
        %v6798 = vpop.f32.mrf.mxu0
        %6799 = vmatprep.mubr.f32.mxu0 0.0
        %v6800 = vand.u32 %v6410, 4294901760
        %v6801 = vsub.f32 %v6410, %v6800
        %6802 = vmatmul.mubr.f32.gmra.mxu0 %v6801
        %v6803 = vpop.f32.mrf.mxu0
        %v6804 = vadd.f32 %v6679, %v6803
        %v6805 = vpop.f32.mrf.mxu0
        %6806 = vmatprep.mubr.f32.mxu0 0.0
        %v6807 = vand.u32 %v6413, 4294901760
        %v6808 = vsub.f32 %v6413, %v6807
        %6809 = vmatmul.mubr.f32.gmra.mxu0 %v6808
        %v6810 = vpop.f32.mrf.mxu0
        %v6811 = vadd.f32 %v6685, %v6810
        %v6812 = vpop.f32.mrf.mxu0
        %6813 = vmatprep.mubr.f32.mxu0 0.0
        %v6814 = vand.u32 %v6416, 4294901760
        %v6815 = vsub.f32 %v6416, %v6814
        %6816 = vmatmul.mubr.f32.gmra.mxu0 %v6815
        %v6817 = vpop.f32.mrf.mxu0
        %v6818 = vadd.f32 %v6691, %v6817
        %v6819 = vpop.f32.mrf.mxu0
        %6820 = vmatprep.mubr.f32.mxu0 0.0
        %v6821 = vand.u32 %v6419, 4294901760
        %v6822 = vsub.f32 %v6419, %v6821
        %6823 = vmatmul.mubr.f32.gmra.mxu0 %v6822
        %v6824 = vpop.f32.mrf.mxu0
        %v6825 = vadd.f32 %v6697, %v6824
        %v6826 = vpop.f32.mrf.mxu0
        %6827 = vmatprep.mubr.f32.mxu0 0.0
        %v6828 = vand.u32 %v6422, 4294901760
        %v6829 = vsub.f32 %v6422, %v6828
        %6830 = vmatmul.mubr.f32.gmra.mxu0 %v6829
        %v6831 = vpop.f32.mrf.mxu0
        %v6832 = vadd.f32 %v6703, %v6831
        %v6833 = vpop.f32.mrf.mxu0
        %6834 = vdwg.mxu0
        %6835 = vmatprep.subr.mxu0 0.0
        %6836 = vmatpush1.msra.mxu0 0.0
        %6837 = vmatprep.subr.mxu0 0.0
        %6838 = vmatpush1.msra.mxu0 0.0
        %6839 = vmatprep.subr.mxu0 0.0
        %6840 = vmatpush1.msra.mxu0 0.0
        %6841 = vmatprep.subr.mxu0 0.0
        %6842 = vmatpush1.msra.mxu0 0.0
        %6843 = vmatprep.subr.mxu0 0.0
        %6844 = vmatpush1.msra.mxu0 0.0
        %6845 = vmatprep.subr.mxu0 0.0
        %6846 = vmatpush1.msra.mxu0 0.0
        %6847 = vmatprep.subr.mxu0 0.0
        %6848 = vmatpush1.msra.mxu0 0.0
        %6849 = vmatprep.subr.mxu0 0.0
        %6850 = vmatpush1.msra.mxu0 0.0
        %6851 = vmatprep.subr.mxu0 0.0
        %6852 = vmatpush1.msra.mxu0 0.0
        %6853 = vmatprep.subr.mxu0 0.0
        %6854 = vmatpush1.msra.mxu0 0.0
        %6855 = vmatprep.subr.mxu0 0.0
        %6856 = vmatpush1.msra.mxu0 0.0
        %6857 = vmatprep.subr.mxu0 0.0
        %6858 = vmatpush1.msra.mxu0 0.0
        %6859 = vmatprep.subr.mxu0 0.0
        %v6860 = vand.u32 %v6395, 4294901760
        %6861 = vmatpush1.msra.mxu0 %v6860
        %6862 = vmatprep.subr.mxu0 0.0
        %v6863 = vand.u32 %v6393, 4294901760
        %6864 = vmatpush1.msra.mxu0 %v6863
        %6865 = vmatprep.subr.mxu0 0.0
        %v6866 = vand.u32 %v6391, 4294901760
        %6867 = vmatpush1.msra.mxu0 %v6866
        %6868 = vmatprep.subr.mxu0 0.0
        %v6869 = vand.u32 %v6389, 4294901760
        %6870 = vmatpush1.msra.mxu0 %v6869
        %6871 = vmatprep.subr.mxu0 0.0
        %6872 = vmatpush2.msra.mxu0 0.0
        %6873 = vmatprep.subr.mxu0 0.0
        %6874 = vmatpush2.msra.mxu0 0.0
        %6875 = vmatprep.subr.mxu0 0.0
        %6876 = vmatpush2.msra.mxu0 0.0
        %6877 = vmatprep.subr.mxu0 0.0
        %6878 = vmatpush2.msra.mxu0 0.0
        %6879 = vmatprep.subr.mxu0 0.0
        %6880 = vmatpush2.msra.mxu0 0.0
        %6881 = vmatprep.subr.mxu0 0.0
        %6882 = vmatpush2.msra.mxu0 0.0
        %6883 = vmatprep.subr.mxu0 0.0
        %6884 = vmatpush2.msra.mxu0 0.0
        %6885 = vmatprep.subr.mxu0 0.0
        %6886 = vmatpush2.msra.mxu0 0.0
        %6887 = vmatprep.subr.mxu0 0.0
        %6888 = vmatpush2.msra.mxu0 0.0
        %6889 = vmatprep.subr.mxu0 0.0
        %6890 = vmatpush2.msra.mxu0 0.0
        %6891 = vmatprep.subr.mxu0 0.0
        %6892 = vmatpush2.msra.mxu0 0.0
        %6893 = vmatprep.subr.mxu0 0.0
        %6894 = vmatpush2.msra.mxu0 0.0
        %6895 = vmatprep.subr.mxu0 0.0
        %6896 = vmatpush2.msra.mxu0 0.0
        %6897 = vmatprep.subr.mxu0 0.0
        %6898 = vmatpush2.msra.mxu0 0.0
        %6899 = vmatprep.subr.mxu0 0.0
        %6900 = vmatpush2.msra.mxu0 0.0
        %6901 = vmatprep.subr.mxu0 0.0
        %6902 = vmatpush2.msra.mxu0 0.0
        %6903 = vmatprep.mubr.f32.mxu0 0.0
        %v6904 = vand.u32 %v6401, 4294901760
        %v6905 = vsub.f32 %v6401, %v6904
        %v6906 = vand.u32 %v6905, 4294901760
        %6907 = vmatmul.mubr.f32.gmra.mxu0 %v6906
        %v6908 = vpop.f32.mrf.mxu0
        %v6909 = vadd.f32 %v6783, %v6908
        %v6910 = vpop.f32.mrf.mxu0
        %6911 = vmatprep.mubr.f32.mxu0 0.0
        %v6912 = vand.u32 %v6404, 4294901760
        %v6913 = vsub.f32 %v6404, %v6912
        %v6914 = vand.u32 %v6913, 4294901760
        %6915 = vmatmul.mubr.f32.gmra.mxu0 %v6914
        %v6916 = vpop.f32.mrf.mxu0
        %v6917 = vadd.f32 %v6790, %v6916
        %v6918 = vpop.f32.mrf.mxu0
        %6919 = vmatprep.mubr.f32.mxu0 0.0
        %v6920 = vand.u32 %v6407, 4294901760
        %v6921 = vsub.f32 %v6407, %v6920
        %v6922 = vand.u32 %v6921, 4294901760
        %6923 = vmatmul.mubr.f32.gmra.mxu0 %v6922
        %v6924 = vpop.f32.mrf.mxu0
        %v6925 = vadd.f32 %v6797, %v6924
        %v6926 = vpop.f32.mrf.mxu0
        %6927 = vmatprep.mubr.f32.mxu0 0.0
        %v6928 = vand.u32 %v6410, 4294901760
        %v6929 = vsub.f32 %v6410, %v6928
        %v6930 = vand.u32 %v6929, 4294901760
        %6931 = vmatmul.mubr.f32.gmra.mxu0 %v6930
        %v6932 = vpop.f32.mrf.mxu0
        %v6933 = vadd.f32 %v6804, %v6932
        %v6934 = vpop.f32.mrf.mxu0
        %6935 = vmatprep.mubr.f32.mxu0 0.0
        %v6936 = vand.u32 %v6413, 4294901760
        %v6937 = vsub.f32 %v6413, %v6936
        %v6938 = vand.u32 %v6937, 4294901760
        %6939 = vmatmul.mubr.f32.gmra.mxu0 %v6938
        %v6940 = vpop.f32.mrf.mxu0
        %v6941 = vadd.f32 %v6811, %v6940
        %v6942 = vpop.f32.mrf.mxu0
        %6943 = vmatprep.mubr.f32.mxu0 0.0
        %v6944 = vand.u32 %v6416, 4294901760
        %v6945 = vsub.f32 %v6416, %v6944
        %v6946 = vand.u32 %v6945, 4294901760
        %6947 = vmatmul.mubr.f32.gmra.mxu0 %v6946
        %v6948 = vpop.f32.mrf.mxu0
        %v6949 = vadd.f32 %v6818, %v6948
        %v6950 = vpop.f32.mrf.mxu0
        %6951 = vmatprep.mubr.f32.mxu0 0.0
        %v6952 = vand.u32 %v6419, 4294901760
        %v6953 = vsub.f32 %v6419, %v6952
        %v6954 = vand.u32 %v6953, 4294901760
        %6955 = vmatmul.mubr.f32.gmra.mxu0 %v6954
        %v6956 = vpop.f32.mrf.mxu0
        %v6957 = vadd.f32 %v6825, %v6956
        %v6958 = vpop.f32.mrf.mxu0
        %6959 = vmatprep.mubr.f32.mxu0 0.0
        %v6960 = vand.u32 %v6422, 4294901760
        %v6961 = vsub.f32 %v6422, %v6960
        %v6962 = vand.u32 %v6961, 4294901760
        %6963 = vmatmul.mubr.f32.gmra.mxu0 %v6962
        %v6964 = vpop.f32.mrf.mxu0
        %v6965 = vadd.f32 %v6832, %v6964
        %v6966 = vpop.f32.mrf.mxu0
        %6967 = vdwg.mxu0
        %6968 = vmatprep.subr.mxu0 0.0
        %6969 = vmatpush1.msra.mxu0 0.0
        %6970 = vmatprep.subr.mxu0 0.0
        %6971 = vmatpush1.msra.mxu0 0.0
        %6972 = vmatprep.subr.mxu0 0.0
        %6973 = vmatpush1.msra.mxu0 0.0
        %6974 = vmatprep.subr.mxu0 0.0
        %6975 = vmatpush1.msra.mxu0 0.0
        %6976 = vmatprep.subr.mxu0 0.0
        %6977 = vmatpush1.msra.mxu0 0.0
        %6978 = vmatprep.subr.mxu0 0.0
        %6979 = vmatpush1.msra.mxu0 0.0
        %6980 = vmatprep.subr.mxu0 0.0
        %6981 = vmatpush1.msra.mxu0 0.0
        %6982 = vmatprep.subr.mxu0 0.0
        %6983 = vmatpush1.msra.mxu0 0.0
        %6984 = vmatprep.subr.mxu0 0.0
        %6985 = vmatpush1.msra.mxu0 0.0
        %6986 = vmatprep.subr.mxu0 0.0
        %6987 = vmatpush1.msra.mxu0 0.0
        %6988 = vmatprep.subr.mxu0 0.0
        %6989 = vmatpush1.msra.mxu0 0.0
        %6990 = vmatprep.subr.mxu0 0.0
        %6991 = vmatpush1.msra.mxu0 0.0
        %6992 = vmatprep.subr.mxu0 0.0
        %v6993 = vand.u32 %v6395, 4294901760
        %v6994 = vsub.f32 %v6395, %v6993
        %v6995 = vand.u32 %v6994, 4294901760
        %6996 = vmatpush1.msra.mxu0 %v6995
        %6997 = vmatprep.subr.mxu0 0.0
        %v6998 = vand.u32 %v6393, 4294901760
        %v6999 = vsub.f32 %v6393, %v6998
        %v7000 = vand.u32 %v6999, 4294901760
        %7001 = vmatpush1.msra.mxu0 %v7000
        %7002 = vmatprep.subr.mxu0 0.0
        %v7003 = vand.u32 %v6391, 4294901760
        %v7004 = vsub.f32 %v6391, %v7003
        %v7005 = vand.u32 %v7004, 4294901760
        %7006 = vmatpush1.msra.mxu0 %v7005
        %7007 = vmatprep.subr.mxu0 0.0
        %v7008 = vand.u32 %v6389, 4294901760
        %v7009 = vsub.f32 %v6389, %v7008
        %v7010 = vand.u32 %v7009, 4294901760
        %7011 = vmatpush1.msra.mxu0 %v7010
        %7012 = vmatprep.subr.mxu0 0.0
        %7013 = vmatpush2.msra.mxu0 0.0
        %7014 = vmatprep.subr.mxu0 0.0
        %7015 = vmatpush2.msra.mxu0 0.0
        %7016 = vmatprep.subr.mxu0 0.0
        %7017 = vmatpush2.msra.mxu0 0.0
        %7018 = vmatprep.subr.mxu0 0.0
        %7019 = vmatpush2.msra.mxu0 0.0
        %7020 = vmatprep.subr.mxu0 0.0
        %7021 = vmatpush2.msra.mxu0 0.0
        %7022 = vmatprep.subr.mxu0 0.0
        %7023 = vmatpush2.msra.mxu0 0.0
        %7024 = vmatprep.subr.mxu0 0.0
        %7025 = vmatpush2.msra.mxu0 0.0
        %7026 = vmatprep.subr.mxu0 0.0
        %7027 = vmatpush2.msra.mxu0 0.0
        %7028 = vmatprep.subr.mxu0 0.0
        %7029 = vmatpush2.msra.mxu0 0.0
        %7030 = vmatprep.subr.mxu0 0.0
        %7031 = vmatpush2.msra.mxu0 0.0
        %7032 = vmatprep.subr.mxu0 0.0
        %7033 = vmatpush2.msra.mxu0 0.0
        %7034 = vmatprep.subr.mxu0 0.0
        %7035 = vmatpush2.msra.mxu0 0.0
        %7036 = vmatprep.subr.mxu0 0.0
        %7037 = vmatpush2.msra.mxu0 0.0
        %7038 = vmatprep.subr.mxu0 0.0
        %7039 = vmatpush2.msra.mxu0 0.0
        %7040 = vmatprep.subr.mxu0 0.0
        %7041 = vmatpush2.msra.mxu0 0.0
        %7042 = vmatprep.subr.mxu0 0.0
        %7043 = vmatpush2.msra.mxu0 0.0
        %7044 = vmatprep.mubr.f32.mxu0 0.0
        %v7045 = vand.u32 %v6401, 4294901760
        %7046 = vmatmul.mubr.f32.gmra.mxu0 %v7045
        %v7047 = vpop.f32.mrf.mxu0
        %v7048 = vadd.f32 %v6909, %v7047
        %v7049 = vpop.f32.mrf.mxu0
        %7050 = vmatprep.mubr.f32.mxu0 0.0
        %v7051 = vand.u32 %v6404, 4294901760
        %7052 = vmatmul.mubr.f32.gmra.mxu0 %v7051
        %v7053 = vpop.f32.mrf.mxu0
        %v7054 = vadd.f32 %v6917, %v7053
        %v7055 = vpop.f32.mrf.mxu0
        %7056 = vmatprep.mubr.f32.mxu0 0.0
        %v7057 = vand.u32 %v6407, 4294901760
        %7058 = vmatmul.mubr.f32.gmra.mxu0 %v7057
        %v7059 = vpop.f32.mrf.mxu0
        %v7060 = vadd.f32 %v6925, %v7059
        %v7061 = vpop.f32.mrf.mxu0
        %7062 = vmatprep.mubr.f32.mxu0 0.0
        %v7063 = vand.u32 %v6410, 4294901760
        %7064 = vmatmul.mubr.f32.gmra.mxu0 %v7063
        %v7065 = vpop.f32.mrf.mxu0
        %v7066 = vadd.f32 %v6933, %v7065
        %v7067 = vpop.f32.mrf.mxu0
        %7068 = vmatprep.mubr.f32.mxu0 0.0
        %v7069 = vand.u32 %v6413, 4294901760
        %7070 = vmatmul.mubr.f32.gmra.mxu0 %v7069
        %v7071 = vpop.f32.mrf.mxu0
        %v7072 = vadd.f32 %v6941, %v7071
        %v7073 = vpop.f32.mrf.mxu0
        %7074 = vmatprep.mubr.f32.mxu0 0.0
        %v7075 = vand.u32 %v6416, 4294901760
        %7076 = vmatmul.mubr.f32.gmra.mxu0 %v7075
        %v7077 = vpop.f32.mrf.mxu0
        %v7078 = vadd.f32 %v6949, %v7077
        %v7079 = vpop.f32.mrf.mxu0
        %7080 = vmatprep.mubr.f32.mxu0 0.0
        %v7081 = vand.u32 %v6419, 4294901760
        %7082 = vmatmul.mubr.f32.gmra.mxu0 %v7081
        %v7083 = vpop.f32.mrf.mxu0
        %v7084 = vadd.f32 %v6957, %v7083
        %v7085 = vpop.f32.mrf.mxu0
        %7086 = vmatprep.mubr.f32.mxu0 0.0
        %v7087 = vand.u32 %v6422, 4294901760
        %7088 = vmatmul.mubr.f32.gmra.mxu0 %v7087
        %v7089 = vpop.f32.mrf.mxu0
        %v7090 = vadd.f32 %v6965, %v7089
        %v7091 = vpop.f32.mrf.mxu0
        %7092 = vdwg.mxu0
        %7093 = vmatprep.subr.mxu0 0.0
        %7094 = vmatpush1.msra.mxu0 0.0
        %7095 = vmatprep.subr.mxu0 0.0
        %7096 = vmatpush1.msra.mxu0 0.0
        %7097 = vmatprep.subr.mxu0 0.0
        %7098 = vmatpush1.msra.mxu0 0.0
        %7099 = vmatprep.subr.mxu0 0.0
        %7100 = vmatpush1.msra.mxu0 0.0
        %7101 = vmatprep.subr.mxu0 0.0
        %7102 = vmatpush1.msra.mxu0 0.0
        %7103 = vmatprep.subr.mxu0 0.0
        %7104 = vmatpush1.msra.mxu0 0.0
        %7105 = vmatprep.subr.mxu0 0.0
        %7106 = vmatpush1.msra.mxu0 0.0
        %7107 = vmatprep.subr.mxu0 0.0
        %7108 = vmatpush1.msra.mxu0 0.0
        %7109 = vmatprep.subr.mxu0 0.0
        %7110 = vmatpush1.msra.mxu0 0.0
        %7111 = vmatprep.subr.mxu0 0.0
        %7112 = vmatpush1.msra.mxu0 0.0
        %7113 = vmatprep.subr.mxu0 0.0
        %7114 = vmatpush1.msra.mxu0 0.0
        %7115 = vmatprep.subr.mxu0 0.0
        %7116 = vmatpush1.msra.mxu0 0.0
        %7117 = vmatprep.subr.mxu0 0.0
        %v7118 = vand.u32 %v6395, 4294901760
        %7119 = vmatpush1.msra.mxu0 %v7118
        %7120 = vmatprep.subr.mxu0 0.0
        %v7121 = vand.u32 %v6393, 4294901760
        %7122 = vmatpush1.msra.mxu0 %v7121
        %7123 = vmatprep.subr.mxu0 0.0
        %v7124 = vand.u32 %v6391, 4294901760
        %7125 = vmatpush1.msra.mxu0 %v7124
        %7126 = vmatprep.subr.mxu0 0.0
        %v7127 = vand.u32 %v6389, 4294901760
        %7128 = vmatpush1.msra.mxu0 %v7127
        %7129 = vmatprep.subr.mxu0 0.0
        %7130 = vmatpush2.msra.mxu0 0.0
        %7131 = vmatprep.subr.mxu0 0.0
        %7132 = vmatpush2.msra.mxu0 0.0
        %7133 = vmatprep.subr.mxu0 0.0
        %7134 = vmatpush2.msra.mxu0 0.0
        %7135 = vmatprep.subr.mxu0 0.0
        %7136 = vmatpush2.msra.mxu0 0.0
        %7137 = vmatprep.subr.mxu0 0.0
        %7138 = vmatpush2.msra.mxu0 0.0
        %7139 = vmatprep.subr.mxu0 0.0
        %7140 = vmatpush2.msra.mxu0 0.0
        %7141 = vmatprep.subr.mxu0 0.0
        %7142 = vmatpush2.msra.mxu0 0.0
        %7143 = vmatprep.subr.mxu0 0.0
        %7144 = vmatpush2.msra.mxu0 0.0
        %7145 = vmatprep.subr.mxu0 0.0
        %7146 = vmatpush2.msra.mxu0 0.0
        %7147 = vmatprep.subr.mxu0 0.0
        %7148 = vmatpush2.msra.mxu0 0.0
        %7149 = vmatprep.subr.mxu0 0.0
        %7150 = vmatpush2.msra.mxu0 0.0
        %7151 = vmatprep.subr.mxu0 0.0
        %7152 = vmatpush2.msra.mxu0 0.0
        %7153 = vmatprep.subr.mxu0 0.0
        %7154 = vmatpush2.msra.mxu0 0.0
        %7155 = vmatprep.subr.mxu0 0.0
        %7156 = vmatpush2.msra.mxu0 0.0
        %7157 = vmatprep.subr.mxu0 0.0
        %7158 = vmatpush2.msra.mxu0 0.0
        %7159 = vmatprep.subr.mxu0 0.0
        %7160 = vmatpush2.msra.mxu0 0.0
        %7161 = vmatprep.mubr.f32.mxu0 0.0
        %v7162 = vand.u32 %v6401, 4294901760
        %7163 = vmatmul.mubr.f32.gmra.mxu0 %v7162
        %v7164 = vpop.f32.mrf.mxu0
        %v7165 = vadd.f32 %v7048, %v7164
        %v7166 = vpop.f32.mrf.mxu0
        %7167 = vmatprep.mubr.f32.mxu0 0.0
        %v7168 = vand.u32 %v6404, 4294901760
        %7169 = vmatmul.mubr.f32.gmra.mxu0 %v7168
        %v7170 = vpop.f32.mrf.mxu0
        %v7171 = vadd.f32 %v7054, %v7170
        %v7172 = vpop.f32.mrf.mxu0
        %7173 = vmatprep.mubr.f32.mxu0 0.0
        %v7174 = vand.u32 %v6407, 4294901760
        %7175 = vmatmul.mubr.f32.gmra.mxu0 %v7174
        %v7176 = vpop.f32.mrf.mxu0
        %v7177 = vadd.f32 %v7060, %v7176
        %v7178 = vpop.f32.mrf.mxu0
        %7179 = vmatprep.mubr.f32.mxu0 0.0
        %v7180 = vand.u32 %v6410, 4294901760
        %7181 = vmatmul.mubr.f32.gmra.mxu0 %v7180
        %v7182 = vpop.f32.mrf.mxu0
        %v7183 = vadd.f32 %v7066, %v7182
        %v7184 = vpop.f32.mrf.mxu0
        %7185 = vmatprep.mubr.f32.mxu0 0.0
        %v7186 = vand.u32 %v6413, 4294901760
        %7187 = vmatmul.mubr.f32.gmra.mxu0 %v7186
        %v7188 = vpop.f32.mrf.mxu0
        %v7189 = vadd.f32 %v7072, %v7188
        %v7190 = vpop.f32.mrf.mxu0
        %7191 = vmatprep.mubr.f32.mxu0 0.0
        %v7192 = vand.u32 %v6416, 4294901760
        %7193 = vmatmul.mubr.f32.gmra.mxu0 %v7192
        %v7194 = vpop.f32.mrf.mxu0
        %v7195 = vadd.f32 %v7078, %v7194
        %v7196 = vpop.f32.mrf.mxu0
        %7197 = vmatprep.mubr.f32.mxu0 0.0
        %v7198 = vand.u32 %v6419, 4294901760
        %7199 = vmatmul.mubr.f32.gmra.mxu0 %v7198
        %v7200 = vpop.f32.mrf.mxu0
        %v7201 = vadd.f32 %v7084, %v7200
        %v7202 = vpop.f32.mrf.mxu0
        %7203 = vmatprep.mubr.f32.mxu0 0.0
        %v7204 = vand.u32 %v6422, 4294901760
        %7205 = vmatmul.mubr.f32.gmra.mxu0 %v7204
        %v7206 = vpop.f32.mrf.mxu0
        %v7207 = vadd.f32 %v7090, %v7206
        %v7208 = vpop.f32.mrf.mxu0
        %7209 = vdwg.mxu0
        %7218 = vrot.lane.b32.xlu0 %v7165, 64
        %v7219 = vpop.permute.xlu0 %7218
        %7220 = vrot.lane.b32.xlu0 %v7171, 64
        %v7221 = vpop.permute.xlu0 %7220
        %7222 = vrot.lane.b32.xlu0 %v7177, 64
        %v7223 = vpop.permute.xlu0 %7222
        %7224 = vrot.lane.b32.xlu0 %v7183, 64
        %v7225 = vpop.permute.xlu0 %7224
        %7226 = vrot.lane.b32.xlu0 %v7189, 64
        %v7227 = vpop.permute.xlu0 %7226
        %7228 = vrot.lane.b32.xlu0 %v7195, 64
        %v7229 = vpop.permute.xlu0 %7228
        %7230 = vrot.lane.b32.xlu0 %v7201, 64
        %v7231 = vpop.permute.xlu0 %7230
        %7232 = vrot.lane.b32.xlu0 %v7207, 64
        %v7233 = vpop.permute.xlu0 %7232
        %v7242 = vadd.f32 %v6344, %v7219
        %v7243 = vadd.f32 %v6345, %v7221
        %v7244 = vadd.f32 %v6346, %v7223
        %v7245 = vadd.f32 %v6347, %v7225
        %v7246 = vadd.f32 %v6348, %v7227
        %v7247 = vadd.f32 %v6349, %v7229
        %v7248 = vadd.f32 %v6350, %v7231
        %v7249 = vadd.f32 %v6351, %v7233
        %7258 = vrot.lane.b32.xlu0 %v7242, 64
        %v7259 = vpop.permute.xlu0 %7258
        %7260 = vrot.lane.b32.xlu0 %v7243, 64
        %v7261 = vpop.permute.xlu0 %7260
        %7262 = vrot.lane.b32.xlu0 %v7244, 64
        %v7263 = vpop.permute.xlu0 %7262
        %7264 = vrot.lane.b32.xlu0 %v7245, 64
        %v7265 = vpop.permute.xlu0 %7264
        %7266 = vrot.lane.b32.xlu0 %v7246, 64
        %v7267 = vpop.permute.xlu0 %7266
        %7268 = vrot.lane.b32.xlu0 %v7247, 64
        %v7269 = vpop.permute.xlu0 %7268
        %7270 = vrot.lane.b32.xlu0 %v7248, 64
        %v7271 = vpop.permute.xlu0 %7270
        %7272 = vrot.lane.b32.xlu0 %v7249, 64
        %v7273 = vpop.permute.xlu0 %7272
        %7282 = vst.msk [vmem:[%s4252] sm:$0xff] %vm1395, %v7259
        %7283 = vst.msk [vmem:[%s4252 + $0x8] sm:$0xff] %vm1395, %v7261
        %7284 = vst.msk [vmem:[%s4252 + $0x10] sm:$0xff] %vm1395, %v7263
        %7285 = vst.msk [vmem:[%s4252 + $0x18] sm:$0xff] %vm1395, %v7265
        %7286 = vst.msk [vmem:[%s4252 + $0x20] sm:$0xff] %vm1395, %v7267
        %7287 = vst.msk [vmem:[%s4252 + $0x28] sm:$0xff] %vm1395, %v7269
        %7288 = vst.msk [vmem:[%s4252 + $0x30] sm:$0xff] %vm1395, %v7271
        %7289 = vst.msk [vmem:[%s4252 + $0x38] sm:$0xff] %vm1395, %v7273
        %p7290 = scmp.eq.s32.totalorder %s24, 3
        // Predicated region
        $region201: #{wkv6.1} parent=179 // pred_check
          %p7291 = pneg %p7290
        $region202: #{wkv6.1} parent=179 // pred_check_branch
          %7293 = sbr.rel (%p7291) target = $region204
        $region203: #{wkv6.1} parent=179 // pred_region
          %v7294 = vld [vmem:[#allocation2] sm:$0xff]
          %v7295 = vld [vmem:[#allocation2 + $0x8] sm:$0xff]
          %v7296 = vld [vmem:[#allocation2 + $0x10] sm:$0xff]
          %v7297 = vld [vmem:[#allocation2 + $0x18] sm:$0xff]
          %v7298 = vld [vmem:[#allocation2 + $0x20] sm:$0xff]
          %v7299 = vld [vmem:[#allocation2 + $0x28] sm:$0xff]
          %v7300 = vld [vmem:[#allocation2 + $0x30] sm:$0xff]
          %v7301 = vld [vmem:[#allocation2 + $0x38] sm:$0xff]
          %v7302 = vld [vmem:[#allocation2 + $0x40] sm:$0xff]
          %v7303 = vld [vmem:[#allocation2 + $0x48] sm:$0xff]
          %v7304 = vld [vmem:[#allocation2 + $0x50] sm:$0xff]
          %v7305 = vld [vmem:[#allocation2 + $0x58] sm:$0xff]
          %v7306 = vld [vmem:[#allocation2 + $0x60] sm:$0xff]
          %v7307 = vld [vmem:[#allocation2 + $0x68] sm:$0xff]
          %v7308 = vld [vmem:[#allocation2 + $0x70] sm:$0xff]
          %v7309 = vld [vmem:[#allocation2 + $0x78] sm:$0xff]
          %7310 = vst.msk [vmem:[%s606] sm:$0xff] %vm1395, %v7294
          %7311 = vst.msk [vmem:[%s606 + $0x8] sm:$0xff] %vm1395, %v7295
          %7312 = vst.msk [vmem:[%s606 + $0x10] sm:$0xff] %vm1395, %v7296
          %7313 = vst.msk [vmem:[%s606 + $0x18] sm:$0xff] %vm1395, %v7297
          %7314 = vst.msk [vmem:[%s606 + $0x20] sm:$0xff] %vm1395, %v7298
          %7315 = vst.msk [vmem:[%s606 + $0x28] sm:$0xff] %vm1395, %v7299
          %7316 = vst.msk [vmem:[%s606 + $0x30] sm:$0xff] %vm1395, %v7300
          %7317 = vst.msk [vmem:[%s606 + $0x38] sm:$0xff] %vm1395, %v7301
          %7318 = vst.msk [vmem:[%s606 + $0x40] sm:$0xff] %vm1395, %v7302
          %7319 = vst.msk [vmem:[%s606 + $0x48] sm:$0xff] %vm1395, %v7303
          %7320 = vst.msk [vmem:[%s606 + $0x50] sm:$0xff] %vm1395, %v7304
          %7321 = vst.msk [vmem:[%s606 + $0x58] sm:$0xff] %vm1395, %v7305
          %7322 = vst.msk [vmem:[%s606 + $0x60] sm:$0xff] %vm1395, %v7306
          %7323 = vst.msk [vmem:[%s606 + $0x68] sm:$0xff] %vm1395, %v7307
          %7324 = vst.msk [vmem:[%s606 + $0x70] sm:$0xff] %vm1395, %v7308
          %7325 = vst.msk [vmem:[%s606 + $0x78] sm:$0xff] %vm1395, %v7309
        $region204: #{wkv6.1} parent=179 // pred_fallthru
          _
        %s7326 = sand.u32 %s205, 1
        %s7327 = sand.u32 %s205, 1
        %s7328 = smul.addr %s7327, 32
        %s7329 = scalar_lea.vmem [#allocation7], %s7328
        %p7330 = scmp.lt.s32.totalorder %s23, 1
        %s7331 = scalar_select %p7330, %s23, 1
        %s7332 = smul.addr %s7331, 16
        %s7333 = smul.addr %s7332, 8
        %s7334 = scalar_lea.vmem %s7, %s7333
        // Predicated region
        $region205: #{wkv6.1} parent=179 // pred_check
          %p7335 = pneg %p215
        $region206: #{wkv6.1} parent=179 // pred_check_branch
          %7337 = sbr.rel (%p7335) target = $region208
        $region207: #{wkv6.1} parent=179 // pred_region
          %s7338 = smul.u32 4, %s24
          %s7339 = smul.addr %s7338, 2
          %s7340 = sadd.s32 %s23, %s7339
          %s7341 = smul.addr %s7340, 8
          %s7342 = scalar_lea.vmem %s6, %s7341
          // Predicated region
          $region209: #{wkv6.1} parent=207 // pred_check
            _
          $region210: #{wkv6.1} parent=207 // pred_check_branch
            %7344 = sbr.rel (0) target = $region212
          $region211: #{wkv6.1} parent=207 // pred_region
            // Predicated region
            $region213: #{wkv6.1} parent=211 // pred_check
              _
            $region214: #{wkv6.1} parent=211 // pred_check_branch
              %7346 = sbr.rel (0) target = $region216
            $region215: #{wkv6.1} parent=211 // pred_region
              // Predicated region
              $region228: #{wkv6.1} parent=215 // pred_check
                _
              $region229: #{wkv6.1} parent=215 // pred_check_branch
                %7368 = sbr.rel (0) target = $region231
              $region230: #{wkv6.1} parent=215 // pred_region
                loop: start=0, step=1, limit=1
                $region232: #{wkv6.1} parent=230 // loop_pre_header
                  _
                $region233: #{wkv6.1} parent=230 // loop_header
                  %s7370 = sphi 0, %s7374
                  %p7371 = scmp.ge.s32.totalorder %s7370, 1
                  %s7375 = sphi %s7329, %s7329
                  %s7376 = sphi %s7342, %s7342
                $region234: #{wkv6.1} parent=230 // loop_header_branch
                  %7373 = sbr.rel (%p7371) target = $region238
                $region235: #{wkv6.1} parent=230 // loop_body
                  %v7377 = vld [vmem:[%s7375] sm:$0xff]
                  %7378 = vst [vmem:[%s7376] sm:$0xff] %v7377
                  %v7379 = vld [vmem:[%s7375 + $0x8] sm:$0xff]
                  %7380 = vst [vmem:[%s7376 + $0x10] sm:$0xff] %v7379
                  %v7381 = vld [vmem:[%s7375 + $0x10] sm:$0xff]
                  %7382 = vst [vmem:[%s7376 + $0x20] sm:$0xff] %v7381
                  %v7383 = vld [vmem:[%s7375 + $0x18] sm:$0xff]
                  %7384 = vst [vmem:[%s7376 + $0x30] sm:$0xff] %v7383
                $region236: #{wkv6.1} parent=230 // loop_footer
                  %s7374 = sadd.s32 1, %s7370
                $region237: #{wkv6.1} parent=230 // loop_footer_branch
                  %7369 = sbr.rel target = $region233
                $region238: #{wkv6.1} parent=230 // loop_exit
                  _
              $region231: #{wkv6.1} parent=215 // pred_fallthru
                _
              // Predicated region
              $region239: #{wkv6.1} parent=215 // pred_check
                _
              $region240: #{wkv6.1} parent=215 // pred_check_branch
                %7386 = sbr.rel target = $region242
              $region241: #{wkv6.1} parent=215 // pred_region
                _
              $region242: #{wkv6.1} parent=215 // pred_fallthru
                _
            $region216: #{wkv6.1} parent=211 // pred_fallthru
              _
            // Predicated region
            $region217: #{wkv6.1} parent=211 // pred_check
              _
            $region218: #{wkv6.1} parent=211 // pred_check_branch
              %7348 = sbr.rel target = $region220
            $region219: #{wkv6.1} parent=211 // pred_region
              %s7350 = ssub.s32 256, 1
              loop: start=0, step=1, limit=1
              $region221: #{wkv6.1} parent=219 // loop_pre_header
                _
              $region222: #{wkv6.1} parent=219 // loop_header
                %s7352 = sphi 0, %s7356
                %p7353 = scmp.ge.s32.totalorder %s7352, 1
                %s7357 = sphi %s7329, %s7329
                %s7358 = sphi %s7342, %s7342
              $region223: #{wkv6.1} parent=219 // loop_header_branch
                %7355 = sbr.rel (%p7353) target = $region227
              $region224: #{wkv6.1} parent=219 // loop_body
                %v7359 = vld [vmem:[%s7357] sm:%s7350]
                %7360 = vst [vmem:[%s7358] sm:%s7350] %v7359
                %v7361 = vld [vmem:[%s7357 + $0x8] sm:%s7350]
                %7362 = vst [vmem:[%s7358 + $0x10] sm:%s7350] %v7361
                %v7363 = vld [vmem:[%s7357 + $0x10] sm:%s7350]
                %7364 = vst [vmem:[%s7358 + $0x20] sm:%s7350] %v7363
                %v7365 = vld [vmem:[%s7357 + $0x18] sm:%s7350]
                %7366 = vst [vmem:[%s7358 + $0x30] sm:%s7350] %v7365
              $region225: #{wkv6.1} parent=219 // loop_footer
                %s7356 = sadd.s32 1, %s7352
              $region226: #{wkv6.1} parent=219 // loop_footer_branch
                %7351 = sbr.rel target = $region222
              $region227: #{wkv6.1} parent=219 // loop_exit
                _
            $region220: #{wkv6.1} parent=211 // pred_fallthru
              _
          $region212: #{wkv6.1} parent=207 // pred_fallthru
            _
          %7387 = vnop
        $region208: #{wkv6.1} parent=179 // pred_fallthru
          _
        // Predicated region
        $region243: #{wkv6.1} parent=179 // pred_check
          %p7388 = pneg %p241
        $region244: #{wkv6.1} parent=179 // pred_check_branch
          %7390 = sbr.rel (%p7388) target = $region246
        $region245: #{wkv6.1} parent=179 // pred_region
          _
        $region246: #{wkv6.1} parent=179 // pred_fallthru
          _
      $region180: #{wkv6.1} parent=5 // pred_fallthru
        _
      %p7391 = scmp.le.s32.totalorder 2, %s14
      // Predicated region
      $region247: #{wkv6.1} parent=5 // pred_check
        %p7392 = pneg %p7391
      $region248: #{wkv6.1} parent=5 // pred_check_branch
        %7394 = sbr.rel (%p7392) target = $region250
      $region249: #{wkv6.1} parent=5 // pred_region
        %s7395 = ssub.s32 %s14, 2
        // Predicated region
        $region251: #{wkv6.1} parent=249 // pred_check
          %p7396 = pneg %p221
        $region252: #{wkv6.1} parent=249 // pred_check_branch
          %7398 = sbr.rel (%p7396) target = $region254
        $region253: #{wkv6.1} parent=249 // pred_region
          %s7399 = sand.u32 %s206, 1
          %s7400 = sand.u32 %s206, 1
          %s7401 = smul.addr %s7400, 32
          %s7402 = scalar_lea.vmem [#allocation7], %s7401
        $region254: #{wkv6.1} parent=249 // pred_fallthru
          _
        // Predicated region
        $region255: #{wkv6.1} parent=249 // pred_check
          %p7403 = pneg %p247
        $region256: #{wkv6.1} parent=249 // pred_check_branch
          %7405 = sbr.rel (%p7403) target = $region258
        $region257: #{wkv6.1} parent=249 // pred_region
          %p7406 = scmp.lt.s32.totalorder %s25, 1
          %s7407 = scalar_select %p7406, %s25, 1
          %s7408 = smul.addr %s7407, 16
          %s7409 = smul.addr %s7408, 8
          %s7410 = scalar_lea.vmem %s7, %s7409
        $region258: #{wkv6.1} parent=249 // pred_fallthru
          _
      $region250: #{wkv6.1} parent=5 // pred_fallthru
        _
    $region6: #{wkv6.1} parent=1 // loop_footer
      %s18 = sadd.s32 1, %s14
    $region7: #{wkv6.1} parent=1 // loop_footer_branch
      %13 = sbr.rel target = $region3
    $region8: #{wkv6.1} parent=1 // loop_exit
      _

</llo_original>
